<compile_context>
chip_gen: v5e
topology: v5e:2x2
jax: 0.10.0
libtpu: 0.0.40
codegen_flags: <defaults>
</compile_context>

<pallas_src>
import math

import jax
import jax.numpy as jnp
from jax.experimental import pallas as pl
from jax.experimental.pallas import tpu as pltpu

EPS = 1e-5
LANE = 128
_VMEM_LIMIT = 32 * 1024 * 1024  # above v5e's 16 MiB scoped default, safe on v7x (64 MiB)


# ----------------------------------------------------------------------------
# small helpers
# ----------------------------------------------------------------------------
def _rup(x, m):
    return -(-x // m) * m


def _pad_last(a, cp):
    c = a.shape[-1]
    if cp == c:
        return a
    pad = [(0, 0)] * (a.ndim - 1) + [(0, cp - c)]
    return jnp.pad(a, pad)


def _prep_w3x3(w, cin_p, cout_p):
    """(3,3,Cin,Cout) f32 -> (9, Cin_p, Cout_p) bf16, zero-padded channels."""
    kh, kw, cin, cout = w.shape
    wp = jnp.pad(w, ((0, 0), (0, 0), (0, cin_p - cin), (0, cout_p - cout)))
    return wp.reshape(kh * kw, cin_p, cout_p).astype(jnp.bfloat16)


def _phase_decompose(x, stride):
    """1-padded stride-phase re-layout of an NHWC tensor.

    Returns (N*s*s, Hq, Wq, C): row n*s*s + py*s + px holds x_pad[n, py::s, px::s, :],
    where x_pad is x zero-padded by 1 pixel (plus bottom/right fill so the padded
    extent divides by s).  Pure relayout -- no data inflation (unlike im2col).
    """
    N, H, W, C = x.shape
    s = stride
    Hp, Wp = H + 2, W + 2
    Hq, Wq = -(-Hp // s), -(-Wp // s)
    xp = jnp.pad(x, ((0, 0), (1, 1 + Hq * s - Hp), (1, 1 + Wq * s - Wp), (0, 0)))
    xph = xp.reshape(N, Hq, s, Wq, s, C).transpose(0, 2, 4, 1, 3, 5)
    return xph.reshape(N * s * s, Hq, Wq, C), Hq, Wq


def _bn_scale_shift(stats, count, gamma, beta):
    """Fold batch statistics (sum, sumsq) into per-channel scale/shift (tiny XLA glue)."""
    mean = stats[0:1, :] / count
    var = jnp.maximum(stats[1:2, :] / count - mean * mean, 0.0)  # biased var (PyTorch)
    scale = gamma * jax.lax.rsqrt(var + EPS)
    return scale, beta - mean * scale


# ----------------------------------------------------------------------------
# Pallas kernels
# ----------------------------------------------------------------------------
def _sum_sumsq(acc):
    # single pass over acc: per-channel sum and sum-of-squares, stacked -> (2, C)
    return jnp.concatenate(
        [jnp.sum(acc, axis=0, keepdims=True),
         jnp.sum(acc * acc, axis=0, keepdims=True)], axis=0)


def _make_stage1_kernel(stride, Ho, Wo, has_proj):
    """conv1 (implicit GEMM) + BN1 stats  [+ 1x1 projection shortcut + its BN stats]."""
    s = stride

    def body(x_ref, w1_ref, ws_ref, y1_ref, st1_ref, ys_ref, sts_ref):
        n = pl.program_id(0)
        cin = x_ref.shape[-1]
        cout = w1_ref.shape[-1]

        # conv1: 9 shifted bf16 matmuls, f32 accumulation (MXU).
        acc = jnp.zeros((Ho * Wo, cout), jnp.float32)
        for t in range(9):
            dy, dx = t // 3, t % 3
            p = (dy % s) * s + (dx % s)
            patch = x_ref[p, dy // s:dy // s + Ho, dx // s:dx // s + Wo, :]
            acc = acc + jnp.dot(patch.reshape(Ho * Wo, cin), w1_ref[t],
                                preferred_element_type=jnp.float32)
        y1_ref[...] = acc.reshape(1, Ho, Wo, cout)

        @pl.when(n == 0)
        def _():
            st1_ref[...] = jnp.zeros_like(st1_ref)
        st1_ref[...] += _sum_sumsq(acc)

        if has_proj:
            # 1x1 stride-s projection shortcut computed on the same resident input tile.
            p = (1 % s) * s + (1 % s)
            o = 1 // s
            xs = x_ref[p, o:o + Ho, o:o + Wo, :]
            acs = jnp.dot(xs.reshape(Ho * Wo, cin), ws_ref[...],
                          preferred_element_type=jnp.float32)
            ys_ref[...] = acs.reshape(1, Ho, Wo, cout)

            @pl.when(n == 0)
            def _():
                sts_ref[...] = jnp.zeros_like(sts_ref)
            sts_ref[...] += _sum_sumsq(acs)

    if has_proj:
        return body

    def body_noproj(x_ref, w1_ref, y1_ref, st1_ref):
        body(x_ref, w1_ref, None, y1_ref, st1_ref, None, None)

    return body_noproj


def _make_stage2_kernel(Ho, Wo):
    """bn1-apply + ReLU (fused) -> conv2 (implicit GEMM) + BN2 stats."""

    def body(y1_ref, w2_ref, sc_ref, sh_ref, y2_ref, st2_ref, pad_ref):
        n = pl.program_id(0)
        cout = w2_ref.shape[-1]

        # normalize + ReLU in f32, then place into the (Ho+2, Wo+2) halo scratch
        act = jnp.maximum(y1_ref[0] * sc_ref[...] + sh_ref[...], 0.0)

        @pl.when(n == 0)
        def _():
            pad_ref[...] = jnp.zeros_like(pad_ref)  # halo border stays zero afterwards
        pad_ref[1:Ho + 1, 1:Wo + 1, :] = act

        acc = jnp.zeros((Ho * Wo, cout), jnp.float32)
        for t in range(9):
            dy, dx = t // 3, t % 3
            patch = pad_ref[dy:dy + Ho, dx:dx + Wo, :].astype(jnp.bfloat16)
            acc = acc + jnp.dot(patch.reshape(Ho * Wo, cout), w2_ref[t],
                                preferred_element_type=jnp.float32)
        y2_ref[...] = acc.reshape(1, Ho, Wo, cout)

        @pl.when(n == 0)
        def _():
            st2_ref[...] = jnp.zeros_like(st2_ref)
        st2_ref[...] += _sum_sumsq(acc)

    return body


def _make_stage3_kernel(has_proj):
    """bn2-apply + shortcut(-bn)-apply + residual add + ReLU."""
    if has_proj:
        def body(y2_ref, ys_ref, sc2_ref, sh2_ref, scs_ref, shs_ref, o_ref):
            res = ys_ref[0] * scs_ref[...] + shs_ref[...]
            o_ref[0] = jnp.maximum(y2_ref[0] * sc2_ref[...] + sh2_ref[...] + res, 0.0)
        return body

    def body(y2_ref, x_ref, sc2_ref, sh2_ref, o_ref):
        o_ref[0] = jnp.maximum(y2_ref[0] * sc2_ref[...] + sh2_ref[...] + x_ref[0], 0.0)
    return body


# ----------------------------------------------------------------------------
# pallas_call wrappers
# ----------------------------------------------------------------------------
def _cparams(sem):
    return pltpu.CompilerParams(dimension_semantics=(sem,),
                                vmem_limit_bytes=_VMEM_LIMIT)


def _stage1(xph, w1, ws, *, N, stride, Ho, Wo):
    ss, Hq, Wq, Cinp = xph.shape[0] // N, xph.shape[1], xph.shape[2], xph.shape[3]
    Coutp = w1.shape[-1]
    has_proj = ws is not None

    in_specs = [pl.BlockSpec((ss, Hq, Wq, Cinp), lambda n: (n, 0, 0, 0)),
                pl.BlockSpec((9, Cinp, Coutp), lambda n: (0, 0, 0))]
    args = [xph, w1]
    out_shape = [jax.ShapeDtypeStruct((N, Ho, Wo, Coutp), jnp.float32),
                 jax.ShapeDtypeStruct((2, Coutp), jnp.float32)]
    out_specs = [pl.BlockSpec((1, Ho, Wo, Coutp), lambda n: (n, 0, 0, 0)),
                 pl.BlockSpec((2, Coutp), lambda n: (0, 0))]
    if has_proj:
        in_specs.append(pl.BlockSpec((Cinp, Coutp), lambda n: (0, 0)))
        args.append(ws)
        out_shape += [jax.ShapeDtypeStruct((N, Ho, Wo, Coutp), jnp.float32),
                      jax.ShapeDtypeStruct((2, Coutp), jnp.float32)]
        out_specs += [pl.BlockSpec((1, Ho, Wo, Coutp), lambda n: (n, 0, 0, 0)),
                      pl.BlockSpec((2, Coutp), lambda n: (0, 0))]

    return pl.pallas_call(
        _make_stage1_kernel(stride, Ho, Wo, has_proj),
        grid=(N,),
        in_specs=in_specs,
        out_shape=tuple(out_shape),
        out_specs=tuple(out_specs),
        compiler_params=_cparams("arbitrary"),  # BN stats accumulate across the grid
    )(*args)


def _stage2(y1, w2, scale1, shift1, *, Ho, Wo):
    N = y1.shape[0]
    Coutp = w2.shape[-1]
    return pl.pallas_call(
        _make_stage2_kernel(Ho, Wo),
        grid=(N,),
        in_specs=[pl.BlockSpec((1, Ho, Wo, Coutp), lambda n: (n, 0, 0, 0)),
                  pl.BlockSpec((9, Coutp, Coutp), lambda n: (0, 0, 0)),
                  pl.BlockSpec((1, Coutp), lambda n: (0, 0)),
                  pl.BlockSpec((1, Coutp), lambda n: (0, 0))],
        out_shape=(jax.ShapeDtypeStruct((N, Ho, Wo, Coutp), jnp.float32),
                   jax.ShapeDtypeStruct((2, Coutp), jnp.float32)),
        out_specs=(pl.BlockSpec((1, Ho, Wo, Coutp), lambda n: (n, 0, 0, 0)),
                   pl.BlockSpec((2, Coutp), lambda n: (0, 0))),
        scratch_shapes=[pltpu.VMEM((Ho + 2, Wo + 2, Coutp), jnp.float32)],
        compiler_params=_cparams("arbitrary"),
    )(y1, w2, scale1, shift1)


def _stage3(y2, shortcut, scale2, shift2, scale_s=None, shift_s=None, *, Ho, Wo):
    N = y2.shape[0]
    Coutp = y2.shape[-1]
    has_proj = scale_s is not None
    in_specs = [pl.BlockSpec((1, Ho, Wo, Coutp), lambda n: (n, 0, 0, 0)),
                pl.BlockSpec((1, Ho, Wo, Coutp), lambda n: (n, 0, 0, 0)),
                pl.BlockSpec((1, Coutp), lambda n: (0, 0)),
                pl.BlockSpec((1, Coutp), lambda n: (0, 0))]
    args = [y2, shortcut, scale2, shift2]
    if has_proj:
        in_specs += [pl.BlockSpec((1, Coutp), lambda n: (0, 0)),
                     pl.BlockSpec((1, Coutp), lambda n: (0, 0))]
        args += [scale_s, shift_s]
    return pl.pallas_call(
        _make_stage3_kernel(has_proj),
        grid=(N,),
        in_specs=in_specs,
        out_shape=jax.ShapeDtypeStruct((N, Ho, Wo, Coutp), jnp.float32),
        out_specs=pl.BlockSpec((1, Ho, Wo, Coutp), lambda n: (n, 0, 0, 0)),
        compiler_params=_cparams("parallel"),  # no cross-step accumulation here
    )(*args)


# ----------------------------------------------------------------------------
# BasicBlock (deterministic synthetic parameters)
# ----------------------------------------------------------------------------
class BasicBlockPallas:
    expansion = 1

    def __init__(self, in_planes, planes, stride=1, *, key):
        k1, k2, k3 = jax.random.split(key, 3)
        self.in_planes, self.planes, self.stride = in_planes, planes, stride

        # conv weights stored as HWIO (3, 3, Cin, Cout); no bias (matches conv3x3)
        self.w1 = jax.random.normal(k1, (3, 3, in_planes, planes), jnp.float32) \
            * math.sqrt(2.0 / (9 * in_planes))
        self.g1 = jnp.ones((1, planes), jnp.float32)
        self.b1 = jnp.zeros((1, planes), jnp.float32)

        self.w2 = jax.random.normal(k2, (3, 3, planes, planes), jnp.float32) \
            * math.sqrt(2.0 / (9 * planes))
        self.g2 = jnp.ones((1, planes), jnp.float32)
        self.b2 = jnp.zeros((1, planes), jnp.float32)

        self.has_shortcut = (stride != 1) or (in_planes != self.expansion * planes)
        if self.has_shortcut:
            self.ws = jax.random.normal(k3, (in_planes, planes), jnp.float32) \
                * math.sqrt(2.0 / in_planes)
            self.gs = jnp.ones((1, planes), jnp.float32)
            self.bs = jnp.zeros((1, planes), jnp.float32)

        # lane-padded (multiple-of-128 channels) bf16 operands for the MXU
        cin_p, cout_p = _rup(in_planes, LANE), _rup(planes, LANE)
        self.cin_p, self.cout_p = cin_p, cout_p
        self.w1p = _prep_w3x3(self.w1, cin_p, cout_p)
        self.w2p = _prep_w3x3(self.w2, cout_p, cout_p)
        self.g1p, self.b1p = _pad_last(self.g1, cout_p), _pad_last(self.b1, cout_p)
        self.g2p, self.b2p = _pad_last(self.g2, cout_p), _pad_last(self.b2, cout_p)
        if self.has_shortcut:
            self.wsp = jnp.pad(self.ws, ((0, cin_p - in_planes),
                                         (0, cout_p - planes))).astype(jnp.bfloat16)
            self.gsp, self.bsp = _pad_last(self.gs, cout_p), _pad_last(self.bs, cout_p)

        self._fwd = jax.jit(self._forward)

    def _forward(self, x_nchw):
        x = jnp.transpose(x_nchw, (0, 2, 3, 1)).astype(jnp.float32)  # NCHW -> NHWC
        N, H, W, _ = x.shape
        s = self.stride
        Ho, Wo = (H - 1) // s + 1, (W - 1) // s + 1
        M = N * Ho * Wo                                             # BN element count / channel

        x_cp = _pad_last(x, self.cin_p)                             # f32, lane-padded
        xph, _, _ = _phase_decompose(x_cp.astype(jnp.bfloat16), s)  # bf16 matmul operand

        # stage 1: conv1 (+ projection-shortcut conv) + BN statistics
        if self.has_shortcut:
            y1, st1, ys, sts = _stage1(xph, self.w1p, self.wsp,
                                       N=N, stride=s, Ho=Ho, Wo=Wo)
        else:
            y1, st1 = _stage1(xph, self.w1p, None, N=N, stride=s, Ho=Ho, Wo=Wo)
        sc1, sh1 = _bn_scale_shift(st1, M, self.g1p, self.b1p)

        # stage 2: bn1-apply + ReLU + conv2 + BN statistics
        y2, st2 = _stage2(y1, self.w2p, sc1, sh1, Ho=Ho, Wo=Wo)
        sc2, sh2 = _bn_scale_shift(st2, M, self.g2p, self.b2p)

        # stage 3: bn2-apply + shortcut + ReLU
        if self.has_shortcut:
            scs, shs = _bn_scale_shift(sts, M, self.gsp, self.bsp)
            out = _stage3(y2, ys, sc2, sh2, scs, shs, Ho=Ho, Wo=Wo)
        else:
            out = _stage3(y2, x_cp, sc2, sh2, Ho=Ho, Wo=Wo)

        out = out[:, :, :, :self.planes]
        return jnp.transpose(out, (0, 3, 1, 2))                     # NHWC -> NCHW

    def __call__(self, x_nchw):
        return self._fwd(x_nchw)


# ----------------------------------------------------------------------------
# Pure-JAX reference (f32, for a sanity check; no torch involved)
# ----------------------------------------------------------------------------
def _ref_bn(y, g, b):
    mean = jnp.mean(y, axis=(0, 1, 2), keepdims=True)
    var = jnp.mean(jnp.square(y - mean), axis=(0, 1, 2), keepdims=True)
    return g.reshape(1, 1, 1, -1) * (y - mean) * jax.lax.rsqrt(var + EPS) + b.reshape(1, 1, 1, -1)


def _ref_conv(x, w, stride, pad):
    return jax.lax.conv_general_dilated(
        x, w, (stride, stride), ((pad, pad), (pad, pad)),
        dimension_numbers=("NHWC", "HWIO", "NHWC"),
        precision=jax.lax.Precision.HIGHEST)


def ref_forward(blk, x_nchw):
    x = jnp.transpose(x_nchw, (0, 2, 3, 1)).astype(jnp.float32)
    out = jnp.maximum(_ref_bn(_ref_conv(x, blk.w1, blk.stride, 1), blk.g1, blk.b1), 0.0)
    out = _ref_bn(_ref_conv(out, blk.w2, 1, 1), blk.g2, blk.b2)
    if blk.has_shortcut:
        ws = blk.ws.reshape(1, 1, *blk.ws.shape)
        sc = _ref_bn(_ref_conv(x, ws, blk.stride, 0), blk.gs, blk.bs)
    else:
        sc = x
    out = jnp.maximum(out + sc, 0.0)
    return jnp.transpose(out, (0, 3, 1, 2))


if __name__ == "__main__":
    key = jax.random.PRNGKey(0)
    kx, kb1, kb2 = jax.random.split(key, 3)
    x = jax.random.normal(kx, (2, 4, 16, 16), jnp.float32)  # NCHW, like the PyTorch module

    # tolerance accounts for bf16 matmul inputs (f32 accumulation / f32 reference)
    ATOL, RTOL = 1e-1, 5e-2

    # Config 1: identity shortcut (stride=1, in_planes == planes)
    blk1 = BasicBlockPallas(4, 4, stride=1, key=kb1)
    y1 = jax.block_until_ready(blk1(x))
    r1 = ref_forward(blk1, x)
    assert y1.shape == (2, 4, 16, 16), y1.shape
    err1 = float(jnp.max(jnp.abs(y1 - r1)))
    assert jnp.allclose(y1, r1, atol=ATOL, rtol=RTOL), err1

    # Config 2: projection shortcut (stride=2, channel expansion 4 -> 8)
    blk2 = BasicBlockPallas(4, 8, stride=2, key=kb2)
    y2 = jax.block_until_ready(blk2(x))
    r2 = ref_forward(blk2, x)
    assert y2.shape == (2, 8, 8, 8), y2.shape
    err2 = float(jnp.max(jnp.abs(y2 - r2)))
    assert jnp.allclose(y2, r2, atol=ATOL, rtol=RTOL), err2

    print("KERNEL_OK")
</pallas_src>

<mosaic_0001>
module attributes {stable_mosaic.version = 11 : i64} {
  func.func @body(%arg0: i32, %arg1: memref<1x16x16x128xf32, #tpu.memory_space<vmem>>, %arg2: memref<9x128x128xbf16, #tpu.memory_space<vmem>>, %arg3: memref<1x128xf32, #tpu.memory_space<vmem>>, %arg4: memref<1x128xf32, #tpu.memory_space<vmem>>, %arg5: memref<1x16x16x128xf32, #tpu.memory_space<vmem>>, %arg6: memref<2x128xf32, #tpu.memory_space<vmem>>, %arg7: memref<18x18x128xf32, #tpu.memory_space<vmem>>) attributes {dimension_semantics = [#tpu.dimension_semantics<arbitrary>], iteration_bounds = array<i64: 2>, scalar_prefetch = 0 : i64, scratch_operands = 1 : i64, tpu.core_type = #tpu.core_type<tc>, window_params = [{transform_indices = @transform_0, window_bounds = array<i64: 1, 16, 16, 128>}, {pipeline_mode = #tpu.pipeline_mode<synchronous>, transform_indices = @transform_1, window_bounds = array<i64: 9, 128, 128>}, {pipeline_mode = #tpu.pipeline_mode<synchronous>, transform_indices = @transform_2, window_bounds = array<i64: 1, 128>}, {pipeline_mode = #tpu.pipeline_mode<synchronous>, transform_indices = @transform_3, window_bounds = array<i64: 1, 128>}, {transform_indices = @transform_4, window_bounds = array<i64: 1, 16, 16, 128>}, {pipeline_mode = #tpu.pipeline_mode<synchronous>, transform_indices = @transform_5, window_bounds = array<i64: 2, 128>}]} {
    %c0 = arith.constant 0 : index
    %c0_0 = arith.constant 0 : index
    %c0_1 = arith.constant 0 : index
    %c0_2 = arith.constant 0 : index
    %0 = vector.load %arg1[%c0, %c0_0, %c0_1, %c0_2] : memref<1x16x16x128xf32, #tpu.memory_space<vmem>>, vector<1x16x16x128xf32>
    %1 = vector.shape_cast %0 : vector<1x16x16x128xf32> to vector<16x16x128xf32>
    %c0_3 = arith.constant 0 : index
    %c0_4 = arith.constant 0 : index
    %2 = vector.load %arg3[%c0_3, %c0_4] : memref<1x128xf32, #tpu.memory_space<vmem>>, vector<1x128xf32>
    %3 = vector.shape_cast %2 : vector<1x128xf32> to vector<1x1x128xf32>
    %4 = vector.broadcast %3 : vector<1x1x128xf32> to vector<16x16x128xf32>
    %5 = arith.mulf %1, %4 : vector<16x16x128xf32>
    %c0_5 = arith.constant 0 : index
    %c0_6 = arith.constant 0 : index
    %6 = vector.load %arg4[%c0_5, %c0_6] : memref<1x128xf32, #tpu.memory_space<vmem>>, vector<1x128xf32>
    %7 = vector.shape_cast %6 : vector<1x128xf32> to vector<1x1x128xf32>
    %8 = vector.broadcast %7 : vector<1x1x128xf32> to vector<16x16x128xf32>
    %9 = arith.addf %5, %8 : vector<16x16x128xf32>
    %cst = arith.constant 0.000000e+00 : f32
    %10 = vector.broadcast %cst : f32 to vector<16x16x128xf32>
    %11 = arith.maximumf %9, %10 : vector<16x16x128xf32>
    %c0_i32 = arith.constant 0 : i32
    %12 = arith.cmpi eq, %arg0, %c0_i32 : i32
    %13 = arith.extui %12 : i1 to i32
    %c0_i32_7 = arith.constant 0 : i32
    %14 = arith.cmpi ne, %13, %c0_i32_7 : i32
    scf.if %14 {
      %cst_79 = arith.constant 0.000000e+00 : f32
      %94 = vector.broadcast %cst_79 : f32 to vector<18x18x128xf32>
      %c0_80 = arith.constant 0 : index
      %c0_81 = arith.constant 0 : index
      %c0_82 = arith.constant 0 : index
      %95 = vector.load %arg7[%c0_80, %c0_81, %c0_82] : memref<18x18x128xf32, #tpu.memory_space<vmem>>, vector<18x18x128xf32>
      tpu.vector_store %arg7[%c0_80, %c0_81, %c0_82], %94 {strides = array<i32>} : memref<18x18x128xf32, #tpu.memory_space<vmem>>, vector<18x18x128xf32>,
    } else {
    }
    %c1 = arith.constant 1 : index
    %c1_8 = arith.constant 1 : index
    %c0_9 = arith.constant 0 : index
    %15 = vector.load %arg7[%c1, %c1_8, %c0_9] : memref<18x18x128xf32, #tpu.memory_space<vmem>>, vector<16x16x128xf32>
    tpu.vector_store %arg7[%c1, %c1_8, %c0_9], %11 {strides = array<i32>} : memref<18x18x128xf32, #tpu.memory_space<vmem>>, vector<16x16x128xf32>,
    %cst_10 = arith.constant 0.000000e+00 : f32
    %16 = vector.broadcast %cst_10 : f32 to vector<256x128xf32>
    %c0_11 = arith.constant 0 : index
    %c0_12 = arith.constant 0 : index
    %c0_13 = arith.constant 0 : index
    %17 = vector.load %arg7[%c0_11, %c0_12, %c0_13] : memref<18x18x128xf32, #tpu.memory_space<vmem>>, vector<16x16x128xf32>
    %18 = arith.truncf %17 : vector<16x16x128xf32> to vector<16x16x128xbf16>
    %19 = vector.shape_cast %18 : vector<16x16x128xbf16> to vector<256x128xbf16>
    %c0_14 = arith.constant 0 : index
    %c0_15 = arith.constant 0 : index
    %c0_16 = arith.constant 0 : index
    %20 = vector.load %arg2[%c0_14, %c0_15, %c0_16] : memref<9x128x128xbf16, #tpu.memory_space<vmem>>, vector<1x128x128xbf16>
    %21 = vector.shape_cast %20 : vector<1x128x128xbf16> to vector<128x128xbf16>
    %cst_17 = arith.constant dense<0.000000e+00> : vector<256x128xf32>
    %22 = tpu.matmul %19, %21, %cst_17 {dimension_numbers = #tpu.dot_dimension_numbers<[1], [0], [0], [1], [0, 0, 1, 1], [], []>} : vector<256x128xbf16>, vector<128x128xbf16>, vector<256x128xf32> -> vector<256x128xf32>
    %23 = arith.addf %16, %22 : vector<256x128xf32>
    %c0_18 = arith.constant 0 : index
    %c1_19 = arith.constant 1 : index
    %c0_20 = arith.constant 0 : index
    %24 = vector.load %arg7[%c0_18, %c1_19, %c0_20] : memref<18x18x128xf32, #tpu.memory_space<vmem>>, vector<16x16x128xf32>
    %25 = arith.truncf %24 : vector<16x16x128xf32> to vector<16x16x128xbf16>
    %26 = vector.shape_cast %25 : vector<16x16x128xbf16> to vector<256x128xbf16>
    %c1_21 = arith.constant 1 : index
    %c0_22 = arith.constant 0 : index
    %c0_23 = arith.constant 0 : index
    %27 = vector.load %arg2[%c1_21, %c0_22, %c0_23] : memref<9x128x128xbf16, #tpu.memory_space<vmem>>, vector<1x128x128xbf16>
    %28 = vector.shape_cast %27 : vector<1x128x128xbf16> to vector<128x128xbf16>
    %cst_24 = arith.constant dense<0.000000e+00> : vector<256x128xf32>
    %29 = tpu.matmul %26, %28, %cst_24 {dimension_numbers = #tpu.dot_dimension_numbers<[1], [0], [0], [1], [0, 0, 1, 1], [], []>} : vector<256x128xbf16>, vector<128x128xbf16>, vector<256x128xf32> -> vector<256x128xf32>
    %30 = arith.addf %23, %29 : vector<256x128xf32>
    %c0_25 = arith.constant 0 : index
    %c2 = arith.constant 2 : index
    %c0_26 = arith.constant 0 : index
    %31 = vector.load %arg7[%c0_25, %c2, %c0_26] : memref<18x18x128xf32, #tpu.memory_space<vmem>>, vector<16x16x128xf32>
    %32 = arith.truncf %31 : vector<16x16x128xf32> to vector<16x16x128xbf16>
    %33 = vector.shape_cast %32 : vector<16x16x128xbf16> to vector<256x128xbf16>
    %c2_27 = arith.constant 2 : index
    %c0_28 = arith.constant 0 : index
    %c0_29 = arith.constant 0 : index
    %34 = vector.load %arg2[%c2_27, %c0_28, %c0_29] : memref<9x128x128xbf16, #tpu.memory_space<vmem>>, vector<1x128x128xbf16>
    %35 = vector.shape_cast %34 : vector<1x128x128xbf16> to vector<128x128xbf16>
    %cst_30 = arith.constant dense<0.000000e+00> : vector<256x128xf32>
    %36 = tpu.matmul %33, %35, %cst_30 {dimension_numbers = #tpu.dot_dimension_numbers<[1], [0], [0], [1], [0, 0, 1, 1], [], []>} : vector<256x128xbf16>, vector<128x128xbf16>, vector<256x128xf32> -> vector<256x128xf32>
    %37 = arith.addf %30, %36 : vector<256x128xf32>
    %c1_31 = arith.constant 1 : index
    %c0_32 = arith.constant 0 : index
    %c0_33 = arith.constant 0 : index
    %38 = vector.load %arg7[%c1_31, %c0_32, %c0_33] : memref<18x18x128xf32, #tpu.memory_space<vmem>>, vector<16x16x128xf32>
    %39 = arith.truncf %38 : vector<16x16x128xf32> to vector<16x16x128xbf16>
    %40 = vector.shape_cast %39 : vector<16x16x128xbf16> to vector<256x128xbf16>
    %c3 = arith.constant 3 : index
    %c0_34 = arith.constant 0 : index
    %c0_35 = arith.constant 0 : index
    %41 = vector.load %arg2[%c3, %c0_34, %c0_35] : memref<9x128x128xbf16, #tpu.memory_space<vmem>>, vector<1x128x128xbf16>
    %42 = vector.shape_cast %41 : vector<1x128x128xbf16> to vector<128x128xbf16>
    %cst_36 = arith.constant dense<0.000000e+00> : vector<256x128xf32>
    %43 = tpu.matmul %40, %42, %cst_36 {dimension_numbers = #tpu.dot_dimension_numbers<[1], [0], [0], [1], [0, 0, 1, 1], [], []>} : vector<256x128xbf16>, vector<128x128xbf16>, vector<256x128xf32> -> vector<256x128xf32>
    %44 = arith.addf %37, %43 : vector<256x128xf32>
    %c1_37 = arith.constant 1 : index
    %c1_38 = arith.constant 1 : index
    %c0_39 = arith.constant 0 : index
    %45 = vector.load %arg7[%c1_37, %c1_38, %c0_39] : memref<18x18x128xf32, #tpu.memory_space<vmem>>, vector<16x16x128xf32>
    %46 = arith.truncf %45 : vector<16x16x128xf32> to vector<16x16x128xbf16>
    %47 = vector.shape_cast %46 : vector<16x16x128xbf16> to vector<256x128xbf16>
    %c4 = arith.constant 4 : index
    %c0_40 = arith.constant 0 : index
    %c0_41 = arith.constant 0 : index
    %48 = vector.load %arg2[%c4, %c0_40, %c0_41] : memref<9x128x128xbf16, #tpu.memory_space<vmem>>, vector<1x128x128xbf16>
    %49 = vector.shape_cast %48 : vector<1x128x128xbf16> to vector<128x128xbf16>
    %cst_42 = arith.constant dense<0.000000e+00> : vector<256x128xf32>
    %50 = tpu.matmul %47, %49, %cst_42 {dimension_numbers = #tpu.dot_dimension_numbers<[1], [0], [0], [1], [0, 0, 1, 1], [], []>} : vector<256x128xbf16>, vector<128x128xbf16>, vector<256x128xf32> -> vector<256x128xf32>
    %51 = arith.addf %44, %50 : vector<256x128xf32>
    %c1_43 = arith.constant 1 : index
    %c2_44 = arith.constant 2 : index
    %c0_45 = arith.constant 0 : index
    %52 = vector.load %arg7[%c1_43, %c2_44, %c0_45] : memref<18x18x128xf32, #tpu.memory_space<vmem>>, vector<16x16x128xf32>
    %53 = arith.truncf %52 : vector<16x16x128xf32> to vector<16x16x128xbf16>
    %54 = vector.shape_cast %53 : vector<16x16x128xbf16> to vector<256x128xbf16>
    %c5 = arith.constant 5 : index
    %c0_46 = arith.constant 0 : index
    %c0_47 = arith.constant 0 : index
    %55 = vector.load %arg2[%c5, %c0_46, %c0_47] : memref<9x128x128xbf16, #tpu.memory_space<vmem>>, vector<1x128x128xbf16>
    %56 = vector.shape_cast %55 : vector<1x128x128xbf16> to vector<128x128xbf16>
    %cst_48 = arith.constant dense<0.000000e+00> : vector<256x128xf32>
    %57 = tpu.matmul %54, %56, %cst_48 {dimension_numbers = #tpu.dot_dimension_numbers<[1], [0], [0], [1], [0, 0, 1, 1], [], []>} : vector<256x128xbf16>, vector<128x128xbf16>, vector<256x128xf32> -> vector<256x128xf32>
    %58 = arith.addf %51, %57 : vector<256x128xf32>
    %c2_49 = arith.constant 2 : index
    %c0_50 = arith.constant 0 : index
    %c0_51 = arith.constant 0 : index
    %59 = vector.load %arg7[%c2_49, %c0_50, %c0_51] : memref<18x18x128xf32, #tpu.memory_space<vmem>>, vector<16x16x128xf32>
    %60 = arith.truncf %59 : vector<16x16x128xf32> to vector<16x16x128xbf16>
    %61 = vector.shape_cast %60 : vector<16x16x128xbf16> to vector<256x128xbf16>
    %c6 = arith.constant 6 : index
    %c0_52 = arith.constant 0 : index
    %c0_53 = arith.constant 0 : index
    %62 = vector.load %arg2[%c6, %c0_52, %c0_53] : memref<9x128x128xbf16, #tpu.memory_space<vmem>>, vector<1x128x128xbf16>
    %63 = vector.shape_cast %62 : vector<1x128x128xbf16> to vector<128x128xbf16>
    %cst_54 = arith.constant dense<0.000000e+00> : vector<256x128xf32>
    %64 = tpu.matmul %61, %63, %cst_54 {dimension_numbers = #tpu.dot_dimension_numbers<[1], [0], [0], [1], [0, 0, 1, 1], [], []>} : vector<256x128xbf16>, vector<128x128xbf16>, vector<256x128xf32> -> vector<256x128xf32>
    %65 = arith.addf %58, %64 : vector<256x128xf32>
    %c2_55 = arith.constant 2 : index
    %c1_56 = arith.constant 1 : index
    %c0_57 = arith.constant 0 : index
    %66 = vector.load %arg7[%c2_55, %c1_56, %c0_57] : memref<18x18x128xf32, #tpu.memory_space<vmem>>, vector<16x16x128xf32>
    %67 = arith.truncf %66 : vector<16x16x128xf32> to vector<16x16x128xbf16>
    %68 = vector.shape_cast %67 : vector<16x16x128xbf16> to vector<256x128xbf16>
    %c7 = arith.constant 7 : index
    %c0_58 = arith.constant 0 : index
    %c0_59 = arith.constant 0 : index
    %69 = vector.load %arg2[%c7, %c0_58, %c0_59] : memref<9x128x128xbf16, #tpu.memory_space<vmem>>, vector<1x128x128xbf16>
    %70 = vector.shape_cast %69 : vector<1x128x128xbf16> to vector<128x128xbf16>
    %cst_60 = arith.constant dense<0.000000e+00> : vector<256x128xf32>
    %71 = tpu.matmul %68, %70, %cst_60 {dimension_numbers = #tpu.dot_dimension_numbers<[1], [0], [0], [1], [0, 0, 1, 1], [], []>} : vector<256x128xbf16>, vector<128x128xbf16>, vector<256x128xf32> -> vector<256x128xf32>
    %72 = arith.addf %65, %71 : vector<256x128xf32>
    %c2_61 = arith.constant 2 : index
    %c2_62 = arith.constant 2 : index
    %c0_63 = arith.constant 0 : index
    %73 = vector.load %arg7[%c2_61, %c2_62, %c0_63] : memref<18x18x128xf32, #tpu.memory_space<vmem>>, vector<16x16x128xf32>
    %74 = arith.truncf %73 : vector<16x16x128xf32> to vector<16x16x128xbf16>
    %75 = vector.shape_cast %74 : vector<16x16x128xbf16> to vector<256x128xbf16>
    %c8 = arith.constant 8 : index
    %c0_64 = arith.constant 0 : index
    %c0_65 = arith.constant 0 : index
    %76 = vector.load %arg2[%c8, %c0_64, %c0_65] : memref<9x128x128xbf16, #tpu.memory_space<vmem>>, vector<1x128x128xbf16>
    %77 = vector.shape_cast %76 : vector<1x128x128xbf16> to vector<128x128xbf16>
    %cst_66 = arith.constant dense<0.000000e+00> : vector<256x128xf32>
    %78 = tpu.matmul %75, %77, %cst_66 {dimension_numbers = #tpu.dot_dimension_numbers<[1], [0], [0], [1], [0, 0, 1, 1], [], []>} : vector<256x128xbf16>, vector<128x128xbf16>, vector<256x128xf32> -> vector<256x128xf32>
    %79 = arith.addf %72, %78 : vector<256x128xf32>
    %80 = vector.shape_cast %79 : vector<256x128xf32> to vector<1x16x16x128xf32>
    %c0_67 = arith.constant 0 : index
    %c0_68 = arith.constant 0 : index
    %c0_69 = arith.constant 0 : index
    %c0_70 = arith.constant 0 : index
    %81 = vector.load %arg5[%c0_67, %c0_68, %c0_69, %c0_70] : memref<1x16x16x128xf32, #tpu.memory_space<vmem>>, vector<1x16x16x128xf32>
    tpu.vector_store %arg5[%c0_67, %c0_68, %c0_69, %c0_70], %80 {strides = array<i32>} : memref<1x16x16x128xf32, #tpu.memory_space<vmem>>, vector<1x16x16x128xf32>,
    %c0_i32_71 = arith.constant 0 : i32
    %82 = arith.cmpi eq, %arg0, %c0_i32_71 : i32
    %83 = arith.extui %82 : i1 to i32
    %c0_i32_72 = arith.constant 0 : i32
    %84 = arith.cmpi ne, %83, %c0_i32_72 : i32
    scf.if %84 {
      %cst_79 = arith.constant 0.000000e+00 : f32
      %94 = vector.broadcast %cst_79 : f32 to vector<2x128xf32>
      %c0_80 = arith.constant 0 : index
      %c0_81 = arith.constant 0 : index
      %95 = vector.load %arg6[%c0_80, %c0_81] : memref<2x128xf32, #tpu.memory_space<vmem>>, vector<2x128xf32>
      tpu.vector_store %arg6[%c0_80, %c0_81], %94 {strides = array<i32>} : memref<2x128xf32, #tpu.memory_space<vmem>>, vector<2x128xf32>,
    } else {
    }
    %c0_73 = arith.constant 0 : index
    %c0_74 = arith.constant 0 : index
    %85 = vector.load %arg6[%c0_73, %c0_74] : memref<2x128xf32, #tpu.memory_space<vmem>>, vector<2x128xf32>
    %cst_75 = arith.constant dense<0.000000e+00> : vector<128xf32>
    %86 = vector.multi_reduction <add>, %79, %cst_75 [0] : vector<256x128xf32> to vector<128xf32>
    %87 = vector.shape_cast %86 : vector<128xf32> to vector<1x128xf32>
    %88 = arith.mulf %79, %79 : vector<256x128xf32>
    %cst_76 = arith.constant dense<0.000000e+00> : vector<128xf32>
    %89 = vector.multi_reduction <add>, %88, %cst_76 [0] : vector<256x128xf32> to vector<128xf32>
    %90 = vector.shape_cast %89 : vector<128xf32> to vector<1x128xf32>
    %91 = tpu.concatenate %87, %90 in 0 : vector<1x128xf32>, vector<1x128xf32> -> vector<2x128xf32>
    %92 = arith.addf %85, %91 : vector<2x128xf32>
    %c0_77 = arith.constant 0 : index
    %c0_78 = arith.constant 0 : index
    %93 = vector.load %arg6[%c0_77, %c0_78] : memref<2x128xf32, #tpu.memory_space<vmem>>, vector<2x128xf32>
    tpu.vector_store %arg6[%c0_77, %c0_78], %92 {strides = array<i32>} : memref<2x128xf32, #tpu.memory_space<vmem>>, vector<2x128xf32>,
    return
  }
  func.func @transform_0(%arg0: i32) -> (i32, i32, i32, i32) {
    %c0_i32 = arith.constant 0 : i32
    %c0_i32_0 = arith.constant 0 : i32
    %c0_i32_1 = arith.constant 0 : i32
    %c0_i32_2 = arith.constant 0 : i32
    return %arg0, %c0_i32, %c0_i32_0, %c0_i32_1 : i32, i32, i32, i32
  }
  func.func @transform_1(%arg0: i32) -> (i32, i32, i32) {
    %c0_i32 = arith.constant 0 : i32
    %c0_i32_0 = arith.constant 0 : i32
    %c0_i32_1 = arith.constant 0 : i32
    %c0_i32_2 = arith.constant 0 : i32
    return %c0_i32, %c0_i32_0, %c0_i32_1 : i32, i32, i32
  }
  func.func @transform_2(%arg0: i32) -> (i32, i32) {
    %c0_i32 = arith.constant 0 : i32
    %c0_i32_0 = arith.constant 0 : i32
    %c0_i32_1 = arith.constant 0 : i32
    return %c0_i32, %c0_i32_0 : i32, i32
  }
  func.func @transform_3(%arg0: i32) -> (i32, i32) {
    %c0_i32 = arith.constant 0 : i32
    %c0_i32_0 = arith.constant 0 : i32
    %c0_i32_1 = arith.constant 0 : i32
    return %c0_i32, %c0_i32_0 : i32, i32
  }
  func.func @transform_4(%arg0: i32) -> (i32, i32, i32, i32) {
    %c0_i32 = arith.constant 0 : i32
    %c0_i32_0 = arith.constant 0 : i32
    %c0_i32_1 = arith.constant 0 : i32
    %c0_i32_2 = arith.constant 0 : i32
    return %arg0, %c0_i32, %c0_i32_0, %c0_i32_1 : i32, i32, i32, i32
  }
  func.func @transform_5(%arg0: i32) -> (i32, i32) {
    %c0_i32 = arith.constant 0 : i32
    %c0_i32_0 = arith.constant 0 : i32
    %c0_i32_1 = arith.constant 0 : i32
    return %c0_i32, %c0_i32_0 : i32, i32
  }
}

module attributes {stable_mosaic.version = 11 : i64} {
  func.func @body_noproj(%arg0: i32, %arg1: memref<1x18x18x128xbf16, #tpu.memory_space<vmem>>, %arg2: memref<9x128x128xbf16, #tpu.memory_space<vmem>>, %arg3: memref<1x16x16x128xf32, #tpu.memory_space<vmem>>, %arg4: memref<2x128xf32, #tpu.memory_space<vmem>>) attributes {dimension_semantics = [#tpu.dimension_semantics<arbitrary>], iteration_bounds = array<i64: 2>, scalar_prefetch = 0 : i64, scratch_operands = 0 : i64, tpu.core_type = #tpu.core_type<tc>, window_params = [{transform_indices = @transform_0, window_bounds = array<i64: 1, 18, 18, 128>}, {pipeline_mode = #tpu.pipeline_mode<synchronous>, transform_indices = @transform_1, window_bounds = array<i64: 9, 128, 128>}, {transform_indices = @transform_2, window_bounds = array<i64: 1, 16, 16, 128>}, {pipeline_mode = #tpu.pipeline_mode<synchronous>, transform_indices = @transform_3, window_bounds = array<i64: 2, 128>}]} {
    %cst = arith.constant 0.000000e+00 : f32
    %0 = vector.broadcast %cst : f32 to vector<256x128xf32>
    %c0 = arith.constant 0 : index
    %c0_0 = arith.constant 0 : index
    %c0_1 = arith.constant 0 : index
    %c0_2 = arith.constant 0 : index
    %1 = vector.load %arg1[%c0, %c0_0, %c0_1, %c0_2] : memref<1x18x18x128xbf16, #tpu.memory_space<vmem>>, vector<1x16x16x128xbf16>
    %2 = vector.shape_cast %1 : vector<1x16x16x128xbf16> to vector<16x16x128xbf16>
    %3 = vector.shape_cast %2 : vector<16x16x128xbf16> to vector<256x128xbf16>
    %c0_3 = arith.constant 0 : index
    %c0_4 = arith.constant 0 : index
    %c0_5 = arith.constant 0 : index
    %4 = vector.load %arg2[%c0_3, %c0_4, %c0_5] : memref<9x128x128xbf16, #tpu.memory_space<vmem>>, vector<1x128x128xbf16>
    %5 = vector.shape_cast %4 : vector<1x128x128xbf16> to vector<128x128xbf16>
    %cst_6 = arith.constant dense<0.000000e+00> : vector<256x128xf32>
    %6 = tpu.matmul %3, %5, %cst_6 {dimension_numbers = #tpu.dot_dimension_numbers<[1], [0], [0], [1], [0, 0, 1, 1], [], []>} : vector<256x128xbf16>, vector<128x128xbf16>, vector<256x128xf32> -> vector<256x128xf32>
    %7 = arith.addf %0, %6 : vector<256x128xf32>
    %c0_7 = arith.constant 0 : index
    %c0_8 = arith.constant 0 : index
    %c1 = arith.constant 1 : index
    %c0_9 = arith.constant 0 : index
    %8 = vector.load %arg1[%c0_7, %c0_8, %c1, %c0_9] : memref<1x18x18x128xbf16, #tpu.memory_space<vmem>>, vector<1x16x16x128xbf16>
    %9 = vector.shape_cast %8 : vector<1x16x16x128xbf16> to vector<16x16x128xbf16>
    %10 = vector.shape_cast %9 : vector<16x16x128xbf16> to vector<256x128xbf16>
    %c1_10 = arith.constant 1 : index
    %c0_11 = arith.constant 0 : index
    %c0_12 = arith.constant 0 : index
    %11 = vector.load %arg2[%c1_10, %c0_11, %c0_12] : memref<9x128x128xbf16, #tpu.memory_space<vmem>>, vector<1x128x128xbf16>
    %12 = vector.shape_cast %11 : vector<1x128x128xbf16> to vector<128x128xbf16>
    %cst_13 = arith.constant dense<0.000000e+00> : vector<256x128xf32>
    %13 = tpu.matmul %10, %12, %cst_13 {dimension_numbers = #tpu.dot_dimension_numbers<[1], [0], [0], [1], [0, 0, 1, 1], [], []>} : vector<256x128xbf16>, vector<128x128xbf16>, vector<256x128xf32> -> vector<256x128xf32>
    %14 = arith.addf %7, %13 : vector<256x128xf32>
    %c0_14 = arith.constant 0 : index
    %c0_15 = arith.constant 0 : index
    %c2 = arith.constant 2 : index
    %c0_16 = arith.constant 0 : index
    %15 = vector.load %arg1[%c0_14, %c0_15, %c2, %c0_16] : memref<1x18x18x128xbf16, #tpu.memory_space<vmem>>, vector<1x16x16x128xbf16>
    %16 = vector.shape_cast %15 : vector<1x16x16x128xbf16> to vector<16x16x128xbf16>
    %17 = vector.shape_cast %16 : vector<16x16x128xbf16> to vector<256x128xbf16>
    %c2_17 = arith.constant 2 : index
    %c0_18 = arith.constant 0 : index
    %c0_19 = arith.constant 0 : index
    %18 = vector.load %arg2[%c2_17, %c0_18, %c0_19] : memref<9x128x128xbf16, #tpu.memory_space<vmem>>, vector<1x128x128xbf16>
    %19 = vector.shape_cast %18 : vector<1x128x128xbf16> to vector<128x128xbf16>
    %cst_20 = arith.constant dense<0.000000e+00> : vector<256x128xf32>
    %20 = tpu.matmul %17, %19, %cst_20 {dimension_numbers = #tpu.dot_dimension_numbers<[1], [0], [0], [1], [0, 0, 1, 1], [], []>} : vector<256x128xbf16>, vector<128x128xbf16>, vector<256x128xf32> -> vector<256x128xf32>
    %21 = arith.addf %14, %20 : vector<256x128xf32>
    %c0_21 = arith.constant 0 : index
    %c1_22 = arith.constant 1 : index
    %c0_23 = arith.constant 0 : index
    %c0_24 = arith.constant 0 : index
    %22 = vector.load %arg1[%c0_21, %c1_22, %c0_23, %c0_24] : memref<1x18x18x128xbf16, #tpu.memory_space<vmem>>, vector<1x16x16x128xbf16>
    %23 = vector.shape_cast %22 : vector<1x16x16x128xbf16> to vector<16x16x128xbf16>
    %24 = vector.shape_cast %23 : vector<16x16x128xbf16> to vector<256x128xbf16>
    %c3 = arith.constant 3 : index
    %c0_25 = arith.constant 0 : index
    %c0_26 = arith.constant 0 : index
    %25 = vector.load %arg2[%c3, %c0_25, %c0_26] : memref<9x128x128xbf16, #tpu.memory_space<vmem>>, vector<1x128x128xbf16>
    %26 = vector.shape_cast %25 : vector<1x128x128xbf16> to vector<128x128xbf16>
    %cst_27 = arith.constant dense<0.000000e+00> : vector<256x128xf32>
    %27 = tpu.matmul %24, %26, %cst_27 {dimension_numbers = #tpu.dot_dimension_numbers<[1], [0], [0], [1], [0, 0, 1, 1], [], []>} : vector<256x128xbf16>, vector<128x128xbf16>, vector<256x128xf32> -> vector<256x128xf32>
    %28 = arith.addf %21, %27 : vector<256x128xf32>
    %c0_28 = arith.constant 0 : index
    %c1_29 = arith.constant 1 : index
    %c1_30 = arith.constant 1 : index
    %c0_31 = arith.constant 0 : index
    %29 = vector.load %arg1[%c0_28, %c1_29, %c1_30, %c0_31] : memref<1x18x18x128xbf16, #tpu.memory_space<vmem>>, vector<1x16x16x128xbf16>
    %30 = vector.shape_cast %29 : vector<1x16x16x128xbf16> to vector<16x16x128xbf16>
    %31 = vector.shape_cast %30 : vector<16x16x128xbf16> to vector<256x128xbf16>
    %c4 = arith.constant 4 : index
    %c0_32 = arith.constant 0 : index
    %c0_33 = arith.constant 0 : index
    %32 = vector.load %arg2[%c4, %c0_32, %c0_33] : memref<9x128x128xbf16, #tpu.memory_space<vmem>>, vector<1x128x128xbf16>
    %33 = vector.shape_cast %32 : vector<1x128x128xbf16> to vector<128x128xbf16>
    %cst_34 = arith.constant dense<0.000000e+00> : vector<256x128xf32>
    %34 = tpu.matmul %31, %33, %cst_34 {dimension_numbers = #tpu.dot_dimension_numbers<[1], [0], [0], [1], [0, 0, 1, 1], [], []>} : vector<256x128xbf16>, vector<128x128xbf16>, vector<256x128xf32> -> vector<256x128xf32>
    %35 = arith.addf %28, %34 : vector<256x128xf32>
    %c0_35 = arith.constant 0 : index
    %c1_36 = arith.constant 1 : index
    %c2_37 = arith.constant 2 : index
    %c0_38 = arith.constant 0 : index
    %36 = vector.load %arg1[%c0_35, %c1_36, %c2_37, %c0_38] : memref<1x18x18x128xbf16, #tpu.memory_space<vmem>>, vector<1x16x16x128xbf16>
    %37 = vector.shape_cast %36 : vector<1x16x16x128xbf16> to vector<16x16x128xbf16>
    %38 = vector.shape_cast %37 : vector<16x16x128xbf16> to vector<256x128xbf16>
    %c5 = arith.constant 5 : index
    %c0_39 = arith.constant 0 : index
    %c0_40 = arith.constant 0 : index
    %39 = vector.load %arg2[%c5, %c0_39, %c0_40] : memref<9x128x128xbf16, #tpu.memory_space<vmem>>, vector<1x128x128xbf16>
    %40 = vector.shape_cast %39 : vector<1x128x128xbf16> to vector<128x128xbf16>
    %cst_41 = arith.constant dense<0.000000e+00> : vector<256x128xf32>
    %41 = tpu.matmul %38, %40, %cst_41 {dimension_numbers = #tpu.dot_dimension_numbers<[1], [0], [0], [1], [0, 0, 1, 1], [], []>} : vector<256x128xbf16>, vector<128x128xbf16>, vector<256x128xf32> -> vector<256x128xf32>
    %42 = arith.addf %35, %41 : vector<256x128xf32>
    %c0_42 = arith.constant 0 : index
    %c2_43 = arith.constant 2 : index
    %c0_44 = arith.constant 0 : index
    %c0_45 = arith.constant 0 : index
    %43 = vector.load %arg1[%c0_42, %c2_43, %c0_44, %c0_45] : memref<1x18x18x128xbf16, #tpu.memory_space<vmem>>, vector<1x16x16x128xbf16>
    %44 = vector.shape_cast %43 : vector<1x16x16x128xbf16> to vector<16x16x128xbf16>
    %45 = vector.shape_cast %44 : vector<16x16x128xbf16> to vector<256x128xbf16>
    %c6 = arith.constant 6 : index
    %c0_46 = arith.constant 0 : index
    %c0_47 = arith.constant 0 : index
    %46 = vector.load %arg2[%c6, %c0_46, %c0_47] : memref<9x128x128xbf16, #tpu.memory_space<vmem>>, vector<1x128x128xbf16>
    %47 = vector.shape_cast %46 : vector<1x128x128xbf16> to vector<128x128xbf16>
    %cst_48 = arith.constant dense<0.000000e+00> : vector<256x128xf32>
    %48 = tpu.matmul %45, %47, %cst_48 {dimension_numbers = #tpu.dot_dimension_numbers<[1], [0], [0], [1], [0, 0, 1, 1], [], []>} : vector<256x128xbf16>, vector<128x128xbf16>, vector<256x128xf32> -> vector<256x128xf32>
    %49 = arith.addf %42, %48 : vector<256x128xf32>
    %c0_49 = arith.constant 0 : index
    %c2_50 = arith.constant 2 : index
    %c1_51 = arith.constant 1 : index
    %c0_52 = arith.constant 0 : index
    %50 = vector.load %arg1[%c0_49, %c2_50, %c1_51, %c0_52] : memref<1x18x18x128xbf16, #tpu.memory_space<vmem>>, vector<1x16x16x128xbf16>
    %51 = vector.shape_cast %50 : vector<1x16x16x128xbf16> to vector<16x16x128xbf16>
    %52 = vector.shape_cast %51 : vector<16x16x128xbf16> to vector<256x128xbf16>
    %c7 = arith.constant 7 : index
    %c0_53 = arith.constant 0 : index
    %c0_54 = arith.constant 0 : index
    %53 = vector.load %arg2[%c7, %c0_53, %c0_54] : memref<9x128x128xbf16, #tpu.memory_space<vmem>>, vector<1x128x128xbf16>
    %54 = vector.shape_cast %53 : vector<1x128x128xbf16> to vector<128x128xbf16>
    %cst_55 = arith.constant dense<0.000000e+00> : vector<256x128xf32>
    %55 = tpu.matmul %52, %54, %cst_55 {dimension_numbers = #tpu.dot_dimension_numbers<[1], [0], [0], [1], [0, 0, 1, 1], [], []>} : vector<256x128xbf16>, vector<128x128xbf16>, vector<256x128xf32> -> vector<256x128xf32>
    %56 = arith.addf %49, %55 : vector<256x128xf32>
    %c0_56 = arith.constant 0 : index
    %c2_57 = arith.constant 2 : index
    %c2_58 = arith.constant 2 : index
    %c0_59 = arith.constant 0 : index
    %57 = vector.load %arg1[%c0_56, %c2_57, %c2_58, %c0_59] : memref<1x18x18x128xbf16, #tpu.memory_space<vmem>>, vector<1x16x16x128xbf16>
    %58 = vector.shape_cast %57 : vector<1x16x16x128xbf16> to vector<16x16x128xbf16>
    %59 = vector.shape_cast %58 : vector<16x16x128xbf16> to vector<256x128xbf16>
    %c8 = arith.constant 8 : index
    %c0_60 = arith.constant 0 : index
    %c0_61 = arith.constant 0 : index
    %60 = vector.load %arg2[%c8, %c0_60, %c0_61] : memref<9x128x128xbf16, #tpu.memory_space<vmem>>, vector<1x128x128xbf16>
    %61 = vector.shape_cast %60 : vector<1x128x128xbf16> to vector<128x128xbf16>
    %cst_62 = arith.constant dense<0.000000e+00> : vector<256x128xf32>
    %62 = tpu.matmul %59, %61, %cst_62 {dimension_numbers = #tpu.dot_dimension_numbers<[1], [0], [0], [1], [0, 0, 1, 1], [], []>} : vector<256x128xbf16>, vector<128x128xbf16>, vector<256x128xf32> -> vector<256x128xf32>
    %63 = arith.addf %56, %62 : vector<256x128xf32>
    %64 = vector.shape_cast %63 : vector<256x128xf32> to vector<1x16x16x128xf32>
    %c0_63 = arith.constant 0 : index
    %c0_64 = arith.constant 0 : index
    %c0_65 = arith.constant 0 : index
    %c0_66 = arith.constant 0 : index
    %65 = vector.load %arg3[%c0_63, %c0_64, %c0_65, %c0_66] : memref<1x16x16x128xf32, #tpu.memory_space<vmem>>, vector<1x16x16x128xf32>
    tpu.vector_store %arg3[%c0_63, %c0_64, %c0_65, %c0_66], %64 {strides = array<i32>} : memref<1x16x16x128xf32, #tpu.memory_space<vmem>>, vector<1x16x16x128xf32>,
    %c0_i32 = arith.constant 0 : i32
    %66 = arith.cmpi eq, %arg0, %c0_i32 : i32
    %67 = arith.extui %66 : i1 to i32
    %c0_i32_67 = arith.constant 0 : i32
    %68 = arith.cmpi ne, %67, %c0_i32_67 : i32
    scf.if %68 {
      %cst_74 = arith.constant 0.000000e+00 : f32
      %78 = vector.broadcast %cst_74 : f32 to vector<2x128xf32>
      %c0_75 = arith.constant 0 : index
      %c0_76 = arith.constant 0 : index
      %79 = vector.load %arg4[%c0_75, %c0_76] : memref<2x128xf32, #tpu.memory_space<vmem>>, vector<2x128xf32>
      tpu.vector_store %arg4[%c0_75, %c0_76], %78 {strides = array<i32>} : memref<2x128xf32, #tpu.memory_space<vmem>>, vector<2x128xf32>,
    } else {
    }
    %c0_68 = arith.constant 0 : index
    %c0_69 = arith.constant 0 : index
    %69 = vector.load %arg4[%c0_68, %c0_69] : memref<2x128xf32, #tpu.memory_space<vmem>>, vector<2x128xf32>
    %cst_70 = arith.constant dense<0.000000e+00> : vector<128xf32>
    %70 = vector.multi_reduction <add>, %63, %cst_70 [0] : vector<256x128xf32> to vector<128xf32>
    %71 = vector.shape_cast %70 : vector<128xf32> to vector<1x128xf32>
    %72 = arith.mulf %63, %63 : vector<256x128xf32>
    %cst_71 = arith.constant dense<0.000000e+00> : vector<128xf32>
    %73 = vector.multi_reduction <add>, %72, %cst_71 [0] : vector<256x128xf32> to vector<128xf32>
    %74 = vector.shape_cast %73 : vector<128xf32> to vector<1x128xf32>
    %75 = tpu.concatenate %71, %74 in 0 : vector<1x128xf32>, vector<1x128xf32> -> vector<2x128xf32>
    %76 = arith.addf %69, %75 : vector<2x128xf32>
    %c0_72 = arith.constant 0 : index
    %c0_73 = arith.constant 0 : index
    %77 = vector.load %arg4[%c0_72, %c0_73] : memref<2x128xf32, #tpu.memory_space<vmem>>, vector<2x128xf32>
    tpu.vector_store %arg4[%c0_72, %c0_73], %76 {strides = array<i32>} : memref<2x128xf32, #tpu.memory_space<vmem>>, vector<2x128xf32>,
    return
  }
  func.func @transform_0(%arg0: i32) -> (i32, i32, i32, i32) {
    %c0_i32 = arith.constant 0 : i32
    %c0_i32_0 = arith.constant 0 : i32
    %c0_i32_1 = arith.constant 0 : i32
    %c0_i32_2 = arith.constant 0 : i32
    return %arg0, %c0_i32, %c0_i32_0, %c0_i32_1 : i32, i32, i32, i32
  }
  func.func @transform_1(%arg0: i32) -> (i32, i32, i32) {
    %c0_i32 = arith.constant 0 : i32
    %c0_i32_0 = arith.constant 0 : i32
    %c0_i32_1 = arith.constant 0 : i32
    %c0_i32_2 = arith.constant 0 : i32
    return %c0_i32, %c0_i32_0, %c0_i32_1 : i32, i32, i32
  }
  func.func @transform_2(%arg0: i32) -> (i32, i32, i32, i32) {
    %c0_i32 = arith.constant 0 : i32
    %c0_i32_0 = arith.constant 0 : i32
    %c0_i32_1 = arith.constant 0 : i32
    %c0_i32_2 = arith.constant 0 : i32
    return %arg0, %c0_i32, %c0_i32_0, %c0_i32_1 : i32, i32, i32, i32
  }
  func.func @transform_3(%arg0: i32) -> (i32, i32) {
    %c0_i32 = arith.constant 0 : i32
    %c0_i32_0 = arith.constant 0 : i32
    %c0_i32_1 = arith.constant 0 : i32
    return %c0_i32, %c0_i32_0 : i32, i32
  }
}

module attributes {stable_mosaic.version = 11 : i64} {
  func.func @body(%arg0: i32, %arg1: memref<1x16x16x128xf32, #tpu.memory_space<vmem>>, %arg2: memref<1x16x16x128xf32, #tpu.memory_space<vmem>>, %arg3: memref<1x128xf32, #tpu.memory_space<vmem>>, %arg4: memref<1x128xf32, #tpu.memory_space<vmem>>, %arg5: memref<1x16x16x128xf32, #tpu.memory_space<vmem>>) attributes {dimension_semantics = [#tpu.dimension_semantics<parallel>], iteration_bounds = array<i64: 2>, scalar_prefetch = 0 : i64, scratch_operands = 0 : i64, tpu.core_type = #tpu.core_type<tc>, window_params = [{transform_indices = @transform_0, window_bounds = array<i64: 1, 16, 16, 128>}, {transform_indices = @transform_1, window_bounds = array<i64: 1, 16, 16, 128>}, {pipeline_mode = #tpu.pipeline_mode<synchronous>, transform_indices = @transform_2, window_bounds = array<i64: 1, 128>}, {pipeline_mode = #tpu.pipeline_mode<synchronous>, transform_indices = @transform_3, window_bounds = array<i64: 1, 128>}, {transform_indices = @transform_4, window_bounds = array<i64: 1, 16, 16, 128>}]} {
    %c0 = arith.constant 0 : index
    %c0_0 = arith.constant 0 : index
    %c0_1 = arith.constant 0 : index
    %c0_2 = arith.constant 0 : index
    %0 = vector.load %arg1[%c0, %c0_0, %c0_1, %c0_2] : memref<1x16x16x128xf32, #tpu.memory_space<vmem>>, vector<1x16x16x128xf32>
    %1 = vector.shape_cast %0 : vector<1x16x16x128xf32> to vector<16x16x128xf32>
    %c0_3 = arith.constant 0 : index
    %c0_4 = arith.constant 0 : index
    %2 = vector.load %arg3[%c0_3, %c0_4] : memref<1x128xf32, #tpu.memory_space<vmem>>, vector<1x128xf32>
    %3 = vector.shape_cast %2 : vector<1x128xf32> to vector<1x1x128xf32>
    %4 = vector.broadcast %3 : vector<1x1x128xf32> to vector<16x16x128xf32>
    %5 = arith.mulf %1, %4 : vector<16x16x128xf32>
    %c0_5 = arith.constant 0 : index
    %c0_6 = arith.constant 0 : index
    %6 = vector.load %arg4[%c0_5, %c0_6] : memref<1x128xf32, #tpu.memory_space<vmem>>, vector<1x128xf32>
    %7 = vector.shape_cast %6 : vector<1x128xf32> to vector<1x1x128xf32>
    %8 = vector.broadcast %7 : vector<1x1x128xf32> to vector<16x16x128xf32>
    %9 = arith.addf %5, %8 : vector<16x16x128xf32>
    %c0_7 = arith.constant 0 : index
    %c0_8 = arith.constant 0 : index
    %c0_9 = arith.constant 0 : index
    %c0_10 = arith.constant 0 : index
    %10 = vector.load %arg2[%c0_7, %c0_8, %c0_9, %c0_10] : memref<1x16x16x128xf32, #tpu.memory_space<vmem>>, vector<1x16x16x128xf32>
    %11 = vector.shape_cast %10 : vector<1x16x16x128xf32> to vector<16x16x128xf32>
    %12 = arith.addf %9, %11 : vector<16x16x128xf32>
    %cst = arith.constant 0.000000e+00 : f32
    %13 = vector.broadcast %cst : f32 to vector<16x16x128xf32>
    %14 = arith.maximumf %12, %13 : vector<16x16x128xf32>
    %c0_11 = arith.constant 0 : index
    %c0_12 = arith.constant 0 : index
    %c0_13 = arith.constant 0 : index
    %c0_14 = arith.constant 0 : index
    %15 = vector.load %arg5[%c0_11, %c0_12, %c0_13, %c0_14] : memref<1x16x16x128xf32, #tpu.memory_space<vmem>>, vector<1x16x16x128xf32>
    %16 = vector.shape_cast %15 : vector<1x16x16x128xf32> to vector<16x16x128xf32>
    %17 = vector.shape_cast %14 : vector<16x16x128xf32> to vector<1x16x16x128xf32>
    tpu.vector_store %arg5[%c0_11, %c0_12, %c0_13, %c0_14], %17 {strides = array<i32>} : memref<1x16x16x128xf32, #tpu.memory_space<vmem>>, vector<1x16x16x128xf32>,
    return
  }
  func.func @transform_0(%arg0: i32) -> (i32, i32, i32, i32) {
    %c0_i32 = arith.constant 0 : i32
    %c0_i32_0 = arith.constant 0 : i32
    %c0_i32_1 = arith.constant 0 : i32
    %c0_i32_2 = arith.constant 0 : i32
    return %arg0, %c0_i32, %c0_i32_0, %c0_i32_1 : i32, i32, i32, i32
  }
  func.func @transform_1(%arg0: i32) -> (i32, i32, i32, i32) {
    %c0_i32 = arith.constant 0 : i32
    %c0_i32_0 = arith.constant 0 : i32
    %c0_i32_1 = arith.constant 0 : i32
    %c0_i32_2 = arith.constant 0 : i32
    return %arg0, %c0_i32, %c0_i32_0, %c0_i32_1 : i32, i32, i32, i32
  }
  func.func @transform_2(%arg0: i32) -> (i32, i32) {
    %c0_i32 = arith.constant 0 : i32
    %c0_i32_0 = arith.constant 0 : i32
    %c0_i32_1 = arith.constant 0 : i32
    return %c0_i32, %c0_i32_0 : i32, i32
  }
  func.func @transform_3(%arg0: i32) -> (i32, i32) {
    %c0_i32 = arith.constant 0 : i32
    %c0_i32_0 = arith.constant 0 : i32
    %c0_i32_1 = arith.constant 0 : i32
    return %c0_i32, %c0_i32_0 : i32, i32
  }
  func.func @transform_4(%arg0: i32) -> (i32, i32, i32, i32) {
    %c0_i32 = arith.constant 0 : i32
    %c0_i32_0 = arith.constant 0 : i32
    %c0_i32_1 = arith.constant 0 : i32
    %c0_i32_2 = arith.constant 0 : i32
    return %arg0, %c0_i32, %c0_i32_0, %c0_i32_1 : i32, i32, i32, i32
  }
}

</mosaic_0001>

<llo_original>
// kernel: _forward.5
$region0: #{_forward.5}
  #allocation0 [shape = 'u32[]', space=smem, size = 0x4, offset = 0x4, fixed_abs, tag = 'smem constant byte address 0x4 - core index']
  #allocation1 [shape = 'u32[72,128]{1,0:T(1,128)}', space=vmem, size = 0x9000, scoped, tag = 'internal scratch']
  %s0 = inlined_call_operand.vmem [shape: f32[2,16,16,128], index: 0, kind: input, shape index: {}]
  %s1 = inlined_call_operand.vmem [shape: f32[2,16,16,128], index: 1, kind: input, shape index: {}]
  %s2 = inlined_call_operand.vmem [shape: f32[1,128], index: 2, kind: input, shape index: {}]
  %s3 = inlined_call_operand.vmem [shape: f32[1,128], index: 3, kind: input, shape index: {}]
  %s4 = inlined_call_operand.vmem [shape: f32[2,16,16,128], index: 4, kind: output, shape index: {}]
  %s5 = sld [smem:[#allocation0]]
  $region49: #{_forward.5} parent=0
    _
  %s7 = ssub.s32 1, %s5
  %s8 = scalar_select 0, %s7, %s5
  loop: start=0, step=1, limit=4
  $region2: #{_forward.5} parent=0 // loop_pre_header
    _
  $region3: #{_forward.5} parent=0 // loop_header
    %s10 = sphi 0, %s14
    %p11 = scmp.ge.s32.totalorder %s10, 4
    %s20 = sphi 0, %s22
    %s23 = sphi 0, %s20
    %s24 = sphi 0, %s23
    %s40 = sphi 0, %s24
    %s46 = sphi 0, %s48
    %s49 = sphi 0, %s46
    %s50 = sphi 0, %s49
    %s66 = sphi 0, %s50
    %s70 = sphi 0, %s70
    %s72 = sphi 0, %s70
    %s73 = sphi 0, %s72
    %s87 = sphi 0, %s73
    %s91 = sphi 0, %s91
    %s93 = sphi 0, %s91
    %s94 = sphi 0, %s93
    %s108 = sphi 0, %s94
    %s114 = sphi 0, %s116
    %s117 = sphi 0, %s114
    %s118 = sphi 0, %s117
    %s134 = sphi 0, %s118
  $region4: #{_forward.5} parent=0 // loop_header_branch
    %13 = sbr.rel (%p11) target = $region8
  $region5: #{_forward.5} parent=0 // loop_body
    %s15 = ssub.s32 %s10, 1
    %s16 = ssub.s32 %s10, 2
    %s17 = sadd.s32 %s10, 1
    %s18 = ssub.s32 %s10, %s17
    %p19 = scmp.eq.s32.totalorder %s18, 0
    %s21 = sadd.s32 %s20, 1
    %s22 = scalar_select %p19, %s20, %s21
    %p25 = pneg %p19
    %p26 = scmp.eq.s32.totalorder %s10, 1
    %p27 = por %p25, %p26
    %p28 = scmp.ne.s32.totalorder %s20, %s23
    %p29 = scmp.eq.s32.totalorder %s10, 0
    %p30 = por %p28, %p29
    %p31 = scmp.ne.s32.totalorder %s20, %s23
    %p32 = scmp.eq.s32.totalorder %s15, 1
    %p33 = por %p31, %p32
    %p34 = scmp.ne.s32.totalorder %s23, %s24
    %p35 = scmp.eq.s32.totalorder %s15, 0
    %p36 = por %p34, %p35
    %p37 = scmp.ne.s32.totalorder %s23, %s24
    %p38 = scmp.eq.s32.totalorder %s16, 1
    %p39 = por %p37, %p38
    %p41 = scmp.ne.s32.totalorder %s24, %s40
    %p42 = scmp.eq.s32.totalorder %s16, 0
    %p43 = por %p41, %p42
    %s44 = ssub.s32 %s10, %s17
    %p45 = scmp.eq.s32.totalorder %s44, 0
    %s47 = sadd.s32 %s46, 1
    %s48 = scalar_select %p45, %s46, %s47
    %p51 = pneg %p45
    %p52 = scmp.eq.s32.totalorder %s10, 1
    %p53 = por %p51, %p52
    %p54 = scmp.ne.s32.totalorder %s46, %s49
    %p55 = scmp.eq.s32.totalorder %s10, 0
    %p56 = por %p54, %p55
    %p57 = scmp.ne.s32.totalorder %s46, %s49
    %p58 = scmp.eq.s32.totalorder %s15, 1
    %p59 = por %p57, %p58
    %p60 = scmp.ne.s32.totalorder %s49, %s50
    %p61 = scmp.eq.s32.totalorder %s15, 0
    %p62 = por %p60, %p61
    %p63 = scmp.ne.s32.totalorder %s49, %s50
    %p64 = scmp.eq.s32.totalorder %s16, 1
    %p65 = por %p63, %p64
    %p67 = scmp.ne.s32.totalorder %s50, %s66
    %p68 = scmp.eq.s32.totalorder %s16, 0
    %p69 = por %p67, %p68
    %s71 = sadd.s32 %s70, 1
    %p74 = scmp.eq.s32.totalorder %s10, 1
    %p75 = scmp.ne.s32.totalorder %s70, %s72
    %p76 = scmp.eq.s32.totalorder %s10, 0
    %p77 = por %p75, %p76
    %p78 = scmp.ne.s32.totalorder %s70, %s72
    %p79 = scmp.eq.s32.totalorder %s15, 1
    %p80 = por %p78, %p79
    %p81 = scmp.ne.s32.totalorder %s72, %s73
    %p82 = scmp.eq.s32.totalorder %s15, 0
    %p83 = por %p81, %p82
    %p84 = scmp.ne.s32.totalorder %s72, %s73
    %p85 = scmp.eq.s32.totalorder %s16, 1
    %p86 = por %p84, %p85
    %p88 = scmp.ne.s32.totalorder %s73, %s87
    %p89 = scmp.eq.s32.totalorder %s16, 0
    %p90 = por %p88, %p89
    %s92 = sadd.s32 %s91, 1
    %p95 = scmp.eq.s32.totalorder %s10, 1
    %p96 = scmp.ne.s32.totalorder %s91, %s93
    %p97 = scmp.eq.s32.totalorder %s10, 0
    %p98 = por %p96, %p97
    %p99 = scmp.ne.s32.totalorder %s91, %s93
    %p100 = scmp.eq.s32.totalorder %s15, 1
    %p101 = por %p99, %p100
    %p102 = scmp.ne.s32.totalorder %s93, %s94
    %p103 = scmp.eq.s32.totalorder %s15, 0
    %p104 = por %p102, %p103
    %p105 = scmp.ne.s32.totalorder %s93, %s94
    %p106 = scmp.eq.s32.totalorder %s16, 1
    %p107 = por %p105, %p106
    %p109 = scmp.ne.s32.totalorder %s94, %s108
    %p110 = scmp.eq.s32.totalorder %s16, 0
    %p111 = por %p109, %p110
    %s112 = ssub.s32 %s10, %s17
    %p113 = scmp.eq.s32.totalorder %s112, 0
    %s115 = sadd.s32 %s114, 1
    %s116 = scalar_select %p113, %s114, %s115
    %p119 = pneg %p113
    %p120 = scmp.eq.s32.totalorder %s10, 1
    %p121 = por %p119, %p120
    %p122 = scmp.ne.s32.totalorder %s114, %s117
    %p123 = scmp.eq.s32.totalorder %s10, 0
    %p124 = por %p122, %p123
    %p125 = scmp.ne.s32.totalorder %s114, %s117
    %p126 = scmp.eq.s32.totalorder %s15, 1
    %p127 = por %p125, %p126
    %p128 = scmp.ne.s32.totalorder %s117, %s118
    %p129 = scmp.eq.s32.totalorder %s15, 0
    %p130 = por %p128, %p129
    %p131 = scmp.ne.s32.totalorder %s117, %s118
    %p132 = scmp.eq.s32.totalorder %s16, 1
    %p133 = por %p131, %p132
    %p135 = scmp.ne.s32.totalorder %s118, %s134
    %p136 = scmp.eq.s32.totalorder %s16, 0
    %p137 = por %p135, %p136
    %p138 = scmp.le.s32.totalorder 1, %s10
    %p139 = scmp.lt.s32.totalorder %s10, 3
    %p140 = pnand %p138, %p139
    %p141 = pneg %p140
    // Predicated region
    $region9: #{_forward.5} parent=5 // pred_check
      _
    $region10: #{_forward.5} parent=5 // pred_check_branch
      %143 = sbr.rel (%p140) target = $region12
    $region11: #{_forward.5} parent=5 // pred_region
      %s144 = ssub.s32 %s10, 1
      // Predicated region
      $region13: #{_forward.5} parent=11 // pred_check
        %p145 = pneg %p83
      $region14: #{_forward.5} parent=11 // pred_check_branch
        %147 = sbr.rel (%p145) target = $region16
      $region15: #{_forward.5} parent=11 // pred_region
        _
      $region16: #{_forward.5} parent=11 // pred_fallthru
        _
      // Predicated region
      $region17: #{_forward.5} parent=11 // pred_check
        %p148 = pneg %p104
      $region18: #{_forward.5} parent=11 // pred_check_branch
        %150 = sbr.rel (%p148) target = $region20
      $region19: #{_forward.5} parent=11 // pred_region
        _
      $region20: #{_forward.5} parent=11 // pred_fallthru
        _
    $region12: #{_forward.5} parent=5 // pred_fallthru
      _
    %p151 = scmp.lt.s32.totalorder %s10, 2
    // Predicated region
    $region21: #{_forward.5} parent=5 // pred_check
      %p152 = pneg %p151
    $region22: #{_forward.5} parent=5 // pred_check_branch
      %154 = sbr.rel (%p152) target = $region24
    $region23: #{_forward.5} parent=5 // pred_region
      // Predicated region
      $region25: #{_forward.5} parent=23 // pred_check
        %p155 = pneg %p30
      $region26: #{_forward.5} parent=23 // pred_check_branch
        %157 = sbr.rel (%p155) target = $region28
      $region27: #{_forward.5} parent=23 // pred_region
        %p158 = scmp.lt.s32.totalorder %s10, 1
        %s159 = scalar_select %p158, %s10, 1
        %s160 = smul.addr %s159, 32
        %s161 = smul.addr %s160, 8
        %s162 = scalar_lea.vmem %s0, %s161
      $region28: #{_forward.5} parent=23 // pred_fallthru
        _
      // Predicated region
      $region29: #{_forward.5} parent=23 // pred_check
        %p163 = pneg %p56
      $region30: #{_forward.5} parent=23 // pred_check_branch
        %165 = sbr.rel (%p163) target = $region32
      $region31: #{_forward.5} parent=23 // pred_region
        %p166 = scmp.lt.s32.totalorder %s10, 1
        %s167 = scalar_select %p166, %s10, 1
        %s168 = smul.addr %s167, 32
        %s169 = smul.addr %s168, 8
        %s170 = scalar_lea.vmem %s1, %s169
      $region32: #{_forward.5} parent=23 // pred_fallthru
        _
    $region24: #{_forward.5} parent=5 // pred_fallthru
      _
    %p171 = scmp.le.s32.totalorder 1, %s10
    %p172 = scmp.lt.s32.totalorder %s10, 3
    %p173 = pnand %p171, %p172
    %p174 = pneg %p173
    // Predicated region
    $region33: #{_forward.5} parent=5 // pred_check
      _
    $region34: #{_forward.5} parent=5 // pred_check_branch
      %176 = sbr.rel (%p173) target = $region36
    $region35: #{_forward.5} parent=5 // pred_region
      %s177 = ssub.s32 %s10, 1
      %p178 = scmp.lt.s32.totalorder %s15, 1
      %s179 = scalar_select %p178, %s15, 1
      %s180 = smul.addr %s179, 32
      %s181 = smul.addr %s180, 8
      %s182 = scalar_lea.vmem %s0, %s181
      %p183 = pneg %p36
      %p184 = pneg %p33
      %p185 = scmp.lt.s32.totalorder %s15, 1
      %s186 = scalar_select %p185, %s15, 1
      %s187 = smul.addr %s186, 32
      %s188 = smul.addr %s187, 8
      %s189 = scalar_lea.vmem %s1, %s188
      %p190 = pneg %p62
      %p191 = pneg %p59
      %p192 = pneg %p83
      %p193 = pneg %p80
      %p194 = pneg %p104
      %p195 = pneg %p101
      %p196 = pneg %p130
      %p197 = pneg %p127
      %p198 = scmp.lt.s32.totalorder %s15, 1
      %s199 = scalar_select %p198, %s15, 1
      %s200 = smul.addr %s199, 32
      %s201 = smul.addr %s200, 8
      %s202 = scalar_lea.vmem %s4, %s201
      %p203 = scmp.lt.s32.totalorder %s15, 1
      %s204 = scalar_select %p203, %s15, 1
      %s205 = smul.addr %s204, 32
      %s206 = smul.addr %s205, 8
      %s207 = scalar_lea.vmem %s0, %s206
      %p208 = scmp.lt.s32.totalorder %s15, 1
      %s209 = scalar_select %p208, %s15, 1
      %s210 = smul.addr %s209, 32
      %s211 = smul.addr %s210, 8
      %s212 = scalar_lea.vmem %s1, %s211
      %p213 = scmp.lt.s32.totalorder %s15, 1
      %s214 = scalar_select %p213, %s15, 1
      %s215 = smul.addr %s214, 32
      %s216 = smul.addr %s215, 8
      %s217 = scalar_lea.vmem %s4, %s216
      %v218 = vld [vmem:[%s207] sm:$0xff]
      %v219 = vld [vmem:[%s207 + $0x8] sm:$0xff]
      %v220 = vld [vmem:[%s207 + $0x10] sm:$0xff]
      %v221 = vld [vmem:[%s207 + $0x18] sm:$0xff]
      %v222 = vld [vmem:[%s207 + $0x20] sm:$0xff]
      %v223 = vld [vmem:[%s207 + $0x28] sm:$0xff]
      %v224 = vld [vmem:[%s207 + $0x30] sm:$0xff]
      %v225 = vld [vmem:[%s207 + $0x38] sm:$0xff]
      %v226 = vld [vmem:[%s207 + $0x40] sm:$0xff]
      %v227 = vld [vmem:[%s207 + $0x48] sm:$0xff]
      %v228 = vld [vmem:[%s207 + $0x50] sm:$0xff]
      %v229 = vld [vmem:[%s207 + $0x58] sm:$0xff]
      %v230 = vld [vmem:[%s207 + $0x60] sm:$0xff]
      %v231 = vld [vmem:[%s207 + $0x68] sm:$0xff]
      %v232 = vld [vmem:[%s207 + $0x70] sm:$0xff]
      %v233 = vld [vmem:[%s207 + $0x78] sm:$0xff]
      %v234 = vld [vmem:[%s207 + $0x80] sm:$0xff]
      %v235 = vld [vmem:[%s207 + $0x88] sm:$0xff]
      %v236 = vld [vmem:[%s207 + $0x90] sm:$0xff]
      %v237 = vld [vmem:[%s207 + $0x98] sm:$0xff]
      %v238 = vld [vmem:[%s207 + $0xa0] sm:$0xff]
      %v239 = vld [vmem:[%s207 + $0xa8] sm:$0xff]
      %v240 = vld [vmem:[%s207 + $0xb0] sm:$0xff]
      %v241 = vld [vmem:[%s207 + $0xb8] sm:$0xff]
      %v242 = vld [vmem:[%s207 + $0xc0] sm:$0xff]
      %v243 = vld [vmem:[%s207 + $0xc8] sm:$0xff]
      %v244 = vld [vmem:[%s207 + $0xd0] sm:$0xff]
      %v245 = vld [vmem:[%s207 + $0xd8] sm:$0xff]
      %v246 = vld [vmem:[%s207 + $0xe0] sm:$0xff]
      %v247 = vld [vmem:[%s207 + $0xe8] sm:$0xff]
      %v248 = vld [vmem:[%s207 + $0xf0] sm:$0xff]
      %v249 = vld [vmem:[%s207 + $0xf8] sm:$0xff]
      %v250 = vld [vmem:[%s2] sm:$0x1]
      %v252 = vperm.slane %v250, 0
      %v254 = vmul.f32 %v218, %v252
      %v255 = vmul.f32 %v219, %v252
      %v256 = vmul.f32 %v220, %v252
      %v257 = vmul.f32 %v221, %v252
      %v258 = vmul.f32 %v222, %v252
      %v259 = vmul.f32 %v223, %v252
      %v260 = vmul.f32 %v224, %v252
      %v261 = vmul.f32 %v225, %v252
      %v262 = vmul.f32 %v226, %v252
      %v263 = vmul.f32 %v227, %v252
      %v264 = vmul.f32 %v228, %v252
      %v265 = vmul.f32 %v229, %v252
      %v266 = vmul.f32 %v230, %v252
      %v267 = vmul.f32 %v231, %v252
      %v268 = vmul.f32 %v232, %v252
      %v269 = vmul.f32 %v233, %v252
      %v270 = vmul.f32 %v234, %v252
      %v271 = vmul.f32 %v235, %v252
      %v272 = vmul.f32 %v236, %v252
      %v273 = vmul.f32 %v237, %v252
      %v274 = vmul.f32 %v238, %v252
      %v275 = vmul.f32 %v239, %v252
      %v276 = vmul.f32 %v240, %v252
      %v277 = vmul.f32 %v241, %v252
      %v278 = vmul.f32 %v242, %v252
      %v279 = vmul.f32 %v243, %v252
      %v280 = vmul.f32 %v244, %v252
      %v281 = vmul.f32 %v245, %v252
      %v282 = vmul.f32 %v246, %v252
      %v283 = vmul.f32 %v247, %v252
      %v284 = vmul.f32 %v248, %v252
      %v285 = vmul.f32 %v249, %v252
      %v286 = vld [vmem:[%s3] sm:$0x1]
      %v288 = vperm.slane %v286, 0
      %v290 = vadd.f32 %v254, %v288
      %v291 = vadd.f32 %v255, %v288
      %v292 = vadd.f32 %v256, %v288
      %v293 = vadd.f32 %v257, %v288
      %v294 = vadd.f32 %v258, %v288
      %v295 = vadd.f32 %v259, %v288
      %v296 = vadd.f32 %v260, %v288
      %v297 = vadd.f32 %v261, %v288
      %v298 = vadd.f32 %v262, %v288
      %v299 = vadd.f32 %v263, %v288
      %v300 = vadd.f32 %v264, %v288
      %v301 = vadd.f32 %v265, %v288
      %v302 = vadd.f32 %v266, %v288
      %v303 = vadd.f32 %v267, %v288
      %v304 = vadd.f32 %v268, %v288
      %v305 = vadd.f32 %v269, %v288
      %v306 = vadd.f32 %v270, %v288
      %v307 = vadd.f32 %v271, %v288
      %v308 = vadd.f32 %v272, %v288
      %v309 = vadd.f32 %v273, %v288
      %v310 = vadd.f32 %v274, %v288
      %v311 = vadd.f32 %v275, %v288
      %v312 = vadd.f32 %v276, %v288
      %v313 = vadd.f32 %v277, %v288
      %v314 = vadd.f32 %v278, %v288
      %v315 = vadd.f32 %v279, %v288
      %v316 = vadd.f32 %v280, %v288
      %v317 = vadd.f32 %v281, %v288
      %v318 = vadd.f32 %v282, %v288
      %v319 = vadd.f32 %v283, %v288
      %v320 = vadd.f32 %v284, %v288
      %v321 = vadd.f32 %v285, %v288
      %v322 = vld [vmem:[%s212] sm:$0xff]
      %v323 = vld [vmem:[%s212 + $0x8] sm:$0xff]
      %v324 = vld [vmem:[%s212 + $0x10] sm:$0xff]
      %v325 = vld [vmem:[%s212 + $0x18] sm:$0xff]
      %v326 = vld [vmem:[%s212 + $0x20] sm:$0xff]
      %v327 = vld [vmem:[%s212 + $0x28] sm:$0xff]
      %v328 = vld [vmem:[%s212 + $0x30] sm:$0xff]
      %v329 = vld [vmem:[%s212 + $0x38] sm:$0xff]
      %v330 = vld [vmem:[%s212 + $0x40] sm:$0xff]
      %v331 = vld [vmem:[%s212 + $0x48] sm:$0xff]
      %v332 = vld [vmem:[%s212 + $0x50] sm:$0xff]
      %v333 = vld [vmem:[%s212 + $0x58] sm:$0xff]
      %v334 = vld [vmem:[%s212 + $0x60] sm:$0xff]
      %v335 = vld [vmem:[%s212 + $0x68] sm:$0xff]
      %v336 = vld [vmem:[%s212 + $0x70] sm:$0xff]
      %v337 = vld [vmem:[%s212 + $0x78] sm:$0xff]
      %v338 = vld [vmem:[%s212 + $0x80] sm:$0xff]
      %v339 = vld [vmem:[%s212 + $0x88] sm:$0xff]
      %v340 = vld [vmem:[%s212 + $0x90] sm:$0xff]
      %v341 = vld [vmem:[%s212 + $0x98] sm:$0xff]
      %v342 = vld [vmem:[%s212 + $0xa0] sm:$0xff]
      %v343 = vld [vmem:[%s212 + $0xa8] sm:$0xff]
      %v344 = vld [vmem:[%s212 + $0xb0] sm:$0xff]
      %v345 = vld [vmem:[%s212 + $0xb8] sm:$0xff]
      %v346 = vld [vmem:[%s212 + $0xc0] sm:$0xff]
      %v347 = vld [vmem:[%s212 + $0xc8] sm:$0xff]
      %v348 = vld [vmem:[%s212 + $0xd0] sm:$0xff]
      %v349 = vld [vmem:[%s212 + $0xd8] sm:$0xff]
      %v350 = vld [vmem:[%s212 + $0xe0] sm:$0xff]
      %v351 = vld [vmem:[%s212 + $0xe8] sm:$0xff]
      %v352 = vld [vmem:[%s212 + $0xf0] sm:$0xff]
      %v353 = vld [vmem:[%s212 + $0xf8] sm:$0xff]
      %v354 = vadd.f32 %v290, %v322
      %v355 = vadd.f32 %v291, %v323
      %v356 = vadd.f32 %v292, %v324
      %v357 = vadd.f32 %v293, %v325
      %v358 = vadd.f32 %v294, %v326
      %v359 = vadd.f32 %v295, %v327
      %v360 = vadd.f32 %v296, %v328
      %v361 = vadd.f32 %v297, %v329
      %v362 = vadd.f32 %v298, %v330
      %v363 = vadd.f32 %v299, %v331
      %v364 = vadd.f32 %v300, %v332
      %v365 = vadd.f32 %v301, %v333
      %v366 = vadd.f32 %v302, %v334
      %v367 = vadd.f32 %v303, %v335
      %v368 = vadd.f32 %v304, %v336
      %v369 = vadd.f32 %v305, %v337
      %v370 = vadd.f32 %v306, %v338
      %v371 = vadd.f32 %v307, %v339
      %v372 = vadd.f32 %v308, %v340
      %v373 = vadd.f32 %v309, %v341
      %v374 = vadd.f32 %v310, %v342
      %v375 = vadd.f32 %v311, %v343
      %v376 = vadd.f32 %v312, %v344
      %v377 = vadd.f32 %v313, %v345
      %v378 = vadd.f32 %v314, %v346
      %v379 = vadd.f32 %v315, %v347
      %v380 = vadd.f32 %v316, %v348
      %v381 = vadd.f32 %v317, %v349
      %v382 = vadd.f32 %v318, %v350
      %v383 = vadd.f32 %v319, %v351
      %v384 = vadd.f32 %v320, %v352
      %v385 = vadd.f32 %v321, %v353
      %v386 = vmax.f32 %v354, 0.0
      %v387 = vmax.f32 %v355, 0.0
      %v388 = vmax.f32 %v356, 0.0
      %v389 = vmax.f32 %v357, 0.0
      %v390 = vmax.f32 %v358, 0.0
      %v391 = vmax.f32 %v359, 0.0
      %v392 = vmax.f32 %v360, 0.0
      %v393 = vmax.f32 %v361, 0.0
      %v394 = vmax.f32 %v362, 0.0
      %v395 = vmax.f32 %v363, 0.0
      %v396 = vmax.f32 %v364, 0.0
      %v397 = vmax.f32 %v365, 0.0
      %v398 = vmax.f32 %v366, 0.0
      %v399 = vmax.f32 %v367, 0.0
      %v400 = vmax.f32 %v368, 0.0
      %v401 = vmax.f32 %v369, 0.0
      %v402 = vmax.f32 %v370, 0.0
      %v403 = vmax.f32 %v371, 0.0
      %v404 = vmax.f32 %v372, 0.0
      %v405 = vmax.f32 %v373, 0.0
      %v406 = vmax.f32 %v374, 0.0
      %v407 = vmax.f32 %v375, 0.0
      %v408 = vmax.f32 %v376, 0.0
      %v409 = vmax.f32 %v377, 0.0
      %v410 = vmax.f32 %v378, 0.0
      %v411 = vmax.f32 %v379, 0.0
      %v412 = vmax.f32 %v380, 0.0
      %v413 = vmax.f32 %v381, 0.0
      %v414 = vmax.f32 %v382, 0.0
      %v415 = vmax.f32 %v383, 0.0
      %v416 = vmax.f32 %v384, 0.0
      %v417 = vmax.f32 %v385, 0.0
      %418 = vst [vmem:[%s217] sm:$0xff] %v386
      %419 = vst [vmem:[%s217 + $0x8] sm:$0xff] %v387
      %420 = vst [vmem:[%s217 + $0x10] sm:$0xff] %v388
      %421 = vst [vmem:[%s217 + $0x18] sm:$0xff] %v389
      %422 = vst [vmem:[%s217 + $0x20] sm:$0xff] %v390
      %423 = vst [vmem:[%s217 + $0x28] sm:$0xff] %v391
      %424 = vst [vmem:[%s217 + $0x30] sm:$0xff] %v392
      %425 = vst [vmem:[%s217 + $0x38] sm:$0xff] %v393
      %426 = vst [vmem:[%s217 + $0x40] sm:$0xff] %v394
      %427 = vst [vmem:[%s217 + $0x48] sm:$0xff] %v395
      %428 = vst [vmem:[%s217 + $0x50] sm:$0xff] %v396
      %429 = vst [vmem:[%s217 + $0x58] sm:$0xff] %v397
      %430 = vst [vmem:[%s217 + $0x60] sm:$0xff] %v398
      %431 = vst [vmem:[%s217 + $0x68] sm:$0xff] %v399
      %432 = vst [vmem:[%s217 + $0x70] sm:$0xff] %v400
      %433 = vst [vmem:[%s217 + $0x78] sm:$0xff] %v401
      %434 = vst [vmem:[%s217 + $0x80] sm:$0xff] %v402
      %435 = vst [vmem:[%s217 + $0x88] sm:$0xff] %v403
      %436 = vst [vmem:[%s217 + $0x90] sm:$0xff] %v404
      %437 = vst [vmem:[%s217 + $0x98] sm:$0xff] %v405
      %438 = vst [vmem:[%s217 + $0xa0] sm:$0xff] %v406
      %439 = vst [vmem:[%s217 + $0xa8] sm:$0xff] %v407
      %440 = vst [vmem:[%s217 + $0xb0] sm:$0xff] %v408
      %441 = vst [vmem:[%s217 + $0xb8] sm:$0xff] %v409
      %442 = vst [vmem:[%s217 + $0xc0] sm:$0xff] %v410
      %443 = vst [vmem:[%s217 + $0xc8] sm:$0xff] %v411
      %444 = vst [vmem:[%s217 + $0xd0] sm:$0xff] %v412
      %445 = vst [vmem:[%s217 + $0xd8] sm:$0xff] %v413
      %446 = vst [vmem:[%s217 + $0xe0] sm:$0xff] %v414
      %447 = vst [vmem:[%s217 + $0xe8] sm:$0xff] %v415
      %448 = vst [vmem:[%s217 + $0xf0] sm:$0xff] %v416
      %449 = vst [vmem:[%s217 + $0xf8] sm:$0xff] %v417
      %p450 = scmp.lt.s32.totalorder %s15, 1
      %s451 = scalar_select %p450, %s15, 1
      %s452 = smul.addr %s451, 32
      %s453 = smul.addr %s452, 8
      %s454 = scalar_lea.vmem %s4, %s453
      // Predicated region
      $region37: #{_forward.5} parent=35 // pred_check
        %p455 = pneg %p127
      $region38: #{_forward.5} parent=35 // pred_check_branch
        %457 = sbr.rel (%p455) target = $region40
      $region39: #{_forward.5} parent=35 // pred_region
        _
      $region40: #{_forward.5} parent=35 // pred_fallthru
        _
    $region36: #{_forward.5} parent=5 // pred_fallthru
      _
    %p458 = scmp.le.s32.totalorder 2, %s10
    // Predicated region
    $region41: #{_forward.5} parent=5 // pred_check
      %p459 = pneg %p458
    $region42: #{_forward.5} parent=5 // pred_check_branch
      %461 = sbr.rel (%p459) target = $region44
    $region43: #{_forward.5} parent=5 // pred_region
      %s462 = ssub.s32 %s10, 2
      // Predicated region
      $region45: #{_forward.5} parent=43 // pred_check
        %p463 = pneg %p133
      $region46: #{_forward.5} parent=43 // pred_check_branch
        %465 = sbr.rel (%p463) target = $region48
      $region47: #{_forward.5} parent=43 // pred_region
        %p466 = scmp.lt.s32.totalorder %s16, 1
        %s467 = scalar_select %p466, %s16, 1
        %s468 = smul.addr %s467, 32
        %s469 = smul.addr %s468, 8
        %s470 = scalar_lea.vmem %s4, %s469
      $region48: #{_forward.5} parent=43 // pred_fallthru
        _
    $region44: #{_forward.5} parent=5 // pred_fallthru
      _
  $region6: #{_forward.5} parent=0 // loop_footer
    %s14 = sadd.s32 1, %s10
  $region7: #{_forward.5} parent=0 // loop_footer_branch
    %9 = sbr.rel target = $region3
  $region8: #{_forward.5} parent=0 // loop_exit
    _

// kernel: _forward.4
$region0: #{_forward.4}
  #allocation0 [shape = 'u32[]', space=smem, size = 0x4, offset = 0x4, fixed_abs, tag = 'smem constant byte address 0x4 - core index']
  #allocation1 [shape = 'u32[72,128]{1,0:T(1,128)}', space=vmem, size = 0x9000, scoped, tag = 'internal scratch']
  #allocation2 [shape = 'f32[18,18,128]{2,1,0:T(8,128)}', space=vmem, size = 0x36000, scoped, tag = 'scratch operand']
  %s0 = inlined_call_operand.vmem [shape: f32[2,16,16,128], index: 0, kind: input, shape index: {}]
  %s1 = inlined_call_operand.vmem [shape: bf16[9,128,128], index: 1, kind: input, shape index: {}]
  %s2 = inlined_call_operand.vmem [shape: f32[1,128], index: 2, kind: input, shape index: {}]
  %s3 = inlined_call_operand.vmem [shape: f32[1,128], index: 3, kind: input, shape index: {}]
  %s4 = inlined_call_operand.vmem [shape: f32[2,16,16,128], index: 4, kind: output, shape index: {0}]
  %s5 = inlined_call_operand.vmem [shape: f32[2,128], index: 5, kind: output, shape index: {1}]
  %6 = xla_tuple %s4, %s5
  %s7 = sld [smem:[#allocation0]]
  $region65: #{_forward.4} parent=0
    _
  %s9 = ssub.s32 1, %s7
  %s10 = scalar_select 0, %s9, %s7
  loop: start=0, step=1, limit=4
  $region2: #{_forward.4} parent=0 // loop_pre_header
    _
  $region3: #{_forward.4} parent=0 // loop_header
    %s12 = sphi 0, %s16
    %p13 = scmp.ge.s32.totalorder %s12, 4
    %s22 = sphi 0, %s24
    %s25 = sphi 0, %s22
    %s26 = sphi 0, %s25
    %s42 = sphi 0, %s26
    %s46 = sphi 0, %s46
    %s48 = sphi 0, %s46
    %s49 = sphi 0, %s48
    %s63 = sphi 0, %s49
    %s67 = sphi 0, %s67
    %s69 = sphi 0, %s67
    %s70 = sphi 0, %s69
    %s84 = sphi 0, %s70
    %s88 = sphi 0, %s88
    %s90 = sphi 0, %s88
    %s91 = sphi 0, %s90
    %s105 = sphi 0, %s91
    %s111 = sphi 0, %s113
    %s114 = sphi 0, %s111
    %s115 = sphi 0, %s114
    %s131 = sphi 0, %s115
    %s135 = sphi 0, %s135
    %s137 = sphi 0, %s135
    %s138 = sphi 0, %s137
    %s152 = sphi 0, %s138
  $region4: #{_forward.4} parent=0 // loop_header_branch
    %15 = sbr.rel (%p13) target = $region8
  $region5: #{_forward.4} parent=0 // loop_body
    %s17 = ssub.s32 %s12, 1
    %s18 = ssub.s32 %s12, 2
    %s19 = sadd.s32 %s12, 1
    %s20 = ssub.s32 %s12, %s19
    %p21 = scmp.eq.s32.totalorder %s20, 0
    %s23 = sadd.s32 %s22, 1
    %s24 = scalar_select %p21, %s22, %s23
    %p27 = pneg %p21
    %p28 = scmp.eq.s32.totalorder %s12, 1
    %p29 = por %p27, %p28
    %p30 = scmp.ne.s32.totalorder %s22, %s25
    %p31 = scmp.eq.s32.totalorder %s12, 0
    %p32 = por %p30, %p31
    %p33 = scmp.ne.s32.totalorder %s22, %s25
    %p34 = scmp.eq.s32.totalorder %s17, 1
    %p35 = por %p33, %p34
    %p36 = scmp.ne.s32.totalorder %s25, %s26
    %p37 = scmp.eq.s32.totalorder %s17, 0
    %p38 = por %p36, %p37
    %p39 = scmp.ne.s32.totalorder %s25, %s26
    %p40 = scmp.eq.s32.totalorder %s18, 1
    %p41 = por %p39, %p40
    %p43 = scmp.ne.s32.totalorder %s26, %s42
    %p44 = scmp.eq.s32.totalorder %s18, 0
    %p45 = por %p43, %p44
    %s47 = sadd.s32 %s46, 1
    %p50 = scmp.eq.s32.totalorder %s12, 1
    %p51 = scmp.ne.s32.totalorder %s46, %s48
    %p52 = scmp.eq.s32.totalorder %s12, 0
    %p53 = por %p51, %p52
    %p54 = scmp.ne.s32.totalorder %s46, %s48
    %p55 = scmp.eq.s32.totalorder %s17, 1
    %p56 = por %p54, %p55
    %p57 = scmp.ne.s32.totalorder %s48, %s49
    %p58 = scmp.eq.s32.totalorder %s17, 0
    %p59 = por %p57, %p58
    %p60 = scmp.ne.s32.totalorder %s48, %s49
    %p61 = scmp.eq.s32.totalorder %s18, 1
    %p62 = por %p60, %p61
    %p64 = scmp.ne.s32.totalorder %s49, %s63
    %p65 = scmp.eq.s32.totalorder %s18, 0
    %p66 = por %p64, %p65
    %s68 = sadd.s32 %s67, 1
    %p71 = scmp.eq.s32.totalorder %s12, 1
    %p72 = scmp.ne.s32.totalorder %s67, %s69
    %p73 = scmp.eq.s32.totalorder %s12, 0
    %p74 = por %p72, %p73
    %p75 = scmp.ne.s32.totalorder %s67, %s69
    %p76 = scmp.eq.s32.totalorder %s17, 1
    %p77 = por %p75, %p76
    %p78 = scmp.ne.s32.totalorder %s69, %s70
    %p79 = scmp.eq.s32.totalorder %s17, 0
    %p80 = por %p78, %p79
    %p81 = scmp.ne.s32.totalorder %s69, %s70
    %p82 = scmp.eq.s32.totalorder %s18, 1
    %p83 = por %p81, %p82
    %p85 = scmp.ne.s32.totalorder %s70, %s84
    %p86 = scmp.eq.s32.totalorder %s18, 0
    %p87 = por %p85, %p86
    %s89 = sadd.s32 %s88, 1
    %p92 = scmp.eq.s32.totalorder %s12, 1
    %p93 = scmp.ne.s32.totalorder %s88, %s90
    %p94 = scmp.eq.s32.totalorder %s12, 0
    %p95 = por %p93, %p94
    %p96 = scmp.ne.s32.totalorder %s88, %s90
    %p97 = scmp.eq.s32.totalorder %s17, 1
    %p98 = por %p96, %p97
    %p99 = scmp.ne.s32.totalorder %s90, %s91
    %p100 = scmp.eq.s32.totalorder %s17, 0
    %p101 = por %p99, %p100
    %p102 = scmp.ne.s32.totalorder %s90, %s91
    %p103 = scmp.eq.s32.totalorder %s18, 1
    %p104 = por %p102, %p103
    %p106 = scmp.ne.s32.totalorder %s91, %s105
    %p107 = scmp.eq.s32.totalorder %s18, 0
    %p108 = por %p106, %p107
    %s109 = ssub.s32 %s12, %s19
    %p110 = scmp.eq.s32.totalorder %s109, 0
    %s112 = sadd.s32 %s111, 1
    %s113 = scalar_select %p110, %s111, %s112
    %p116 = pneg %p110
    %p117 = scmp.eq.s32.totalorder %s12, 1
    %p118 = por %p116, %p117
    %p119 = scmp.ne.s32.totalorder %s111, %s114
    %p120 = scmp.eq.s32.totalorder %s12, 0
    %p121 = por %p119, %p120
    %p122 = scmp.ne.s32.totalorder %s111, %s114
    %p123 = scmp.eq.s32.totalorder %s17, 1
    %p124 = por %p122, %p123
    %p125 = scmp.ne.s32.totalorder %s114, %s115
    %p126 = scmp.eq.s32.totalorder %s17, 0
    %p127 = por %p125, %p126
    %p128 = scmp.ne.s32.totalorder %s114, %s115
    %p129 = scmp.eq.s32.totalorder %s18, 1
    %p130 = por %p128, %p129
    %p132 = scmp.ne.s32.totalorder %s115, %s131
    %p133 = scmp.eq.s32.totalorder %s18, 0
    %p134 = por %p132, %p133
    %s136 = sadd.s32 %s135, 1
    %p139 = scmp.eq.s32.totalorder %s12, 1
    %p140 = scmp.ne.s32.totalorder %s135, %s137
    %p141 = scmp.eq.s32.totalorder %s12, 0
    %p142 = por %p140, %p141
    %p143 = scmp.ne.s32.totalorder %s135, %s137
    %p144 = scmp.eq.s32.totalorder %s17, 1
    %p145 = por %p143, %p144
    %p146 = scmp.ne.s32.totalorder %s137, %s138
    %p147 = scmp.eq.s32.totalorder %s17, 0
    %p148 = por %p146, %p147
    %p149 = scmp.ne.s32.totalorder %s137, %s138
    %p150 = scmp.eq.s32.totalorder %s18, 1
    %p151 = por %p149, %p150
    %p153 = scmp.ne.s32.totalorder %s138, %s152
    %p154 = scmp.eq.s32.totalorder %s18, 0
    %p155 = por %p153, %p154
    %p156 = scmp.le.s32.totalorder 1, %s12
    %p157 = scmp.lt.s32.totalorder %s12, 3
    %p158 = pnand %p156, %p157
    %p159 = pneg %p158
    // Predicated region
    $region9: #{_forward.4} parent=5 // pred_check
      _
    $region10: #{_forward.4} parent=5 // pred_check_branch
      %161 = sbr.rel (%p158) target = $region12
    $region11: #{_forward.4} parent=5 // pred_region
      %s162 = ssub.s32 %s12, 1
      // Predicated region
      $region13: #{_forward.4} parent=11 // pred_check
        %p163 = pneg %p59
      $region14: #{_forward.4} parent=11 // pred_check_branch
        %165 = sbr.rel (%p163) target = $region16
      $region15: #{_forward.4} parent=11 // pred_region
        _
      $region16: #{_forward.4} parent=11 // pred_fallthru
        _
      // Predicated region
      $region17: #{_forward.4} parent=11 // pred_check
        %p166 = pneg %p80
      $region18: #{_forward.4} parent=11 // pred_check_branch
        %168 = sbr.rel (%p166) target = $region20
      $region19: #{_forward.4} parent=11 // pred_region
        _
      $region20: #{_forward.4} parent=11 // pred_fallthru
        _
      // Predicated region
      $region21: #{_forward.4} parent=11 // pred_check
        %p169 = pneg %p101
      $region22: #{_forward.4} parent=11 // pred_check_branch
        %171 = sbr.rel (%p169) target = $region24
      $region23: #{_forward.4} parent=11 // pred_region
        _
      $region24: #{_forward.4} parent=11 // pred_fallthru
        _
    $region12: #{_forward.4} parent=5 // pred_fallthru
      _
    %p172 = scmp.lt.s32.totalorder %s12, 2
    // Predicated region
    $region25: #{_forward.4} parent=5 // pred_check
      %p173 = pneg %p172
    $region26: #{_forward.4} parent=5 // pred_check_branch
      %175 = sbr.rel (%p173) target = $region28
    $region27: #{_forward.4} parent=5 // pred_region
      // Predicated region
      $region29: #{_forward.4} parent=27 // pred_check
        %p176 = pneg %p32
      $region30: #{_forward.4} parent=27 // pred_check_branch
        %178 = sbr.rel (%p176) target = $region32
      $region31: #{_forward.4} parent=27 // pred_region
        %p179 = scmp.lt.s32.totalorder %s12, 1
        %s180 = scalar_select %p179, %s12, 1
        %s181 = smul.addr %s180, 32
        %s182 = smul.addr %s181, 8
        %s183 = scalar_lea.vmem %s0, %s182
      $region32: #{_forward.4} parent=27 // pred_fallthru
        _
    $region28: #{_forward.4} parent=5 // pred_fallthru
      _
    %p184 = scmp.le.s32.totalorder 1, %s12
    %p185 = scmp.lt.s32.totalorder %s12, 3
    %p186 = pnand %p184, %p185
    %p187 = pneg %p186
    // Predicated region
    $region33: #{_forward.4} parent=5 // pred_check
      _
    $region34: #{_forward.4} parent=5 // pred_check_branch
      %189 = sbr.rel (%p186) target = $region36
    $region35: #{_forward.4} parent=5 // pred_region
      %s190 = ssub.s32 %s12, 1
      %p191 = scmp.lt.s32.totalorder %s17, 1
      %s192 = scalar_select %p191, %s17, 1
      %s193 = smul.addr %s192, 32
      %s194 = smul.addr %s193, 8
      %s195 = scalar_lea.vmem %s0, %s194
      %p196 = pneg %p38
      %p197 = pneg %p35
      %p198 = pneg %p59
      %p199 = pneg %p56
      %p200 = pneg %p80
      %p201 = pneg %p77
      %p202 = pneg %p101
      %p203 = pneg %p98
      %p204 = pneg %p127
      %p205 = pneg %p124
      %p206 = scmp.lt.s32.totalorder %s17, 1
      %s207 = scalar_select %p206, %s17, 1
      %s208 = smul.addr %s207, 32
      %s209 = smul.addr %s208, 8
      %s210 = scalar_lea.vmem %s4, %s209
      %p211 = pneg %p148
      %p212 = pneg %p145
      %p213 = scmp.lt.s32.totalorder %s17, 1
      %s214 = scalar_select %p213, %s17, 1
      %s215 = smul.addr %s214, 32
      %s216 = smul.addr %s215, 8
      %s217 = scalar_lea.vmem %s0, %s216
      %p218 = scmp.lt.s32.totalorder %s17, 1
      %s219 = scalar_select %p218, %s17, 1
      %s220 = smul.addr %s219, 32
      %s221 = smul.addr %s220, 8
      %s222 = scalar_lea.vmem %s4, %s221
      %v223 = vld [vmem:[%s217] sm:$0xff]
      %v224 = vld [vmem:[%s217 + $0x8] sm:$0xff]
      %v225 = vld [vmem:[%s217 + $0x10] sm:$0xff]
      %v226 = vld [vmem:[%s217 + $0x18] sm:$0xff]
      %v227 = vld [vmem:[%s217 + $0x20] sm:$0xff]
      %v228 = vld [vmem:[%s217 + $0x28] sm:$0xff]
      %v229 = vld [vmem:[%s217 + $0x30] sm:$0xff]
      %v230 = vld [vmem:[%s217 + $0x38] sm:$0xff]
      %v231 = vld [vmem:[%s217 + $0x40] sm:$0xff]
      %v232 = vld [vmem:[%s217 + $0x48] sm:$0xff]
      %v233 = vld [vmem:[%s217 + $0x50] sm:$0xff]
      %v234 = vld [vmem:[%s217 + $0x58] sm:$0xff]
      %v235 = vld [vmem:[%s217 + $0x60] sm:$0xff]
      %v236 = vld [vmem:[%s217 + $0x68] sm:$0xff]
      %v237 = vld [vmem:[%s217 + $0x70] sm:$0xff]
      %v238 = vld [vmem:[%s217 + $0x78] sm:$0xff]
      %v239 = vld [vmem:[%s217 + $0x80] sm:$0xff]
      %v240 = vld [vmem:[%s217 + $0x88] sm:$0xff]
      %v241 = vld [vmem:[%s217 + $0x90] sm:$0xff]
      %v242 = vld [vmem:[%s217 + $0x98] sm:$0xff]
      %v243 = vld [vmem:[%s217 + $0xa0] sm:$0xff]
      %v244 = vld [vmem:[%s217 + $0xa8] sm:$0xff]
      %v245 = vld [vmem:[%s217 + $0xb0] sm:$0xff]
      %v246 = vld [vmem:[%s217 + $0xb8] sm:$0xff]
      %v247 = vld [vmem:[%s217 + $0xc0] sm:$0xff]
      %v248 = vld [vmem:[%s217 + $0xc8] sm:$0xff]
      %v249 = vld [vmem:[%s217 + $0xd0] sm:$0xff]
      %v250 = vld [vmem:[%s217 + $0xd8] sm:$0xff]
      %v251 = vld [vmem:[%s217 + $0xe0] sm:$0xff]
      %v252 = vld [vmem:[%s217 + $0xe8] sm:$0xff]
      %v253 = vld [vmem:[%s217 + $0xf0] sm:$0xff]
      %v254 = vld [vmem:[%s217 + $0xf8] sm:$0xff]
      %v255 = vld [vmem:[%s2] sm:$0x1]
      %v257 = vperm.slane %v255, 0
      %v259 = vmul.f32 %v223, %v257
      %v260 = vmul.f32 %v224, %v257
      %v261 = vmul.f32 %v225, %v257
      %v262 = vmul.f32 %v226, %v257
      %v263 = vmul.f32 %v227, %v257
      %v264 = vmul.f32 %v228, %v257
      %v265 = vmul.f32 %v229, %v257
      %v266 = vmul.f32 %v230, %v257
      %v267 = vmul.f32 %v231, %v257
      %v268 = vmul.f32 %v232, %v257
      %v269 = vmul.f32 %v233, %v257
      %v270 = vmul.f32 %v234, %v257
      %v271 = vmul.f32 %v235, %v257
      %v272 = vmul.f32 %v236, %v257
      %v273 = vmul.f32 %v237, %v257
      %v274 = vmul.f32 %v238, %v257
      %v275 = vmul.f32 %v239, %v257
      %v276 = vmul.f32 %v240, %v257
      %v277 = vmul.f32 %v241, %v257
      %v278 = vmul.f32 %v242, %v257
      %v279 = vmul.f32 %v243, %v257
      %v280 = vmul.f32 %v244, %v257
      %v281 = vmul.f32 %v245, %v257
      %v282 = vmul.f32 %v246, %v257
      %v283 = vmul.f32 %v247, %v257
      %v284 = vmul.f32 %v248, %v257
      %v285 = vmul.f32 %v249, %v257
      %v286 = vmul.f32 %v250, %v257
      %v287 = vmul.f32 %v251, %v257
      %v288 = vmul.f32 %v252, %v257
      %v289 = vmul.f32 %v253, %v257
      %v290 = vmul.f32 %v254, %v257
      %v291 = vld [vmem:[%s3] sm:$0x1]
      %v293 = vperm.slane %v291, 0
      %v295 = vadd.f32 %v259, %v293
      %v296 = vadd.f32 %v260, %v293
      %v297 = vadd.f32 %v261, %v293
      %v298 = vadd.f32 %v262, %v293
      %v299 = vadd.f32 %v263, %v293
      %v300 = vadd.f32 %v264, %v293
      %v301 = vadd.f32 %v265, %v293
      %v302 = vadd.f32 %v266, %v293
      %v303 = vadd.f32 %v267, %v293
      %v304 = vadd.f32 %v268, %v293
      %v305 = vadd.f32 %v269, %v293
      %v306 = vadd.f32 %v270, %v293
      %v307 = vadd.f32 %v271, %v293
      %v308 = vadd.f32 %v272, %v293
      %v309 = vadd.f32 %v273, %v293
      %v310 = vadd.f32 %v274, %v293
      %v311 = vadd.f32 %v275, %v293
      %v312 = vadd.f32 %v276, %v293
      %v313 = vadd.f32 %v277, %v293
      %v314 = vadd.f32 %v278, %v293
      %v315 = vadd.f32 %v279, %v293
      %v316 = vadd.f32 %v280, %v293
      %v317 = vadd.f32 %v281, %v293
      %v318 = vadd.f32 %v282, %v293
      %v319 = vadd.f32 %v283, %v293
      %v320 = vadd.f32 %v284, %v293
      %v321 = vadd.f32 %v285, %v293
      %v322 = vadd.f32 %v286, %v293
      %v323 = vadd.f32 %v287, %v293
      %v324 = vadd.f32 %v288, %v293
      %v325 = vadd.f32 %v289, %v293
      %v326 = vadd.f32 %v290, %v293
      %v327 = vmax.f32 %v295, 0.0
      %v328 = vmax.f32 %v296, 0.0
      %v329 = vmax.f32 %v297, 0.0
      %v330 = vmax.f32 %v298, 0.0
      %v331 = vmax.f32 %v299, 0.0
      %v332 = vmax.f32 %v300, 0.0
      %v333 = vmax.f32 %v301, 0.0
      %v334 = vmax.f32 %v302, 0.0
      %v335 = vmax.f32 %v303, 0.0
      %v336 = vmax.f32 %v304, 0.0
      %v337 = vmax.f32 %v305, 0.0
      %v338 = vmax.f32 %v306, 0.0
      %v339 = vmax.f32 %v307, 0.0
      %v340 = vmax.f32 %v308, 0.0
      %v341 = vmax.f32 %v309, 0.0
      %v342 = vmax.f32 %v310, 0.0
      %v343 = vmax.f32 %v311, 0.0
      %v344 = vmax.f32 %v312, 0.0
      %v345 = vmax.f32 %v313, 0.0
      %v346 = vmax.f32 %v314, 0.0
      %v347 = vmax.f32 %v315, 0.0
      %v348 = vmax.f32 %v316, 0.0
      %v349 = vmax.f32 %v317, 0.0
      %v350 = vmax.f32 %v318, 0.0
      %v351 = vmax.f32 %v319, 0.0
      %v352 = vmax.f32 %v320, 0.0
      %v353 = vmax.f32 %v321, 0.0
      %v354 = vmax.f32 %v322, 0.0
      %v355 = vmax.f32 %v323, 0.0
      %v356 = vmax.f32 %v324, 0.0
      %v357 = vmax.f32 %v325, 0.0
      %v358 = vmax.f32 %v326, 0.0
      %p359 = scmp.eq.s32.totalorder %s17, 0
      // Predicated region
      $region37: #{_forward.4} parent=35 // pred_check
        %p360 = pneg %p359
      $region38: #{_forward.4} parent=35 // pred_check_branch
        %362 = sbr.rel (%p360) target = $region40
      $region39: #{_forward.4} parent=35 // pred_region
        %363 = vst [vmem:[#allocation2] sm:$0xff] 0.0
        %364 = vst [vmem:[#allocation2 + $0x8] sm:$0xff] 0.0
        %365 = vst [vmem:[#allocation2 + $0x10] sm:$0x3] 0.0
        %366 = vst [vmem:[#allocation2 + $0x18] sm:$0xff] 0.0
        %367 = vst [vmem:[#allocation2 + $0x20] sm:$0xff] 0.0
        %368 = vst [vmem:[#allocation2 + $0x28] sm:$0x3] 0.0
        %369 = vst [vmem:[#allocation2 + $0x30] sm:$0xff] 0.0
        %370 = vst [vmem:[#allocation2 + $0x38] sm:$0xff] 0.0
        %371 = vst [vmem:[#allocation2 + $0x40] sm:$0x3] 0.0
        %372 = vst [vmem:[#allocation2 + $0x48] sm:$0xff] 0.0
        %373 = vst [vmem:[#allocation2 + $0x50] sm:$0xff] 0.0
        %374 = vst [vmem:[#allocation2 + $0x58] sm:$0x3] 0.0
        %375 = vst [vmem:[#allocation2 + $0x60] sm:$0xff] 0.0
        %376 = vst [vmem:[#allocation2 + $0x68] sm:$0xff] 0.0
        %377 = vst [vmem:[#allocation2 + $0x70] sm:$0x3] 0.0
        %378 = vst [vmem:[#allocation2 + $0x78] sm:$0xff] 0.0
        %379 = vst [vmem:[#allocation2 + $0x80] sm:$0xff] 0.0
        %380 = vst [vmem:[#allocation2 + $0x88] sm:$0x3] 0.0
        %381 = vst [vmem:[#allocation2 + $0x90] sm:$0xff] 0.0
        %382 = vst [vmem:[#allocation2 + $0x98] sm:$0xff] 0.0
        %383 = vst [vmem:[#allocation2 + $0xa0] sm:$0x3] 0.0
        %384 = vst [vmem:[#allocation2 + $0xa8] sm:$0xff] 0.0
        %385 = vst [vmem:[#allocation2 + $0xb0] sm:$0xff] 0.0
        %386 = vst [vmem:[#allocation2 + $0xb8] sm:$0x3] 0.0
        %387 = vst [vmem:[#allocation2 + $0xc0] sm:$0xff] 0.0
        %388 = vst [vmem:[#allocation2 + $0xc8] sm:$0xff] 0.0
        %389 = vst [vmem:[#allocation2 + $0xd0] sm:$0x3] 0.0
        %390 = vst [vmem:[#allocation2 + $0xd8] sm:$0xff] 0.0
        %391 = vst [vmem:[#allocation2 + $0xe0] sm:$0xff] 0.0
        %392 = vst [vmem:[#allocation2 + $0xe8] sm:$0x3] 0.0
        %393 = vst [vmem:[#allocation2 + $0xf0] sm:$0xff] 0.0
        %394 = vst [vmem:[#allocation2 + $0xf8] sm:$0xff] 0.0
        %395 = vst [vmem:[#allocation2 + $0x100] sm:$0x3] 0.0
        %396 = vst [vmem:[#allocation2 + $0x108] sm:$0xff] 0.0
        %397 = vst [vmem:[#allocation2 + $0x110] sm:$0xff] 0.0
        %398 = vst [vmem:[#allocation2 + $0x118] sm:$0x3] 0.0
        %399 = vst [vmem:[#allocation2 + $0x120] sm:$0xff] 0.0
        %400 = vst [vmem:[#allocation2 + $0x128] sm:$0xff] 0.0
        %401 = vst [vmem:[#allocation2 + $0x130] sm:$0x3] 0.0
        %402 = vst [vmem:[#allocation2 + $0x138] sm:$0xff] 0.0
        %403 = vst [vmem:[#allocation2 + $0x140] sm:$0xff] 0.0
        %404 = vst [vmem:[#allocation2 + $0x148] sm:$0x3] 0.0
        %405 = vst [vmem:[#allocation2 + $0x150] sm:$0xff] 0.0
        %406 = vst [vmem:[#allocation2 + $0x158] sm:$0xff] 0.0
        %407 = vst [vmem:[#allocation2 + $0x160] sm:$0x3] 0.0
        %408 = vst [vmem:[#allocation2 + $0x168] sm:$0xff] 0.0
        %409 = vst [vmem:[#allocation2 + $0x170] sm:$0xff] 0.0
        %410 = vst [vmem:[#allocation2 + $0x178] sm:$0x3] 0.0
        %411 = vst [vmem:[#allocation2 + $0x180] sm:$0xff] 0.0
        %412 = vst [vmem:[#allocation2 + $0x188] sm:$0xff] 0.0
        %413 = vst [vmem:[#allocation2 + $0x190] sm:$0x3] 0.0
        %414 = vst [vmem:[#allocation2 + $0x198] sm:$0xff] 0.0
        %415 = vst [vmem:[#allocation2 + $0x1a0] sm:$0xff] 0.0
        %416 = vst [vmem:[#allocation2 + $0x1a8] sm:$0x3] 0.0
      $region40: #{_forward.4} parent=35 // pred_fallthru
        _
      %s417 = scalar_lea.vmem [#allocation2], 24
      %418 = vst [vmem:[%s417 + $0x1] sm:$0xff] %v327
      %419 = vst [vmem:[%s417 + $0x9] sm:$0xff] %v328
      %420 = vst [vmem:[%s417 + $0x19] sm:$0xff] %v329
      %421 = vst [vmem:[%s417 + $0x21] sm:$0xff] %v330
      %422 = vst [vmem:[%s417 + $0x31] sm:$0xff] %v331
      %423 = vst [vmem:[%s417 + $0x39] sm:$0xff] %v332
      %424 = vst [vmem:[%s417 + $0x49] sm:$0xff] %v333
      %425 = vst [vmem:[%s417 + $0x51] sm:$0xff] %v334
      %426 = vst [vmem:[%s417 + $0x61] sm:$0xff] %v335
      %427 = vst [vmem:[%s417 + $0x69] sm:$0xff] %v336
      %428 = vst [vmem:[%s417 + $0x79] sm:$0xff] %v337
      %429 = vst [vmem:[%s417 + $0x81] sm:$0xff] %v338
      %430 = vst [vmem:[%s417 + $0x91] sm:$0xff] %v339
      %431 = vst [vmem:[%s417 + $0x99] sm:$0xff] %v340
      %432 = vst [vmem:[%s417 + $0xa9] sm:$0xff] %v341
      %433 = vst [vmem:[%s417 + $0xb1] sm:$0xff] %v342
      %434 = vst [vmem:[%s417 + $0xc1] sm:$0xff] %v343
      %435 = vst [vmem:[%s417 + $0xc9] sm:$0xff] %v344
      %436 = vst [vmem:[%s417 + $0xd9] sm:$0xff] %v345
      %437 = vst [vmem:[%s417 + $0xe1] sm:$0xff] %v346
      %438 = vst [vmem:[%s417 + $0xf1] sm:$0xff] %v347
      %439 = vst [vmem:[%s417 + $0xf9] sm:$0xff] %v348
      %440 = vst [vmem:[%s417 + $0x109] sm:$0xff] %v349
      %441 = vst [vmem:[%s417 + $0x111] sm:$0xff] %v350
      %442 = vst [vmem:[%s417 + $0x121] sm:$0xff] %v351
      %443 = vst [vmem:[%s417 + $0x129] sm:$0xff] %v352
      %444 = vst [vmem:[%s417 + $0x139] sm:$0xff] %v353
      %445 = vst [vmem:[%s417 + $0x141] sm:$0xff] %v354
      %446 = vst [vmem:[%s417 + $0x151] sm:$0xff] %v355
      %447 = vst [vmem:[%s417 + $0x159] sm:$0xff] %v356
      %448 = vst [vmem:[%s417 + $0x169] sm:$0xff] %v357
      %449 = vst [vmem:[%s417 + $0x171] sm:$0xff] %v358
      %v450 = vld [vmem:[#allocation2] sm:$0xff]
      %v451 = vld [vmem:[#allocation2 + $0x8] sm:$0xff]
      %v452 = vld [vmem:[#allocation2 + $0x18] sm:$0xff]
      %v453 = vld [vmem:[#allocation2 + $0x20] sm:$0xff]
      %v454 = vld [vmem:[#allocation2 + $0x30] sm:$0xff]
      %v455 = vld [vmem:[#allocation2 + $0x38] sm:$0xff]
      %v456 = vld [vmem:[#allocation2 + $0x48] sm:$0xff]
      %v457 = vld [vmem:[#allocation2 + $0x50] sm:$0xff]
      %v458 = vld [vmem:[#allocation2 + $0x60] sm:$0xff]
      %v459 = vld [vmem:[#allocation2 + $0x68] sm:$0xff]
      %v460 = vld [vmem:[#allocation2 + $0x78] sm:$0xff]
      %v461 = vld [vmem:[#allocation2 + $0x80] sm:$0xff]
      %v462 = vld [vmem:[#allocation2 + $0x90] sm:$0xff]
      %v463 = vld [vmem:[#allocation2 + $0x98] sm:$0xff]
      %v464 = vld [vmem:[#allocation2 + $0xa8] sm:$0xff]
      %v465 = vld [vmem:[#allocation2 + $0xb0] sm:$0xff]
      %v466 = vld [vmem:[#allocation2 + $0xc0] sm:$0xff]
      %v467 = vld [vmem:[#allocation2 + $0xc8] sm:$0xff]
      %v468 = vld [vmem:[#allocation2 + $0xd8] sm:$0xff]
      %v469 = vld [vmem:[#allocation2 + $0xe0] sm:$0xff]
      %v470 = vld [vmem:[#allocation2 + $0xf0] sm:$0xff]
      %v471 = vld [vmem:[#allocation2 + $0xf8] sm:$0xff]
      %v472 = vld [vmem:[#allocation2 + $0x108] sm:$0xff]
      %v473 = vld [vmem:[#allocation2 + $0x110] sm:$0xff]
      %v474 = vld [vmem:[#allocation2 + $0x120] sm:$0xff]
      %v475 = vld [vmem:[#allocation2 + $0x128] sm:$0xff]
      %v476 = vld [vmem:[#allocation2 + $0x138] sm:$0xff]
      %v477 = vld [vmem:[#allocation2 + $0x140] sm:$0xff]
      %v478 = vld [vmem:[#allocation2 + $0x150] sm:$0xff]
      %v479 = vld [vmem:[#allocation2 + $0x158] sm:$0xff]
      %v480 = vld [vmem:[#allocation2 + $0x168] sm:$0xff]
      %v481 = vld [vmem:[#allocation2 + $0x170] sm:$0xff]
      %v482 = vpack.c.bf16 %v450, %v450
      %v483 = vpack.c.bf16 %v451, %v451
      %v484 = vpack.c.bf16 %v452, %v452
      %v485 = vpack.c.bf16 %v453, %v453
      %v486 = vpack.c.bf16 %v454, %v454
      %v487 = vpack.c.bf16 %v455, %v455
      %v488 = vpack.c.bf16 %v456, %v456
      %v489 = vpack.c.bf16 %v457, %v457
      %v490 = vpack.c.bf16 %v458, %v458
      %v491 = vpack.c.bf16 %v459, %v459
      %v492 = vpack.c.bf16 %v460, %v460
      %v493 = vpack.c.bf16 %v461, %v461
      %v494 = vpack.c.bf16 %v462, %v462
      %v495 = vpack.c.bf16 %v463, %v463
      %v496 = vpack.c.bf16 %v464, %v464
      %v497 = vpack.c.bf16 %v465, %v465
      %v498 = vpack.c.bf16 %v466, %v466
      %v499 = vpack.c.bf16 %v467, %v467
      %v500 = vpack.c.bf16 %v468, %v468
      %v501 = vpack.c.bf16 %v469, %v469
      %v502 = vpack.c.bf16 %v470, %v470
      %v503 = vpack.c.bf16 %v471, %v471
      %v504 = vpack.c.bf16 %v472, %v472
      %v505 = vpack.c.bf16 %v473, %v473
      %v506 = vpack.c.bf16 %v474, %v474
      %v507 = vpack.c.bf16 %v475, %v475
      %v508 = vpack.c.bf16 %v476, %v476
      %v509 = vpack.c.bf16 %v477, %v477
      %v510 = vpack.c.bf16 %v478, %v478
      %v511 = vpack.c.bf16 %v479, %v479
      %v512 = vpack.c.bf16 %v480, %v480
      %v513 = vpack.c.bf16 %v481, %v481
      %v514 = vld [vmem:[%s1] sm:$0xf]
      %v515 = vld [vmem:[%s1 + $0x4] sm:$0xf]
      %v516 = vld [vmem:[%s1 + $0x8] sm:$0xf]
      %v517 = vld [vmem:[%s1 + $0xc] sm:$0xf]
      %v518 = vld [vmem:[%s1 + $0x10] sm:$0xf]
      %v519 = vld [vmem:[%s1 + $0x14] sm:$0xf]
      %v520 = vld [vmem:[%s1 + $0x18] sm:$0xf]
      %v521 = vld [vmem:[%s1 + $0x1c] sm:$0xf]
      %v522 = vld [vmem:[%s1 + $0x20] sm:$0xf]
      %v523 = vld [vmem:[%s1 + $0x24] sm:$0xf]
      %v524 = vld [vmem:[%s1 + $0x28] sm:$0xf]
      %v525 = vld [vmem:[%s1 + $0x2c] sm:$0xf]
      %v526 = vld [vmem:[%s1 + $0x30] sm:$0xf]
      %v527 = vld [vmem:[%s1 + $0x34] sm:$0xf]
      %v528 = vld [vmem:[%s1 + $0x38] sm:$0xf]
      %v529 = vld [vmem:[%s1 + $0x3c] sm:$0xf]
      %v530 = vld [vmem:[#allocation2 + $0x1] sm:$0xff]
      %v531 = vld [vmem:[#allocation2 + $0x9] sm:$0xff]
      %v532 = vld [vmem:[#allocation2 + $0x19] sm:$0xff]
      %v533 = vld [vmem:[#allocation2 + $0x21] sm:$0xff]
      %v534 = vld [vmem:[#allocation2 + $0x31] sm:$0xff]
      %v535 = vld [vmem:[#allocation2 + $0x39] sm:$0xff]
      %v536 = vld [vmem:[#allocation2 + $0x49] sm:$0xff]
      %v537 = vld [vmem:[#allocation2 + $0x51] sm:$0xff]
      %v538 = vld [vmem:[#allocation2 + $0x61] sm:$0xff]
      %v539 = vld [vmem:[#allocation2 + $0x69] sm:$0xff]
      %v540 = vld [vmem:[#allocation2 + $0x79] sm:$0xff]
      %v541 = vld [vmem:[#allocation2 + $0x81] sm:$0xff]
      %v542 = vld [vmem:[#allocation2 + $0x91] sm:$0xff]
      %v543 = vld [vmem:[#allocation2 + $0x99] sm:$0xff]
      %v544 = vld [vmem:[#allocation2 + $0xa9] sm:$0xff]
      %v545 = vld [vmem:[#allocation2 + $0xb1] sm:$0xff]
      %v546 = vld [vmem:[#allocation2 + $0xc1] sm:$0xff]
      %v547 = vld [vmem:[#allocation2 + $0xc9] sm:$0xff]
      %v548 = vld [vmem:[#allocation2 + $0xd9] sm:$0xff]
      %v549 = vld [vmem:[#allocation2 + $0xe1] sm:$0xff]
      %v550 = vld [vmem:[#allocation2 + $0xf1] sm:$0xff]
      %v551 = vld [vmem:[#allocation2 + $0xf9] sm:$0xff]
      %v552 = vld [vmem:[#allocation2 + $0x109] sm:$0xff]
      %v553 = vld [vmem:[#allocation2 + $0x111] sm:$0xff]
      %v554 = vld [vmem:[#allocation2 + $0x121] sm:$0xff]
      %v555 = vld [vmem:[#allocation2 + $0x129] sm:$0xff]
      %v556 = vld [vmem:[#allocation2 + $0x139] sm:$0xff]
      %v557 = vld [vmem:[#allocation2 + $0x141] sm:$0xff]
      %v558 = vld [vmem:[#allocation2 + $0x151] sm:$0xff]
      %v559 = vld [vmem:[#allocation2 + $0x159] sm:$0xff]
      %v560 = vld [vmem:[#allocation2 + $0x169] sm:$0xff]
      %v561 = vld [vmem:[#allocation2 + $0x171] sm:$0xff]
      %v562 = vpack.c.bf16 %v530, %v530
      %v563 = vpack.c.bf16 %v531, %v531
      %v564 = vpack.c.bf16 %v532, %v532
      %v565 = vpack.c.bf16 %v533, %v533
      %v566 = vpack.c.bf16 %v534, %v534
      %v567 = vpack.c.bf16 %v535, %v535
      %v568 = vpack.c.bf16 %v536, %v536
      %v569 = vpack.c.bf16 %v537, %v537
      %v570 = vpack.c.bf16 %v538, %v538
      %v571 = vpack.c.bf16 %v539, %v539
      %v572 = vpack.c.bf16 %v540, %v540
      %v573 = vpack.c.bf16 %v541, %v541
      %v574 = vpack.c.bf16 %v542, %v542
      %v575 = vpack.c.bf16 %v543, %v543
      %v576 = vpack.c.bf16 %v544, %v544
      %v577 = vpack.c.bf16 %v545, %v545
      %v578 = vpack.c.bf16 %v546, %v546
      %v579 = vpack.c.bf16 %v547, %v547
      %v580 = vpack.c.bf16 %v548, %v548
      %v581 = vpack.c.bf16 %v549, %v549
      %v582 = vpack.c.bf16 %v550, %v550
      %v583 = vpack.c.bf16 %v551, %v551
      %v584 = vpack.c.bf16 %v552, %v552
      %v585 = vpack.c.bf16 %v553, %v553
      %v586 = vpack.c.bf16 %v554, %v554
      %v587 = vpack.c.bf16 %v555, %v555
      %v588 = vpack.c.bf16 %v556, %v556
      %v589 = vpack.c.bf16 %v557, %v557
      %v590 = vpack.c.bf16 %v558, %v558
      %v591 = vpack.c.bf16 %v559, %v559
      %v592 = vpack.c.bf16 %v560, %v560
      %v593 = vpack.c.bf16 %v561, %v561
      %s594 = scalar_lea.vmem %s1, 64
      %v595 = vld [vmem:[%s594] sm:$0xf]
      %v596 = vld [vmem:[%s594 + $0x4] sm:$0xf]
      %v597 = vld [vmem:[%s594 + $0x8] sm:$0xf]
      %v598 = vld [vmem:[%s594 + $0xc] sm:$0xf]
      %v599 = vld [vmem:[%s594 + $0x10] sm:$0xf]
      %v600 = vld [vmem:[%s594 + $0x14] sm:$0xf]
      %v601 = vld [vmem:[%s594 + $0x18] sm:$0xf]
      %v602 = vld [vmem:[%s594 + $0x1c] sm:$0xf]
      %v603 = vld [vmem:[%s594 + $0x20] sm:$0xf]
      %v604 = vld [vmem:[%s594 + $0x24] sm:$0xf]
      %v605 = vld [vmem:[%s594 + $0x28] sm:$0xf]
      %v606 = vld [vmem:[%s594 + $0x2c] sm:$0xf]
      %v607 = vld [vmem:[%s594 + $0x30] sm:$0xf]
      %v608 = vld [vmem:[%s594 + $0x34] sm:$0xf]
      %v609 = vld [vmem:[%s594 + $0x38] sm:$0xf]
      %v610 = vld [vmem:[%s594 + $0x3c] sm:$0xf]
      %v643 = vunpack.c.l.b16 %v562
      %v644 = vunpack.c.l.b16 %v563
      %v645 = vunpack.c.l.b16 %v564
      %v646 = vunpack.c.l.b16 %v565
      %v647 = vunpack.c.l.b16 %v566
      %v648 = vunpack.c.l.b16 %v567
      %v649 = vunpack.c.l.b16 %v568
      %v650 = vunpack.c.l.b16 %v569
      %v651 = vunpack.c.l.b16 %v570
      %v652 = vunpack.c.l.b16 %v571
      %v653 = vunpack.c.l.b16 %v572
      %v654 = vunpack.c.l.b16 %v573
      %v655 = vunpack.c.l.b16 %v574
      %v656 = vunpack.c.l.b16 %v575
      %v657 = vunpack.c.l.b16 %v576
      %v658 = vunpack.c.l.b16 %v577
      %v659 = vunpack.c.l.b16 %v578
      %v660 = vunpack.c.l.b16 %v579
      %v661 = vunpack.c.l.b16 %v580
      %v662 = vunpack.c.l.b16 %v581
      %v663 = vunpack.c.l.b16 %v582
      %v664 = vunpack.c.l.b16 %v583
      %v665 = vunpack.c.l.b16 %v584
      %v666 = vunpack.c.l.b16 %v585
      %v667 = vunpack.c.l.b16 %v586
      %v668 = vunpack.c.l.b16 %v587
      %v669 = vunpack.c.l.b16 %v588
      %v670 = vunpack.c.l.b16 %v589
      %v671 = vunpack.c.l.b16 %v590
      %v672 = vunpack.c.l.b16 %v591
      %v673 = vunpack.c.l.b16 %v592
      %v674 = vunpack.c.l.b16 %v593
      %v675 = vpack.c.b16 %v644, %v643
      %v676 = vpack.c.b16 %v646, %v645
      %v677 = vpack.c.b16 %v648, %v647
      %v678 = vpack.c.b16 %v650, %v649
      %v679 = vpack.c.b16 %v652, %v651
      %v680 = vpack.c.b16 %v654, %v653
      %v681 = vpack.c.b16 %v656, %v655
      %v682 = vpack.c.b16 %v658, %v657
      %v683 = vpack.c.b16 %v660, %v659
      %v684 = vpack.c.b16 %v662, %v661
      %v685 = vpack.c.b16 %v664, %v663
      %v686 = vpack.c.b16 %v666, %v665
      %v687 = vpack.c.b16 %v668, %v667
      %v688 = vpack.c.b16 %v670, %v669
      %v689 = vpack.c.b16 %v672, %v671
      %v690 = vpack.c.b16 %v674, %v673
      %v723 = vunpack.c.l.b16 %v595
      %v724 = vunpack.c.l.b16 %v596
      %v725 = vunpack.c.l.b16 %v597
      %v726 = vunpack.c.l.b16 %v598
      %v727 = vunpack.c.l.b16 %v599
      %v728 = vunpack.c.l.b16 %v600
      %v729 = vunpack.c.l.b16 %v601
      %v730 = vunpack.c.l.b16 %v602
      %v731 = vunpack.c.l.b16 %v603
      %v732 = vunpack.c.l.b16 %v604
      %v733 = vunpack.c.l.b16 %v605
      %v734 = vunpack.c.l.b16 %v606
      %v735 = vunpack.c.l.b16 %v607
      %v736 = vunpack.c.l.b16 %v608
      %v737 = vunpack.c.l.b16 %v609
      %v738 = vunpack.c.l.b16 %v610
      %v739 = vpack.c.b16 %v724, %v723
      %v740 = vpack.c.b16 %v726, %v725
      %v741 = vpack.c.b16 %v728, %v727
      %v742 = vpack.c.b16 %v730, %v729
      %v743 = vpack.c.b16 %v732, %v731
      %v744 = vpack.c.b16 %v734, %v733
      %v745 = vpack.c.b16 %v736, %v735
      %v746 = vpack.c.b16 %v738, %v737
      %755 = vmatpush.bf16.msra.mxu0 %v746
      %756 = vmatpush.bf16.msra.mxu0 %v745
      %757 = vmatpush.bf16.msra.mxu0 %v744
      %758 = vmatpush.bf16.msra.mxu0 %v743
      %759 = vmatpush.bf16.msra.mxu0 %v742
      %760 = vmatpush.bf16.msra.mxu0 %v741
      %761 = vmatpush.bf16.msra.mxu0 %v740
      %762 = vmatpush.bf16.msra.mxu0 %v739
      %763 = vmatmul.bf16.gmra.mxu0 %v675
      %v764 = vpop.f32.mrf.mxu0
      %v765 = vadd.f32 0.0, %v764
      %v766 = vpop.f32.mrf.mxu0
      %v767 = vadd.f32 0.0, %v766
      %768 = vmatmul.bf16.gmra.mxu0 %v676
      %v769 = vpop.f32.mrf.mxu0
      %v770 = vadd.f32 0.0, %v769
      %v771 = vpop.f32.mrf.mxu0
      %v772 = vadd.f32 0.0, %v771
      %773 = vmatmul.bf16.gmra.mxu0 %v677
      %v774 = vpop.f32.mrf.mxu0
      %v775 = vadd.f32 0.0, %v774
      %v776 = vpop.f32.mrf.mxu0
      %v777 = vadd.f32 0.0, %v776
      %778 = vmatmul.bf16.gmra.mxu0 %v678
      %v779 = vpop.f32.mrf.mxu0
      %v780 = vadd.f32 0.0, %v779
      %v781 = vpop.f32.mrf.mxu0
      %v782 = vadd.f32 0.0, %v781
      %783 = vmatmul.bf16.gmra.mxu0 %v679
      %v784 = vpop.f32.mrf.mxu0
      %v785 = vadd.f32 0.0, %v784
      %v786 = vpop.f32.mrf.mxu0
      %v787 = vadd.f32 0.0, %v786
      %788 = vmatmul.bf16.gmra.mxu0 %v680
      %v789 = vpop.f32.mrf.mxu0
      %v790 = vadd.f32 0.0, %v789
      %v791 = vpop.f32.mrf.mxu0
      %v792 = vadd.f32 0.0, %v791
      %793 = vmatmul.bf16.gmra.mxu0 %v681
      %v794 = vpop.f32.mrf.mxu0
      %v795 = vadd.f32 0.0, %v794
      %v796 = vpop.f32.mrf.mxu0
      %v797 = vadd.f32 0.0, %v796
      %798 = vmatmul.bf16.gmra.mxu0 %v682
      %v799 = vpop.f32.mrf.mxu0
      %v800 = vadd.f32 0.0, %v799
      %v801 = vpop.f32.mrf.mxu0
      %v802 = vadd.f32 0.0, %v801
      %803 = vmatmul.bf16.gmra.mxu0 %v683
      %v804 = vpop.f32.mrf.mxu0
      %v805 = vadd.f32 0.0, %v804
      %v806 = vpop.f32.mrf.mxu0
      %v807 = vadd.f32 0.0, %v806
      %808 = vmatmul.bf16.gmra.mxu0 %v684
      %v809 = vpop.f32.mrf.mxu0
      %v810 = vadd.f32 0.0, %v809
      %v811 = vpop.f32.mrf.mxu0
      %v812 = vadd.f32 0.0, %v811
      %813 = vmatmul.bf16.gmra.mxu0 %v685
      %v814 = vpop.f32.mrf.mxu0
      %v815 = vadd.f32 0.0, %v814
      %v816 = vpop.f32.mrf.mxu0
      %v817 = vadd.f32 0.0, %v816
      %818 = vmatmul.bf16.gmra.mxu0 %v686
      %v819 = vpop.f32.mrf.mxu0
      %v820 = vadd.f32 0.0, %v819
      %v821 = vpop.f32.mrf.mxu0
      %v822 = vadd.f32 0.0, %v821
      %823 = vmatmul.bf16.gmra.mxu0 %v687
      %v824 = vpop.f32.mrf.mxu0
      %v825 = vadd.f32 0.0, %v824
      %v826 = vpop.f32.mrf.mxu0
      %v827 = vadd.f32 0.0, %v826
      %828 = vmatmul.bf16.gmra.mxu0 %v688
      %v829 = vpop.f32.mrf.mxu0
      %v830 = vadd.f32 0.0, %v829
      %v831 = vpop.f32.mrf.mxu0
      %v832 = vadd.f32 0.0, %v831
      %833 = vmatmul.bf16.gmra.mxu0 %v689
      %v834 = vpop.f32.mrf.mxu0
      %v835 = vadd.f32 0.0, %v834
      %v836 = vpop.f32.mrf.mxu0
      %v837 = vadd.f32 0.0, %v836
      %838 = vmatmul.bf16.gmra.mxu0 %v690
      %v839 = vpop.f32.mrf.mxu0
      %v840 = vadd.f32 0.0, %v839
      %v841 = vpop.f32.mrf.mxu0
      %v842 = vadd.f32 0.0, %v841
      %843 = vdwg.mxu0
      %v876 = vunpack.c.l.b16 %v482
      %v877 = vunpack.c.l.b16 %v483
      %v878 = vunpack.c.l.b16 %v484
      %v879 = vunpack.c.l.b16 %v485
      %v880 = vunpack.c.l.b16 %v486
      %v881 = vunpack.c.l.b16 %v487
      %v882 = vunpack.c.l.b16 %v488
      %v883 = vunpack.c.l.b16 %v489
      %v884 = vunpack.c.l.b16 %v490
      %v885 = vunpack.c.l.b16 %v491
      %v886 = vunpack.c.l.b16 %v492
      %v887 = vunpack.c.l.b16 %v493
      %v888 = vunpack.c.l.b16 %v494
      %v889 = vunpack.c.l.b16 %v495
      %v890 = vunpack.c.l.b16 %v496
      %v891 = vunpack.c.l.b16 %v497
      %v892 = vunpack.c.l.b16 %v498
      %v893 = vunpack.c.l.b16 %v499
      %v894 = vunpack.c.l.b16 %v500
      %v895 = vunpack.c.l.b16 %v501
      %v896 = vunpack.c.l.b16 %v502
      %v897 = vunpack.c.l.b16 %v503
      %v898 = vunpack.c.l.b16 %v504
      %v899 = vunpack.c.l.b16 %v505
      %v900 = vunpack.c.l.b16 %v506
      %v901 = vunpack.c.l.b16 %v507
      %v902 = vunpack.c.l.b16 %v508
      %v903 = vunpack.c.l.b16 %v509
      %v904 = vunpack.c.l.b16 %v510
      %v905 = vunpack.c.l.b16 %v511
      %v906 = vunpack.c.l.b16 %v512
      %v907 = vunpack.c.l.b16 %v513
      %v908 = vpack.c.b16 %v877, %v876
      %v909 = vpack.c.b16 %v879, %v878
      %v910 = vpack.c.b16 %v881, %v880
      %v911 = vpack.c.b16 %v883, %v882
      %v912 = vpack.c.b16 %v885, %v884
      %v913 = vpack.c.b16 %v887, %v886
      %v914 = vpack.c.b16 %v889, %v888
      %v915 = vpack.c.b16 %v891, %v890
      %v916 = vpack.c.b16 %v893, %v892
      %v917 = vpack.c.b16 %v895, %v894
      %v918 = vpack.c.b16 %v897, %v896
      %v919 = vpack.c.b16 %v899, %v898
      %v920 = vpack.c.b16 %v901, %v900
      %v921 = vpack.c.b16 %v903, %v902
      %v922 = vpack.c.b16 %v905, %v904
      %v923 = vpack.c.b16 %v907, %v906
      %v956 = vunpack.c.l.b16 %v514
      %v957 = vunpack.c.l.b16 %v515
      %v958 = vunpack.c.l.b16 %v516
      %v959 = vunpack.c.l.b16 %v517
      %v960 = vunpack.c.l.b16 %v518
      %v961 = vunpack.c.l.b16 %v519
      %v962 = vunpack.c.l.b16 %v520
      %v963 = vunpack.c.l.b16 %v521
      %v964 = vunpack.c.l.b16 %v522
      %v965 = vunpack.c.l.b16 %v523
      %v966 = vunpack.c.l.b16 %v524
      %v967 = vunpack.c.l.b16 %v525
      %v968 = vunpack.c.l.b16 %v526
      %v969 = vunpack.c.l.b16 %v527
      %v970 = vunpack.c.l.b16 %v528
      %v971 = vunpack.c.l.b16 %v529
      %v972 = vpack.c.b16 %v957, %v956
      %v973 = vpack.c.b16 %v959, %v958
      %v974 = vpack.c.b16 %v961, %v960
      %v975 = vpack.c.b16 %v963, %v962
      %v976 = vpack.c.b16 %v965, %v964
      %v977 = vpack.c.b16 %v967, %v966
      %v978 = vpack.c.b16 %v969, %v968
      %v979 = vpack.c.b16 %v971, %v970
      %988 = vmatpush.bf16.msra.mxu0 %v979
      %989 = vmatpush.bf16.msra.mxu0 %v978
      %990 = vmatpush.bf16.msra.mxu0 %v977
      %991 = vmatpush.bf16.msra.mxu0 %v976
      %992 = vmatpush.bf16.msra.mxu0 %v975
      %993 = vmatpush.bf16.msra.mxu0 %v974
      %994 = vmatpush.bf16.msra.mxu0 %v973
      %995 = vmatpush.bf16.msra.mxu0 %v972
      %996 = vmatmul.bf16.gmra.mxu0 %v908
      %v997 = vpop.f32.mrf.mxu0
      %v998 = vadd.f32 %v765, %v997
      %v999 = vpop.f32.mrf.mxu0
      %v1000 = vadd.f32 %v767, %v999
      %1001 = vmatmul.bf16.gmra.mxu0 %v909
      %v1002 = vpop.f32.mrf.mxu0
      %v1003 = vadd.f32 %v770, %v1002
      %v1004 = vpop.f32.mrf.mxu0
      %v1005 = vadd.f32 %v772, %v1004
      %1006 = vmatmul.bf16.gmra.mxu0 %v910
      %v1007 = vpop.f32.mrf.mxu0
      %v1008 = vadd.f32 %v775, %v1007
      %v1009 = vpop.f32.mrf.mxu0
      %v1010 = vadd.f32 %v777, %v1009
      %1011 = vmatmul.bf16.gmra.mxu0 %v911
      %v1012 = vpop.f32.mrf.mxu0
      %v1013 = vadd.f32 %v780, %v1012
      %v1014 = vpop.f32.mrf.mxu0
      %v1015 = vadd.f32 %v782, %v1014
      %1016 = vmatmul.bf16.gmra.mxu0 %v912
      %v1017 = vpop.f32.mrf.mxu0
      %v1018 = vadd.f32 %v785, %v1017
      %v1019 = vpop.f32.mrf.mxu0
      %v1020 = vadd.f32 %v787, %v1019
      %1021 = vmatmul.bf16.gmra.mxu0 %v913
      %v1022 = vpop.f32.mrf.mxu0
      %v1023 = vadd.f32 %v790, %v1022
      %v1024 = vpop.f32.mrf.mxu0
      %v1025 = vadd.f32 %v792, %v1024
      %1026 = vmatmul.bf16.gmra.mxu0 %v914
      %v1027 = vpop.f32.mrf.mxu0
      %v1028 = vadd.f32 %v795, %v1027
      %v1029 = vpop.f32.mrf.mxu0
      %v1030 = vadd.f32 %v797, %v1029
      %1031 = vmatmul.bf16.gmra.mxu0 %v915
      %v1032 = vpop.f32.mrf.mxu0
      %v1033 = vadd.f32 %v800, %v1032
      %v1034 = vpop.f32.mrf.mxu0
      %v1035 = vadd.f32 %v802, %v1034
      %1036 = vmatmul.bf16.gmra.mxu0 %v916
      %v1037 = vpop.f32.mrf.mxu0
      %v1038 = vadd.f32 %v805, %v1037
      %v1039 = vpop.f32.mrf.mxu0
      %v1040 = vadd.f32 %v807, %v1039
      %1041 = vmatmul.bf16.gmra.mxu0 %v917
      %v1042 = vpop.f32.mrf.mxu0
      %v1043 = vadd.f32 %v810, %v1042
      %v1044 = vpop.f32.mrf.mxu0
      %v1045 = vadd.f32 %v812, %v1044
      %1046 = vmatmul.bf16.gmra.mxu0 %v918
      %v1047 = vpop.f32.mrf.mxu0
      %v1048 = vadd.f32 %v815, %v1047
      %v1049 = vpop.f32.mrf.mxu0
      %v1050 = vadd.f32 %v817, %v1049
      %1051 = vmatmul.bf16.gmra.mxu0 %v919
      %v1052 = vpop.f32.mrf.mxu0
      %v1053 = vadd.f32 %v820, %v1052
      %v1054 = vpop.f32.mrf.mxu0
      %v1055 = vadd.f32 %v822, %v1054
      %1056 = vmatmul.bf16.gmra.mxu0 %v920
      %v1057 = vpop.f32.mrf.mxu0
      %v1058 = vadd.f32 %v825, %v1057
      %v1059 = vpop.f32.mrf.mxu0
      %v1060 = vadd.f32 %v827, %v1059
      %1061 = vmatmul.bf16.gmra.mxu0 %v921
      %v1062 = vpop.f32.mrf.mxu0
      %v1063 = vadd.f32 %v830, %v1062
      %v1064 = vpop.f32.mrf.mxu0
      %v1065 = vadd.f32 %v832, %v1064
      %1066 = vmatmul.bf16.gmra.mxu0 %v922
      %v1067 = vpop.f32.mrf.mxu0
      %v1068 = vadd.f32 %v835, %v1067
      %v1069 = vpop.f32.mrf.mxu0
      %v1070 = vadd.f32 %v837, %v1069
      %1071 = vmatmul.bf16.gmra.mxu0 %v923
      %v1072 = vpop.f32.mrf.mxu0
      %v1073 = vadd.f32 %v840, %v1072
      %v1074 = vpop.f32.mrf.mxu0
      %v1075 = vadd.f32 %v842, %v1074
      %1076 = vdwg.mxu0
      %v1077 = vld [vmem:[#allocation2 + $0x2] sm:$0xff]
      %v1078 = vld [vmem:[#allocation2 + $0xa] sm:$0xff]
      %v1079 = vld [vmem:[#allocation2 + $0x1a] sm:$0xff]
      %v1080 = vld [vmem:[#allocation2 + $0x22] sm:$0xff]
      %v1081 = vld [vmem:[#allocation2 + $0x32] sm:$0xff]
      %v1082 = vld [vmem:[#allocation2 + $0x3a] sm:$0xff]
      %v1083 = vld [vmem:[#allocation2 + $0x4a] sm:$0xff]
      %v1084 = vld [vmem:[#allocation2 + $0x52] sm:$0xff]
      %v1085 = vld [vmem:[#allocation2 + $0x62] sm:$0xff]
      %v1086 = vld [vmem:[#allocation2 + $0x6a] sm:$0xff]
      %v1087 = vld [vmem:[#allocation2 + $0x7a] sm:$0xff]
      %v1088 = vld [vmem:[#allocation2 + $0x82] sm:$0xff]
      %v1089 = vld [vmem:[#allocation2 + $0x92] sm:$0xff]
      %v1090 = vld [vmem:[#allocation2 + $0x9a] sm:$0xff]
      %v1091 = vld [vmem:[#allocation2 + $0xaa] sm:$0xff]
      %v1092 = vld [vmem:[#allocation2 + $0xb2] sm:$0xff]
      %v1093 = vld [vmem:[#allocation2 + $0xc2] sm:$0xff]
      %v1094 = vld [vmem:[#allocation2 + $0xca] sm:$0xff]
      %v1095 = vld [vmem:[#allocation2 + $0xda] sm:$0xff]
      %v1096 = vld [vmem:[#allocation2 + $0xe2] sm:$0xff]
      %v1097 = vld [vmem:[#allocation2 + $0xf2] sm:$0xff]
      %v1098 = vld [vmem:[#allocation2 + $0xfa] sm:$0xff]
      %v1099 = vld [vmem:[#allocation2 + $0x10a] sm:$0xff]
      %v1100 = vld [vmem:[#allocation2 + $0x112] sm:$0xff]
      %v1101 = vld [vmem:[#allocation2 + $0x122] sm:$0xff]
      %v1102 = vld [vmem:[#allocation2 + $0x12a] sm:$0xff]
      %v1103 = vld [vmem:[#allocation2 + $0x13a] sm:$0xff]
      %v1104 = vld [vmem:[#allocation2 + $0x142] sm:$0xff]
      %v1105 = vld [vmem:[#allocation2 + $0x152] sm:$0xff]
      %v1106 = vld [vmem:[#allocation2 + $0x15a] sm:$0xff]
      %v1107 = vld [vmem:[#allocation2 + $0x16a] sm:$0xff]
      %v1108 = vld [vmem:[#allocation2 + $0x172] sm:$0xff]
      %v1109 = vpack.c.bf16 %v1077, %v1077
      %v1110 = vpack.c.bf16 %v1078, %v1078
      %v1111 = vpack.c.bf16 %v1079, %v1079
      %v1112 = vpack.c.bf16 %v1080, %v1080
      %v1113 = vpack.c.bf16 %v1081, %v1081
      %v1114 = vpack.c.bf16 %v1082, %v1082
      %v1115 = vpack.c.bf16 %v1083, %v1083
      %v1116 = vpack.c.bf16 %v1084, %v1084
      %v1117 = vpack.c.bf16 %v1085, %v1085
      %v1118 = vpack.c.bf16 %v1086, %v1086
      %v1119 = vpack.c.bf16 %v1087, %v1087
      %v1120 = vpack.c.bf16 %v1088, %v1088
      %v1121 = vpack.c.bf16 %v1089, %v1089
      %v1122 = vpack.c.bf16 %v1090, %v1090
      %v1123 = vpack.c.bf16 %v1091, %v1091
      %v1124 = vpack.c.bf16 %v1092, %v1092
      %v1125 = vpack.c.bf16 %v1093, %v1093
      %v1126 = vpack.c.bf16 %v1094, %v1094
      %v1127 = vpack.c.bf16 %v1095, %v1095
      %v1128 = vpack.c.bf16 %v1096, %v1096
      %v1129 = vpack.c.bf16 %v1097, %v1097
      %v1130 = vpack.c.bf16 %v1098, %v1098
      %v1131 = vpack.c.bf16 %v1099, %v1099
      %v1132 = vpack.c.bf16 %v1100, %v1100
      %v1133 = vpack.c.bf16 %v1101, %v1101
      %v1134 = vpack.c.bf16 %v1102, %v1102
      %v1135 = vpack.c.bf16 %v1103, %v1103
      %v1136 = vpack.c.bf16 %v1104, %v1104
      %v1137 = vpack.c.bf16 %v1105, %v1105
      %v1138 = vpack.c.bf16 %v1106, %v1106
      %v1139 = vpack.c.bf16 %v1107, %v1107
      %v1140 = vpack.c.bf16 %v1108, %v1108
      %s1141 = scalar_lea.vmem %s1, 128
      %v1142 = vld [vmem:[%s1141] sm:$0xf]
      %v1143 = vld [vmem:[%s1141 + $0x4] sm:$0xf]
      %v1144 = vld [vmem:[%s1141 + $0x8] sm:$0xf]
      %v1145 = vld [vmem:[%s1141 + $0xc] sm:$0xf]
      %v1146 = vld [vmem:[%s1141 + $0x10] sm:$0xf]
      %v1147 = vld [vmem:[%s1141 + $0x14] sm:$0xf]
      %v1148 = vld [vmem:[%s1141 + $0x18] sm:$0xf]
      %v1149 = vld [vmem:[%s1141 + $0x1c] sm:$0xf]
      %v1150 = vld [vmem:[%s1141 + $0x20] sm:$0xf]
      %v1151 = vld [vmem:[%s1141 + $0x24] sm:$0xf]
      %v1152 = vld [vmem:[%s1141 + $0x28] sm:$0xf]
      %v1153 = vld [vmem:[%s1141 + $0x2c] sm:$0xf]
      %v1154 = vld [vmem:[%s1141 + $0x30] sm:$0xf]
      %v1155 = vld [vmem:[%s1141 + $0x34] sm:$0xf]
      %v1156 = vld [vmem:[%s1141 + $0x38] sm:$0xf]
      %v1157 = vld [vmem:[%s1141 + $0x3c] sm:$0xf]
      %v1190 = vunpack.c.l.b16 %v1109
      %v1191 = vunpack.c.l.b16 %v1110
      %v1192 = vunpack.c.l.b16 %v1111
      %v1193 = vunpack.c.l.b16 %v1112
      %v1194 = vunpack.c.l.b16 %v1113
      %v1195 = vunpack.c.l.b16 %v1114
      %v1196 = vunpack.c.l.b16 %v1115
      %v1197 = vunpack.c.l.b16 %v1116
      %v1198 = vunpack.c.l.b16 %v1117
      %v1199 = vunpack.c.l.b16 %v1118
      %v1200 = vunpack.c.l.b16 %v1119
      %v1201 = vunpack.c.l.b16 %v1120
      %v1202 = vunpack.c.l.b16 %v1121
      %v1203 = vunpack.c.l.b16 %v1122
      %v1204 = vunpack.c.l.b16 %v1123
      %v1205 = vunpack.c.l.b16 %v1124
      %v1206 = vunpack.c.l.b16 %v1125
      %v1207 = vunpack.c.l.b16 %v1126
      %v1208 = vunpack.c.l.b16 %v1127
      %v1209 = vunpack.c.l.b16 %v1128
      %v1210 = vunpack.c.l.b16 %v1129
      %v1211 = vunpack.c.l.b16 %v1130
      %v1212 = vunpack.c.l.b16 %v1131
      %v1213 = vunpack.c.l.b16 %v1132
      %v1214 = vunpack.c.l.b16 %v1133
      %v1215 = vunpack.c.l.b16 %v1134
      %v1216 = vunpack.c.l.b16 %v1135
      %v1217 = vunpack.c.l.b16 %v1136
      %v1218 = vunpack.c.l.b16 %v1137
      %v1219 = vunpack.c.l.b16 %v1138
      %v1220 = vunpack.c.l.b16 %v1139
      %v1221 = vunpack.c.l.b16 %v1140
      %v1222 = vpack.c.b16 %v1191, %v1190
      %v1223 = vpack.c.b16 %v1193, %v1192
      %v1224 = vpack.c.b16 %v1195, %v1194
      %v1225 = vpack.c.b16 %v1197, %v1196
      %v1226 = vpack.c.b16 %v1199, %v1198
      %v1227 = vpack.c.b16 %v1201, %v1200
      %v1228 = vpack.c.b16 %v1203, %v1202
      %v1229 = vpack.c.b16 %v1205, %v1204
      %v1230 = vpack.c.b16 %v1207, %v1206
      %v1231 = vpack.c.b16 %v1209, %v1208
      %v1232 = vpack.c.b16 %v1211, %v1210
      %v1233 = vpack.c.b16 %v1213, %v1212
      %v1234 = vpack.c.b16 %v1215, %v1214
      %v1235 = vpack.c.b16 %v1217, %v1216
      %v1236 = vpack.c.b16 %v1219, %v1218
      %v1237 = vpack.c.b16 %v1221, %v1220
      %v1270 = vunpack.c.l.b16 %v1142
      %v1271 = vunpack.c.l.b16 %v1143
      %v1272 = vunpack.c.l.b16 %v1144
      %v1273 = vunpack.c.l.b16 %v1145
      %v1274 = vunpack.c.l.b16 %v1146
      %v1275 = vunpack.c.l.b16 %v1147
      %v1276 = vunpack.c.l.b16 %v1148
      %v1277 = vunpack.c.l.b16 %v1149
      %v1278 = vunpack.c.l.b16 %v1150
      %v1279 = vunpack.c.l.b16 %v1151
      %v1280 = vunpack.c.l.b16 %v1152
      %v1281 = vunpack.c.l.b16 %v1153
      %v1282 = vunpack.c.l.b16 %v1154
      %v1283 = vunpack.c.l.b16 %v1155
      %v1284 = vunpack.c.l.b16 %v1156
      %v1285 = vunpack.c.l.b16 %v1157
      %v1286 = vpack.c.b16 %v1271, %v1270
      %v1287 = vpack.c.b16 %v1273, %v1272
      %v1288 = vpack.c.b16 %v1275, %v1274
      %v1289 = vpack.c.b16 %v1277, %v1276
      %v1290 = vpack.c.b16 %v1279, %v1278
      %v1291 = vpack.c.b16 %v1281, %v1280
      %v1292 = vpack.c.b16 %v1283, %v1282
      %v1293 = vpack.c.b16 %v1285, %v1284
      %1302 = vmatpush.bf16.msra.mxu0 %v1293
      %1303 = vmatpush.bf16.msra.mxu0 %v1292
      %1304 = vmatpush.bf16.msra.mxu0 %v1291
      %1305 = vmatpush.bf16.msra.mxu0 %v1290
      %1306 = vmatpush.bf16.msra.mxu0 %v1289
      %1307 = vmatpush.bf16.msra.mxu0 %v1288
      %1308 = vmatpush.bf16.msra.mxu0 %v1287
      %1309 = vmatpush.bf16.msra.mxu0 %v1286
      %1310 = vmatmul.bf16.gmra.mxu0 %v1222
      %v1311 = vpop.f32.mrf.mxu0
      %v1312 = vadd.f32 0.0, %v1311
      %v1313 = vpop.f32.mrf.mxu0
      %v1314 = vadd.f32 0.0, %v1313
      %1315 = vmatmul.bf16.gmra.mxu0 %v1223
      %v1316 = vpop.f32.mrf.mxu0
      %v1317 = vadd.f32 0.0, %v1316
      %v1318 = vpop.f32.mrf.mxu0
      %v1319 = vadd.f32 0.0, %v1318
      %1320 = vmatmul.bf16.gmra.mxu0 %v1224
      %v1321 = vpop.f32.mrf.mxu0
      %v1322 = vadd.f32 0.0, %v1321
      %v1323 = vpop.f32.mrf.mxu0
      %v1324 = vadd.f32 0.0, %v1323
      %1325 = vmatmul.bf16.gmra.mxu0 %v1225
      %v1326 = vpop.f32.mrf.mxu0
      %v1327 = vadd.f32 0.0, %v1326
      %v1328 = vpop.f32.mrf.mxu0
      %v1329 = vadd.f32 0.0, %v1328
      %1330 = vmatmul.bf16.gmra.mxu0 %v1226
      %v1331 = vpop.f32.mrf.mxu0
      %v1332 = vadd.f32 0.0, %v1331
      %v1333 = vpop.f32.mrf.mxu0
      %v1334 = vadd.f32 0.0, %v1333
      %1335 = vmatmul.bf16.gmra.mxu0 %v1227
      %v1336 = vpop.f32.mrf.mxu0
      %v1337 = vadd.f32 0.0, %v1336
      %v1338 = vpop.f32.mrf.mxu0
      %v1339 = vadd.f32 0.0, %v1338
      %1340 = vmatmul.bf16.gmra.mxu0 %v1228
      %v1341 = vpop.f32.mrf.mxu0
      %v1342 = vadd.f32 0.0, %v1341
      %v1343 = vpop.f32.mrf.mxu0
      %v1344 = vadd.f32 0.0, %v1343
      %1345 = vmatmul.bf16.gmra.mxu0 %v1229
      %v1346 = vpop.f32.mrf.mxu0
      %v1347 = vadd.f32 0.0, %v1346
      %v1348 = vpop.f32.mrf.mxu0
      %v1349 = vadd.f32 0.0, %v1348
      %1350 = vmatmul.bf16.gmra.mxu0 %v1230
      %v1351 = vpop.f32.mrf.mxu0
      %v1352 = vadd.f32 0.0, %v1351
      %v1353 = vpop.f32.mrf.mxu0
      %v1354 = vadd.f32 0.0, %v1353
      %1355 = vmatmul.bf16.gmra.mxu0 %v1231
      %v1356 = vpop.f32.mrf.mxu0
      %v1357 = vadd.f32 0.0, %v1356
      %v1358 = vpop.f32.mrf.mxu0
      %v1359 = vadd.f32 0.0, %v1358
      %1360 = vmatmul.bf16.gmra.mxu0 %v1232
      %v1361 = vpop.f32.mrf.mxu0
      %v1362 = vadd.f32 0.0, %v1361
      %v1363 = vpop.f32.mrf.mxu0
      %v1364 = vadd.f32 0.0, %v1363
      %1365 = vmatmul.bf16.gmra.mxu0 %v1233
      %v1366 = vpop.f32.mrf.mxu0
      %v1367 = vadd.f32 0.0, %v1366
      %v1368 = vpop.f32.mrf.mxu0
      %v1369 = vadd.f32 0.0, %v1368
      %1370 = vmatmul.bf16.gmra.mxu0 %v1234
      %v1371 = vpop.f32.mrf.mxu0
      %v1372 = vadd.f32 0.0, %v1371
      %v1373 = vpop.f32.mrf.mxu0
      %v1374 = vadd.f32 0.0, %v1373
      %1375 = vmatmul.bf16.gmra.mxu0 %v1235
      %v1376 = vpop.f32.mrf.mxu0
      %v1377 = vadd.f32 0.0, %v1376
      %v1378 = vpop.f32.mrf.mxu0
      %v1379 = vadd.f32 0.0, %v1378
      %1380 = vmatmul.bf16.gmra.mxu0 %v1236
      %v1381 = vpop.f32.mrf.mxu0
      %v1382 = vadd.f32 0.0, %v1381
      %v1383 = vpop.f32.mrf.mxu0
      %v1384 = vadd.f32 0.0, %v1383
      %1385 = vmatmul.bf16.gmra.mxu0 %v1237
      %v1386 = vpop.f32.mrf.mxu0
      %v1387 = vadd.f32 0.0, %v1386
      %v1388 = vpop.f32.mrf.mxu0
      %v1389 = vadd.f32 0.0, %v1388
      %1390 = vdwg.mxu0
      %v1391 = vadd.f32 %v998, %v1312
      %v1392 = vadd.f32 %v1000, %v1314
      %v1393 = vadd.f32 %v1003, %v1317
      %v1394 = vadd.f32 %v1005, %v1319
      %v1395 = vadd.f32 %v1008, %v1322
      %v1396 = vadd.f32 %v1010, %v1324
      %v1397 = vadd.f32 %v1013, %v1327
      %v1398 = vadd.f32 %v1015, %v1329
      %v1399 = vadd.f32 %v1018, %v1332
      %v1400 = vadd.f32 %v1020, %v1334
      %v1401 = vadd.f32 %v1023, %v1337
      %v1402 = vadd.f32 %v1025, %v1339
      %v1403 = vadd.f32 %v1028, %v1342
      %v1404 = vadd.f32 %v1030, %v1344
      %v1405 = vadd.f32 %v1033, %v1347
      %v1406 = vadd.f32 %v1035, %v1349
      %v1407 = vadd.f32 %v1038, %v1352
      %v1408 = vadd.f32 %v1040, %v1354
      %v1409 = vadd.f32 %v1043, %v1357
      %v1410 = vadd.f32 %v1045, %v1359
      %v1411 = vadd.f32 %v1048, %v1362
      %v1412 = vadd.f32 %v1050, %v1364
      %v1413 = vadd.f32 %v1053, %v1367
      %v1414 = vadd.f32 %v1055, %v1369
      %v1415 = vadd.f32 %v1058, %v1372
      %v1416 = vadd.f32 %v1060, %v1374
      %v1417 = vadd.f32 %v1063, %v1377
      %v1418 = vadd.f32 %v1065, %v1379
      %v1419 = vadd.f32 %v1068, %v1382
      %v1420 = vadd.f32 %v1070, %v1384
      %v1421 = vadd.f32 %v1073, %v1387
      %v1422 = vadd.f32 %v1075, %v1389
      %v1423 = vld [vmem:[%s417] sm:$0xff]
      %v1424 = vld [vmem:[%s417 + $0x8] sm:$0xff]
      %v1425 = vld [vmem:[%s417 + $0x18] sm:$0xff]
      %v1426 = vld [vmem:[%s417 + $0x20] sm:$0xff]
      %v1427 = vld [vmem:[%s417 + $0x30] sm:$0xff]
      %v1428 = vld [vmem:[%s417 + $0x38] sm:$0xff]
      %v1429 = vld [vmem:[%s417 + $0x48] sm:$0xff]
      %v1430 = vld [vmem:[%s417 + $0x50] sm:$0xff]
      %v1431 = vld [vmem:[%s417 + $0x60] sm:$0xff]
      %v1432 = vld [vmem:[%s417 + $0x68] sm:$0xff]
      %v1433 = vld [vmem:[%s417 + $0x78] sm:$0xff]
      %v1434 = vld [vmem:[%s417 + $0x80] sm:$0xff]
      %v1435 = vld [vmem:[%s417 + $0x90] sm:$0xff]
      %v1436 = vld [vmem:[%s417 + $0x98] sm:$0xff]
      %v1437 = vld [vmem:[%s417 + $0xa8] sm:$0xff]
      %v1438 = vld [vmem:[%s417 + $0xb0] sm:$0xff]
      %v1439 = vld [vmem:[%s417 + $0xc0] sm:$0xff]
      %v1440 = vld [vmem:[%s417 + $0xc8] sm:$0xff]
      %v1441 = vld [vmem:[%s417 + $0xd8] sm:$0xff]
      %v1442 = vld [vmem:[%s417 + $0xe0] sm:$0xff]
      %v1443 = vld [vmem:[%s417 + $0xf0] sm:$0xff]
      %v1444 = vld [vmem:[%s417 + $0xf8] sm:$0xff]
      %v1445 = vld [vmem:[%s417 + $0x108] sm:$0xff]
      %v1446 = vld [vmem:[%s417 + $0x110] sm:$0xff]
      %v1447 = vld [vmem:[%s417 + $0x120] sm:$0xff]
      %v1448 = vld [vmem:[%s417 + $0x128] sm:$0xff]
      %v1449 = vld [vmem:[%s417 + $0x138] sm:$0xff]
      %v1450 = vld [vmem:[%s417 + $0x140] sm:$0xff]
      %v1451 = vld [vmem:[%s417 + $0x150] sm:$0xff]
      %v1452 = vld [vmem:[%s417 + $0x158] sm:$0xff]
      %v1453 = vld [vmem:[%s417 + $0x168] sm:$0xff]
      %v1454 = vld [vmem:[%s417 + $0x170] sm:$0xff]
      %v1455 = vpack.c.bf16 %v1423, %v1423
      %v1456 = vpack.c.bf16 %v1424, %v1424
      %v1457 = vpack.c.bf16 %v1425, %v1425
      %v1458 = vpack.c.bf16 %v1426, %v1426
      %v1459 = vpack.c.bf16 %v1427, %v1427
      %v1460 = vpack.c.bf16 %v1428, %v1428
      %v1461 = vpack.c.bf16 %v1429, %v1429
      %v1462 = vpack.c.bf16 %v1430, %v1430
      %v1463 = vpack.c.bf16 %v1431, %v1431
      %v1464 = vpack.c.bf16 %v1432, %v1432
      %v1465 = vpack.c.bf16 %v1433, %v1433
      %v1466 = vpack.c.bf16 %v1434, %v1434
      %v1467 = vpack.c.bf16 %v1435, %v1435
      %v1468 = vpack.c.bf16 %v1436, %v1436
      %v1469 = vpack.c.bf16 %v1437, %v1437
      %v1470 = vpack.c.bf16 %v1438, %v1438
      %v1471 = vpack.c.bf16 %v1439, %v1439
      %v1472 = vpack.c.bf16 %v1440, %v1440
      %v1473 = vpack.c.bf16 %v1441, %v1441
      %v1474 = vpack.c.bf16 %v1442, %v1442
      %v1475 = vpack.c.bf16 %v1443, %v1443
      %v1476 = vpack.c.bf16 %v1444, %v1444
      %v1477 = vpack.c.bf16 %v1445, %v1445
      %v1478 = vpack.c.bf16 %v1446, %v1446
      %v1479 = vpack.c.bf16 %v1447, %v1447
      %v1480 = vpack.c.bf16 %v1448, %v1448
      %v1481 = vpack.c.bf16 %v1449, %v1449
      %v1482 = vpack.c.bf16 %v1450, %v1450
      %v1483 = vpack.c.bf16 %v1451, %v1451
      %v1484 = vpack.c.bf16 %v1452, %v1452
      %v1485 = vpack.c.bf16 %v1453, %v1453
      %v1486 = vpack.c.bf16 %v1454, %v1454
      %s1487 = scalar_lea.vmem %s1, 192
      %v1488 = vld [vmem:[%s1487] sm:$0xf]
      %v1489 = vld [vmem:[%s1487 + $0x4] sm:$0xf]
      %v1490 = vld [vmem:[%s1487 + $0x8] sm:$0xf]
      %v1491 = vld [vmem:[%s1487 + $0xc] sm:$0xf]
      %v1492 = vld [vmem:[%s1487 + $0x10] sm:$0xf]
      %v1493 = vld [vmem:[%s1487 + $0x14] sm:$0xf]
      %v1494 = vld [vmem:[%s1487 + $0x18] sm:$0xf]
      %v1495 = vld [vmem:[%s1487 + $0x1c] sm:$0xf]
      %v1496 = vld [vmem:[%s1487 + $0x20] sm:$0xf]
      %v1497 = vld [vmem:[%s1487 + $0x24] sm:$0xf]
      %v1498 = vld [vmem:[%s1487 + $0x28] sm:$0xf]
      %v1499 = vld [vmem:[%s1487 + $0x2c] sm:$0xf]
      %v1500 = vld [vmem:[%s1487 + $0x30] sm:$0xf]
      %v1501 = vld [vmem:[%s1487 + $0x34] sm:$0xf]
      %v1502 = vld [vmem:[%s1487 + $0x38] sm:$0xf]
      %v1503 = vld [vmem:[%s1487 + $0x3c] sm:$0xf]
      %v1536 = vunpack.c.l.b16 %v1455
      %v1537 = vunpack.c.l.b16 %v1456
      %v1538 = vunpack.c.l.b16 %v1457
      %v1539 = vunpack.c.l.b16 %v1458
      %v1540 = vunpack.c.l.b16 %v1459
      %v1541 = vunpack.c.l.b16 %v1460
      %v1542 = vunpack.c.l.b16 %v1461
      %v1543 = vunpack.c.l.b16 %v1462
      %v1544 = vunpack.c.l.b16 %v1463
      %v1545 = vunpack.c.l.b16 %v1464
      %v1546 = vunpack.c.l.b16 %v1465
      %v1547 = vunpack.c.l.b16 %v1466
      %v1548 = vunpack.c.l.b16 %v1467
      %v1549 = vunpack.c.l.b16 %v1468
      %v1550 = vunpack.c.l.b16 %v1469
      %v1551 = vunpack.c.l.b16 %v1470
      %v1552 = vunpack.c.l.b16 %v1471
      %v1553 = vunpack.c.l.b16 %v1472
      %v1554 = vunpack.c.l.b16 %v1473
      %v1555 = vunpack.c.l.b16 %v1474
      %v1556 = vunpack.c.l.b16 %v1475
      %v1557 = vunpack.c.l.b16 %v1476
      %v1558 = vunpack.c.l.b16 %v1477
      %v1559 = vunpack.c.l.b16 %v1478
      %v1560 = vunpack.c.l.b16 %v1479
      %v1561 = vunpack.c.l.b16 %v1480
      %v1562 = vunpack.c.l.b16 %v1481
      %v1563 = vunpack.c.l.b16 %v1482
      %v1564 = vunpack.c.l.b16 %v1483
      %v1565 = vunpack.c.l.b16 %v1484
      %v1566 = vunpack.c.l.b16 %v1485
      %v1567 = vunpack.c.l.b16 %v1486
      %v1568 = vpack.c.b16 %v1537, %v1536
      %v1569 = vpack.c.b16 %v1539, %v1538
      %v1570 = vpack.c.b16 %v1541, %v1540
      %v1571 = vpack.c.b16 %v1543, %v1542
      %v1572 = vpack.c.b16 %v1545, %v1544
      %v1573 = vpack.c.b16 %v1547, %v1546
      %v1574 = vpack.c.b16 %v1549, %v1548
      %v1575 = vpack.c.b16 %v1551, %v1550
      %v1576 = vpack.c.b16 %v1553, %v1552
      %v1577 = vpack.c.b16 %v1555, %v1554
      %v1578 = vpack.c.b16 %v1557, %v1556
      %v1579 = vpack.c.b16 %v1559, %v1558
      %v1580 = vpack.c.b16 %v1561, %v1560
      %v1581 = vpack.c.b16 %v1563, %v1562
      %v1582 = vpack.c.b16 %v1565, %v1564
      %v1583 = vpack.c.b16 %v1567, %v1566
      %v1616 = vunpack.c.l.b16 %v1488
      %v1617 = vunpack.c.l.b16 %v1489
      %v1618 = vunpack.c.l.b16 %v1490
      %v1619 = vunpack.c.l.b16 %v1491
      %v1620 = vunpack.c.l.b16 %v1492
      %v1621 = vunpack.c.l.b16 %v1493
      %v1622 = vunpack.c.l.b16 %v1494
      %v1623 = vunpack.c.l.b16 %v1495
      %v1624 = vunpack.c.l.b16 %v1496
      %v1625 = vunpack.c.l.b16 %v1497
      %v1626 = vunpack.c.l.b16 %v1498
      %v1627 = vunpack.c.l.b16 %v1499
      %v1628 = vunpack.c.l.b16 %v1500
      %v1629 = vunpack.c.l.b16 %v1501
      %v1630 = vunpack.c.l.b16 %v1502
      %v1631 = vunpack.c.l.b16 %v1503
      %v1632 = vpack.c.b16 %v1617, %v1616
      %v1633 = vpack.c.b16 %v1619, %v1618
      %v1634 = vpack.c.b16 %v1621, %v1620
      %v1635 = vpack.c.b16 %v1623, %v1622
      %v1636 = vpack.c.b16 %v1625, %v1624
      %v1637 = vpack.c.b16 %v1627, %v1626
      %v1638 = vpack.c.b16 %v1629, %v1628
      %v1639 = vpack.c.b16 %v1631, %v1630
      %1648 = vmatpush.bf16.msra.mxu0 %v1639
      %1649 = vmatpush.bf16.msra.mxu0 %v1638
      %1650 = vmatpush.bf16.msra.mxu0 %v1637
      %1651 = vmatpush.bf16.msra.mxu0 %v1636
      %1652 = vmatpush.bf16.msra.mxu0 %v1635
      %1653 = vmatpush.bf16.msra.mxu0 %v1634
      %1654 = vmatpush.bf16.msra.mxu0 %v1633
      %1655 = vmatpush.bf16.msra.mxu0 %v1632
      %1656 = vmatmul.bf16.gmra.mxu0 %v1568
      %v1657 = vpop.f32.mrf.mxu0
      %v1658 = vadd.f32 0.0, %v1657
      %v1659 = vpop.f32.mrf.mxu0
      %v1660 = vadd.f32 0.0, %v1659
      %1661 = vmatmul.bf16.gmra.mxu0 %v1569
      %v1662 = vpop.f32.mrf.mxu0
      %v1663 = vadd.f32 0.0, %v1662
      %v1664 = vpop.f32.mrf.mxu0
      %v1665 = vadd.f32 0.0, %v1664
      %1666 = vmatmul.bf16.gmra.mxu0 %v1570
      %v1667 = vpop.f32.mrf.mxu0
      %v1668 = vadd.f32 0.0, %v1667
      %v1669 = vpop.f32.mrf.mxu0
      %v1670 = vadd.f32 0.0, %v1669
      %1671 = vmatmul.bf16.gmra.mxu0 %v1571
      %v1672 = vpop.f32.mrf.mxu0
      %v1673 = vadd.f32 0.0, %v1672
      %v1674 = vpop.f32.mrf.mxu0
      %v1675 = vadd.f32 0.0, %v1674
      %1676 = vmatmul.bf16.gmra.mxu0 %v1572
      %v1677 = vpop.f32.mrf.mxu0
      %v1678 = vadd.f32 0.0, %v1677
      %v1679 = vpop.f32.mrf.mxu0
      %v1680 = vadd.f32 0.0, %v1679
      %1681 = vmatmul.bf16.gmra.mxu0 %v1573
      %v1682 = vpop.f32.mrf.mxu0
      %v1683 = vadd.f32 0.0, %v1682
      %v1684 = vpop.f32.mrf.mxu0
      %v1685 = vadd.f32 0.0, %v1684
      %1686 = vmatmul.bf16.gmra.mxu0 %v1574
      %v1687 = vpop.f32.mrf.mxu0
      %v1688 = vadd.f32 0.0, %v1687
      %v1689 = vpop.f32.mrf.mxu0
      %v1690 = vadd.f32 0.0, %v1689
      %1691 = vmatmul.bf16.gmra.mxu0 %v1575
      %v1692 = vpop.f32.mrf.mxu0
      %v1693 = vadd.f32 0.0, %v1692
      %v1694 = vpop.f32.mrf.mxu0
      %v1695 = vadd.f32 0.0, %v1694
      %1696 = vmatmul.bf16.gmra.mxu0 %v1576
      %v1697 = vpop.f32.mrf.mxu0
      %v1698 = vadd.f32 0.0, %v1697
      %v1699 = vpop.f32.mrf.mxu0
      %v1700 = vadd.f32 0.0, %v1699
      %1701 = vmatmul.bf16.gmra.mxu0 %v1577
      %v1702 = vpop.f32.mrf.mxu0
      %v1703 = vadd.f32 0.0, %v1702
      %v1704 = vpop.f32.mrf.mxu0
      %v1705 = vadd.f32 0.0, %v1704
      %1706 = vmatmul.bf16.gmra.mxu0 %v1578
      %v1707 = vpop.f32.mrf.mxu0
      %v1708 = vadd.f32 0.0, %v1707
      %v1709 = vpop.f32.mrf.mxu0
      %v1710 = vadd.f32 0.0, %v1709
      %1711 = vmatmul.bf16.gmra.mxu0 %v1579
      %v1712 = vpop.f32.mrf.mxu0
      %v1713 = vadd.f32 0.0, %v1712
      %v1714 = vpop.f32.mrf.mxu0
      %v1715 = vadd.f32 0.0, %v1714
      %1716 = vmatmul.bf16.gmra.mxu0 %v1580
      %v1717 = vpop.f32.mrf.mxu0
      %v1718 = vadd.f32 0.0, %v1717
      %v1719 = vpop.f32.mrf.mxu0
      %v1720 = vadd.f32 0.0, %v1719
      %1721 = vmatmul.bf16.gmra.mxu0 %v1581
      %v1722 = vpop.f32.mrf.mxu0
      %v1723 = vadd.f32 0.0, %v1722
      %v1724 = vpop.f32.mrf.mxu0
      %v1725 = vadd.f32 0.0, %v1724
      %1726 = vmatmul.bf16.gmra.mxu0 %v1582
      %v1727 = vpop.f32.mrf.mxu0
      %v1728 = vadd.f32 0.0, %v1727
      %v1729 = vpop.f32.mrf.mxu0
      %v1730 = vadd.f32 0.0, %v1729
      %1731 = vmatmul.bf16.gmra.mxu0 %v1583
      %v1732 = vpop.f32.mrf.mxu0
      %v1733 = vadd.f32 0.0, %v1732
      %v1734 = vpop.f32.mrf.mxu0
      %v1735 = vadd.f32 0.0, %v1734
      %1736 = vdwg.mxu0
      %v1737 = vadd.f32 %v1391, %v1658
      %v1738 = vadd.f32 %v1392, %v1660
      %v1739 = vadd.f32 %v1393, %v1663
      %v1740 = vadd.f32 %v1394, %v1665
      %v1741 = vadd.f32 %v1395, %v1668
      %v1742 = vadd.f32 %v1396, %v1670
      %v1743 = vadd.f32 %v1397, %v1673
      %v1744 = vadd.f32 %v1398, %v1675
      %v1745 = vadd.f32 %v1399, %v1678
      %v1746 = vadd.f32 %v1400, %v1680
      %v1747 = vadd.f32 %v1401, %v1683
      %v1748 = vadd.f32 %v1402, %v1685
      %v1749 = vadd.f32 %v1403, %v1688
      %v1750 = vadd.f32 %v1404, %v1690
      %v1751 = vadd.f32 %v1405, %v1693
      %v1752 = vadd.f32 %v1406, %v1695
      %v1753 = vadd.f32 %v1407, %v1698
      %v1754 = vadd.f32 %v1408, %v1700
      %v1755 = vadd.f32 %v1409, %v1703
      %v1756 = vadd.f32 %v1410, %v1705
      %v1757 = vadd.f32 %v1411, %v1708
      %v1758 = vadd.f32 %v1412, %v1710
      %v1759 = vadd.f32 %v1413, %v1713
      %v1760 = vadd.f32 %v1414, %v1715
      %v1761 = vadd.f32 %v1415, %v1718
      %v1762 = vadd.f32 %v1416, %v1720
      %v1763 = vadd.f32 %v1417, %v1723
      %v1764 = vadd.f32 %v1418, %v1725
      %v1765 = vadd.f32 %v1419, %v1728
      %v1766 = vadd.f32 %v1420, %v1730
      %v1767 = vadd.f32 %v1421, %v1733
      %v1768 = vadd.f32 %v1422, %v1735
      %v1769 = vld [vmem:[%s417 + $0x1] sm:$0xff]
      %v1770 = vld [vmem:[%s417 + $0x9] sm:$0xff]
      %v1771 = vld [vmem:[%s417 + $0x19] sm:$0xff]
      %v1772 = vld [vmem:[%s417 + $0x21] sm:$0xff]
      %v1773 = vld [vmem:[%s417 + $0x31] sm:$0xff]
      %v1774 = vld [vmem:[%s417 + $0x39] sm:$0xff]
      %v1775 = vld [vmem:[%s417 + $0x49] sm:$0xff]
      %v1776 = vld [vmem:[%s417 + $0x51] sm:$0xff]
      %v1777 = vld [vmem:[%s417 + $0x61] sm:$0xff]
      %v1778 = vld [vmem:[%s417 + $0x69] sm:$0xff]
      %v1779 = vld [vmem:[%s417 + $0x79] sm:$0xff]
      %v1780 = vld [vmem:[%s417 + $0x81] sm:$0xff]
      %v1781 = vld [vmem:[%s417 + $0x91] sm:$0xff]
      %v1782 = vld [vmem:[%s417 + $0x99] sm:$0xff]
      %v1783 = vld [vmem:[%s417 + $0xa9] sm:$0xff]
      %v1784 = vld [vmem:[%s417 + $0xb1] sm:$0xff]
      %v1785 = vld [vmem:[%s417 + $0xc1] sm:$0xff]
      %v1786 = vld [vmem:[%s417 + $0xc9] sm:$0xff]
      %v1787 = vld [vmem:[%s417 + $0xd9] sm:$0xff]
      %v1788 = vld [vmem:[%s417 + $0xe1] sm:$0xff]
      %v1789 = vld [vmem:[%s417 + $0xf1] sm:$0xff]
      %v1790 = vld [vmem:[%s417 + $0xf9] sm:$0xff]
      %v1791 = vld [vmem:[%s417 + $0x109] sm:$0xff]
      %v1792 = vld [vmem:[%s417 + $0x111] sm:$0xff]
      %v1793 = vld [vmem:[%s417 + $0x121] sm:$0xff]
      %v1794 = vld [vmem:[%s417 + $0x129] sm:$0xff]
      %v1795 = vld [vmem:[%s417 + $0x139] sm:$0xff]
      %v1796 = vld [vmem:[%s417 + $0x141] sm:$0xff]
      %v1797 = vld [vmem:[%s417 + $0x151] sm:$0xff]
      %v1798 = vld [vmem:[%s417 + $0x159] sm:$0xff]
      %v1799 = vld [vmem:[%s417 + $0x169] sm:$0xff]
      %v1800 = vld [vmem:[%s417 + $0x171] sm:$0xff]
      %v1801 = vpack.c.bf16 %v1769, %v1769
      %v1802 = vpack.c.bf16 %v1770, %v1770
      %v1803 = vpack.c.bf16 %v1771, %v1771
      %v1804 = vpack.c.bf16 %v1772, %v1772
      %v1805 = vpack.c.bf16 %v1773, %v1773
      %v1806 = vpack.c.bf16 %v1774, %v1774
      %v1807 = vpack.c.bf16 %v1775, %v1775
      %v1808 = vpack.c.bf16 %v1776, %v1776
      %v1809 = vpack.c.bf16 %v1777, %v1777
      %v1810 = vpack.c.bf16 %v1778, %v1778
      %v1811 = vpack.c.bf16 %v1779, %v1779
      %v1812 = vpack.c.bf16 %v1780, %v1780
      %v1813 = vpack.c.bf16 %v1781, %v1781
      %v1814 = vpack.c.bf16 %v1782, %v1782
      %v1815 = vpack.c.bf16 %v1783, %v1783
      %v1816 = vpack.c.bf16 %v1784, %v1784
      %v1817 = vpack.c.bf16 %v1785, %v1785
      %v1818 = vpack.c.bf16 %v1786, %v1786
      %v1819 = vpack.c.bf16 %v1787, %v1787
      %v1820 = vpack.c.bf16 %v1788, %v1788
      %v1821 = vpack.c.bf16 %v1789, %v1789
      %v1822 = vpack.c.bf16 %v1790, %v1790
      %v1823 = vpack.c.bf16 %v1791, %v1791
      %v1824 = vpack.c.bf16 %v1792, %v1792
      %v1825 = vpack.c.bf16 %v1793, %v1793
      %v1826 = vpack.c.bf16 %v1794, %v1794
      %v1827 = vpack.c.bf16 %v1795, %v1795
      %v1828 = vpack.c.bf16 %v1796, %v1796
      %v1829 = vpack.c.bf16 %v1797, %v1797
      %v1830 = vpack.c.bf16 %v1798, %v1798
      %v1831 = vpack.c.bf16 %v1799, %v1799
      %v1832 = vpack.c.bf16 %v1800, %v1800
      %s1833 = scalar_lea.vmem %s1, 256
      %v1834 = vld [vmem:[%s1833] sm:$0xf]
      %v1835 = vld [vmem:[%s1833 + $0x4] sm:$0xf]
      %v1836 = vld [vmem:[%s1833 + $0x8] sm:$0xf]
      %v1837 = vld [vmem:[%s1833 + $0xc] sm:$0xf]
      %v1838 = vld [vmem:[%s1833 + $0x10] sm:$0xf]
      %v1839 = vld [vmem:[%s1833 + $0x14] sm:$0xf]
      %v1840 = vld [vmem:[%s1833 + $0x18] sm:$0xf]
      %v1841 = vld [vmem:[%s1833 + $0x1c] sm:$0xf]
      %v1842 = vld [vmem:[%s1833 + $0x20] sm:$0xf]
      %v1843 = vld [vmem:[%s1833 + $0x24] sm:$0xf]
      %v1844 = vld [vmem:[%s1833 + $0x28] sm:$0xf]
      %v1845 = vld [vmem:[%s1833 + $0x2c] sm:$0xf]
      %v1846 = vld [vmem:[%s1833 + $0x30] sm:$0xf]
      %v1847 = vld [vmem:[%s1833 + $0x34] sm:$0xf]
      %v1848 = vld [vmem:[%s1833 + $0x38] sm:$0xf]
      %v1849 = vld [vmem:[%s1833 + $0x3c] sm:$0xf]
      %v1882 = vunpack.c.l.b16 %v1801
      %v1883 = vunpack.c.l.b16 %v1802
      %v1884 = vunpack.c.l.b16 %v1803
      %v1885 = vunpack.c.l.b16 %v1804
      %v1886 = vunpack.c.l.b16 %v1805
      %v1887 = vunpack.c.l.b16 %v1806
      %v1888 = vunpack.c.l.b16 %v1807
      %v1889 = vunpack.c.l.b16 %v1808
      %v1890 = vunpack.c.l.b16 %v1809
      %v1891 = vunpack.c.l.b16 %v1810
      %v1892 = vunpack.c.l.b16 %v1811
      %v1893 = vunpack.c.l.b16 %v1812
      %v1894 = vunpack.c.l.b16 %v1813
      %v1895 = vunpack.c.l.b16 %v1814
      %v1896 = vunpack.c.l.b16 %v1815
      %v1897 = vunpack.c.l.b16 %v1816
      %v1898 = vunpack.c.l.b16 %v1817
      %v1899 = vunpack.c.l.b16 %v1818
      %v1900 = vunpack.c.l.b16 %v1819
      %v1901 = vunpack.c.l.b16 %v1820
      %v1902 = vunpack.c.l.b16 %v1821
      %v1903 = vunpack.c.l.b16 %v1822
      %v1904 = vunpack.c.l.b16 %v1823
      %v1905 = vunpack.c.l.b16 %v1824
      %v1906 = vunpack.c.l.b16 %v1825
      %v1907 = vunpack.c.l.b16 %v1826
      %v1908 = vunpack.c.l.b16 %v1827
      %v1909 = vunpack.c.l.b16 %v1828
      %v1910 = vunpack.c.l.b16 %v1829
      %v1911 = vunpack.c.l.b16 %v1830
      %v1912 = vunpack.c.l.b16 %v1831
      %v1913 = vunpack.c.l.b16 %v1832
      %v1914 = vpack.c.b16 %v1883, %v1882
      %v1915 = vpack.c.b16 %v1885, %v1884
      %v1916 = vpack.c.b16 %v1887, %v1886
      %v1917 = vpack.c.b16 %v1889, %v1888
      %v1918 = vpack.c.b16 %v1891, %v1890
      %v1919 = vpack.c.b16 %v1893, %v1892
      %v1920 = vpack.c.b16 %v1895, %v1894
      %v1921 = vpack.c.b16 %v1897, %v1896
      %v1922 = vpack.c.b16 %v1899, %v1898
      %v1923 = vpack.c.b16 %v1901, %v1900
      %v1924 = vpack.c.b16 %v1903, %v1902
      %v1925 = vpack.c.b16 %v1905, %v1904
      %v1926 = vpack.c.b16 %v1907, %v1906
      %v1927 = vpack.c.b16 %v1909, %v1908
      %v1928 = vpack.c.b16 %v1911, %v1910
      %v1929 = vpack.c.b16 %v1913, %v1912
      %v1962 = vunpack.c.l.b16 %v1834
      %v1963 = vunpack.c.l.b16 %v1835
      %v1964 = vunpack.c.l.b16 %v1836
      %v1965 = vunpack.c.l.b16 %v1837
      %v1966 = vunpack.c.l.b16 %v1838
      %v1967 = vunpack.c.l.b16 %v1839
      %v1968 = vunpack.c.l.b16 %v1840
      %v1969 = vunpack.c.l.b16 %v1841
      %v1970 = vunpack.c.l.b16 %v1842
      %v1971 = vunpack.c.l.b16 %v1843
      %v1972 = vunpack.c.l.b16 %v1844
      %v1973 = vunpack.c.l.b16 %v1845
      %v1974 = vunpack.c.l.b16 %v1846
      %v1975 = vunpack.c.l.b16 %v1847
      %v1976 = vunpack.c.l.b16 %v1848
      %v1977 = vunpack.c.l.b16 %v1849
      %v1978 = vpack.c.b16 %v1963, %v1962
      %v1979 = vpack.c.b16 %v1965, %v1964
      %v1980 = vpack.c.b16 %v1967, %v1966
      %v1981 = vpack.c.b16 %v1969, %v1968
      %v1982 = vpack.c.b16 %v1971, %v1970
      %v1983 = vpack.c.b16 %v1973, %v1972
      %v1984 = vpack.c.b16 %v1975, %v1974
      %v1985 = vpack.c.b16 %v1977, %v1976
      %1994 = vmatpush.bf16.msra.mxu0 %v1985
      %1995 = vmatpush.bf16.msra.mxu0 %v1984
      %1996 = vmatpush.bf16.msra.mxu0 %v1983
      %1997 = vmatpush.bf16.msra.mxu0 %v1982
      %1998 = vmatpush.bf16.msra.mxu0 %v1981
      %1999 = vmatpush.bf16.msra.mxu0 %v1980
      %2000 = vmatpush.bf16.msra.mxu0 %v1979
      %2001 = vmatpush.bf16.msra.mxu0 %v1978
      %2002 = vmatmul.bf16.gmra.mxu0 %v1914
      %v2003 = vpop.f32.mrf.mxu0
      %v2004 = vadd.f32 0.0, %v2003
      %v2005 = vpop.f32.mrf.mxu0
      %v2006 = vadd.f32 0.0, %v2005
      %2007 = vmatmul.bf16.gmra.mxu0 %v1915
      %v2008 = vpop.f32.mrf.mxu0
      %v2009 = vadd.f32 0.0, %v2008
      %v2010 = vpop.f32.mrf.mxu0
      %v2011 = vadd.f32 0.0, %v2010
      %2012 = vmatmul.bf16.gmra.mxu0 %v1916
      %v2013 = vpop.f32.mrf.mxu0
      %v2014 = vadd.f32 0.0, %v2013
      %v2015 = vpop.f32.mrf.mxu0
      %v2016 = vadd.f32 0.0, %v2015
      %2017 = vmatmul.bf16.gmra.mxu0 %v1917
      %v2018 = vpop.f32.mrf.mxu0
      %v2019 = vadd.f32 0.0, %v2018
      %v2020 = vpop.f32.mrf.mxu0
      %v2021 = vadd.f32 0.0, %v2020
      %2022 = vmatmul.bf16.gmra.mxu0 %v1918
      %v2023 = vpop.f32.mrf.mxu0
      %v2024 = vadd.f32 0.0, %v2023
      %v2025 = vpop.f32.mrf.mxu0
      %v2026 = vadd.f32 0.0, %v2025
      %2027 = vmatmul.bf16.gmra.mxu0 %v1919
      %v2028 = vpop.f32.mrf.mxu0
      %v2029 = vadd.f32 0.0, %v2028
      %v2030 = vpop.f32.mrf.mxu0
      %v2031 = vadd.f32 0.0, %v2030
      %2032 = vmatmul.bf16.gmra.mxu0 %v1920
      %v2033 = vpop.f32.mrf.mxu0
      %v2034 = vadd.f32 0.0, %v2033
      %v2035 = vpop.f32.mrf.mxu0
      %v2036 = vadd.f32 0.0, %v2035
      %2037 = vmatmul.bf16.gmra.mxu0 %v1921
      %v2038 = vpop.f32.mrf.mxu0
      %v2039 = vadd.f32 0.0, %v2038
      %v2040 = vpop.f32.mrf.mxu0
      %v2041 = vadd.f32 0.0, %v2040
      %2042 = vmatmul.bf16.gmra.mxu0 %v1922
      %v2043 = vpop.f32.mrf.mxu0
      %v2044 = vadd.f32 0.0, %v2043
      %v2045 = vpop.f32.mrf.mxu0
      %v2046 = vadd.f32 0.0, %v2045
      %2047 = vmatmul.bf16.gmra.mxu0 %v1923
      %v2048 = vpop.f32.mrf.mxu0
      %v2049 = vadd.f32 0.0, %v2048
      %v2050 = vpop.f32.mrf.mxu0
      %v2051 = vadd.f32 0.0, %v2050
      %2052 = vmatmul.bf16.gmra.mxu0 %v1924
      %v2053 = vpop.f32.mrf.mxu0
      %v2054 = vadd.f32 0.0, %v2053
      %v2055 = vpop.f32.mrf.mxu0
      %v2056 = vadd.f32 0.0, %v2055
      %2057 = vmatmul.bf16.gmra.mxu0 %v1925
      %v2058 = vpop.f32.mrf.mxu0
      %v2059 = vadd.f32 0.0, %v2058
      %v2060 = vpop.f32.mrf.mxu0
      %v2061 = vadd.f32 0.0, %v2060
      %2062 = vmatmul.bf16.gmra.mxu0 %v1926
      %v2063 = vpop.f32.mrf.mxu0
      %v2064 = vadd.f32 0.0, %v2063
      %v2065 = vpop.f32.mrf.mxu0
      %v2066 = vadd.f32 0.0, %v2065
      %2067 = vmatmul.bf16.gmra.mxu0 %v1927
      %v2068 = vpop.f32.mrf.mxu0
      %v2069 = vadd.f32 0.0, %v2068
      %v2070 = vpop.f32.mrf.mxu0
      %v2071 = vadd.f32 0.0, %v2070
      %2072 = vmatmul.bf16.gmra.mxu0 %v1928
      %v2073 = vpop.f32.mrf.mxu0
      %v2074 = vadd.f32 0.0, %v2073
      %v2075 = vpop.f32.mrf.mxu0
      %v2076 = vadd.f32 0.0, %v2075
      %2077 = vmatmul.bf16.gmra.mxu0 %v1929
      %v2078 = vpop.f32.mrf.mxu0
      %v2079 = vadd.f32 0.0, %v2078
      %v2080 = vpop.f32.mrf.mxu0
      %v2081 = vadd.f32 0.0, %v2080
      %2082 = vdwg.mxu0
      %v2083 = vadd.f32 %v1737, %v2004
      %v2084 = vadd.f32 %v1738, %v2006
      %v2085 = vadd.f32 %v1739, %v2009
      %v2086 = vadd.f32 %v1740, %v2011
      %v2087 = vadd.f32 %v1741, %v2014
      %v2088 = vadd.f32 %v1742, %v2016
      %v2089 = vadd.f32 %v1743, %v2019
      %v2090 = vadd.f32 %v1744, %v2021
      %v2091 = vadd.f32 %v1745, %v2024
      %v2092 = vadd.f32 %v1746, %v2026
      %v2093 = vadd.f32 %v1747, %v2029
      %v2094 = vadd.f32 %v1748, %v2031
      %v2095 = vadd.f32 %v1749, %v2034
      %v2096 = vadd.f32 %v1750, %v2036
      %v2097 = vadd.f32 %v1751, %v2039
      %v2098 = vadd.f32 %v1752, %v2041
      %v2099 = vadd.f32 %v1753, %v2044
      %v2100 = vadd.f32 %v1754, %v2046
      %v2101 = vadd.f32 %v1755, %v2049
      %v2102 = vadd.f32 %v1756, %v2051
      %v2103 = vadd.f32 %v1757, %v2054
      %v2104 = vadd.f32 %v1758, %v2056
      %v2105 = vadd.f32 %v1759, %v2059
      %v2106 = vadd.f32 %v1760, %v2061
      %v2107 = vadd.f32 %v1761, %v2064
      %v2108 = vadd.f32 %v1762, %v2066
      %v2109 = vadd.f32 %v1763, %v2069
      %v2110 = vadd.f32 %v1764, %v2071
      %v2111 = vadd.f32 %v1765, %v2074
      %v2112 = vadd.f32 %v1766, %v2076
      %v2113 = vadd.f32 %v1767, %v2079
      %v2114 = vadd.f32 %v1768, %v2081
      %v2115 = vld [vmem:[%s417 + $0x2] sm:$0xff]
      %v2116 = vld [vmem:[%s417 + $0xa] sm:$0xff]
      %v2117 = vld [vmem:[%s417 + $0x1a] sm:$0xff]
      %v2118 = vld [vmem:[%s417 + $0x22] sm:$0xff]
      %v2119 = vld [vmem:[%s417 + $0x32] sm:$0xff]
      %v2120 = vld [vmem:[%s417 + $0x3a] sm:$0xff]
      %v2121 = vld [vmem:[%s417 + $0x4a] sm:$0xff]
      %v2122 = vld [vmem:[%s417 + $0x52] sm:$0xff]
      %v2123 = vld [vmem:[%s417 + $0x62] sm:$0xff]
      %v2124 = vld [vmem:[%s417 + $0x6a] sm:$0xff]
      %v2125 = vld [vmem:[%s417 + $0x7a] sm:$0xff]
      %v2126 = vld [vmem:[%s417 + $0x82] sm:$0xff]
      %v2127 = vld [vmem:[%s417 + $0x92] sm:$0xff]
      %v2128 = vld [vmem:[%s417 + $0x9a] sm:$0xff]
      %v2129 = vld [vmem:[%s417 + $0xaa] sm:$0xff]
      %v2130 = vld [vmem:[%s417 + $0xb2] sm:$0xff]
      %v2131 = vld [vmem:[%s417 + $0xc2] sm:$0xff]
      %v2132 = vld [vmem:[%s417 + $0xca] sm:$0xff]
      %v2133 = vld [vmem:[%s417 + $0xda] sm:$0xff]
      %v2134 = vld [vmem:[%s417 + $0xe2] sm:$0xff]
      %v2135 = vld [vmem:[%s417 + $0xf2] sm:$0xff]
      %v2136 = vld [vmem:[%s417 + $0xfa] sm:$0xff]
      %v2137 = vld [vmem:[%s417 + $0x10a] sm:$0xff]
      %v2138 = vld [vmem:[%s417 + $0x112] sm:$0xff]
      %v2139 = vld [vmem:[%s417 + $0x122] sm:$0xff]
      %v2140 = vld [vmem:[%s417 + $0x12a] sm:$0xff]
      %v2141 = vld [vmem:[%s417 + $0x13a] sm:$0xff]
      %v2142 = vld [vmem:[%s417 + $0x142] sm:$0xff]
      %v2143 = vld [vmem:[%s417 + $0x152] sm:$0xff]
      %v2144 = vld [vmem:[%s417 + $0x15a] sm:$0xff]
      %v2145 = vld [vmem:[%s417 + $0x16a] sm:$0xff]
      %v2146 = vld [vmem:[%s417 + $0x172] sm:$0xff]
      %v2147 = vpack.c.bf16 %v2115, %v2115
      %v2148 = vpack.c.bf16 %v2116, %v2116
      %v2149 = vpack.c.bf16 %v2117, %v2117
      %v2150 = vpack.c.bf16 %v2118, %v2118
      %v2151 = vpack.c.bf16 %v2119, %v2119
      %v2152 = vpack.c.bf16 %v2120, %v2120
      %v2153 = vpack.c.bf16 %v2121, %v2121
      %v2154 = vpack.c.bf16 %v2122, %v2122
      %v2155 = vpack.c.bf16 %v2123, %v2123
      %v2156 = vpack.c.bf16 %v2124, %v2124
      %v2157 = vpack.c.bf16 %v2125, %v2125
      %v2158 = vpack.c.bf16 %v2126, %v2126
      %v2159 = vpack.c.bf16 %v2127, %v2127
      %v2160 = vpack.c.bf16 %v2128, %v2128
      %v2161 = vpack.c.bf16 %v2129, %v2129
      %v2162 = vpack.c.bf16 %v2130, %v2130
      %v2163 = vpack.c.bf16 %v2131, %v2131
      %v2164 = vpack.c.bf16 %v2132, %v2132
      %v2165 = vpack.c.bf16 %v2133, %v2133
      %v2166 = vpack.c.bf16 %v2134, %v2134
      %v2167 = vpack.c.bf16 %v2135, %v2135
      %v2168 = vpack.c.bf16 %v2136, %v2136
      %v2169 = vpack.c.bf16 %v2137, %v2137
      %v2170 = vpack.c.bf16 %v2138, %v2138
      %v2171 = vpack.c.bf16 %v2139, %v2139
      %v2172 = vpack.c.bf16 %v2140, %v2140
      %v2173 = vpack.c.bf16 %v2141, %v2141
      %v2174 = vpack.c.bf16 %v2142, %v2142
      %v2175 = vpack.c.bf16 %v2143, %v2143
      %v2176 = vpack.c.bf16 %v2144, %v2144
      %v2177 = vpack.c.bf16 %v2145, %v2145
      %v2178 = vpack.c.bf16 %v2146, %v2146
      %s2179 = scalar_lea.vmem %s1, 320
      %v2180 = vld [vmem:[%s2179] sm:$0xf]
      %v2181 = vld [vmem:[%s2179 + $0x4] sm:$0xf]
      %v2182 = vld [vmem:[%s2179 + $0x8] sm:$0xf]
      %v2183 = vld [vmem:[%s2179 + $0xc] sm:$0xf]
      %v2184 = vld [vmem:[%s2179 + $0x10] sm:$0xf]
      %v2185 = vld [vmem:[%s2179 + $0x14] sm:$0xf]
      %v2186 = vld [vmem:[%s2179 + $0x18] sm:$0xf]
      %v2187 = vld [vmem:[%s2179 + $0x1c] sm:$0xf]
      %v2188 = vld [vmem:[%s2179 + $0x20] sm:$0xf]
      %v2189 = vld [vmem:[%s2179 + $0x24] sm:$0xf]
      %v2190 = vld [vmem:[%s2179 + $0x28] sm:$0xf]
      %v2191 = vld [vmem:[%s2179 + $0x2c] sm:$0xf]
      %v2192 = vld [vmem:[%s2179 + $0x30] sm:$0xf]
      %v2193 = vld [vmem:[%s2179 + $0x34] sm:$0xf]
      %v2194 = vld [vmem:[%s2179 + $0x38] sm:$0xf]
      %v2195 = vld [vmem:[%s2179 + $0x3c] sm:$0xf]
      %v2228 = vunpack.c.l.b16 %v2147
      %v2229 = vunpack.c.l.b16 %v2148
      %v2230 = vunpack.c.l.b16 %v2149
      %v2231 = vunpack.c.l.b16 %v2150
      %v2232 = vunpack.c.l.b16 %v2151
      %v2233 = vunpack.c.l.b16 %v2152
      %v2234 = vunpack.c.l.b16 %v2153
      %v2235 = vunpack.c.l.b16 %v2154
      %v2236 = vunpack.c.l.b16 %v2155
      %v2237 = vunpack.c.l.b16 %v2156
      %v2238 = vunpack.c.l.b16 %v2157
      %v2239 = vunpack.c.l.b16 %v2158
      %v2240 = vunpack.c.l.b16 %v2159
      %v2241 = vunpack.c.l.b16 %v2160
      %v2242 = vunpack.c.l.b16 %v2161
      %v2243 = vunpack.c.l.b16 %v2162
      %v2244 = vunpack.c.l.b16 %v2163
      %v2245 = vunpack.c.l.b16 %v2164
      %v2246 = vunpack.c.l.b16 %v2165
      %v2247 = vunpack.c.l.b16 %v2166
      %v2248 = vunpack.c.l.b16 %v2167
      %v2249 = vunpack.c.l.b16 %v2168
      %v2250 = vunpack.c.l.b16 %v2169
      %v2251 = vunpack.c.l.b16 %v2170
      %v2252 = vunpack.c.l.b16 %v2171
      %v2253 = vunpack.c.l.b16 %v2172
      %v2254 = vunpack.c.l.b16 %v2173
      %v2255 = vunpack.c.l.b16 %v2174
      %v2256 = vunpack.c.l.b16 %v2175
      %v2257 = vunpack.c.l.b16 %v2176
      %v2258 = vunpack.c.l.b16 %v2177
      %v2259 = vunpack.c.l.b16 %v2178
      %v2260 = vpack.c.b16 %v2229, %v2228
      %v2261 = vpack.c.b16 %v2231, %v2230
      %v2262 = vpack.c.b16 %v2233, %v2232
      %v2263 = vpack.c.b16 %v2235, %v2234
      %v2264 = vpack.c.b16 %v2237, %v2236
      %v2265 = vpack.c.b16 %v2239, %v2238
      %v2266 = vpack.c.b16 %v2241, %v2240
      %v2267 = vpack.c.b16 %v2243, %v2242
      %v2268 = vpack.c.b16 %v2245, %v2244
      %v2269 = vpack.c.b16 %v2247, %v2246
      %v2270 = vpack.c.b16 %v2249, %v2248
      %v2271 = vpack.c.b16 %v2251, %v2250
      %v2272 = vpack.c.b16 %v2253, %v2252
      %v2273 = vpack.c.b16 %v2255, %v2254
      %v2274 = vpack.c.b16 %v2257, %v2256
      %v2275 = vpack.c.b16 %v2259, %v2258
      %v2308 = vunpack.c.l.b16 %v2180
      %v2309 = vunpack.c.l.b16 %v2181
      %v2310 = vunpack.c.l.b16 %v2182
      %v2311 = vunpack.c.l.b16 %v2183
      %v2312 = vunpack.c.l.b16 %v2184
      %v2313 = vunpack.c.l.b16 %v2185
      %v2314 = vunpack.c.l.b16 %v2186
      %v2315 = vunpack.c.l.b16 %v2187
      %v2316 = vunpack.c.l.b16 %v2188
      %v2317 = vunpack.c.l.b16 %v2189
      %v2318 = vunpack.c.l.b16 %v2190
      %v2319 = vunpack.c.l.b16 %v2191
      %v2320 = vunpack.c.l.b16 %v2192
      %v2321 = vunpack.c.l.b16 %v2193
      %v2322 = vunpack.c.l.b16 %v2194
      %v2323 = vunpack.c.l.b16 %v2195
      %v2324 = vpack.c.b16 %v2309, %v2308
      %v2325 = vpack.c.b16 %v2311, %v2310
      %v2326 = vpack.c.b16 %v2313, %v2312
      %v2327 = vpack.c.b16 %v2315, %v2314
      %v2328 = vpack.c.b16 %v2317, %v2316
      %v2329 = vpack.c.b16 %v2319, %v2318
      %v2330 = vpack.c.b16 %v2321, %v2320
      %v2331 = vpack.c.b16 %v2323, %v2322
      %2340 = vmatpush.bf16.msra.mxu0 %v2331
      %2341 = vmatpush.bf16.msra.mxu0 %v2330
      %2342 = vmatpush.bf16.msra.mxu0 %v2329
      %2343 = vmatpush.bf16.msra.mxu0 %v2328
      %2344 = vmatpush.bf16.msra.mxu0 %v2327
      %2345 = vmatpush.bf16.msra.mxu0 %v2326
      %2346 = vmatpush.bf16.msra.mxu0 %v2325
      %2347 = vmatpush.bf16.msra.mxu0 %v2324
      %2348 = vmatmul.bf16.gmra.mxu0 %v2260
      %v2349 = vpop.f32.mrf.mxu0
      %v2350 = vadd.f32 0.0, %v2349
      %v2351 = vpop.f32.mrf.mxu0
      %v2352 = vadd.f32 0.0, %v2351
      %2353 = vmatmul.bf16.gmra.mxu0 %v2261
      %v2354 = vpop.f32.mrf.mxu0
      %v2355 = vadd.f32 0.0, %v2354
      %v2356 = vpop.f32.mrf.mxu0
      %v2357 = vadd.f32 0.0, %v2356
      %2358 = vmatmul.bf16.gmra.mxu0 %v2262
      %v2359 = vpop.f32.mrf.mxu0
      %v2360 = vadd.f32 0.0, %v2359
      %v2361 = vpop.f32.mrf.mxu0
      %v2362 = vadd.f32 0.0, %v2361
      %2363 = vmatmul.bf16.gmra.mxu0 %v2263
      %v2364 = vpop.f32.mrf.mxu0
      %v2365 = vadd.f32 0.0, %v2364
      %v2366 = vpop.f32.mrf.mxu0
      %v2367 = vadd.f32 0.0, %v2366
      %2368 = vmatmul.bf16.gmra.mxu0 %v2264
      %v2369 = vpop.f32.mrf.mxu0
      %v2370 = vadd.f32 0.0, %v2369
      %v2371 = vpop.f32.mrf.mxu0
      %v2372 = vadd.f32 0.0, %v2371
      %2373 = vmatmul.bf16.gmra.mxu0 %v2265
      %v2374 = vpop.f32.mrf.mxu0
      %v2375 = vadd.f32 0.0, %v2374
      %v2376 = vpop.f32.mrf.mxu0
      %v2377 = vadd.f32 0.0, %v2376
      %2378 = vmatmul.bf16.gmra.mxu0 %v2266
      %v2379 = vpop.f32.mrf.mxu0
      %v2380 = vadd.f32 0.0, %v2379
      %v2381 = vpop.f32.mrf.mxu0
      %v2382 = vadd.f32 0.0, %v2381
      %2383 = vmatmul.bf16.gmra.mxu0 %v2267
      %v2384 = vpop.f32.mrf.mxu0
      %v2385 = vadd.f32 0.0, %v2384
      %v2386 = vpop.f32.mrf.mxu0
      %v2387 = vadd.f32 0.0, %v2386
      %2388 = vmatmul.bf16.gmra.mxu0 %v2268
      %v2389 = vpop.f32.mrf.mxu0
      %v2390 = vadd.f32 0.0, %v2389
      %v2391 = vpop.f32.mrf.mxu0
      %v2392 = vadd.f32 0.0, %v2391
      %2393 = vmatmul.bf16.gmra.mxu0 %v2269
      %v2394 = vpop.f32.mrf.mxu0
      %v2395 = vadd.f32 0.0, %v2394
      %v2396 = vpop.f32.mrf.mxu0
      %v2397 = vadd.f32 0.0, %v2396
      %2398 = vmatmul.bf16.gmra.mxu0 %v2270
      %v2399 = vpop.f32.mrf.mxu0
      %v2400 = vadd.f32 0.0, %v2399
      %v2401 = vpop.f32.mrf.mxu0
      %v2402 = vadd.f32 0.0, %v2401
      %2403 = vmatmul.bf16.gmra.mxu0 %v2271
      %v2404 = vpop.f32.mrf.mxu0
      %v2405 = vadd.f32 0.0, %v2404
      %v2406 = vpop.f32.mrf.mxu0
      %v2407 = vadd.f32 0.0, %v2406
      %2408 = vmatmul.bf16.gmra.mxu0 %v2272
      %v2409 = vpop.f32.mrf.mxu0
      %v2410 = vadd.f32 0.0, %v2409
      %v2411 = vpop.f32.mrf.mxu0
      %v2412 = vadd.f32 0.0, %v2411
      %2413 = vmatmul.bf16.gmra.mxu0 %v2273
      %v2414 = vpop.f32.mrf.mxu0
      %v2415 = vadd.f32 0.0, %v2414
      %v2416 = vpop.f32.mrf.mxu0
      %v2417 = vadd.f32 0.0, %v2416
      %2418 = vmatmul.bf16.gmra.mxu0 %v2274
      %v2419 = vpop.f32.mrf.mxu0
      %v2420 = vadd.f32 0.0, %v2419
      %v2421 = vpop.f32.mrf.mxu0
      %v2422 = vadd.f32 0.0, %v2421
      %2423 = vmatmul.bf16.gmra.mxu0 %v2275
      %v2424 = vpop.f32.mrf.mxu0
      %v2425 = vadd.f32 0.0, %v2424
      %v2426 = vpop.f32.mrf.mxu0
      %v2427 = vadd.f32 0.0, %v2426
      %2428 = vdwg.mxu0
      %v2429 = vadd.f32 %v2083, %v2350
      %v2430 = vadd.f32 %v2084, %v2352
      %v2431 = vadd.f32 %v2085, %v2355
      %v2432 = vadd.f32 %v2086, %v2357
      %v2433 = vadd.f32 %v2087, %v2360
      %v2434 = vadd.f32 %v2088, %v2362
      %v2435 = vadd.f32 %v2089, %v2365
      %v2436 = vadd.f32 %v2090, %v2367
      %v2437 = vadd.f32 %v2091, %v2370
      %v2438 = vadd.f32 %v2092, %v2372
      %v2439 = vadd.f32 %v2093, %v2375
      %v2440 = vadd.f32 %v2094, %v2377
      %v2441 = vadd.f32 %v2095, %v2380
      %v2442 = vadd.f32 %v2096, %v2382
      %v2443 = vadd.f32 %v2097, %v2385
      %v2444 = vadd.f32 %v2098, %v2387
      %v2445 = vadd.f32 %v2099, %v2390
      %v2446 = vadd.f32 %v2100, %v2392
      %v2447 = vadd.f32 %v2101, %v2395
      %v2448 = vadd.f32 %v2102, %v2397
      %v2449 = vadd.f32 %v2103, %v2400
      %v2450 = vadd.f32 %v2104, %v2402
      %v2451 = vadd.f32 %v2105, %v2405
      %v2452 = vadd.f32 %v2106, %v2407
      %v2453 = vadd.f32 %v2107, %v2410
      %v2454 = vadd.f32 %v2108, %v2412
      %v2455 = vadd.f32 %v2109, %v2415
      %v2456 = vadd.f32 %v2110, %v2417
      %v2457 = vadd.f32 %v2111, %v2420
      %v2458 = vadd.f32 %v2112, %v2422
      %v2459 = vadd.f32 %v2113, %v2425
      %v2460 = vadd.f32 %v2114, %v2427
      %s2461 = scalar_lea.vmem [#allocation2], 48
      %v2462 = vld [vmem:[%s2461] sm:$0xff]
      %v2463 = vld [vmem:[%s2461 + $0x8] sm:$0xff]
      %v2464 = vld [vmem:[%s2461 + $0x18] sm:$0xff]
      %v2465 = vld [vmem:[%s2461 + $0x20] sm:$0xff]
      %v2466 = vld [vmem:[%s2461 + $0x30] sm:$0xff]
      %v2467 = vld [vmem:[%s2461 + $0x38] sm:$0xff]
      %v2468 = vld [vmem:[%s2461 + $0x48] sm:$0xff]
      %v2469 = vld [vmem:[%s2461 + $0x50] sm:$0xff]
      %v2470 = vld [vmem:[%s2461 + $0x60] sm:$0xff]
      %v2471 = vld [vmem:[%s2461 + $0x68] sm:$0xff]
      %v2472 = vld [vmem:[%s2461 + $0x78] sm:$0xff]
      %v2473 = vld [vmem:[%s2461 + $0x80] sm:$0xff]
      %v2474 = vld [vmem:[%s2461 + $0x90] sm:$0xff]
      %v2475 = vld [vmem:[%s2461 + $0x98] sm:$0xff]
      %v2476 = vld [vmem:[%s2461 + $0xa8] sm:$0xff]
      %v2477 = vld [vmem:[%s2461 + $0xb0] sm:$0xff]
      %v2478 = vld [vmem:[%s2461 + $0xc0] sm:$0xff]
      %v2479 = vld [vmem:[%s2461 + $0xc8] sm:$0xff]
      %v2480 = vld [vmem:[%s2461 + $0xd8] sm:$0xff]
      %v2481 = vld [vmem:[%s2461 + $0xe0] sm:$0xff]
      %v2482 = vld [vmem:[%s2461 + $0xf0] sm:$0xff]
      %v2483 = vld [vmem:[%s2461 + $0xf8] sm:$0xff]
      %v2484 = vld [vmem:[%s2461 + $0x108] sm:$0xff]
      %v2485 = vld [vmem:[%s2461 + $0x110] sm:$0xff]
      %v2486 = vld [vmem:[%s2461 + $0x120] sm:$0xff]
      %v2487 = vld [vmem:[%s2461 + $0x128] sm:$0xff]
      %v2488 = vld [vmem:[%s2461 + $0x138] sm:$0xff]
      %v2489 = vld [vmem:[%s2461 + $0x140] sm:$0xff]
      %v2490 = vld [vmem:[%s2461 + $0x150] sm:$0xff]
      %v2491 = vld [vmem:[%s2461 + $0x158] sm:$0xff]
      %v2492 = vld [vmem:[%s2461 + $0x168] sm:$0xff]
      %v2493 = vld [vmem:[%s2461 + $0x170] sm:$0xff]
      %v2494 = vpack.c.bf16 %v2462, %v2462
      %v2495 = vpack.c.bf16 %v2463, %v2463
      %v2496 = vpack.c.bf16 %v2464, %v2464
      %v2497 = vpack.c.bf16 %v2465, %v2465
      %v2498 = vpack.c.bf16 %v2466, %v2466
      %v2499 = vpack.c.bf16 %v2467, %v2467
      %v2500 = vpack.c.bf16 %v2468, %v2468
      %v2501 = vpack.c.bf16 %v2469, %v2469
      %v2502 = vpack.c.bf16 %v2470, %v2470
      %v2503 = vpack.c.bf16 %v2471, %v2471
      %v2504 = vpack.c.bf16 %v2472, %v2472
      %v2505 = vpack.c.bf16 %v2473, %v2473
      %v2506 = vpack.c.bf16 %v2474, %v2474
      %v2507 = vpack.c.bf16 %v2475, %v2475
      %v2508 = vpack.c.bf16 %v2476, %v2476
      %v2509 = vpack.c.bf16 %v2477, %v2477
      %v2510 = vpack.c.bf16 %v2478, %v2478
      %v2511 = vpack.c.bf16 %v2479, %v2479
      %v2512 = vpack.c.bf16 %v2480, %v2480
      %v2513 = vpack.c.bf16 %v2481, %v2481
      %v2514 = vpack.c.bf16 %v2482, %v2482
      %v2515 = vpack.c.bf16 %v2483, %v2483
      %v2516 = vpack.c.bf16 %v2484, %v2484
      %v2517 = vpack.c.bf16 %v2485, %v2485
      %v2518 = vpack.c.bf16 %v2486, %v2486
      %v2519 = vpack.c.bf16 %v2487, %v2487
      %v2520 = vpack.c.bf16 %v2488, %v2488
      %v2521 = vpack.c.bf16 %v2489, %v2489
      %v2522 = vpack.c.bf16 %v2490, %v2490
      %v2523 = vpack.c.bf16 %v2491, %v2491
      %v2524 = vpack.c.bf16 %v2492, %v2492
      %v2525 = vpack.c.bf16 %v2493, %v2493
      %s2526 = scalar_lea.vmem %s1, 384
      %v2527 = vld [vmem:[%s2526] sm:$0xf]
      %v2528 = vld [vmem:[%s2526 + $0x4] sm:$0xf]
      %v2529 = vld [vmem:[%s2526 + $0x8] sm:$0xf]
      %v2530 = vld [vmem:[%s2526 + $0xc] sm:$0xf]
      %v2531 = vld [vmem:[%s2526 + $0x10] sm:$0xf]
      %v2532 = vld [vmem:[%s2526 + $0x14] sm:$0xf]
      %v2533 = vld [vmem:[%s2526 + $0x18] sm:$0xf]
      %v2534 = vld [vmem:[%s2526 + $0x1c] sm:$0xf]
      %v2535 = vld [vmem:[%s2526 + $0x20] sm:$0xf]
      %v2536 = vld [vmem:[%s2526 + $0x24] sm:$0xf]
      %v2537 = vld [vmem:[%s2526 + $0x28] sm:$0xf]
      %v2538 = vld [vmem:[%s2526 + $0x2c] sm:$0xf]
      %v2539 = vld [vmem:[%s2526 + $0x30] sm:$0xf]
      %v2540 = vld [vmem:[%s2526 + $0x34] sm:$0xf]
      %v2541 = vld [vmem:[%s2526 + $0x38] sm:$0xf]
      %v2542 = vld [vmem:[%s2526 + $0x3c] sm:$0xf]
      %v2575 = vunpack.c.l.b16 %v2494
      %v2576 = vunpack.c.l.b16 %v2495
      %v2577 = vunpack.c.l.b16 %v2496
      %v2578 = vunpack.c.l.b16 %v2497
      %v2579 = vunpack.c.l.b16 %v2498
      %v2580 = vunpack.c.l.b16 %v2499
      %v2581 = vunpack.c.l.b16 %v2500
      %v2582 = vunpack.c.l.b16 %v2501
      %v2583 = vunpack.c.l.b16 %v2502
      %v2584 = vunpack.c.l.b16 %v2503
      %v2585 = vunpack.c.l.b16 %v2504
      %v2586 = vunpack.c.l.b16 %v2505
      %v2587 = vunpack.c.l.b16 %v2506
      %v2588 = vunpack.c.l.b16 %v2507
      %v2589 = vunpack.c.l.b16 %v2508
      %v2590 = vunpack.c.l.b16 %v2509
      %v2591 = vunpack.c.l.b16 %v2510
      %v2592 = vunpack.c.l.b16 %v2511
      %v2593 = vunpack.c.l.b16 %v2512
      %v2594 = vunpack.c.l.b16 %v2513
      %v2595 = vunpack.c.l.b16 %v2514
      %v2596 = vunpack.c.l.b16 %v2515
      %v2597 = vunpack.c.l.b16 %v2516
      %v2598 = vunpack.c.l.b16 %v2517
      %v2599 = vunpack.c.l.b16 %v2518
      %v2600 = vunpack.c.l.b16 %v2519
      %v2601 = vunpack.c.l.b16 %v2520
      %v2602 = vunpack.c.l.b16 %v2521
      %v2603 = vunpack.c.l.b16 %v2522
      %v2604 = vunpack.c.l.b16 %v2523
      %v2605 = vunpack.c.l.b16 %v2524
      %v2606 = vunpack.c.l.b16 %v2525
      %v2607 = vpack.c.b16 %v2576, %v2575
      %v2608 = vpack.c.b16 %v2578, %v2577
      %v2609 = vpack.c.b16 %v2580, %v2579
      %v2610 = vpack.c.b16 %v2582, %v2581
      %v2611 = vpack.c.b16 %v2584, %v2583
      %v2612 = vpack.c.b16 %v2586, %v2585
      %v2613 = vpack.c.b16 %v2588, %v2587
      %v2614 = vpack.c.b16 %v2590, %v2589
      %v2615 = vpack.c.b16 %v2592, %v2591
      %v2616 = vpack.c.b16 %v2594, %v2593
      %v2617 = vpack.c.b16 %v2596, %v2595
      %v2618 = vpack.c.b16 %v2598, %v2597
      %v2619 = vpack.c.b16 %v2600, %v2599
      %v2620 = vpack.c.b16 %v2602, %v2601
      %v2621 = vpack.c.b16 %v2604, %v2603
      %v2622 = vpack.c.b16 %v2606, %v2605
      %v2655 = vunpack.c.l.b16 %v2527
      %v2656 = vunpack.c.l.b16 %v2528
      %v2657 = vunpack.c.l.b16 %v2529
      %v2658 = vunpack.c.l.b16 %v2530
      %v2659 = vunpack.c.l.b16 %v2531
      %v2660 = vunpack.c.l.b16 %v2532
      %v2661 = vunpack.c.l.b16 %v2533
      %v2662 = vunpack.c.l.b16 %v2534
      %v2663 = vunpack.c.l.b16 %v2535
      %v2664 = vunpack.c.l.b16 %v2536
      %v2665 = vunpack.c.l.b16 %v2537
      %v2666 = vunpack.c.l.b16 %v2538
      %v2667 = vunpack.c.l.b16 %v2539
      %v2668 = vunpack.c.l.b16 %v2540
      %v2669 = vunpack.c.l.b16 %v2541
      %v2670 = vunpack.c.l.b16 %v2542
      %v2671 = vpack.c.b16 %v2656, %v2655
      %v2672 = vpack.c.b16 %v2658, %v2657
      %v2673 = vpack.c.b16 %v2660, %v2659
      %v2674 = vpack.c.b16 %v2662, %v2661
      %v2675 = vpack.c.b16 %v2664, %v2663
      %v2676 = vpack.c.b16 %v2666, %v2665
      %v2677 = vpack.c.b16 %v2668, %v2667
      %v2678 = vpack.c.b16 %v2670, %v2669
      %2687 = vmatpush.bf16.msra.mxu0 %v2678
      %2688 = vmatpush.bf16.msra.mxu0 %v2677
      %2689 = vmatpush.bf16.msra.mxu0 %v2676
      %2690 = vmatpush.bf16.msra.mxu0 %v2675
      %2691 = vmatpush.bf16.msra.mxu0 %v2674
      %2692 = vmatpush.bf16.msra.mxu0 %v2673
      %2693 = vmatpush.bf16.msra.mxu0 %v2672
      %2694 = vmatpush.bf16.msra.mxu0 %v2671
      %2695 = vmatmul.bf16.gmra.mxu0 %v2607
      %v2696 = vpop.f32.mrf.mxu0
      %v2697 = vadd.f32 0.0, %v2696
      %v2698 = vpop.f32.mrf.mxu0
      %v2699 = vadd.f32 0.0, %v2698
      %2700 = vmatmul.bf16.gmra.mxu0 %v2608
      %v2701 = vpop.f32.mrf.mxu0
      %v2702 = vadd.f32 0.0, %v2701
      %v2703 = vpop.f32.mrf.mxu0
      %v2704 = vadd.f32 0.0, %v2703
      %2705 = vmatmul.bf16.gmra.mxu0 %v2609
      %v2706 = vpop.f32.mrf.mxu0
      %v2707 = vadd.f32 0.0, %v2706
      %v2708 = vpop.f32.mrf.mxu0
      %v2709 = vadd.f32 0.0, %v2708
      %2710 = vmatmul.bf16.gmra.mxu0 %v2610
      %v2711 = vpop.f32.mrf.mxu0
      %v2712 = vadd.f32 0.0, %v2711
      %v2713 = vpop.f32.mrf.mxu0
      %v2714 = vadd.f32 0.0, %v2713
      %2715 = vmatmul.bf16.gmra.mxu0 %v2611
      %v2716 = vpop.f32.mrf.mxu0
      %v2717 = vadd.f32 0.0, %v2716
      %v2718 = vpop.f32.mrf.mxu0
      %v2719 = vadd.f32 0.0, %v2718
      %2720 = vmatmul.bf16.gmra.mxu0 %v2612
      %v2721 = vpop.f32.mrf.mxu0
      %v2722 = vadd.f32 0.0, %v2721
      %v2723 = vpop.f32.mrf.mxu0
      %v2724 = vadd.f32 0.0, %v2723
      %2725 = vmatmul.bf16.gmra.mxu0 %v2613
      %v2726 = vpop.f32.mrf.mxu0
      %v2727 = vadd.f32 0.0, %v2726
      %v2728 = vpop.f32.mrf.mxu0
      %v2729 = vadd.f32 0.0, %v2728
      %2730 = vmatmul.bf16.gmra.mxu0 %v2614
      %v2731 = vpop.f32.mrf.mxu0
      %v2732 = vadd.f32 0.0, %v2731
      %v2733 = vpop.f32.mrf.mxu0
      %v2734 = vadd.f32 0.0, %v2733
      %2735 = vmatmul.bf16.gmra.mxu0 %v2615
      %v2736 = vpop.f32.mrf.mxu0
      %v2737 = vadd.f32 0.0, %v2736
      %v2738 = vpop.f32.mrf.mxu0
      %v2739 = vadd.f32 0.0, %v2738
      %2740 = vmatmul.bf16.gmra.mxu0 %v2616
      %v2741 = vpop.f32.mrf.mxu0
      %v2742 = vadd.f32 0.0, %v2741
      %v2743 = vpop.f32.mrf.mxu0
      %v2744 = vadd.f32 0.0, %v2743
      %2745 = vmatmul.bf16.gmra.mxu0 %v2617
      %v2746 = vpop.f32.mrf.mxu0
      %v2747 = vadd.f32 0.0, %v2746
      %v2748 = vpop.f32.mrf.mxu0
      %v2749 = vadd.f32 0.0, %v2748
      %2750 = vmatmul.bf16.gmra.mxu0 %v2618
      %v2751 = vpop.f32.mrf.mxu0
      %v2752 = vadd.f32 0.0, %v2751
      %v2753 = vpop.f32.mrf.mxu0
      %v2754 = vadd.f32 0.0, %v2753
      %2755 = vmatmul.bf16.gmra.mxu0 %v2619
      %v2756 = vpop.f32.mrf.mxu0
      %v2757 = vadd.f32 0.0, %v2756
      %v2758 = vpop.f32.mrf.mxu0
      %v2759 = vadd.f32 0.0, %v2758
      %2760 = vmatmul.bf16.gmra.mxu0 %v2620
      %v2761 = vpop.f32.mrf.mxu0
      %v2762 = vadd.f32 0.0, %v2761
      %v2763 = vpop.f32.mrf.mxu0
      %v2764 = vadd.f32 0.0, %v2763
      %2765 = vmatmul.bf16.gmra.mxu0 %v2621
      %v2766 = vpop.f32.mrf.mxu0
      %v2767 = vadd.f32 0.0, %v2766
      %v2768 = vpop.f32.mrf.mxu0
      %v2769 = vadd.f32 0.0, %v2768
      %2770 = vmatmul.bf16.gmra.mxu0 %v2622
      %v2771 = vpop.f32.mrf.mxu0
      %v2772 = vadd.f32 0.0, %v2771
      %v2773 = vpop.f32.mrf.mxu0
      %v2774 = vadd.f32 0.0, %v2773
      %2775 = vdwg.mxu0
      %v2776 = vadd.f32 %v2429, %v2697
      %v2777 = vadd.f32 %v2430, %v2699
      %v2778 = vadd.f32 %v2431, %v2702
      %v2779 = vadd.f32 %v2432, %v2704
      %v2780 = vadd.f32 %v2433, %v2707
      %v2781 = vadd.f32 %v2434, %v2709
      %v2782 = vadd.f32 %v2435, %v2712
      %v2783 = vadd.f32 %v2436, %v2714
      %v2784 = vadd.f32 %v2437, %v2717
      %v2785 = vadd.f32 %v2438, %v2719
      %v2786 = vadd.f32 %v2439, %v2722
      %v2787 = vadd.f32 %v2440, %v2724
      %v2788 = vadd.f32 %v2441, %v2727
      %v2789 = vadd.f32 %v2442, %v2729
      %v2790 = vadd.f32 %v2443, %v2732
      %v2791 = vadd.f32 %v2444, %v2734
      %v2792 = vadd.f32 %v2445, %v2737
      %v2793 = vadd.f32 %v2446, %v2739
      %v2794 = vadd.f32 %v2447, %v2742
      %v2795 = vadd.f32 %v2448, %v2744
      %v2796 = vadd.f32 %v2449, %v2747
      %v2797 = vadd.f32 %v2450, %v2749
      %v2798 = vadd.f32 %v2451, %v2752
      %v2799 = vadd.f32 %v2452, %v2754
      %v2800 = vadd.f32 %v2453, %v2757
      %v2801 = vadd.f32 %v2454, %v2759
      %v2802 = vadd.f32 %v2455, %v2762
      %v2803 = vadd.f32 %v2456, %v2764
      %v2804 = vadd.f32 %v2457, %v2767
      %v2805 = vadd.f32 %v2458, %v2769
      %v2806 = vadd.f32 %v2459, %v2772
      %v2807 = vadd.f32 %v2460, %v2774
      %v2808 = vld [vmem:[%s2461 + $0x1] sm:$0xff]
      %v2809 = vld [vmem:[%s2461 + $0x9] sm:$0xff]
      %v2810 = vld [vmem:[%s2461 + $0x19] sm:$0xff]
      %v2811 = vld [vmem:[%s2461 + $0x21] sm:$0xff]
      %v2812 = vld [vmem:[%s2461 + $0x31] sm:$0xff]
      %v2813 = vld [vmem:[%s2461 + $0x39] sm:$0xff]
      %v2814 = vld [vmem:[%s2461 + $0x49] sm:$0xff]
      %v2815 = vld [vmem:[%s2461 + $0x51] sm:$0xff]
      %v2816 = vld [vmem:[%s2461 + $0x61] sm:$0xff]
      %v2817 = vld [vmem:[%s2461 + $0x69] sm:$0xff]
      %v2818 = vld [vmem:[%s2461 + $0x79] sm:$0xff]
      %v2819 = vld [vmem:[%s2461 + $0x81] sm:$0xff]
      %v2820 = vld [vmem:[%s2461 + $0x91] sm:$0xff]
      %v2821 = vld [vmem:[%s2461 + $0x99] sm:$0xff]
      %v2822 = vld [vmem:[%s2461 + $0xa9] sm:$0xff]
      %v2823 = vld [vmem:[%s2461 + $0xb1] sm:$0xff]
      %v2824 = vld [vmem:[%s2461 + $0xc1] sm:$0xff]
      %v2825 = vld [vmem:[%s2461 + $0xc9] sm:$0xff]
      %v2826 = vld [vmem:[%s2461 + $0xd9] sm:$0xff]
      %v2827 = vld [vmem:[%s2461 + $0xe1] sm:$0xff]
      %v2828 = vld [vmem:[%s2461 + $0xf1] sm:$0xff]
      %v2829 = vld [vmem:[%s2461 + $0xf9] sm:$0xff]
      %v2830 = vld [vmem:[%s2461 + $0x109] sm:$0xff]
      %v2831 = vld [vmem:[%s2461 + $0x111] sm:$0xff]
      %v2832 = vld [vmem:[%s2461 + $0x121] sm:$0xff]
      %v2833 = vld [vmem:[%s2461 + $0x129] sm:$0xff]
      %v2834 = vld [vmem:[%s2461 + $0x139] sm:$0xff]
      %v2835 = vld [vmem:[%s2461 + $0x141] sm:$0xff]
      %v2836 = vld [vmem:[%s2461 + $0x151] sm:$0xff]
      %v2837 = vld [vmem:[%s2461 + $0x159] sm:$0xff]
      %v2838 = vld [vmem:[%s2461 + $0x169] sm:$0xff]
      %v2839 = vld [vmem:[%s2461 + $0x171] sm:$0xff]
      %v2840 = vpack.c.bf16 %v2808, %v2808
      %v2841 = vpack.c.bf16 %v2809, %v2809
      %v2842 = vpack.c.bf16 %v2810, %v2810
      %v2843 = vpack.c.bf16 %v2811, %v2811
      %v2844 = vpack.c.bf16 %v2812, %v2812
      %v2845 = vpack.c.bf16 %v2813, %v2813
      %v2846 = vpack.c.bf16 %v2814, %v2814
      %v2847 = vpack.c.bf16 %v2815, %v2815
      %v2848 = vpack.c.bf16 %v2816, %v2816
      %v2849 = vpack.c.bf16 %v2817, %v2817
      %v2850 = vpack.c.bf16 %v2818, %v2818
      %v2851 = vpack.c.bf16 %v2819, %v2819
      %v2852 = vpack.c.bf16 %v2820, %v2820
      %v2853 = vpack.c.bf16 %v2821, %v2821
      %v2854 = vpack.c.bf16 %v2822, %v2822
      %v2855 = vpack.c.bf16 %v2823, %v2823
      %v2856 = vpack.c.bf16 %v2824, %v2824
      %v2857 = vpack.c.bf16 %v2825, %v2825
      %v2858 = vpack.c.bf16 %v2826, %v2826
      %v2859 = vpack.c.bf16 %v2827, %v2827
      %v2860 = vpack.c.bf16 %v2828, %v2828
      %v2861 = vpack.c.bf16 %v2829, %v2829
      %v2862 = vpack.c.bf16 %v2830, %v2830
      %v2863 = vpack.c.bf16 %v2831, %v2831
      %v2864 = vpack.c.bf16 %v2832, %v2832
      %v2865 = vpack.c.bf16 %v2833, %v2833
      %v2866 = vpack.c.bf16 %v2834, %v2834
      %v2867 = vpack.c.bf16 %v2835, %v2835
      %v2868 = vpack.c.bf16 %v2836, %v2836
      %v2869 = vpack.c.bf16 %v2837, %v2837
      %v2870 = vpack.c.bf16 %v2838, %v2838
      %v2871 = vpack.c.bf16 %v2839, %v2839
      %s2872 = scalar_lea.vmem %s1, 448
      %v2873 = vld [vmem:[%s2872] sm:$0xf]
      %v2874 = vld [vmem:[%s2872 + $0x4] sm:$0xf]
      %v2875 = vld [vmem:[%s2872 + $0x8] sm:$0xf]
      %v2876 = vld [vmem:[%s2872 + $0xc] sm:$0xf]
      %v2877 = vld [vmem:[%s2872 + $0x10] sm:$0xf]
      %v2878 = vld [vmem:[%s2872 + $0x14] sm:$0xf]
      %v2879 = vld [vmem:[%s2872 + $0x18] sm:$0xf]
      %v2880 = vld [vmem:[%s2872 + $0x1c] sm:$0xf]
      %v2881 = vld [vmem:[%s2872 + $0x20] sm:$0xf]
      %v2882 = vld [vmem:[%s2872 + $0x24] sm:$0xf]
      %v2883 = vld [vmem:[%s2872 + $0x28] sm:$0xf]
      %v2884 = vld [vmem:[%s2872 + $0x2c] sm:$0xf]
      %v2885 = vld [vmem:[%s2872 + $0x30] sm:$0xf]
      %v2886 = vld [vmem:[%s2872 + $0x34] sm:$0xf]
      %v2887 = vld [vmem:[%s2872 + $0x38] sm:$0xf]
      %v2888 = vld [vmem:[%s2872 + $0x3c] sm:$0xf]
      %v2921 = vunpack.c.l.b16 %v2840
      %v2922 = vunpack.c.l.b16 %v2841
      %v2923 = vunpack.c.l.b16 %v2842
      %v2924 = vunpack.c.l.b16 %v2843
      %v2925 = vunpack.c.l.b16 %v2844
      %v2926 = vunpack.c.l.b16 %v2845
      %v2927 = vunpack.c.l.b16 %v2846
      %v2928 = vunpack.c.l.b16 %v2847
      %v2929 = vunpack.c.l.b16 %v2848
      %v2930 = vunpack.c.l.b16 %v2849
      %v2931 = vunpack.c.l.b16 %v2850
      %v2932 = vunpack.c.l.b16 %v2851
      %v2933 = vunpack.c.l.b16 %v2852
      %v2934 = vunpack.c.l.b16 %v2853
      %v2935 = vunpack.c.l.b16 %v2854
      %v2936 = vunpack.c.l.b16 %v2855
      %v2937 = vunpack.c.l.b16 %v2856
      %v2938 = vunpack.c.l.b16 %v2857
      %v2939 = vunpack.c.l.b16 %v2858
      %v2940 = vunpack.c.l.b16 %v2859
      %v2941 = vunpack.c.l.b16 %v2860
      %v2942 = vunpack.c.l.b16 %v2861
      %v2943 = vunpack.c.l.b16 %v2862
      %v2944 = vunpack.c.l.b16 %v2863
      %v2945 = vunpack.c.l.b16 %v2864
      %v2946 = vunpack.c.l.b16 %v2865
      %v2947 = vunpack.c.l.b16 %v2866
      %v2948 = vunpack.c.l.b16 %v2867
      %v2949 = vunpack.c.l.b16 %v2868
      %v2950 = vunpack.c.l.b16 %v2869
      %v2951 = vunpack.c.l.b16 %v2870
      %v2952 = vunpack.c.l.b16 %v2871
      %v2953 = vpack.c.b16 %v2922, %v2921
      %v2954 = vpack.c.b16 %v2924, %v2923
      %v2955 = vpack.c.b16 %v2926, %v2925
      %v2956 = vpack.c.b16 %v2928, %v2927
      %v2957 = vpack.c.b16 %v2930, %v2929
      %v2958 = vpack.c.b16 %v2932, %v2931
      %v2959 = vpack.c.b16 %v2934, %v2933
      %v2960 = vpack.c.b16 %v2936, %v2935
      %v2961 = vpack.c.b16 %v2938, %v2937
      %v2962 = vpack.c.b16 %v2940, %v2939
      %v2963 = vpack.c.b16 %v2942, %v2941
      %v2964 = vpack.c.b16 %v2944, %v2943
      %v2965 = vpack.c.b16 %v2946, %v2945
      %v2966 = vpack.c.b16 %v2948, %v2947
      %v2967 = vpack.c.b16 %v2950, %v2949
      %v2968 = vpack.c.b16 %v2952, %v2951
      %v3001 = vunpack.c.l.b16 %v2873
      %v3002 = vunpack.c.l.b16 %v2874
      %v3003 = vunpack.c.l.b16 %v2875
      %v3004 = vunpack.c.l.b16 %v2876
      %v3005 = vunpack.c.l.b16 %v2877
      %v3006 = vunpack.c.l.b16 %v2878
      %v3007 = vunpack.c.l.b16 %v2879
      %v3008 = vunpack.c.l.b16 %v2880
      %v3009 = vunpack.c.l.b16 %v2881
      %v3010 = vunpack.c.l.b16 %v2882
      %v3011 = vunpack.c.l.b16 %v2883
      %v3012 = vunpack.c.l.b16 %v2884
      %v3013 = vunpack.c.l.b16 %v2885
      %v3014 = vunpack.c.l.b16 %v2886
      %v3015 = vunpack.c.l.b16 %v2887
      %v3016 = vunpack.c.l.b16 %v2888
      %v3017 = vpack.c.b16 %v3002, %v3001
      %v3018 = vpack.c.b16 %v3004, %v3003
      %v3019 = vpack.c.b16 %v3006, %v3005
      %v3020 = vpack.c.b16 %v3008, %v3007
      %v3021 = vpack.c.b16 %v3010, %v3009
      %v3022 = vpack.c.b16 %v3012, %v3011
      %v3023 = vpack.c.b16 %v3014, %v3013
      %v3024 = vpack.c.b16 %v3016, %v3015
      %3033 = vmatpush.bf16.msra.mxu0 %v3024
      %3034 = vmatpush.bf16.msra.mxu0 %v3023
      %3035 = vmatpush.bf16.msra.mxu0 %v3022
      %3036 = vmatpush.bf16.msra.mxu0 %v3021
      %3037 = vmatpush.bf16.msra.mxu0 %v3020
      %3038 = vmatpush.bf16.msra.mxu0 %v3019
      %3039 = vmatpush.bf16.msra.mxu0 %v3018
      %3040 = vmatpush.bf16.msra.mxu0 %v3017
      %3041 = vmatmul.bf16.gmra.mxu0 %v2953
      %v3042 = vpop.f32.mrf.mxu0
      %v3043 = vadd.f32 0.0, %v3042
      %v3044 = vpop.f32.mrf.mxu0
      %v3045 = vadd.f32 0.0, %v3044
      %3046 = vmatmul.bf16.gmra.mxu0 %v2954
      %v3047 = vpop.f32.mrf.mxu0
      %v3048 = vadd.f32 0.0, %v3047
      %v3049 = vpop.f32.mrf.mxu0
      %v3050 = vadd.f32 0.0, %v3049
      %3051 = vmatmul.bf16.gmra.mxu0 %v2955
      %v3052 = vpop.f32.mrf.mxu0
      %v3053 = vadd.f32 0.0, %v3052
      %v3054 = vpop.f32.mrf.mxu0
      %v3055 = vadd.f32 0.0, %v3054
      %3056 = vmatmul.bf16.gmra.mxu0 %v2956
      %v3057 = vpop.f32.mrf.mxu0
      %v3058 = vadd.f32 0.0, %v3057
      %v3059 = vpop.f32.mrf.mxu0
      %v3060 = vadd.f32 0.0, %v3059
      %3061 = vmatmul.bf16.gmra.mxu0 %v2957
      %v3062 = vpop.f32.mrf.mxu0
      %v3063 = vadd.f32 0.0, %v3062
      %v3064 = vpop.f32.mrf.mxu0
      %v3065 = vadd.f32 0.0, %v3064
      %3066 = vmatmul.bf16.gmra.mxu0 %v2958
      %v3067 = vpop.f32.mrf.mxu0
      %v3068 = vadd.f32 0.0, %v3067
      %v3069 = vpop.f32.mrf.mxu0
      %v3070 = vadd.f32 0.0, %v3069
      %3071 = vmatmul.bf16.gmra.mxu0 %v2959
      %v3072 = vpop.f32.mrf.mxu0
      %v3073 = vadd.f32 0.0, %v3072
      %v3074 = vpop.f32.mrf.mxu0
      %v3075 = vadd.f32 0.0, %v3074
      %3076 = vmatmul.bf16.gmra.mxu0 %v2960
      %v3077 = vpop.f32.mrf.mxu0
      %v3078 = vadd.f32 0.0, %v3077
      %v3079 = vpop.f32.mrf.mxu0
      %v3080 = vadd.f32 0.0, %v3079
      %3081 = vmatmul.bf16.gmra.mxu0 %v2961
      %v3082 = vpop.f32.mrf.mxu0
      %v3083 = vadd.f32 0.0, %v3082
      %v3084 = vpop.f32.mrf.mxu0
      %v3085 = vadd.f32 0.0, %v3084
      %3086 = vmatmul.bf16.gmra.mxu0 %v2962
      %v3087 = vpop.f32.mrf.mxu0
      %v3088 = vadd.f32 0.0, %v3087
      %v3089 = vpop.f32.mrf.mxu0
      %v3090 = vadd.f32 0.0, %v3089
      %3091 = vmatmul.bf16.gmra.mxu0 %v2963
      %v3092 = vpop.f32.mrf.mxu0
      %v3093 = vadd.f32 0.0, %v3092
      %v3094 = vpop.f32.mrf.mxu0
      %v3095 = vadd.f32 0.0, %v3094
      %3096 = vmatmul.bf16.gmra.mxu0 %v2964
      %v3097 = vpop.f32.mrf.mxu0
      %v3098 = vadd.f32 0.0, %v3097
      %v3099 = vpop.f32.mrf.mxu0
      %v3100 = vadd.f32 0.0, %v3099
      %3101 = vmatmul.bf16.gmra.mxu0 %v2965
      %v3102 = vpop.f32.mrf.mxu0
      %v3103 = vadd.f32 0.0, %v3102
      %v3104 = vpop.f32.mrf.mxu0
      %v3105 = vadd.f32 0.0, %v3104
      %3106 = vmatmul.bf16.gmra.mxu0 %v2966
      %v3107 = vpop.f32.mrf.mxu0
      %v3108 = vadd.f32 0.0, %v3107
      %v3109 = vpop.f32.mrf.mxu0
      %v3110 = vadd.f32 0.0, %v3109
      %3111 = vmatmul.bf16.gmra.mxu0 %v2967
      %v3112 = vpop.f32.mrf.mxu0
      %v3113 = vadd.f32 0.0, %v3112
      %v3114 = vpop.f32.mrf.mxu0
      %v3115 = vadd.f32 0.0, %v3114
      %3116 = vmatmul.bf16.gmra.mxu0 %v2968
      %v3117 = vpop.f32.mrf.mxu0
      %v3118 = vadd.f32 0.0, %v3117
      %v3119 = vpop.f32.mrf.mxu0
      %v3120 = vadd.f32 0.0, %v3119
      %3121 = vdwg.mxu0
      %v3122 = vadd.f32 %v2776, %v3043
      %v3123 = vadd.f32 %v2777, %v3045
      %v3124 = vadd.f32 %v2778, %v3048
      %v3125 = vadd.f32 %v2779, %v3050
      %v3126 = vadd.f32 %v2780, %v3053
      %v3127 = vadd.f32 %v2781, %v3055
      %v3128 = vadd.f32 %v2782, %v3058
      %v3129 = vadd.f32 %v2783, %v3060
      %v3130 = vadd.f32 %v2784, %v3063
      %v3131 = vadd.f32 %v2785, %v3065
      %v3132 = vadd.f32 %v2786, %v3068
      %v3133 = vadd.f32 %v2787, %v3070
      %v3134 = vadd.f32 %v2788, %v3073
      %v3135 = vadd.f32 %v2789, %v3075
      %v3136 = vadd.f32 %v2790, %v3078
      %v3137 = vadd.f32 %v2791, %v3080
      %v3138 = vadd.f32 %v2792, %v3083
      %v3139 = vadd.f32 %v2793, %v3085
      %v3140 = vadd.f32 %v2794, %v3088
      %v3141 = vadd.f32 %v2795, %v3090
      %v3142 = vadd.f32 %v2796, %v3093
      %v3143 = vadd.f32 %v2797, %v3095
      %v3144 = vadd.f32 %v2798, %v3098
      %v3145 = vadd.f32 %v2799, %v3100
      %v3146 = vadd.f32 %v2800, %v3103
      %v3147 = vadd.f32 %v2801, %v3105
      %v3148 = vadd.f32 %v2802, %v3108
      %v3149 = vadd.f32 %v2803, %v3110
      %v3150 = vadd.f32 %v2804, %v3113
      %v3151 = vadd.f32 %v2805, %v3115
      %v3152 = vadd.f32 %v2806, %v3118
      %v3153 = vadd.f32 %v2807, %v3120
      %v3154 = vld [vmem:[%s2461 + $0x2] sm:$0xff]
      %v3155 = vld [vmem:[%s2461 + $0xa] sm:$0xff]
      %v3156 = vld [vmem:[%s2461 + $0x1a] sm:$0xff]
      %v3157 = vld [vmem:[%s2461 + $0x22] sm:$0xff]
      %v3158 = vld [vmem:[%s2461 + $0x32] sm:$0xff]
      %v3159 = vld [vmem:[%s2461 + $0x3a] sm:$0xff]
      %v3160 = vld [vmem:[%s2461 + $0x4a] sm:$0xff]
      %v3161 = vld [vmem:[%s2461 + $0x52] sm:$0xff]
      %v3162 = vld [vmem:[%s2461 + $0x62] sm:$0xff]
      %v3163 = vld [vmem:[%s2461 + $0x6a] sm:$0xff]
      %v3164 = vld [vmem:[%s2461 + $0x7a] sm:$0xff]
      %v3165 = vld [vmem:[%s2461 + $0x82] sm:$0xff]
      %v3166 = vld [vmem:[%s2461 + $0x92] sm:$0xff]
      %v3167 = vld [vmem:[%s2461 + $0x9a] sm:$0xff]
      %v3168 = vld [vmem:[%s2461 + $0xaa] sm:$0xff]
      %v3169 = vld [vmem:[%s2461 + $0xb2] sm:$0xff]
      %v3170 = vld [vmem:[%s2461 + $0xc2] sm:$0xff]
      %v3171 = vld [vmem:[%s2461 + $0xca] sm:$0xff]
      %v3172 = vld [vmem:[%s2461 + $0xda] sm:$0xff]
      %v3173 = vld [vmem:[%s2461 + $0xe2] sm:$0xff]
      %v3174 = vld [vmem:[%s2461 + $0xf2] sm:$0xff]
      %v3175 = vld [vmem:[%s2461 + $0xfa] sm:$0xff]
      %v3176 = vld [vmem:[%s2461 + $0x10a] sm:$0xff]
      %v3177 = vld [vmem:[%s2461 + $0x112] sm:$0xff]
      %v3178 = vld [vmem:[%s2461 + $0x122] sm:$0xff]
      %v3179 = vld [vmem:[%s2461 + $0x12a] sm:$0xff]
      %v3180 = vld [vmem:[%s2461 + $0x13a] sm:$0xff]
      %v3181 = vld [vmem:[%s2461 + $0x142] sm:$0xff]
      %v3182 = vld [vmem:[%s2461 + $0x152] sm:$0xff]
      %v3183 = vld [vmem:[%s2461 + $0x15a] sm:$0xff]
      %v3184 = vld [vmem:[%s2461 + $0x16a] sm:$0xff]
      %v3185 = vld [vmem:[%s2461 + $0x172] sm:$0xff]
      %v3186 = vpack.c.bf16 %v3154, %v3154
      %v3187 = vpack.c.bf16 %v3155, %v3155
      %v3188 = vpack.c.bf16 %v3156, %v3156
      %v3189 = vpack.c.bf16 %v3157, %v3157
      %v3190 = vpack.c.bf16 %v3158, %v3158
      %v3191 = vpack.c.bf16 %v3159, %v3159
      %v3192 = vpack.c.bf16 %v3160, %v3160
      %v3193 = vpack.c.bf16 %v3161, %v3161
      %v3194 = vpack.c.bf16 %v3162, %v3162
      %v3195 = vpack.c.bf16 %v3163, %v3163
      %v3196 = vpack.c.bf16 %v3164, %v3164
      %v3197 = vpack.c.bf16 %v3165, %v3165
      %v3198 = vpack.c.bf16 %v3166, %v3166
      %v3199 = vpack.c.bf16 %v3167, %v3167
      %v3200 = vpack.c.bf16 %v3168, %v3168
      %v3201 = vpack.c.bf16 %v3169, %v3169
      %v3202 = vpack.c.bf16 %v3170, %v3170
      %v3203 = vpack.c.bf16 %v3171, %v3171
      %v3204 = vpack.c.bf16 %v3172, %v3172
      %v3205 = vpack.c.bf16 %v3173, %v3173
      %v3206 = vpack.c.bf16 %v3174, %v3174
      %v3207 = vpack.c.bf16 %v3175, %v3175
      %v3208 = vpack.c.bf16 %v3176, %v3176
      %v3209 = vpack.c.bf16 %v3177, %v3177
      %v3210 = vpack.c.bf16 %v3178, %v3178
      %v3211 = vpack.c.bf16 %v3179, %v3179
      %v3212 = vpack.c.bf16 %v3180, %v3180
      %v3213 = vpack.c.bf16 %v3181, %v3181
      %v3214 = vpack.c.bf16 %v3182, %v3182
      %v3215 = vpack.c.bf16 %v3183, %v3183
      %v3216 = vpack.c.bf16 %v3184, %v3184
      %v3217 = vpack.c.bf16 %v3185, %v3185
      %s3218 = scalar_lea.vmem %s1, 512
      %v3219 = vld [vmem:[%s3218] sm:$0xf]
      %v3220 = vld [vmem:[%s3218 + $0x4] sm:$0xf]
      %v3221 = vld [vmem:[%s3218 + $0x8] sm:$0xf]
      %v3222 = vld [vmem:[%s3218 + $0xc] sm:$0xf]
      %v3223 = vld [vmem:[%s3218 + $0x10] sm:$0xf]
      %v3224 = vld [vmem:[%s3218 + $0x14] sm:$0xf]
      %v3225 = vld [vmem:[%s3218 + $0x18] sm:$0xf]
      %v3226 = vld [vmem:[%s3218 + $0x1c] sm:$0xf]
      %v3227 = vld [vmem:[%s3218 + $0x20] sm:$0xf]
      %v3228 = vld [vmem:[%s3218 + $0x24] sm:$0xf]
      %v3229 = vld [vmem:[%s3218 + $0x28] sm:$0xf]
      %v3230 = vld [vmem:[%s3218 + $0x2c] sm:$0xf]
      %v3231 = vld [vmem:[%s3218 + $0x30] sm:$0xf]
      %v3232 = vld [vmem:[%s3218 + $0x34] sm:$0xf]
      %v3233 = vld [vmem:[%s3218 + $0x38] sm:$0xf]
      %v3234 = vld [vmem:[%s3218 + $0x3c] sm:$0xf]
      %v3267 = vunpack.c.l.b16 %v3186
      %v3268 = vunpack.c.l.b16 %v3187
      %v3269 = vunpack.c.l.b16 %v3188
      %v3270 = vunpack.c.l.b16 %v3189
      %v3271 = vunpack.c.l.b16 %v3190
      %v3272 = vunpack.c.l.b16 %v3191
      %v3273 = vunpack.c.l.b16 %v3192
      %v3274 = vunpack.c.l.b16 %v3193
      %v3275 = vunpack.c.l.b16 %v3194
      %v3276 = vunpack.c.l.b16 %v3195
      %v3277 = vunpack.c.l.b16 %v3196
      %v3278 = vunpack.c.l.b16 %v3197
      %v3279 = vunpack.c.l.b16 %v3198
      %v3280 = vunpack.c.l.b16 %v3199
      %v3281 = vunpack.c.l.b16 %v3200
      %v3282 = vunpack.c.l.b16 %v3201
      %v3283 = vunpack.c.l.b16 %v3202
      %v3284 = vunpack.c.l.b16 %v3203
      %v3285 = vunpack.c.l.b16 %v3204
      %v3286 = vunpack.c.l.b16 %v3205
      %v3287 = vunpack.c.l.b16 %v3206
      %v3288 = vunpack.c.l.b16 %v3207
      %v3289 = vunpack.c.l.b16 %v3208
      %v3290 = vunpack.c.l.b16 %v3209
      %v3291 = vunpack.c.l.b16 %v3210
      %v3292 = vunpack.c.l.b16 %v3211
      %v3293 = vunpack.c.l.b16 %v3212
      %v3294 = vunpack.c.l.b16 %v3213
      %v3295 = vunpack.c.l.b16 %v3214
      %v3296 = vunpack.c.l.b16 %v3215
      %v3297 = vunpack.c.l.b16 %v3216
      %v3298 = vunpack.c.l.b16 %v3217
      %v3299 = vpack.c.b16 %v3268, %v3267
      %v3300 = vpack.c.b16 %v3270, %v3269
      %v3301 = vpack.c.b16 %v3272, %v3271
      %v3302 = vpack.c.b16 %v3274, %v3273
      %v3303 = vpack.c.b16 %v3276, %v3275
      %v3304 = vpack.c.b16 %v3278, %v3277
      %v3305 = vpack.c.b16 %v3280, %v3279
      %v3306 = vpack.c.b16 %v3282, %v3281
      %v3307 = vpack.c.b16 %v3284, %v3283
      %v3308 = vpack.c.b16 %v3286, %v3285
      %v3309 = vpack.c.b16 %v3288, %v3287
      %v3310 = vpack.c.b16 %v3290, %v3289
      %v3311 = vpack.c.b16 %v3292, %v3291
      %v3312 = vpack.c.b16 %v3294, %v3293
      %v3313 = vpack.c.b16 %v3296, %v3295
      %v3314 = vpack.c.b16 %v3298, %v3297
      %v3347 = vunpack.c.l.b16 %v3219
      %v3348 = vunpack.c.l.b16 %v3220
      %v3349 = vunpack.c.l.b16 %v3221
      %v3350 = vunpack.c.l.b16 %v3222
      %v3351 = vunpack.c.l.b16 %v3223
      %v3352 = vunpack.c.l.b16 %v3224
      %v3353 = vunpack.c.l.b16 %v3225
      %v3354 = vunpack.c.l.b16 %v3226
      %v3355 = vunpack.c.l.b16 %v3227
      %v3356 = vunpack.c.l.b16 %v3228
      %v3357 = vunpack.c.l.b16 %v3229
      %v3358 = vunpack.c.l.b16 %v3230
      %v3359 = vunpack.c.l.b16 %v3231
      %v3360 = vunpack.c.l.b16 %v3232
      %v3361 = vunpack.c.l.b16 %v3233
      %v3362 = vunpack.c.l.b16 %v3234
      %v3363 = vpack.c.b16 %v3348, %v3347
      %v3364 = vpack.c.b16 %v3350, %v3349
      %v3365 = vpack.c.b16 %v3352, %v3351
      %v3366 = vpack.c.b16 %v3354, %v3353
      %v3367 = vpack.c.b16 %v3356, %v3355
      %v3368 = vpack.c.b16 %v3358, %v3357
      %v3369 = vpack.c.b16 %v3360, %v3359
      %v3370 = vpack.c.b16 %v3362, %v3361
      %3379 = vmatpush.bf16.msra.mxu0 %v3370
      %3380 = vmatpush.bf16.msra.mxu0 %v3369
      %3381 = vmatpush.bf16.msra.mxu0 %v3368
      %3382 = vmatpush.bf16.msra.mxu0 %v3367
      %3383 = vmatpush.bf16.msra.mxu0 %v3366
      %3384 = vmatpush.bf16.msra.mxu0 %v3365
      %3385 = vmatpush.bf16.msra.mxu0 %v3364
      %3386 = vmatpush.bf16.msra.mxu0 %v3363
      %3387 = vmatmul.bf16.gmra.mxu0 %v3299
      %v3388 = vpop.f32.mrf.mxu0
      %v3389 = vadd.f32 0.0, %v3388
      %v3390 = vpop.f32.mrf.mxu0
      %v3391 = vadd.f32 0.0, %v3390
      %3392 = vmatmul.bf16.gmra.mxu0 %v3300
      %v3393 = vpop.f32.mrf.mxu0
      %v3394 = vadd.f32 0.0, %v3393
      %v3395 = vpop.f32.mrf.mxu0
      %v3396 = vadd.f32 0.0, %v3395
      %3397 = vmatmul.bf16.gmra.mxu0 %v3301
      %v3398 = vpop.f32.mrf.mxu0
      %v3399 = vadd.f32 0.0, %v3398
      %v3400 = vpop.f32.mrf.mxu0
      %v3401 = vadd.f32 0.0, %v3400
      %3402 = vmatmul.bf16.gmra.mxu0 %v3302
      %v3403 = vpop.f32.mrf.mxu0
      %v3404 = vadd.f32 0.0, %v3403
      %v3405 = vpop.f32.mrf.mxu0
      %v3406 = vadd.f32 0.0, %v3405
      %3407 = vmatmul.bf16.gmra.mxu0 %v3303
      %v3408 = vpop.f32.mrf.mxu0
      %v3409 = vadd.f32 0.0, %v3408
      %v3410 = vpop.f32.mrf.mxu0
      %v3411 = vadd.f32 0.0, %v3410
      %3412 = vmatmul.bf16.gmra.mxu0 %v3304
      %v3413 = vpop.f32.mrf.mxu0
      %v3414 = vadd.f32 0.0, %v3413
      %v3415 = vpop.f32.mrf.mxu0
      %v3416 = vadd.f32 0.0, %v3415
      %3417 = vmatmul.bf16.gmra.mxu0 %v3305
      %v3418 = vpop.f32.mrf.mxu0
      %v3419 = vadd.f32 0.0, %v3418
      %v3420 = vpop.f32.mrf.mxu0
      %v3421 = vadd.f32 0.0, %v3420
      %3422 = vmatmul.bf16.gmra.mxu0 %v3306
      %v3423 = vpop.f32.mrf.mxu0
      %v3424 = vadd.f32 0.0, %v3423
      %v3425 = vpop.f32.mrf.mxu0
      %v3426 = vadd.f32 0.0, %v3425
      %3427 = vmatmul.bf16.gmra.mxu0 %v3307
      %v3428 = vpop.f32.mrf.mxu0
      %v3429 = vadd.f32 0.0, %v3428
      %v3430 = vpop.f32.mrf.mxu0
      %v3431 = vadd.f32 0.0, %v3430
      %3432 = vmatmul.bf16.gmra.mxu0 %v3308
      %v3433 = vpop.f32.mrf.mxu0
      %v3434 = vadd.f32 0.0, %v3433
      %v3435 = vpop.f32.mrf.mxu0
      %v3436 = vadd.f32 0.0, %v3435
      %3437 = vmatmul.bf16.gmra.mxu0 %v3309
      %v3438 = vpop.f32.mrf.mxu0
      %v3439 = vadd.f32 0.0, %v3438
      %v3440 = vpop.f32.mrf.mxu0
      %v3441 = vadd.f32 0.0, %v3440
      %3442 = vmatmul.bf16.gmra.mxu0 %v3310
      %v3443 = vpop.f32.mrf.mxu0
      %v3444 = vadd.f32 0.0, %v3443
      %v3445 = vpop.f32.mrf.mxu0
      %v3446 = vadd.f32 0.0, %v3445
      %3447 = vmatmul.bf16.gmra.mxu0 %v3311
      %v3448 = vpop.f32.mrf.mxu0
      %v3449 = vadd.f32 0.0, %v3448
      %v3450 = vpop.f32.mrf.mxu0
      %v3451 = vadd.f32 0.0, %v3450
      %3452 = vmatmul.bf16.gmra.mxu0 %v3312
      %v3453 = vpop.f32.mrf.mxu0
      %v3454 = vadd.f32 0.0, %v3453
      %v3455 = vpop.f32.mrf.mxu0
      %v3456 = vadd.f32 0.0, %v3455
      %3457 = vmatmul.bf16.gmra.mxu0 %v3313
      %v3458 = vpop.f32.mrf.mxu0
      %v3459 = vadd.f32 0.0, %v3458
      %v3460 = vpop.f32.mrf.mxu0
      %v3461 = vadd.f32 0.0, %v3460
      %3462 = vmatmul.bf16.gmra.mxu0 %v3314
      %v3463 = vpop.f32.mrf.mxu0
      %v3464 = vadd.f32 0.0, %v3463
      %v3465 = vpop.f32.mrf.mxu0
      %v3466 = vadd.f32 0.0, %v3465
      %3467 = vdwg.mxu0
      %v3468 = vadd.f32 %v3122, %v3389
      %v3469 = vadd.f32 %v3123, %v3391
      %v3470 = vadd.f32 %v3124, %v3394
      %v3471 = vadd.f32 %v3125, %v3396
      %v3472 = vadd.f32 %v3126, %v3399
      %v3473 = vadd.f32 %v3127, %v3401
      %v3474 = vadd.f32 %v3128, %v3404
      %v3475 = vadd.f32 %v3129, %v3406
      %v3476 = vadd.f32 %v3130, %v3409
      %v3477 = vadd.f32 %v3131, %v3411
      %v3478 = vadd.f32 %v3132, %v3414
      %v3479 = vadd.f32 %v3133, %v3416
      %v3480 = vadd.f32 %v3134, %v3419
      %v3481 = vadd.f32 %v3135, %v3421
      %v3482 = vadd.f32 %v3136, %v3424
      %v3483 = vadd.f32 %v3137, %v3426
      %v3484 = vadd.f32 %v3138, %v3429
      %v3485 = vadd.f32 %v3139, %v3431
      %v3486 = vadd.f32 %v3140, %v3434
      %v3487 = vadd.f32 %v3141, %v3436
      %v3488 = vadd.f32 %v3142, %v3439
      %v3489 = vadd.f32 %v3143, %v3441
      %v3490 = vadd.f32 %v3144, %v3444
      %v3491 = vadd.f32 %v3145, %v3446
      %v3492 = vadd.f32 %v3146, %v3449
      %v3493 = vadd.f32 %v3147, %v3451
      %v3494 = vadd.f32 %v3148, %v3454
      %v3495 = vadd.f32 %v3149, %v3456
      %v3496 = vadd.f32 %v3150, %v3459
      %v3497 = vadd.f32 %v3151, %v3461
      %v3498 = vadd.f32 %v3152, %v3464
      %v3499 = vadd.f32 %v3153, %v3466
      %3500 = vst [vmem:[%s222] sm:$0xff] %v3468
      %3501 = vst [vmem:[%s222 + $0x8] sm:$0xff] %v3469
      %3502 = vst [vmem:[%s222 + $0x10] sm:$0xff] %v3470
      %3503 = vst [vmem:[%s222 + $0x18] sm:$0xff] %v3471
      %3504 = vst [vmem:[%s222 + $0x20] sm:$0xff] %v3472
      %3505 = vst [vmem:[%s222 + $0x28] sm:$0xff] %v3473
      %3506 = vst [vmem:[%s222 + $0x30] sm:$0xff] %v3474
      %3507 = vst [vmem:[%s222 + $0x38] sm:$0xff] %v3475
      %3508 = vst [vmem:[%s222 + $0x40] sm:$0xff] %v3476
      %3509 = vst [vmem:[%s222 + $0x48] sm:$0xff] %v3477
      %3510 = vst [vmem:[%s222 + $0x50] sm:$0xff] %v3478
      %3511 = vst [vmem:[%s222 + $0x58] sm:$0xff] %v3479
      %3512 = vst [vmem:[%s222 + $0x60] sm:$0xff] %v3480
      %3513 = vst [vmem:[%s222 + $0x68] sm:$0xff] %v3481
      %3514 = vst [vmem:[%s222 + $0x70] sm:$0xff] %v3482
      %3515 = vst [vmem:[%s222 + $0x78] sm:$0xff] %v3483
      %3516 = vst [vmem:[%s222 + $0x80] sm:$0xff] %v3484
      %3517 = vst [vmem:[%s222 + $0x88] sm:$0xff] %v3485
      %3518 = vst [vmem:[%s222 + $0x90] sm:$0xff] %v3486
      %3519 = vst [vmem:[%s222 + $0x98] sm:$0xff] %v3487
      %3520 = vst [vmem:[%s222 + $0xa0] sm:$0xff] %v3488
      %3521 = vst [vmem:[%s222 + $0xa8] sm:$0xff] %v3489
      %3522 = vst [vmem:[%s222 + $0xb0] sm:$0xff] %v3490
      %3523 = vst [vmem:[%s222 + $0xb8] sm:$0xff] %v3491
      %3524 = vst [vmem:[%s222 + $0xc0] sm:$0xff] %v3492
      %3525 = vst [vmem:[%s222 + $0xc8] sm:$0xff] %v3493
      %3526 = vst [vmem:[%s222 + $0xd0] sm:$0xff] %v3494
      %3527 = vst [vmem:[%s222 + $0xd8] sm:$0xff] %v3495
      %3528 = vst [vmem:[%s222 + $0xe0] sm:$0xff] %v3496
      %3529 = vst [vmem:[%s222 + $0xe8] sm:$0xff] %v3497
      %3530 = vst [vmem:[%s222 + $0xf0] sm:$0xff] %v3498
      %3531 = vst [vmem:[%s222 + $0xf8] sm:$0xff] %v3499
      // Predicated region
      $region41: #{_forward.4} parent=35 // pred_check
        %p3532 = pneg %p359
      $region42: #{_forward.4} parent=35 // pred_check_branch
        %3534 = sbr.rel (%p3532) target = $region44
      $region43: #{_forward.4} parent=35 // pred_region
        %3535 = vst [vmem:[%s5] sm:$0x3] 0.0
      $region44: #{_forward.4} parent=35 // pred_fallthru
        _
      %v3536 = vld [vmem:[%s5] sm:$0x3]
      %v3537 = vadd.f32 %v3468, %v3469
      %v3538 = vadd.f32 %v3537, %v3470
      %v3539 = vadd.f32 %v3538, %v3471
      %v3540 = vadd.f32 %v3539, %v3472
      %v3541 = vadd.f32 %v3540, %v3473
      %v3542 = vadd.f32 %v3541, %v3474
      %v3543 = vadd.f32 %v3542, %v3475
      %v3544 = vadd.f32 %v3543, %v3476
      %v3545 = vadd.f32 %v3544, %v3477
      %v3546 = vadd.f32 %v3545, %v3478
      %v3547 = vadd.f32 %v3546, %v3479
      %v3548 = vadd.f32 %v3547, %v3480
      %v3549 = vadd.f32 %v3548, %v3481
      %v3550 = vadd.f32 %v3549, %v3482
      %v3551 = vadd.f32 %v3550, %v3483
      %v3552 = vadd.f32 %v3551, %v3484
      %v3553 = vadd.f32 %v3552, %v3485
      %v3554 = vadd.f32 %v3553, %v3486
      %v3555 = vadd.f32 %v3554, %v3487
      %v3556 = vadd.f32 %v3555, %v3488
      %v3557 = vadd.f32 %v3556, %v3489
      %v3558 = vadd.f32 %v3557, %v3490
      %v3559 = vadd.f32 %v3558, %v3491
      %v3560 = vadd.f32 %v3559, %v3492
      %v3561 = vadd.f32 %v3560, %v3493
      %v3562 = vadd.f32 %v3561, %v3494
      %v3563 = vadd.f32 %v3562, %v3495
      %v3564 = vadd.f32 %v3563, %v3496
      %v3565 = vadd.f32 %v3564, %v3497
      %v3566 = vadd.f32 %v3565, %v3498
      %v3567 = vadd.f32 %v3566, %v3499
      %v3568 = vrot.slane %v3567, 4
      %v3569 = vadd.f32 %v3567, %v3568
      %v3570 = vrot.slane %v3569, 2
      %v3571 = vadd.f32 %v3569, %v3570
      %v3572 = vrot.slane %v3571, 1
      %v3573 = vadd.f32 %v3571, %v3572
      %v3574 = vmul.f32 %v3468, %v3468
      %v3575 = vmul.f32 %v3469, %v3469
      %v3576 = vmul.f32 %v3470, %v3470
      %v3577 = vmul.f32 %v3471, %v3471
      %v3578 = vmul.f32 %v3472, %v3472
      %v3579 = vmul.f32 %v3473, %v3473
      %v3580 = vmul.f32 %v3474, %v3474
      %v3581 = vmul.f32 %v3475, %v3475
      %v3582 = vmul.f32 %v3476, %v3476
      %v3583 = vmul.f32 %v3477, %v3477
      %v3584 = vmul.f32 %v3478, %v3478
      %v3585 = vmul.f32 %v3479, %v3479
      %v3586 = vmul.f32 %v3480, %v3480
      %v3587 = vmul.f32 %v3481, %v3481
      %v3588 = vmul.f32 %v3482, %v3482
      %v3589 = vmul.f32 %v3483, %v3483
      %v3590 = vmul.f32 %v3484, %v3484
      %v3591 = vmul.f32 %v3485, %v3485
      %v3592 = vmul.f32 %v3486, %v3486
      %v3593 = vmul.f32 %v3487, %v3487
      %v3594 = vmul.f32 %v3488, %v3488
      %v3595 = vmul.f32 %v3489, %v3489
      %v3596 = vmul.f32 %v3490, %v3490
      %v3597 = vmul.f32 %v3491, %v3491
      %v3598 = vmul.f32 %v3492, %v3492
      %v3599 = vmul.f32 %v3493, %v3493
      %v3600 = vmul.f32 %v3494, %v3494
      %v3601 = vmul.f32 %v3495, %v3495
      %v3602 = vmul.f32 %v3496, %v3496
      %v3603 = vmul.f32 %v3497, %v3497
      %v3604 = vmul.f32 %v3498, %v3498
      %v3605 = vmul.f32 %v3499, %v3499
      %v3606 = vadd.f32 %v3574, %v3575
      %v3607 = vadd.f32 %v3606, %v3576
      %v3608 = vadd.f32 %v3607, %v3577
      %v3609 = vadd.f32 %v3608, %v3578
      %v3610 = vadd.f32 %v3609, %v3579
      %v3611 = vadd.f32 %v3610, %v3580
      %v3612 = vadd.f32 %v3611, %v3581
      %v3613 = vadd.f32 %v3612, %v3582
      %v3614 = vadd.f32 %v3613, %v3583
      %v3615 = vadd.f32 %v3614, %v3584
      %v3616 = vadd.f32 %v3615, %v3585
      %v3617 = vadd.f32 %v3616, %v3586
      %v3618 = vadd.f32 %v3617, %v3587
      %v3619 = vadd.f32 %v3618, %v3588
      %v3620 = vadd.f32 %v3619, %v3589
      %v3621 = vadd.f32 %v3620, %v3590
      %v3622 = vadd.f32 %v3621, %v3591
      %v3623 = vadd.f32 %v3622, %v3592
      %v3624 = vadd.f32 %v3623, %v3593
      %v3625 = vadd.f32 %v3624, %v3594
      %v3626 = vadd.f32 %v3625, %v3595
      %v3627 = vadd.f32 %v3626, %v3596
      %v3628 = vadd.f32 %v3627, %v3597
      %v3629 = vadd.f32 %v3628, %v3598
      %v3630 = vadd.f32 %v3629, %v3599
      %v3631 = vadd.f32 %v3630, %v3600
      %v3632 = vadd.f32 %v3631, %v3601
      %v3633 = vadd.f32 %v3632, %v3602
      %v3634 = vadd.f32 %v3633, %v3603
      %v3635 = vadd.f32 %v3634, %v3604
      %v3636 = vadd.f32 %v3635, %v3605
      %v3637 = vrot.slane %v3636, 4
      %v3638 = vadd.f32 %v3636, %v3637
      %v3639 = vrot.slane %v3638, 2
      %v3640 = vadd.f32 %v3638, %v3639
      %v3641 = vrot.slane %v3640, 1
      %v3642 = vadd.f32 %v3640, %v3641
      %vm3643 = vcmask 1040384
      %v3644 = vsel %vm3643, %v3573, %v3642
      %v3645 = vadd.f32 %v3536, %v3644
      %3646 = vst [vmem:[%s5] sm:$0x3] %v3645
      %p3647 = scmp.lt.s32.totalorder %s17, 1
      %s3648 = scalar_select %p3647, %s17, 1
      %s3649 = smul.addr %s3648, 32
      %s3650 = smul.addr %s3649, 8
      %s3651 = scalar_lea.vmem %s4, %s3650
      // Predicated region
      $region45: #{_forward.4} parent=35 // pred_check
        %p3652 = pneg %p124
      $region46: #{_forward.4} parent=35 // pred_check_branch
        %3654 = sbr.rel (%p3652) target = $region48
      $region47: #{_forward.4} parent=35 // pred_region
        _
      $region48: #{_forward.4} parent=35 // pred_fallthru
        _
      // Predicated region
      $region49: #{_forward.4} parent=35 // pred_check
        %p3655 = pneg %p145
      $region50: #{_forward.4} parent=35 // pred_check_branch
        %3657 = sbr.rel (%p3655) target = $region52
      $region51: #{_forward.4} parent=35 // pred_region
        _
      $region52: #{_forward.4} parent=35 // pred_fallthru
        _
      // Predicated region
      $region53: #{_forward.4} parent=35 // pred_check
        %p3658 = pneg %p145
      $region54: #{_forward.4} parent=35 // pred_check_branch
        %3660 = sbr.rel (%p3658) target = $region56
      $region55: #{_forward.4} parent=35 // pred_region
        _
      $region56: #{_forward.4} parent=35 // pred_fallthru
        _
    $region36: #{_forward.4} parent=5 // pred_fallthru
      _
    %p3661 = scmp.le.s32.totalorder 2, %s12
    // Predicated region
    $region57: #{_forward.4} parent=5 // pred_check
      %p3662 = pneg %p3661
    $region58: #{_forward.4} parent=5 // pred_check_branch
      %3664 = sbr.rel (%p3662) target = $region60
    $region59: #{_forward.4} parent=5 // pred_region
      %s3665 = ssub.s32 %s12, 2
      // Predicated region
      $region61: #{_forward.4} parent=59 // pred_check
        %p3666 = pneg %p130
      $region62: #{_forward.4} parent=59 // pred_check_branch
        %3668 = sbr.rel (%p3666) target = $region64
      $region63: #{_forward.4} parent=59 // pred_region
        %p3669 = scmp.lt.s32.totalorder %s18, 1
        %s3670 = scalar_select %p3669, %s18, 1
        %s3671 = smul.addr %s3670, 32
        %s3672 = smul.addr %s3671, 8
        %s3673 = scalar_lea.vmem %s4, %s3672
      $region64: #{_forward.4} parent=59 // pred_fallthru
        _
    $region60: #{_forward.4} parent=5 // pred_fallthru
      _
  $region6: #{_forward.4} parent=0 // loop_footer
    %s16 = sadd.s32 1, %s12
  $region7: #{_forward.4} parent=0 // loop_footer_branch
    %11 = sbr.rel target = $region3
  $region8: #{_forward.4} parent=0 // loop_exit
    _

// kernel: _forward.3
$region0: #{_forward.3}
  #allocation0 [shape = 'u32[]', space=smem, size = 0x4, offset = 0x4, fixed_abs, tag = 'smem constant byte address 0x4 - core index']
  #allocation1 [shape = 'u32[72,128]{1,0:T(1,128)}', space=vmem, size = 0x9000, scoped, tag = 'internal scratch']
  %s0 = inlined_call_operand.vmem [shape: bf16[2,18,18,128], index: 0, kind: input, shape index: {}]
  %s1 = inlined_call_operand.vmem [shape: bf16[9,128,128], index: 1, kind: input, shape index: {}]
  %s2 = inlined_call_operand.vmem [shape: f32[2,16,16,128], index: 2, kind: output, shape index: {0}]
  %s3 = inlined_call_operand.vmem [shape: f32[2,128], index: 3, kind: output, shape index: {1}]
  %4 = xla_tuple %s2, %s3
  %s5 = sld [smem:[#allocation0]]
  $region53: #{_forward.3} parent=0
    _
  %s7 = ssub.s32 1, %s5
  %s8 = scalar_select 0, %s7, %s5
  loop: start=0, step=1, limit=4
  $region2: #{_forward.3} parent=0 // loop_pre_header
    _
  $region3: #{_forward.3} parent=0 // loop_header
    %s10 = sphi 0, %s14
    %p11 = scmp.ge.s32.totalorder %s10, 4
    %s20 = sphi 0, %s22
    %s23 = sphi 0, %s20
    %s24 = sphi 0, %s23
    %s40 = sphi 0, %s24
    %s44 = sphi 0, %s44
    %s46 = sphi 0, %s44
    %s47 = sphi 0, %s46
    %s61 = sphi 0, %s47
    %s67 = sphi 0, %s69
    %s70 = sphi 0, %s67
    %s71 = sphi 0, %s70
    %s87 = sphi 0, %s71
    %s91 = sphi 0, %s91
    %s93 = sphi 0, %s91
    %s94 = sphi 0, %s93
    %s108 = sphi 0, %s94
  $region4: #{_forward.3} parent=0 // loop_header_branch
    %13 = sbr.rel (%p11) target = $region8
  $region5: #{_forward.3} parent=0 // loop_body
    %s15 = ssub.s32 %s10, 1
    %s16 = ssub.s32 %s10, 2
    %s17 = sadd.s32 %s10, 1
    %s18 = ssub.s32 %s10, %s17
    %p19 = scmp.eq.s32.totalorder %s18, 0
    %s21 = sadd.s32 %s20, 1
    %s22 = scalar_select %p19, %s20, %s21
    %p25 = pneg %p19
    %p26 = scmp.eq.s32.totalorder %s10, 1
    %p27 = por %p25, %p26
    %p28 = scmp.ne.s32.totalorder %s20, %s23
    %p29 = scmp.eq.s32.totalorder %s10, 0
    %p30 = por %p28, %p29
    %p31 = scmp.ne.s32.totalorder %s20, %s23
    %p32 = scmp.eq.s32.totalorder %s15, 1
    %p33 = por %p31, %p32
    %p34 = scmp.ne.s32.totalorder %s23, %s24
    %p35 = scmp.eq.s32.totalorder %s15, 0
    %p36 = por %p34, %p35
    %p37 = scmp.ne.s32.totalorder %s23, %s24
    %p38 = scmp.eq.s32.totalorder %s16, 1
    %p39 = por %p37, %p38
    %p41 = scmp.ne.s32.totalorder %s24, %s40
    %p42 = scmp.eq.s32.totalorder %s16, 0
    %p43 = por %p41, %p42
    %s45 = sadd.s32 %s44, 1
    %p48 = scmp.eq.s32.totalorder %s10, 1
    %p49 = scmp.ne.s32.totalorder %s44, %s46
    %p50 = scmp.eq.s32.totalorder %s10, 0
    %p51 = por %p49, %p50
    %p52 = scmp.ne.s32.totalorder %s44, %s46
    %p53 = scmp.eq.s32.totalorder %s15, 1
    %p54 = por %p52, %p53
    %p55 = scmp.ne.s32.totalorder %s46, %s47
    %p56 = scmp.eq.s32.totalorder %s15, 0
    %p57 = por %p55, %p56
    %p58 = scmp.ne.s32.totalorder %s46, %s47
    %p59 = scmp.eq.s32.totalorder %s16, 1
    %p60 = por %p58, %p59
    %p62 = scmp.ne.s32.totalorder %s47, %s61
    %p63 = scmp.eq.s32.totalorder %s16, 0
    %p64 = por %p62, %p63
    %s65 = ssub.s32 %s10, %s17
    %p66 = scmp.eq.s32.totalorder %s65, 0
    %s68 = sadd.s32 %s67, 1
    %s69 = scalar_select %p66, %s67, %s68
    %p72 = pneg %p66
    %p73 = scmp.eq.s32.totalorder %s10, 1
    %p74 = por %p72, %p73
    %p75 = scmp.ne.s32.totalorder %s67, %s70
    %p76 = scmp.eq.s32.totalorder %s10, 0
    %p77 = por %p75, %p76
    %p78 = scmp.ne.s32.totalorder %s67, %s70
    %p79 = scmp.eq.s32.totalorder %s15, 1
    %p80 = por %p78, %p79
    %p81 = scmp.ne.s32.totalorder %s70, %s71
    %p82 = scmp.eq.s32.totalorder %s15, 0
    %p83 = por %p81, %p82
    %p84 = scmp.ne.s32.totalorder %s70, %s71
    %p85 = scmp.eq.s32.totalorder %s16, 1
    %p86 = por %p84, %p85
    %p88 = scmp.ne.s32.totalorder %s71, %s87
    %p89 = scmp.eq.s32.totalorder %s16, 0
    %p90 = por %p88, %p89
    %s92 = sadd.s32 %s91, 1
    %p95 = scmp.eq.s32.totalorder %s10, 1
    %p96 = scmp.ne.s32.totalorder %s91, %s93
    %p97 = scmp.eq.s32.totalorder %s10, 0
    %p98 = por %p96, %p97
    %p99 = scmp.ne.s32.totalorder %s91, %s93
    %p100 = scmp.eq.s32.totalorder %s15, 1
    %p101 = por %p99, %p100
    %p102 = scmp.ne.s32.totalorder %s93, %s94
    %p103 = scmp.eq.s32.totalorder %s15, 0
    %p104 = por %p102, %p103
    %p105 = scmp.ne.s32.totalorder %s93, %s94
    %p106 = scmp.eq.s32.totalorder %s16, 1
    %p107 = por %p105, %p106
    %p109 = scmp.ne.s32.totalorder %s94, %s108
    %p110 = scmp.eq.s32.totalorder %s16, 0
    %p111 = por %p109, %p110
    %p112 = scmp.le.s32.totalorder 1, %s10
    %p113 = scmp.lt.s32.totalorder %s10, 3
    %p114 = pnand %p112, %p113
    %p115 = pneg %p114
    // Predicated region
    $region9: #{_forward.3} parent=5 // pred_check
      _
    $region10: #{_forward.3} parent=5 // pred_check_branch
      %117 = sbr.rel (%p114) target = $region12
    $region11: #{_forward.3} parent=5 // pred_region
      %s118 = ssub.s32 %s10, 1
      // Predicated region
      $region13: #{_forward.3} parent=11 // pred_check
        %p119 = pneg %p57
      $region14: #{_forward.3} parent=11 // pred_check_branch
        %121 = sbr.rel (%p119) target = $region16
      $region15: #{_forward.3} parent=11 // pred_region
        _
      $region16: #{_forward.3} parent=11 // pred_fallthru
        _
    $region12: #{_forward.3} parent=5 // pred_fallthru
      _
    %p122 = scmp.lt.s32.totalorder %s10, 2
    // Predicated region
    $region17: #{_forward.3} parent=5 // pred_check
      %p123 = pneg %p122
    $region18: #{_forward.3} parent=5 // pred_check_branch
      %125 = sbr.rel (%p123) target = $region20
    $region19: #{_forward.3} parent=5 // pred_region
      // Predicated region
      $region21: #{_forward.3} parent=19 // pred_check
        %p126 = pneg %p30
      $region22: #{_forward.3} parent=19 // pred_check_branch
        %128 = sbr.rel (%p126) target = $region24
      $region23: #{_forward.3} parent=19 // pred_region
        %p129 = scmp.lt.s32.totalorder %s10, 1
        %s130 = scalar_select %p129, %s10, 1
        %s131 = smul.addr %s130, 54
        %s132 = smul.addr %s131, 4
        %s133 = scalar_lea.vmem %s0, %s132
      $region24: #{_forward.3} parent=19 // pred_fallthru
        _
    $region20: #{_forward.3} parent=5 // pred_fallthru
      _
    %p134 = scmp.le.s32.totalorder 1, %s10
    %p135 = scmp.lt.s32.totalorder %s10, 3
    %p136 = pnand %p134, %p135
    %p137 = pneg %p136
    // Predicated region
    $region25: #{_forward.3} parent=5 // pred_check
      _
    $region26: #{_forward.3} parent=5 // pred_check_branch
      %139 = sbr.rel (%p136) target = $region28
    $region27: #{_forward.3} parent=5 // pred_region
      %s140 = ssub.s32 %s10, 1
      %p141 = scmp.lt.s32.totalorder %s15, 1
      %s142 = scalar_select %p141, %s15, 1
      %s143 = smul.addr %s142, 54
      %s144 = smul.addr %s143, 4
      %s145 = scalar_lea.vmem %s0, %s144
      %p146 = pneg %p36
      %p147 = pneg %p33
      %p148 = pneg %p57
      %p149 = pneg %p54
      %p150 = pneg %p83
      %p151 = pneg %p80
      %p152 = scmp.lt.s32.totalorder %s15, 1
      %s153 = scalar_select %p152, %s15, 1
      %s154 = smul.addr %s153, 32
      %s155 = smul.addr %s154, 8
      %s156 = scalar_lea.vmem %s2, %s155
      %p157 = pneg %p104
      %p158 = pneg %p101
      %p159 = scmp.lt.s32.totalorder %s15, 1
      %s160 = scalar_select %p159, %s15, 1
      %s161 = smul.addr %s160, 54
      %s162 = smul.addr %s161, 4
      %s163 = scalar_lea.vmem %s0, %s162
      %p164 = scmp.lt.s32.totalorder %s15, 1
      %s165 = scalar_select %p164, %s15, 1
      %s166 = smul.addr %s165, 32
      %s167 = smul.addr %s166, 8
      %s168 = scalar_lea.vmem %s2, %s167
      %v169 = vld [vmem:[%s163] sm:$0xf]
      %v170 = vld [vmem:[%s163 + $0x4] sm:$0xf]
      %v171 = vld [vmem:[%s163 + $0xc] sm:$0xf]
      %v172 = vld [vmem:[%s163 + $0x10] sm:$0xf]
      %v173 = vld [vmem:[%s163 + $0x18] sm:$0xf]
      %v174 = vld [vmem:[%s163 + $0x1c] sm:$0xf]
      %v175 = vld [vmem:[%s163 + $0x24] sm:$0xf]
      %v176 = vld [vmem:[%s163 + $0x28] sm:$0xf]
      %v177 = vld [vmem:[%s163 + $0x30] sm:$0xf]
      %v178 = vld [vmem:[%s163 + $0x34] sm:$0xf]
      %v179 = vld [vmem:[%s163 + $0x3c] sm:$0xf]
      %v180 = vld [vmem:[%s163 + $0x40] sm:$0xf]
      %v181 = vld [vmem:[%s163 + $0x48] sm:$0xf]
      %v182 = vld [vmem:[%s163 + $0x4c] sm:$0xf]
      %v183 = vld [vmem:[%s163 + $0x54] sm:$0xf]
      %v184 = vld [vmem:[%s163 + $0x58] sm:$0xf]
      %v185 = vld [vmem:[%s163 + $0x60] sm:$0xf]
      %v186 = vld [vmem:[%s163 + $0x64] sm:$0xf]
      %v187 = vld [vmem:[%s163 + $0x6c] sm:$0xf]
      %v188 = vld [vmem:[%s163 + $0x70] sm:$0xf]
      %v189 = vld [vmem:[%s163 + $0x78] sm:$0xf]
      %v190 = vld [vmem:[%s163 + $0x7c] sm:$0xf]
      %v191 = vld [vmem:[%s163 + $0x84] sm:$0xf]
      %v192 = vld [vmem:[%s163 + $0x88] sm:$0xf]
      %v193 = vld [vmem:[%s163 + $0x90] sm:$0xf]
      %v194 = vld [vmem:[%s163 + $0x94] sm:$0xf]
      %v195 = vld [vmem:[%s163 + $0x9c] sm:$0xf]
      %v196 = vld [vmem:[%s163 + $0xa0] sm:$0xf]
      %v197 = vld [vmem:[%s163 + $0xa8] sm:$0xf]
      %v198 = vld [vmem:[%s163 + $0xac] sm:$0xf]
      %v199 = vld [vmem:[%s163 + $0xb4] sm:$0xf]
      %v200 = vld [vmem:[%s163 + $0xb8] sm:$0xf]
      %v201 = vld [vmem:[%s1] sm:$0xf]
      %v202 = vld [vmem:[%s1 + $0x4] sm:$0xf]
      %v203 = vld [vmem:[%s1 + $0x8] sm:$0xf]
      %v204 = vld [vmem:[%s1 + $0xc] sm:$0xf]
      %v205 = vld [vmem:[%s1 + $0x10] sm:$0xf]
      %v206 = vld [vmem:[%s1 + $0x14] sm:$0xf]
      %v207 = vld [vmem:[%s1 + $0x18] sm:$0xf]
      %v208 = vld [vmem:[%s1 + $0x1c] sm:$0xf]
      %v209 = vld [vmem:[%s1 + $0x20] sm:$0xf]
      %v210 = vld [vmem:[%s1 + $0x24] sm:$0xf]
      %v211 = vld [vmem:[%s1 + $0x28] sm:$0xf]
      %v212 = vld [vmem:[%s1 + $0x2c] sm:$0xf]
      %v213 = vld [vmem:[%s1 + $0x30] sm:$0xf]
      %v214 = vld [vmem:[%s1 + $0x34] sm:$0xf]
      %v215 = vld [vmem:[%s1 + $0x38] sm:$0xf]
      %v216 = vld [vmem:[%s1 + $0x3c] sm:$0xf]
      %v217 = vld [vmem:[%s163 + $0x8] sm:$0x1]
      %v218 = vld [vmem:[%s163 + $0x14] sm:$0x1]
      %v219 = vld [vmem:[%s163 + $0x20] sm:$0x1]
      %v220 = vld [vmem:[%s163 + $0x2c] sm:$0x1]
      %v221 = vld [vmem:[%s163 + $0x38] sm:$0x1]
      %v222 = vld [vmem:[%s163 + $0x44] sm:$0x1]
      %v223 = vld [vmem:[%s163 + $0x50] sm:$0x1]
      %v224 = vld [vmem:[%s163 + $0x5c] sm:$0x1]
      %v225 = vld [vmem:[%s163 + $0x68] sm:$0x1]
      %v226 = vld [vmem:[%s163 + $0x74] sm:$0x1]
      %v227 = vld [vmem:[%s163 + $0x80] sm:$0x1]
      %v228 = vld [vmem:[%s163 + $0x8c] sm:$0x1]
      %v229 = vld [vmem:[%s163 + $0x98] sm:$0x1]
      %v230 = vld [vmem:[%s163 + $0xa4] sm:$0x1]
      %v231 = vld [vmem:[%s163 + $0xb0] sm:$0x1]
      %v232 = vld [vmem:[%s163 + $0xbc] sm:$0x1]
      %vm233 = vsmask.f32 3328
      %vm234 = vsmask.f32 7440
      %vm235 = vmor %vm233, %vm234
      %v237 = vshrl.u32 %v169, 16
      %v239 = vrot.slane %v237, 4
      %v240 = vshll.u32 %v169, 16
      %v242 = vrot.slane %v240, 5
      %v243 = vor.u32 %v239, %v242
      %v244 = vrot.slane %v243, 4
      %v246 = vshll.u32 %v170, 16
      %v248 = vrot.slane %v246, 5
      %v249 = vsel %vm235, %v244, %v248
      %v250 = vshrl.u32 %v170, 16
      %v252 = vrot.slane %v250, 4
      %v253 = vor.u32 %v252, %v248
      %v254 = vrot.slane %v253, 4
      %v256 = vshll.u32 %v217, 16
      %v258 = vrot.slane %v256, 5
      %v259 = vsel %vm235, %v254, %v258
      %v261 = vshrl.u32 %v171, 16
      %v263 = vrot.slane %v261, 4
      %v264 = vshll.u32 %v171, 16
      %v266 = vrot.slane %v264, 5
      %v267 = vor.u32 %v263, %v266
      %v268 = vrot.slane %v267, 4
      %v270 = vshll.u32 %v172, 16
      %v272 = vrot.slane %v270, 5
      %v273 = vsel %vm235, %v268, %v272
      %v274 = vshrl.u32 %v172, 16
      %v276 = vrot.slane %v274, 4
      %v277 = vor.u32 %v276, %v272
      %v278 = vrot.slane %v277, 4
      %v280 = vshll.u32 %v218, 16
      %v282 = vrot.slane %v280, 5
      %v283 = vsel %vm235, %v278, %v282
      %v285 = vshrl.u32 %v173, 16
      %v287 = vrot.slane %v285, 4
      %v288 = vshll.u32 %v173, 16
      %v290 = vrot.slane %v288, 5
      %v291 = vor.u32 %v287, %v290
      %v292 = vrot.slane %v291, 4
      %v294 = vshll.u32 %v174, 16
      %v296 = vrot.slane %v294, 5
      %v297 = vsel %vm235, %v292, %v296
      %v298 = vshrl.u32 %v174, 16
      %v300 = vrot.slane %v298, 4
      %v301 = vor.u32 %v300, %v296
      %v302 = vrot.slane %v301, 4
      %v304 = vshll.u32 %v219, 16
      %v306 = vrot.slane %v304, 5
      %v307 = vsel %vm235, %v302, %v306
      %v309 = vshrl.u32 %v175, 16
      %v311 = vrot.slane %v309, 4
      %v312 = vshll.u32 %v175, 16
      %v314 = vrot.slane %v312, 5
      %v315 = vor.u32 %v311, %v314
      %v316 = vrot.slane %v315, 4
      %v318 = vshll.u32 %v176, 16
      %v320 = vrot.slane %v318, 5
      %v321 = vsel %vm235, %v316, %v320
      %v322 = vshrl.u32 %v176, 16
      %v324 = vrot.slane %v322, 4
      %v325 = vor.u32 %v324, %v320
      %v326 = vrot.slane %v325, 4
      %v328 = vshll.u32 %v220, 16
      %v330 = vrot.slane %v328, 5
      %v331 = vsel %vm235, %v326, %v330
      %v333 = vshrl.u32 %v177, 16
      %v335 = vrot.slane %v333, 4
      %v336 = vshll.u32 %v177, 16
      %v338 = vrot.slane %v336, 5
      %v339 = vor.u32 %v335, %v338
      %v340 = vrot.slane %v339, 4
      %v342 = vshll.u32 %v178, 16
      %v344 = vrot.slane %v342, 5
      %v345 = vsel %vm235, %v340, %v344
      %v346 = vshrl.u32 %v178, 16
      %v348 = vrot.slane %v346, 4
      %v349 = vor.u32 %v348, %v344
      %v350 = vrot.slane %v349, 4
      %v352 = vshll.u32 %v221, 16
      %v354 = vrot.slane %v352, 5
      %v355 = vsel %vm235, %v350, %v354
      %v357 = vshrl.u32 %v179, 16
      %v359 = vrot.slane %v357, 4
      %v360 = vshll.u32 %v179, 16
      %v362 = vrot.slane %v360, 5
      %v363 = vor.u32 %v359, %v362
      %v364 = vrot.slane %v363, 4
      %v366 = vshll.u32 %v180, 16
      %v368 = vrot.slane %v366, 5
      %v369 = vsel %vm235, %v364, %v368
      %v370 = vshrl.u32 %v180, 16
      %v372 = vrot.slane %v370, 4
      %v373 = vor.u32 %v372, %v368
      %v374 = vrot.slane %v373, 4
      %v376 = vshll.u32 %v222, 16
      %v378 = vrot.slane %v376, 5
      %v379 = vsel %vm235, %v374, %v378
      %v381 = vshrl.u32 %v181, 16
      %v383 = vrot.slane %v381, 4
      %v384 = vshll.u32 %v181, 16
      %v386 = vrot.slane %v384, 5
      %v387 = vor.u32 %v383, %v386
      %v388 = vrot.slane %v387, 4
      %v390 = vshll.u32 %v182, 16
      %v392 = vrot.slane %v390, 5
      %v393 = vsel %vm235, %v388, %v392
      %v394 = vshrl.u32 %v182, 16
      %v396 = vrot.slane %v394, 4
      %v397 = vor.u32 %v396, %v392
      %v398 = vrot.slane %v397, 4
      %v400 = vshll.u32 %v223, 16
      %v402 = vrot.slane %v400, 5
      %v403 = vsel %vm235, %v398, %v402
      %v405 = vshrl.u32 %v183, 16
      %v407 = vrot.slane %v405, 4
      %v408 = vshll.u32 %v183, 16
      %v410 = vrot.slane %v408, 5
      %v411 = vor.u32 %v407, %v410
      %v412 = vrot.slane %v411, 4
      %v414 = vshll.u32 %v184, 16
      %v416 = vrot.slane %v414, 5
      %v417 = vsel %vm235, %v412, %v416
      %v418 = vshrl.u32 %v184, 16
      %v420 = vrot.slane %v418, 4
      %v421 = vor.u32 %v420, %v416
      %v422 = vrot.slane %v421, 4
      %v424 = vshll.u32 %v224, 16
      %v426 = vrot.slane %v424, 5
      %v427 = vsel %vm235, %v422, %v426
      %v429 = vshrl.u32 %v185, 16
      %v431 = vrot.slane %v429, 4
      %v432 = vshll.u32 %v185, 16
      %v434 = vrot.slane %v432, 5
      %v435 = vor.u32 %v431, %v434
      %v436 = vrot.slane %v435, 4
      %v438 = vshll.u32 %v186, 16
      %v440 = vrot.slane %v438, 5
      %v441 = vsel %vm235, %v436, %v440
      %v442 = vshrl.u32 %v186, 16
      %v444 = vrot.slane %v442, 4
      %v445 = vor.u32 %v444, %v440
      %v446 = vrot.slane %v445, 4
      %v448 = vshll.u32 %v225, 16
      %v450 = vrot.slane %v448, 5
      %v451 = vsel %vm235, %v446, %v450
      %v453 = vshrl.u32 %v187, 16
      %v455 = vrot.slane %v453, 4
      %v456 = vshll.u32 %v187, 16
      %v458 = vrot.slane %v456, 5
      %v459 = vor.u32 %v455, %v458
      %v460 = vrot.slane %v459, 4
      %v462 = vshll.u32 %v188, 16
      %v464 = vrot.slane %v462, 5
      %v465 = vsel %vm235, %v460, %v464
      %v466 = vshrl.u32 %v188, 16
      %v468 = vrot.slane %v466, 4
      %v469 = vor.u32 %v468, %v464
      %v470 = vrot.slane %v469, 4
      %v472 = vshll.u32 %v226, 16
      %v474 = vrot.slane %v472, 5
      %v475 = vsel %vm235, %v470, %v474
      %v477 = vshrl.u32 %v189, 16
      %v479 = vrot.slane %v477, 4
      %v480 = vshll.u32 %v189, 16
      %v482 = vrot.slane %v480, 5
      %v483 = vor.u32 %v479, %v482
      %v484 = vrot.slane %v483, 4
      %v486 = vshll.u32 %v190, 16
      %v488 = vrot.slane %v486, 5
      %v489 = vsel %vm235, %v484, %v488
      %v490 = vshrl.u32 %v190, 16
      %v492 = vrot.slane %v490, 4
      %v493 = vor.u32 %v492, %v488
      %v494 = vrot.slane %v493, 4
      %v496 = vshll.u32 %v227, 16
      %v498 = vrot.slane %v496, 5
      %v499 = vsel %vm235, %v494, %v498
      %v501 = vshrl.u32 %v191, 16
      %v503 = vrot.slane %v501, 4
      %v504 = vshll.u32 %v191, 16
      %v506 = vrot.slane %v504, 5
      %v507 = vor.u32 %v503, %v506
      %v508 = vrot.slane %v507, 4
      %v510 = vshll.u32 %v192, 16
      %v512 = vrot.slane %v510, 5
      %v513 = vsel %vm235, %v508, %v512
      %v514 = vshrl.u32 %v192, 16
      %v516 = vrot.slane %v514, 4
      %v517 = vor.u32 %v516, %v512
      %v518 = vrot.slane %v517, 4
      %v520 = vshll.u32 %v228, 16
      %v522 = vrot.slane %v520, 5
      %v523 = vsel %vm235, %v518, %v522
      %v525 = vshrl.u32 %v193, 16
      %v527 = vrot.slane %v525, 4
      %v528 = vshll.u32 %v193, 16
      %v530 = vrot.slane %v528, 5
      %v531 = vor.u32 %v527, %v530
      %v532 = vrot.slane %v531, 4
      %v534 = vshll.u32 %v194, 16
      %v536 = vrot.slane %v534, 5
      %v537 = vsel %vm235, %v532, %v536
      %v538 = vshrl.u32 %v194, 16
      %v540 = vrot.slane %v538, 4
      %v541 = vor.u32 %v540, %v536
      %v542 = vrot.slane %v541, 4
      %v544 = vshll.u32 %v229, 16
      %v546 = vrot.slane %v544, 5
      %v547 = vsel %vm235, %v542, %v546
      %v549 = vshrl.u32 %v195, 16
      %v551 = vrot.slane %v549, 4
      %v552 = vshll.u32 %v195, 16
      %v554 = vrot.slane %v552, 5
      %v555 = vor.u32 %v551, %v554
      %v556 = vrot.slane %v555, 4
      %v558 = vshll.u32 %v196, 16
      %v560 = vrot.slane %v558, 5
      %v561 = vsel %vm235, %v556, %v560
      %v562 = vshrl.u32 %v196, 16
      %v564 = vrot.slane %v562, 4
      %v565 = vor.u32 %v564, %v560
      %v566 = vrot.slane %v565, 4
      %v568 = vshll.u32 %v230, 16
      %v570 = vrot.slane %v568, 5
      %v571 = vsel %vm235, %v566, %v570
      %v573 = vshrl.u32 %v197, 16
      %v575 = vrot.slane %v573, 4
      %v576 = vshll.u32 %v197, 16
      %v578 = vrot.slane %v576, 5
      %v579 = vor.u32 %v575, %v578
      %v580 = vrot.slane %v579, 4
      %v582 = vshll.u32 %v198, 16
      %v584 = vrot.slane %v582, 5
      %v585 = vsel %vm235, %v580, %v584
      %v586 = vshrl.u32 %v198, 16
      %v588 = vrot.slane %v586, 4
      %v589 = vor.u32 %v588, %v584
      %v590 = vrot.slane %v589, 4
      %v592 = vshll.u32 %v231, 16
      %v594 = vrot.slane %v592, 5
      %v595 = vsel %vm235, %v590, %v594
      %v597 = vshrl.u32 %v199, 16
      %v599 = vrot.slane %v597, 4
      %v600 = vshll.u32 %v199, 16
      %v602 = vrot.slane %v600, 5
      %v603 = vor.u32 %v599, %v602
      %v604 = vrot.slane %v603, 4
      %v606 = vshll.u32 %v200, 16
      %v608 = vrot.slane %v606, 5
      %v609 = vsel %vm235, %v604, %v608
      %v610 = vshrl.u32 %v200, 16
      %v612 = vrot.slane %v610, 4
      %v613 = vor.u32 %v612, %v608
      %v614 = vrot.slane %v613, 4
      %v616 = vshll.u32 %v232, 16
      %v618 = vrot.slane %v616, 5
      %v619 = vsel %vm235, %v614, %v618
      %s620 = scalar_lea.vmem %s1, 64
      %v621 = vld [vmem:[%s620] sm:$0xf]
      %v622 = vld [vmem:[%s620 + $0x4] sm:$0xf]
      %v623 = vld [vmem:[%s620 + $0x8] sm:$0xf]
      %v624 = vld [vmem:[%s620 + $0xc] sm:$0xf]
      %v625 = vld [vmem:[%s620 + $0x10] sm:$0xf]
      %v626 = vld [vmem:[%s620 + $0x14] sm:$0xf]
      %v627 = vld [vmem:[%s620 + $0x18] sm:$0xf]
      %v628 = vld [vmem:[%s620 + $0x1c] sm:$0xf]
      %v629 = vld [vmem:[%s620 + $0x20] sm:$0xf]
      %v630 = vld [vmem:[%s620 + $0x24] sm:$0xf]
      %v631 = vld [vmem:[%s620 + $0x28] sm:$0xf]
      %v632 = vld [vmem:[%s620 + $0x2c] sm:$0xf]
      %v633 = vld [vmem:[%s620 + $0x30] sm:$0xf]
      %v634 = vld [vmem:[%s620 + $0x34] sm:$0xf]
      %v635 = vld [vmem:[%s620 + $0x38] sm:$0xf]
      %v636 = vld [vmem:[%s620 + $0x3c] sm:$0xf]
      %v637 = vunpack.c.l.b16 %v249
      %v638 = vunpack.c.l.b16 %v259
      %v639 = vunpack.c.l.b16 %v273
      %v640 = vunpack.c.l.b16 %v283
      %v641 = vunpack.c.l.b16 %v297
      %v642 = vunpack.c.l.b16 %v307
      %v643 = vunpack.c.l.b16 %v321
      %v644 = vunpack.c.l.b16 %v331
      %v645 = vunpack.c.l.b16 %v345
      %v646 = vunpack.c.l.b16 %v355
      %v647 = vunpack.c.l.b16 %v369
      %v648 = vunpack.c.l.b16 %v379
      %v649 = vunpack.c.l.b16 %v393
      %v650 = vunpack.c.l.b16 %v403
      %v651 = vunpack.c.l.b16 %v417
      %v652 = vunpack.c.l.b16 %v427
      %v653 = vunpack.c.l.b16 %v441
      %v654 = vunpack.c.l.b16 %v451
      %v655 = vunpack.c.l.b16 %v465
      %v656 = vunpack.c.l.b16 %v475
      %v657 = vunpack.c.l.b16 %v489
      %v658 = vunpack.c.l.b16 %v499
      %v659 = vunpack.c.l.b16 %v513
      %v660 = vunpack.c.l.b16 %v523
      %v661 = vunpack.c.l.b16 %v537
      %v662 = vunpack.c.l.b16 %v547
      %v663 = vunpack.c.l.b16 %v561
      %v664 = vunpack.c.l.b16 %v571
      %v665 = vunpack.c.l.b16 %v585
      %v666 = vunpack.c.l.b16 %v595
      %v667 = vunpack.c.l.b16 %v609
      %v668 = vunpack.c.l.b16 %v619
      %v669 = vpack.c.b16 %v638, %v637
      %v670 = vpack.c.b16 %v640, %v639
      %v671 = vpack.c.b16 %v642, %v641
      %v672 = vpack.c.b16 %v644, %v643
      %v673 = vpack.c.b16 %v646, %v645
      %v674 = vpack.c.b16 %v648, %v647
      %v675 = vpack.c.b16 %v650, %v649
      %v676 = vpack.c.b16 %v652, %v651
      %v677 = vpack.c.b16 %v654, %v653
      %v678 = vpack.c.b16 %v656, %v655
      %v679 = vpack.c.b16 %v658, %v657
      %v680 = vpack.c.b16 %v660, %v659
      %v681 = vpack.c.b16 %v662, %v661
      %v682 = vpack.c.b16 %v664, %v663
      %v683 = vpack.c.b16 %v666, %v665
      %v684 = vpack.c.b16 %v668, %v667
      %v717 = vunpack.c.l.b16 %v621
      %v718 = vunpack.c.l.b16 %v622
      %v719 = vunpack.c.l.b16 %v623
      %v720 = vunpack.c.l.b16 %v624
      %v721 = vunpack.c.l.b16 %v625
      %v722 = vunpack.c.l.b16 %v626
      %v723 = vunpack.c.l.b16 %v627
      %v724 = vunpack.c.l.b16 %v628
      %v725 = vunpack.c.l.b16 %v629
      %v726 = vunpack.c.l.b16 %v630
      %v727 = vunpack.c.l.b16 %v631
      %v728 = vunpack.c.l.b16 %v632
      %v729 = vunpack.c.l.b16 %v633
      %v730 = vunpack.c.l.b16 %v634
      %v731 = vunpack.c.l.b16 %v635
      %v732 = vunpack.c.l.b16 %v636
      %v733 = vpack.c.b16 %v718, %v717
      %v734 = vpack.c.b16 %v720, %v719
      %v735 = vpack.c.b16 %v722, %v721
      %v736 = vpack.c.b16 %v724, %v723
      %v737 = vpack.c.b16 %v726, %v725
      %v738 = vpack.c.b16 %v728, %v727
      %v739 = vpack.c.b16 %v730, %v729
      %v740 = vpack.c.b16 %v732, %v731
      %749 = vmatpush.bf16.msra.mxu0 %v740
      %750 = vmatpush.bf16.msra.mxu0 %v739
      %751 = vmatpush.bf16.msra.mxu0 %v738
      %752 = vmatpush.bf16.msra.mxu0 %v737
      %753 = vmatpush.bf16.msra.mxu0 %v736
      %754 = vmatpush.bf16.msra.mxu0 %v735
      %755 = vmatpush.bf16.msra.mxu0 %v734
      %756 = vmatpush.bf16.msra.mxu0 %v733
      %757 = vmatmul.bf16.gmra.mxu0 %v669
      %v758 = vpop.f32.mrf.mxu0
      %v759 = vadd.f32 0.0, %v758
      %v760 = vpop.f32.mrf.mxu0
      %v761 = vadd.f32 0.0, %v760
      %762 = vmatmul.bf16.gmra.mxu0 %v670
      %v763 = vpop.f32.mrf.mxu0
      %v764 = vadd.f32 0.0, %v763
      %v765 = vpop.f32.mrf.mxu0
      %v766 = vadd.f32 0.0, %v765
      %767 = vmatmul.bf16.gmra.mxu0 %v671
      %v768 = vpop.f32.mrf.mxu0
      %v769 = vadd.f32 0.0, %v768
      %v770 = vpop.f32.mrf.mxu0
      %v771 = vadd.f32 0.0, %v770
      %772 = vmatmul.bf16.gmra.mxu0 %v672
      %v773 = vpop.f32.mrf.mxu0
      %v774 = vadd.f32 0.0, %v773
      %v775 = vpop.f32.mrf.mxu0
      %v776 = vadd.f32 0.0, %v775
      %777 = vmatmul.bf16.gmra.mxu0 %v673
      %v778 = vpop.f32.mrf.mxu0
      %v779 = vadd.f32 0.0, %v778
      %v780 = vpop.f32.mrf.mxu0
      %v781 = vadd.f32 0.0, %v780
      %782 = vmatmul.bf16.gmra.mxu0 %v674
      %v783 = vpop.f32.mrf.mxu0
      %v784 = vadd.f32 0.0, %v783
      %v785 = vpop.f32.mrf.mxu0
      %v786 = vadd.f32 0.0, %v785
      %787 = vmatmul.bf16.gmra.mxu0 %v675
      %v788 = vpop.f32.mrf.mxu0
      %v789 = vadd.f32 0.0, %v788
      %v790 = vpop.f32.mrf.mxu0
      %v791 = vadd.f32 0.0, %v790
      %792 = vmatmul.bf16.gmra.mxu0 %v676
      %v793 = vpop.f32.mrf.mxu0
      %v794 = vadd.f32 0.0, %v793
      %v795 = vpop.f32.mrf.mxu0
      %v796 = vadd.f32 0.0, %v795
      %797 = vmatmul.bf16.gmra.mxu0 %v677
      %v798 = vpop.f32.mrf.mxu0
      %v799 = vadd.f32 0.0, %v798
      %v800 = vpop.f32.mrf.mxu0
      %v801 = vadd.f32 0.0, %v800
      %802 = vmatmul.bf16.gmra.mxu0 %v678
      %v803 = vpop.f32.mrf.mxu0
      %v804 = vadd.f32 0.0, %v803
      %v805 = vpop.f32.mrf.mxu0
      %v806 = vadd.f32 0.0, %v805
      %807 = vmatmul.bf16.gmra.mxu0 %v679
      %v808 = vpop.f32.mrf.mxu0
      %v809 = vadd.f32 0.0, %v808
      %v810 = vpop.f32.mrf.mxu0
      %v811 = vadd.f32 0.0, %v810
      %812 = vmatmul.bf16.gmra.mxu0 %v680
      %v813 = vpop.f32.mrf.mxu0
      %v814 = vadd.f32 0.0, %v813
      %v815 = vpop.f32.mrf.mxu0
      %v816 = vadd.f32 0.0, %v815
      %817 = vmatmul.bf16.gmra.mxu0 %v681
      %v818 = vpop.f32.mrf.mxu0
      %v819 = vadd.f32 0.0, %v818
      %v820 = vpop.f32.mrf.mxu0
      %v821 = vadd.f32 0.0, %v820
      %822 = vmatmul.bf16.gmra.mxu0 %v682
      %v823 = vpop.f32.mrf.mxu0
      %v824 = vadd.f32 0.0, %v823
      %v825 = vpop.f32.mrf.mxu0
      %v826 = vadd.f32 0.0, %v825
      %827 = vmatmul.bf16.gmra.mxu0 %v683
      %v828 = vpop.f32.mrf.mxu0
      %v829 = vadd.f32 0.0, %v828
      %v830 = vpop.f32.mrf.mxu0
      %v831 = vadd.f32 0.0, %v830
      %832 = vmatmul.bf16.gmra.mxu0 %v684
      %v833 = vpop.f32.mrf.mxu0
      %v834 = vadd.f32 0.0, %v833
      %v835 = vpop.f32.mrf.mxu0
      %v836 = vadd.f32 0.0, %v835
      %837 = vdwg.mxu0
      %v870 = vunpack.c.l.b16 %v169
      %v871 = vunpack.c.l.b16 %v170
      %v872 = vunpack.c.l.b16 %v171
      %v873 = vunpack.c.l.b16 %v172
      %v874 = vunpack.c.l.b16 %v173
      %v875 = vunpack.c.l.b16 %v174
      %v876 = vunpack.c.l.b16 %v175
      %v877 = vunpack.c.l.b16 %v176
      %v878 = vunpack.c.l.b16 %v177
      %v879 = vunpack.c.l.b16 %v178
      %v880 = vunpack.c.l.b16 %v179
      %v881 = vunpack.c.l.b16 %v180
      %v882 = vunpack.c.l.b16 %v181
      %v883 = vunpack.c.l.b16 %v182
      %v884 = vunpack.c.l.b16 %v183
      %v885 = vunpack.c.l.b16 %v184
      %v886 = vunpack.c.l.b16 %v185
      %v887 = vunpack.c.l.b16 %v186
      %v888 = vunpack.c.l.b16 %v187
      %v889 = vunpack.c.l.b16 %v188
      %v890 = vunpack.c.l.b16 %v189
      %v891 = vunpack.c.l.b16 %v190
      %v892 = vunpack.c.l.b16 %v191
      %v893 = vunpack.c.l.b16 %v192
      %v894 = vunpack.c.l.b16 %v193
      %v895 = vunpack.c.l.b16 %v194
      %v896 = vunpack.c.l.b16 %v195
      %v897 = vunpack.c.l.b16 %v196
      %v898 = vunpack.c.l.b16 %v197
      %v899 = vunpack.c.l.b16 %v198
      %v900 = vunpack.c.l.b16 %v199
      %v901 = vunpack.c.l.b16 %v200
      %v902 = vpack.c.b16 %v871, %v870
      %v903 = vpack.c.b16 %v873, %v872
      %v904 = vpack.c.b16 %v875, %v874
      %v905 = vpack.c.b16 %v877, %v876
      %v906 = vpack.c.b16 %v879, %v878
      %v907 = vpack.c.b16 %v881, %v880
      %v908 = vpack.c.b16 %v883, %v882
      %v909 = vpack.c.b16 %v885, %v884
      %v910 = vpack.c.b16 %v887, %v886
      %v911 = vpack.c.b16 %v889, %v888
      %v912 = vpack.c.b16 %v891, %v890
      %v913 = vpack.c.b16 %v893, %v892
      %v914 = vpack.c.b16 %v895, %v894
      %v915 = vpack.c.b16 %v897, %v896
      %v916 = vpack.c.b16 %v899, %v898
      %v917 = vpack.c.b16 %v901, %v900
      %v950 = vunpack.c.l.b16 %v201
      %v951 = vunpack.c.l.b16 %v202
      %v952 = vunpack.c.l.b16 %v203
      %v953 = vunpack.c.l.b16 %v204
      %v954 = vunpack.c.l.b16 %v205
      %v955 = vunpack.c.l.b16 %v206
      %v956 = vunpack.c.l.b16 %v207
      %v957 = vunpack.c.l.b16 %v208
      %v958 = vunpack.c.l.b16 %v209
      %v959 = vunpack.c.l.b16 %v210
      %v960 = vunpack.c.l.b16 %v211
      %v961 = vunpack.c.l.b16 %v212
      %v962 = vunpack.c.l.b16 %v213
      %v963 = vunpack.c.l.b16 %v214
      %v964 = vunpack.c.l.b16 %v215
      %v965 = vunpack.c.l.b16 %v216
      %v966 = vpack.c.b16 %v951, %v950
      %v967 = vpack.c.b16 %v953, %v952
      %v968 = vpack.c.b16 %v955, %v954
      %v969 = vpack.c.b16 %v957, %v956
      %v970 = vpack.c.b16 %v959, %v958
      %v971 = vpack.c.b16 %v961, %v960
      %v972 = vpack.c.b16 %v963, %v962
      %v973 = vpack.c.b16 %v965, %v964
      %982 = vmatpush.bf16.msra.mxu0 %v973
      %983 = vmatpush.bf16.msra.mxu0 %v972
      %984 = vmatpush.bf16.msra.mxu0 %v971
      %985 = vmatpush.bf16.msra.mxu0 %v970
      %986 = vmatpush.bf16.msra.mxu0 %v969
      %987 = vmatpush.bf16.msra.mxu0 %v968
      %988 = vmatpush.bf16.msra.mxu0 %v967
      %989 = vmatpush.bf16.msra.mxu0 %v966
      %990 = vmatmul.bf16.gmra.mxu0 %v902
      %v991 = vpop.f32.mrf.mxu0
      %v992 = vadd.f32 %v759, %v991
      %v993 = vpop.f32.mrf.mxu0
      %v994 = vadd.f32 %v761, %v993
      %995 = vmatmul.bf16.gmra.mxu0 %v903
      %v996 = vpop.f32.mrf.mxu0
      %v997 = vadd.f32 %v764, %v996
      %v998 = vpop.f32.mrf.mxu0
      %v999 = vadd.f32 %v766, %v998
      %1000 = vmatmul.bf16.gmra.mxu0 %v904
      %v1001 = vpop.f32.mrf.mxu0
      %v1002 = vadd.f32 %v769, %v1001
      %v1003 = vpop.f32.mrf.mxu0
      %v1004 = vadd.f32 %v771, %v1003
      %1005 = vmatmul.bf16.gmra.mxu0 %v905
      %v1006 = vpop.f32.mrf.mxu0
      %v1007 = vadd.f32 %v774, %v1006
      %v1008 = vpop.f32.mrf.mxu0
      %v1009 = vadd.f32 %v776, %v1008
      %1010 = vmatmul.bf16.gmra.mxu0 %v906
      %v1011 = vpop.f32.mrf.mxu0
      %v1012 = vadd.f32 %v779, %v1011
      %v1013 = vpop.f32.mrf.mxu0
      %v1014 = vadd.f32 %v781, %v1013
      %1015 = vmatmul.bf16.gmra.mxu0 %v907
      %v1016 = vpop.f32.mrf.mxu0
      %v1017 = vadd.f32 %v784, %v1016
      %v1018 = vpop.f32.mrf.mxu0
      %v1019 = vadd.f32 %v786, %v1018
      %1020 = vmatmul.bf16.gmra.mxu0 %v908
      %v1021 = vpop.f32.mrf.mxu0
      %v1022 = vadd.f32 %v789, %v1021
      %v1023 = vpop.f32.mrf.mxu0
      %v1024 = vadd.f32 %v791, %v1023
      %1025 = vmatmul.bf16.gmra.mxu0 %v909
      %v1026 = vpop.f32.mrf.mxu0
      %v1027 = vadd.f32 %v794, %v1026
      %v1028 = vpop.f32.mrf.mxu0
      %v1029 = vadd.f32 %v796, %v1028
      %1030 = vmatmul.bf16.gmra.mxu0 %v910
      %v1031 = vpop.f32.mrf.mxu0
      %v1032 = vadd.f32 %v799, %v1031
      %v1033 = vpop.f32.mrf.mxu0
      %v1034 = vadd.f32 %v801, %v1033
      %1035 = vmatmul.bf16.gmra.mxu0 %v911
      %v1036 = vpop.f32.mrf.mxu0
      %v1037 = vadd.f32 %v804, %v1036
      %v1038 = vpop.f32.mrf.mxu0
      %v1039 = vadd.f32 %v806, %v1038
      %1040 = vmatmul.bf16.gmra.mxu0 %v912
      %v1041 = vpop.f32.mrf.mxu0
      %v1042 = vadd.f32 %v809, %v1041
      %v1043 = vpop.f32.mrf.mxu0
      %v1044 = vadd.f32 %v811, %v1043
      %1045 = vmatmul.bf16.gmra.mxu0 %v913
      %v1046 = vpop.f32.mrf.mxu0
      %v1047 = vadd.f32 %v814, %v1046
      %v1048 = vpop.f32.mrf.mxu0
      %v1049 = vadd.f32 %v816, %v1048
      %1050 = vmatmul.bf16.gmra.mxu0 %v914
      %v1051 = vpop.f32.mrf.mxu0
      %v1052 = vadd.f32 %v819, %v1051
      %v1053 = vpop.f32.mrf.mxu0
      %v1054 = vadd.f32 %v821, %v1053
      %1055 = vmatmul.bf16.gmra.mxu0 %v915
      %v1056 = vpop.f32.mrf.mxu0
      %v1057 = vadd.f32 %v824, %v1056
      %v1058 = vpop.f32.mrf.mxu0
      %v1059 = vadd.f32 %v826, %v1058
      %1060 = vmatmul.bf16.gmra.mxu0 %v916
      %v1061 = vpop.f32.mrf.mxu0
      %v1062 = vadd.f32 %v829, %v1061
      %v1063 = vpop.f32.mrf.mxu0
      %v1064 = vadd.f32 %v831, %v1063
      %1065 = vmatmul.bf16.gmra.mxu0 %v917
      %v1066 = vpop.f32.mrf.mxu0
      %v1067 = vadd.f32 %v834, %v1066
      %v1068 = vpop.f32.mrf.mxu0
      %v1069 = vadd.f32 %v836, %v1068
      %1070 = vdwg.mxu0
      %v1071 = vld [vmem:[%s163] sm:$0xe]
      %v1072 = vld [vmem:[%s163 + $0xc] sm:$0xe]
      %v1073 = vld [vmem:[%s163 + $0x18] sm:$0xe]
      %v1074 = vld [vmem:[%s163 + $0x24] sm:$0xe]
      %v1075 = vld [vmem:[%s163 + $0x30] sm:$0xe]
      %v1076 = vld [vmem:[%s163 + $0x3c] sm:$0xe]
      %v1077 = vld [vmem:[%s163 + $0x48] sm:$0xe]
      %v1078 = vld [vmem:[%s163 + $0x54] sm:$0xe]
      %v1079 = vld [vmem:[%s163 + $0x60] sm:$0xe]
      %v1080 = vld [vmem:[%s163 + $0x6c] sm:$0xe]
      %v1081 = vld [vmem:[%s163 + $0x78] sm:$0xe]
      %v1082 = vld [vmem:[%s163 + $0x84] sm:$0xe]
      %v1083 = vld [vmem:[%s163 + $0x90] sm:$0xe]
      %v1084 = vld [vmem:[%s163 + $0x9c] sm:$0xe]
      %v1085 = vld [vmem:[%s163 + $0xa8] sm:$0xe]
      %v1086 = vld [vmem:[%s163 + $0xb4] sm:$0xe]
      %vm1119 = vcmask 1042432
      %vm1120 = vcmask 1046532
      %vm1121 = vmor %vm1119, %vm1120
      %v1122 = vrot.slane %v1071, 5
      %v1123 = vrot.slane %v1122, 4
      %v1124 = vrot.slane %v170, 5
      %v1125 = vsel %vm1121, %v1123, %v1124
      %v1126 = vrot.slane %v1124, 4
      %v1127 = vrot.slane %v217, 5
      %v1128 = vsel %vm1121, %v1126, %v1127
      %v1129 = vrot.slane %v1072, 5
      %v1130 = vrot.slane %v1129, 4
      %v1131 = vrot.slane %v172, 5
      %v1132 = vsel %vm1121, %v1130, %v1131
      %v1133 = vrot.slane %v1131, 4
      %v1134 = vrot.slane %v218, 5
      %v1135 = vsel %vm1121, %v1133, %v1134
      %v1136 = vrot.slane %v1073, 5
      %v1137 = vrot.slane %v1136, 4
      %v1138 = vrot.slane %v174, 5
      %v1139 = vsel %vm1121, %v1137, %v1138
      %v1140 = vrot.slane %v1138, 4
      %v1141 = vrot.slane %v219, 5
      %v1142 = vsel %vm1121, %v1140, %v1141
      %v1143 = vrot.slane %v1074, 5
      %v1144 = vrot.slane %v1143, 4
      %v1145 = vrot.slane %v176, 5
      %v1146 = vsel %vm1121, %v1144, %v1145
      %v1147 = vrot.slane %v1145, 4
      %v1148 = vrot.slane %v220, 5
      %v1149 = vsel %vm1121, %v1147, %v1148
      %v1150 = vrot.slane %v1075, 5
      %v1151 = vrot.slane %v1150, 4
      %v1152 = vrot.slane %v178, 5
      %v1153 = vsel %vm1121, %v1151, %v1152
      %v1154 = vrot.slane %v1152, 4
      %v1155 = vrot.slane %v221, 5
      %v1156 = vsel %vm1121, %v1154, %v1155
      %v1157 = vrot.slane %v1076, 5
      %v1158 = vrot.slane %v1157, 4
      %v1159 = vrot.slane %v180, 5
      %v1160 = vsel %vm1121, %v1158, %v1159
      %v1161 = vrot.slane %v1159, 4
      %v1162 = vrot.slane %v222, 5
      %v1163 = vsel %vm1121, %v1161, %v1162
      %v1164 = vrot.slane %v1077, 5
      %v1165 = vrot.slane %v1164, 4
      %v1166 = vrot.slane %v182, 5
      %v1167 = vsel %vm1121, %v1165, %v1166
      %v1168 = vrot.slane %v1166, 4
      %v1169 = vrot.slane %v223, 5
      %v1170 = vsel %vm1121, %v1168, %v1169
      %v1171 = vrot.slane %v1078, 5
      %v1172 = vrot.slane %v1171, 4
      %v1173 = vrot.slane %v184, 5
      %v1174 = vsel %vm1121, %v1172, %v1173
      %v1175 = vrot.slane %v1173, 4
      %v1176 = vrot.slane %v224, 5
      %v1177 = vsel %vm1121, %v1175, %v1176
      %v1178 = vrot.slane %v1079, 5
      %v1179 = vrot.slane %v1178, 4
      %v1180 = vrot.slane %v186, 5
      %v1181 = vsel %vm1121, %v1179, %v1180
      %v1182 = vrot.slane %v1180, 4
      %v1183 = vrot.slane %v225, 5
      %v1184 = vsel %vm1121, %v1182, %v1183
      %v1185 = vrot.slane %v1080, 5
      %v1186 = vrot.slane %v1185, 4
      %v1187 = vrot.slane %v188, 5
      %v1188 = vsel %vm1121, %v1186, %v1187
      %v1189 = vrot.slane %v1187, 4
      %v1190 = vrot.slane %v226, 5
      %v1191 = vsel %vm1121, %v1189, %v1190
      %v1192 = vrot.slane %v1081, 5
      %v1193 = vrot.slane %v1192, 4
      %v1194 = vrot.slane %v190, 5
      %v1195 = vsel %vm1121, %v1193, %v1194
      %v1196 = vrot.slane %v1194, 4
      %v1197 = vrot.slane %v227, 5
      %v1198 = vsel %vm1121, %v1196, %v1197
      %v1199 = vrot.slane %v1082, 5
      %v1200 = vrot.slane %v1199, 4
      %v1201 = vrot.slane %v192, 5
      %v1202 = vsel %vm1121, %v1200, %v1201
      %v1203 = vrot.slane %v1201, 4
      %v1204 = vrot.slane %v228, 5
      %v1205 = vsel %vm1121, %v1203, %v1204
      %v1206 = vrot.slane %v1083, 5
      %v1207 = vrot.slane %v1206, 4
      %v1208 = vrot.slane %v194, 5
      %v1209 = vsel %vm1121, %v1207, %v1208
      %v1210 = vrot.slane %v1208, 4
      %v1211 = vrot.slane %v229, 5
      %v1212 = vsel %vm1121, %v1210, %v1211
      %v1213 = vrot.slane %v1084, 5
      %v1214 = vrot.slane %v1213, 4
      %v1215 = vrot.slane %v196, 5
      %v1216 = vsel %vm1121, %v1214, %v1215
      %v1217 = vrot.slane %v1215, 4
      %v1218 = vrot.slane %v230, 5
      %v1219 = vsel %vm1121, %v1217, %v1218
      %v1220 = vrot.slane %v1085, 5
      %v1221 = vrot.slane %v1220, 4
      %v1222 = vrot.slane %v198, 5
      %v1223 = vsel %vm1121, %v1221, %v1222
      %v1224 = vrot.slane %v1222, 4
      %v1225 = vrot.slane %v231, 5
      %v1226 = vsel %vm1121, %v1224, %v1225
      %v1227 = vrot.slane %v1086, 5
      %v1228 = vrot.slane %v1227, 4
      %v1229 = vrot.slane %v200, 5
      %v1230 = vsel %vm1121, %v1228, %v1229
      %v1231 = vrot.slane %v1229, 4
      %v1232 = vrot.slane %v232, 5
      %v1233 = vsel %vm1121, %v1231, %v1232
      %s1234 = scalar_lea.vmem %s1, 128
      %v1235 = vld [vmem:[%s1234] sm:$0xf]
      %v1236 = vld [vmem:[%s1234 + $0x4] sm:$0xf]
      %v1237 = vld [vmem:[%s1234 + $0x8] sm:$0xf]
      %v1238 = vld [vmem:[%s1234 + $0xc] sm:$0xf]
      %v1239 = vld [vmem:[%s1234 + $0x10] sm:$0xf]
      %v1240 = vld [vmem:[%s1234 + $0x14] sm:$0xf]
      %v1241 = vld [vmem:[%s1234 + $0x18] sm:$0xf]
      %v1242 = vld [vmem:[%s1234 + $0x1c] sm:$0xf]
      %v1243 = vld [vmem:[%s1234 + $0x20] sm:$0xf]
      %v1244 = vld [vmem:[%s1234 + $0x24] sm:$0xf]
      %v1245 = vld [vmem:[%s1234 + $0x28] sm:$0xf]
      %v1246 = vld [vmem:[%s1234 + $0x2c] sm:$0xf]
      %v1247 = vld [vmem:[%s1234 + $0x30] sm:$0xf]
      %v1248 = vld [vmem:[%s1234 + $0x34] sm:$0xf]
      %v1249 = vld [vmem:[%s1234 + $0x38] sm:$0xf]
      %v1250 = vld [vmem:[%s1234 + $0x3c] sm:$0xf]
      %v1251 = vunpack.c.l.b16 %v1125
      %v1252 = vunpack.c.l.b16 %v1128
      %v1253 = vunpack.c.l.b16 %v1132
      %v1254 = vunpack.c.l.b16 %v1135
      %v1255 = vunpack.c.l.b16 %v1139
      %v1256 = vunpack.c.l.b16 %v1142
      %v1257 = vunpack.c.l.b16 %v1146
      %v1258 = vunpack.c.l.b16 %v1149
      %v1259 = vunpack.c.l.b16 %v1153
      %v1260 = vunpack.c.l.b16 %v1156
      %v1261 = vunpack.c.l.b16 %v1160
      %v1262 = vunpack.c.l.b16 %v1163
      %v1263 = vunpack.c.l.b16 %v1167
      %v1264 = vunpack.c.l.b16 %v1170
      %v1265 = vunpack.c.l.b16 %v1174
      %v1266 = vunpack.c.l.b16 %v1177
      %v1267 = vunpack.c.l.b16 %v1181
      %v1268 = vunpack.c.l.b16 %v1184
      %v1269 = vunpack.c.l.b16 %v1188
      %v1270 = vunpack.c.l.b16 %v1191
      %v1271 = vunpack.c.l.b16 %v1195
      %v1272 = vunpack.c.l.b16 %v1198
      %v1273 = vunpack.c.l.b16 %v1202
      %v1274 = vunpack.c.l.b16 %v1205
      %v1275 = vunpack.c.l.b16 %v1209
      %v1276 = vunpack.c.l.b16 %v1212
      %v1277 = vunpack.c.l.b16 %v1216
      %v1278 = vunpack.c.l.b16 %v1219
      %v1279 = vunpack.c.l.b16 %v1223
      %v1280 = vunpack.c.l.b16 %v1226
      %v1281 = vunpack.c.l.b16 %v1230
      %v1282 = vunpack.c.l.b16 %v1233
      %v1283 = vpack.c.b16 %v1252, %v1251
      %v1284 = vpack.c.b16 %v1254, %v1253
      %v1285 = vpack.c.b16 %v1256, %v1255
      %v1286 = vpack.c.b16 %v1258, %v1257
      %v1287 = vpack.c.b16 %v1260, %v1259
      %v1288 = vpack.c.b16 %v1262, %v1261
      %v1289 = vpack.c.b16 %v1264, %v1263
      %v1290 = vpack.c.b16 %v1266, %v1265
      %v1291 = vpack.c.b16 %v1268, %v1267
      %v1292 = vpack.c.b16 %v1270, %v1269
      %v1293 = vpack.c.b16 %v1272, %v1271
      %v1294 = vpack.c.b16 %v1274, %v1273
      %v1295 = vpack.c.b16 %v1276, %v1275
      %v1296 = vpack.c.b16 %v1278, %v1277
      %v1297 = vpack.c.b16 %v1280, %v1279
      %v1298 = vpack.c.b16 %v1282, %v1281
      %v1331 = vunpack.c.l.b16 %v1235
      %v1332 = vunpack.c.l.b16 %v1236
      %v1333 = vunpack.c.l.b16 %v1237
      %v1334 = vunpack.c.l.b16 %v1238
      %v1335 = vunpack.c.l.b16 %v1239
      %v1336 = vunpack.c.l.b16 %v1240
      %v1337 = vunpack.c.l.b16 %v1241
      %v1338 = vunpack.c.l.b16 %v1242
      %v1339 = vunpack.c.l.b16 %v1243
      %v1340 = vunpack.c.l.b16 %v1244
      %v1341 = vunpack.c.l.b16 %v1245
      %v1342 = vunpack.c.l.b16 %v1246
      %v1343 = vunpack.c.l.b16 %v1247
      %v1344 = vunpack.c.l.b16 %v1248
      %v1345 = vunpack.c.l.b16 %v1249
      %v1346 = vunpack.c.l.b16 %v1250
      %v1347 = vpack.c.b16 %v1332, %v1331
      %v1348 = vpack.c.b16 %v1334, %v1333
      %v1349 = vpack.c.b16 %v1336, %v1335
      %v1350 = vpack.c.b16 %v1338, %v1337
      %v1351 = vpack.c.b16 %v1340, %v1339
      %v1352 = vpack.c.b16 %v1342, %v1341
      %v1353 = vpack.c.b16 %v1344, %v1343
      %v1354 = vpack.c.b16 %v1346, %v1345
      %1363 = vmatpush.bf16.msra.mxu0 %v1354
      %1364 = vmatpush.bf16.msra.mxu0 %v1353
      %1365 = vmatpush.bf16.msra.mxu0 %v1352
      %1366 = vmatpush.bf16.msra.mxu0 %v1351
      %1367 = vmatpush.bf16.msra.mxu0 %v1350
      %1368 = vmatpush.bf16.msra.mxu0 %v1349
      %1369 = vmatpush.bf16.msra.mxu0 %v1348
      %1370 = vmatpush.bf16.msra.mxu0 %v1347
      %1371 = vmatmul.bf16.gmra.mxu0 %v1283
      %v1372 = vpop.f32.mrf.mxu0
      %v1373 = vadd.f32 0.0, %v1372
      %v1374 = vpop.f32.mrf.mxu0
      %v1375 = vadd.f32 0.0, %v1374
      %1376 = vmatmul.bf16.gmra.mxu0 %v1284
      %v1377 = vpop.f32.mrf.mxu0
      %v1378 = vadd.f32 0.0, %v1377
      %v1379 = vpop.f32.mrf.mxu0
      %v1380 = vadd.f32 0.0, %v1379
      %1381 = vmatmul.bf16.gmra.mxu0 %v1285
      %v1382 = vpop.f32.mrf.mxu0
      %v1383 = vadd.f32 0.0, %v1382
      %v1384 = vpop.f32.mrf.mxu0
      %v1385 = vadd.f32 0.0, %v1384
      %1386 = vmatmul.bf16.gmra.mxu0 %v1286
      %v1387 = vpop.f32.mrf.mxu0
      %v1388 = vadd.f32 0.0, %v1387
      %v1389 = vpop.f32.mrf.mxu0
      %v1390 = vadd.f32 0.0, %v1389
      %1391 = vmatmul.bf16.gmra.mxu0 %v1287
      %v1392 = vpop.f32.mrf.mxu0
      %v1393 = vadd.f32 0.0, %v1392
      %v1394 = vpop.f32.mrf.mxu0
      %v1395 = vadd.f32 0.0, %v1394
      %1396 = vmatmul.bf16.gmra.mxu0 %v1288
      %v1397 = vpop.f32.mrf.mxu0
      %v1398 = vadd.f32 0.0, %v1397
      %v1399 = vpop.f32.mrf.mxu0
      %v1400 = vadd.f32 0.0, %v1399
      %1401 = vmatmul.bf16.gmra.mxu0 %v1289
      %v1402 = vpop.f32.mrf.mxu0
      %v1403 = vadd.f32 0.0, %v1402
      %v1404 = vpop.f32.mrf.mxu0
      %v1405 = vadd.f32 0.0, %v1404
      %1406 = vmatmul.bf16.gmra.mxu0 %v1290
      %v1407 = vpop.f32.mrf.mxu0
      %v1408 = vadd.f32 0.0, %v1407
      %v1409 = vpop.f32.mrf.mxu0
      %v1410 = vadd.f32 0.0, %v1409
      %1411 = vmatmul.bf16.gmra.mxu0 %v1291
      %v1412 = vpop.f32.mrf.mxu0
      %v1413 = vadd.f32 0.0, %v1412
      %v1414 = vpop.f32.mrf.mxu0
      %v1415 = vadd.f32 0.0, %v1414
      %1416 = vmatmul.bf16.gmra.mxu0 %v1292
      %v1417 = vpop.f32.mrf.mxu0
      %v1418 = vadd.f32 0.0, %v1417
      %v1419 = vpop.f32.mrf.mxu0
      %v1420 = vadd.f32 0.0, %v1419
      %1421 = vmatmul.bf16.gmra.mxu0 %v1293
      %v1422 = vpop.f32.mrf.mxu0
      %v1423 = vadd.f32 0.0, %v1422
      %v1424 = vpop.f32.mrf.mxu0
      %v1425 = vadd.f32 0.0, %v1424
      %1426 = vmatmul.bf16.gmra.mxu0 %v1294
      %v1427 = vpop.f32.mrf.mxu0
      %v1428 = vadd.f32 0.0, %v1427
      %v1429 = vpop.f32.mrf.mxu0
      %v1430 = vadd.f32 0.0, %v1429
      %1431 = vmatmul.bf16.gmra.mxu0 %v1295
      %v1432 = vpop.f32.mrf.mxu0
      %v1433 = vadd.f32 0.0, %v1432
      %v1434 = vpop.f32.mrf.mxu0
      %v1435 = vadd.f32 0.0, %v1434
      %1436 = vmatmul.bf16.gmra.mxu0 %v1296
      %v1437 = vpop.f32.mrf.mxu0
      %v1438 = vadd.f32 0.0, %v1437
      %v1439 = vpop.f32.mrf.mxu0
      %v1440 = vadd.f32 0.0, %v1439
      %1441 = vmatmul.bf16.gmra.mxu0 %v1297
      %v1442 = vpop.f32.mrf.mxu0
      %v1443 = vadd.f32 0.0, %v1442
      %v1444 = vpop.f32.mrf.mxu0
      %v1445 = vadd.f32 0.0, %v1444
      %1446 = vmatmul.bf16.gmra.mxu0 %v1298
      %v1447 = vpop.f32.mrf.mxu0
      %v1448 = vadd.f32 0.0, %v1447
      %v1449 = vpop.f32.mrf.mxu0
      %v1450 = vadd.f32 0.0, %v1449
      %1451 = vdwg.mxu0
      %v1452 = vadd.f32 %v992, %v1373
      %v1453 = vadd.f32 %v994, %v1375
      %v1454 = vadd.f32 %v997, %v1378
      %v1455 = vadd.f32 %v999, %v1380
      %v1456 = vadd.f32 %v1002, %v1383
      %v1457 = vadd.f32 %v1004, %v1385
      %v1458 = vadd.f32 %v1007, %v1388
      %v1459 = vadd.f32 %v1009, %v1390
      %v1460 = vadd.f32 %v1012, %v1393
      %v1461 = vadd.f32 %v1014, %v1395
      %v1462 = vadd.f32 %v1017, %v1398
      %v1463 = vadd.f32 %v1019, %v1400
      %v1464 = vadd.f32 %v1022, %v1403
      %v1465 = vadd.f32 %v1024, %v1405
      %v1466 = vadd.f32 %v1027, %v1408
      %v1467 = vadd.f32 %v1029, %v1410
      %v1468 = vadd.f32 %v1032, %v1413
      %v1469 = vadd.f32 %v1034, %v1415
      %v1470 = vadd.f32 %v1037, %v1418
      %v1471 = vadd.f32 %v1039, %v1420
      %v1472 = vadd.f32 %v1042, %v1423
      %v1473 = vadd.f32 %v1044, %v1425
      %v1474 = vadd.f32 %v1047, %v1428
      %v1475 = vadd.f32 %v1049, %v1430
      %v1476 = vadd.f32 %v1052, %v1433
      %v1477 = vadd.f32 %v1054, %v1435
      %v1478 = vadd.f32 %v1057, %v1438
      %v1479 = vadd.f32 %v1059, %v1440
      %v1480 = vadd.f32 %v1062, %v1443
      %v1481 = vadd.f32 %v1064, %v1445
      %v1482 = vadd.f32 %v1067, %v1448
      %v1483 = vadd.f32 %v1069, %v1450
      %s1484 = scalar_lea.vmem %s163, 12
      %v1485 = vld [vmem:[%s1484] sm:$0xf]
      %v1486 = vld [vmem:[%s1484 + $0x4] sm:$0xf]
      %v1487 = vld [vmem:[%s1484 + $0xc] sm:$0xf]
      %v1488 = vld [vmem:[%s1484 + $0x10] sm:$0xf]
      %v1489 = vld [vmem:[%s1484 + $0x18] sm:$0xf]
      %v1490 = vld [vmem:[%s1484 + $0x1c] sm:$0xf]
      %v1491 = vld [vmem:[%s1484 + $0x24] sm:$0xf]
      %v1492 = vld [vmem:[%s1484 + $0x28] sm:$0xf]
      %v1493 = vld [vmem:[%s1484 + $0x30] sm:$0xf]
      %v1494 = vld [vmem:[%s1484 + $0x34] sm:$0xf]
      %v1495 = vld [vmem:[%s1484 + $0x3c] sm:$0xf]
      %v1496 = vld [vmem:[%s1484 + $0x40] sm:$0xf]
      %v1497 = vld [vmem:[%s1484 + $0x48] sm:$0xf]
      %v1498 = vld [vmem:[%s1484 + $0x4c] sm:$0xf]
      %v1499 = vld [vmem:[%s1484 + $0x54] sm:$0xf]
      %v1500 = vld [vmem:[%s1484 + $0x58] sm:$0xf]
      %v1501 = vld [vmem:[%s1484 + $0x60] sm:$0xf]
      %v1502 = vld [vmem:[%s1484 + $0x64] sm:$0xf]
      %v1503 = vld [vmem:[%s1484 + $0x6c] sm:$0xf]
      %v1504 = vld [vmem:[%s1484 + $0x70] sm:$0xf]
      %v1505 = vld [vmem:[%s1484 + $0x78] sm:$0xf]
      %v1506 = vld [vmem:[%s1484 + $0x7c] sm:$0xf]
      %v1507 = vld [vmem:[%s1484 + $0x84] sm:$0xf]
      %v1508 = vld [vmem:[%s1484 + $0x88] sm:$0xf]
      %v1509 = vld [vmem:[%s1484 + $0x90] sm:$0xf]
      %v1510 = vld [vmem:[%s1484 + $0x94] sm:$0xf]
      %v1511 = vld [vmem:[%s1484 + $0x9c] sm:$0xf]
      %v1512 = vld [vmem:[%s1484 + $0xa0] sm:$0xf]
      %v1513 = vld [vmem:[%s1484 + $0xa8] sm:$0xf]
      %v1514 = vld [vmem:[%s1484 + $0xac] sm:$0xf]
      %v1515 = vld [vmem:[%s1484 + $0xb4] sm:$0xf]
      %v1516 = vld [vmem:[%s1484 + $0xb8] sm:$0xf]
      %s1517 = scalar_lea.vmem %s1, 192
      %v1518 = vld [vmem:[%s1517] sm:$0xf]
      %v1519 = vld [vmem:[%s1517 + $0x4] sm:$0xf]
      %v1520 = vld [vmem:[%s1517 + $0x8] sm:$0xf]
      %v1521 = vld [vmem:[%s1517 + $0xc] sm:$0xf]
      %v1522 = vld [vmem:[%s1517 + $0x10] sm:$0xf]
      %v1523 = vld [vmem:[%s1517 + $0x14] sm:$0xf]
      %v1524 = vld [vmem:[%s1517 + $0x18] sm:$0xf]
      %v1525 = vld [vmem:[%s1517 + $0x1c] sm:$0xf]
      %v1526 = vld [vmem:[%s1517 + $0x20] sm:$0xf]
      %v1527 = vld [vmem:[%s1517 + $0x24] sm:$0xf]
      %v1528 = vld [vmem:[%s1517 + $0x28] sm:$0xf]
      %v1529 = vld [vmem:[%s1517 + $0x2c] sm:$0xf]
      %v1530 = vld [vmem:[%s1517 + $0x30] sm:$0xf]
      %v1531 = vld [vmem:[%s1517 + $0x34] sm:$0xf]
      %v1532 = vld [vmem:[%s1517 + $0x38] sm:$0xf]
      %v1533 = vld [vmem:[%s1517 + $0x3c] sm:$0xf]
      %v1566 = vunpack.c.l.b16 %v1485
      %v1567 = vunpack.c.l.b16 %v1486
      %v1568 = vunpack.c.l.b16 %v1487
      %v1569 = vunpack.c.l.b16 %v1488
      %v1570 = vunpack.c.l.b16 %v1489
      %v1571 = vunpack.c.l.b16 %v1490
      %v1572 = vunpack.c.l.b16 %v1491
      %v1573 = vunpack.c.l.b16 %v1492
      %v1574 = vunpack.c.l.b16 %v1493
      %v1575 = vunpack.c.l.b16 %v1494
      %v1576 = vunpack.c.l.b16 %v1495
      %v1577 = vunpack.c.l.b16 %v1496
      %v1578 = vunpack.c.l.b16 %v1497
      %v1579 = vunpack.c.l.b16 %v1498
      %v1580 = vunpack.c.l.b16 %v1499
      %v1581 = vunpack.c.l.b16 %v1500
      %v1582 = vunpack.c.l.b16 %v1501
      %v1583 = vunpack.c.l.b16 %v1502
      %v1584 = vunpack.c.l.b16 %v1503
      %v1585 = vunpack.c.l.b16 %v1504
      %v1586 = vunpack.c.l.b16 %v1505
      %v1587 = vunpack.c.l.b16 %v1506
      %v1588 = vunpack.c.l.b16 %v1507
      %v1589 = vunpack.c.l.b16 %v1508
      %v1590 = vunpack.c.l.b16 %v1509
      %v1591 = vunpack.c.l.b16 %v1510
      %v1592 = vunpack.c.l.b16 %v1511
      %v1593 = vunpack.c.l.b16 %v1512
      %v1594 = vunpack.c.l.b16 %v1513
      %v1595 = vunpack.c.l.b16 %v1514
      %v1596 = vunpack.c.l.b16 %v1515
      %v1597 = vunpack.c.l.b16 %v1516
      %v1598 = vpack.c.b16 %v1567, %v1566
      %v1599 = vpack.c.b16 %v1569, %v1568
      %v1600 = vpack.c.b16 %v1571, %v1570
      %v1601 = vpack.c.b16 %v1573, %v1572
      %v1602 = vpack.c.b16 %v1575, %v1574
      %v1603 = vpack.c.b16 %v1577, %v1576
      %v1604 = vpack.c.b16 %v1579, %v1578
      %v1605 = vpack.c.b16 %v1581, %v1580
      %v1606 = vpack.c.b16 %v1583, %v1582
      %v1607 = vpack.c.b16 %v1585, %v1584
      %v1608 = vpack.c.b16 %v1587, %v1586
      %v1609 = vpack.c.b16 %v1589, %v1588
      %v1610 = vpack.c.b16 %v1591, %v1590
      %v1611 = vpack.c.b16 %v1593, %v1592
      %v1612 = vpack.c.b16 %v1595, %v1594
      %v1613 = vpack.c.b16 %v1597, %v1596
      %v1646 = vunpack.c.l.b16 %v1518
      %v1647 = vunpack.c.l.b16 %v1519
      %v1648 = vunpack.c.l.b16 %v1520
      %v1649 = vunpack.c.l.b16 %v1521
      %v1650 = vunpack.c.l.b16 %v1522
      %v1651 = vunpack.c.l.b16 %v1523
      %v1652 = vunpack.c.l.b16 %v1524
      %v1653 = vunpack.c.l.b16 %v1525
      %v1654 = vunpack.c.l.b16 %v1526
      %v1655 = vunpack.c.l.b16 %v1527
      %v1656 = vunpack.c.l.b16 %v1528
      %v1657 = vunpack.c.l.b16 %v1529
      %v1658 = vunpack.c.l.b16 %v1530
      %v1659 = vunpack.c.l.b16 %v1531
      %v1660 = vunpack.c.l.b16 %v1532
      %v1661 = vunpack.c.l.b16 %v1533
      %v1662 = vpack.c.b16 %v1647, %v1646
      %v1663 = vpack.c.b16 %v1649, %v1648
      %v1664 = vpack.c.b16 %v1651, %v1650
      %v1665 = vpack.c.b16 %v1653, %v1652
      %v1666 = vpack.c.b16 %v1655, %v1654
      %v1667 = vpack.c.b16 %v1657, %v1656
      %v1668 = vpack.c.b16 %v1659, %v1658
      %v1669 = vpack.c.b16 %v1661, %v1660
      %1678 = vmatpush.bf16.msra.mxu0 %v1669
      %1679 = vmatpush.bf16.msra.mxu0 %v1668
      %1680 = vmatpush.bf16.msra.mxu0 %v1667
      %1681 = vmatpush.bf16.msra.mxu0 %v1666
      %1682 = vmatpush.bf16.msra.mxu0 %v1665
      %1683 = vmatpush.bf16.msra.mxu0 %v1664
      %1684 = vmatpush.bf16.msra.mxu0 %v1663
      %1685 = vmatpush.bf16.msra.mxu0 %v1662
      %1686 = vmatmul.bf16.gmra.mxu0 %v1598
      %v1687 = vpop.f32.mrf.mxu0
      %v1688 = vadd.f32 0.0, %v1687
      %v1689 = vpop.f32.mrf.mxu0
      %v1690 = vadd.f32 0.0, %v1689
      %1691 = vmatmul.bf16.gmra.mxu0 %v1599
      %v1692 = vpop.f32.mrf.mxu0
      %v1693 = vadd.f32 0.0, %v1692
      %v1694 = vpop.f32.mrf.mxu0
      %v1695 = vadd.f32 0.0, %v1694
      %1696 = vmatmul.bf16.gmra.mxu0 %v1600
      %v1697 = vpop.f32.mrf.mxu0
      %v1698 = vadd.f32 0.0, %v1697
      %v1699 = vpop.f32.mrf.mxu0
      %v1700 = vadd.f32 0.0, %v1699
      %1701 = vmatmul.bf16.gmra.mxu0 %v1601
      %v1702 = vpop.f32.mrf.mxu0
      %v1703 = vadd.f32 0.0, %v1702
      %v1704 = vpop.f32.mrf.mxu0
      %v1705 = vadd.f32 0.0, %v1704
      %1706 = vmatmul.bf16.gmra.mxu0 %v1602
      %v1707 = vpop.f32.mrf.mxu0
      %v1708 = vadd.f32 0.0, %v1707
      %v1709 = vpop.f32.mrf.mxu0
      %v1710 = vadd.f32 0.0, %v1709
      %1711 = vmatmul.bf16.gmra.mxu0 %v1603
      %v1712 = vpop.f32.mrf.mxu0
      %v1713 = vadd.f32 0.0, %v1712
      %v1714 = vpop.f32.mrf.mxu0
      %v1715 = vadd.f32 0.0, %v1714
      %1716 = vmatmul.bf16.gmra.mxu0 %v1604
      %v1717 = vpop.f32.mrf.mxu0
      %v1718 = vadd.f32 0.0, %v1717
      %v1719 = vpop.f32.mrf.mxu0
      %v1720 = vadd.f32 0.0, %v1719
      %1721 = vmatmul.bf16.gmra.mxu0 %v1605
      %v1722 = vpop.f32.mrf.mxu0
      %v1723 = vadd.f32 0.0, %v1722
      %v1724 = vpop.f32.mrf.mxu0
      %v1725 = vadd.f32 0.0, %v1724
      %1726 = vmatmul.bf16.gmra.mxu0 %v1606
      %v1727 = vpop.f32.mrf.mxu0
      %v1728 = vadd.f32 0.0, %v1727
      %v1729 = vpop.f32.mrf.mxu0
      %v1730 = vadd.f32 0.0, %v1729
      %1731 = vmatmul.bf16.gmra.mxu0 %v1607
      %v1732 = vpop.f32.mrf.mxu0
      %v1733 = vadd.f32 0.0, %v1732
      %v1734 = vpop.f32.mrf.mxu0
      %v1735 = vadd.f32 0.0, %v1734
      %1736 = vmatmul.bf16.gmra.mxu0 %v1608
      %v1737 = vpop.f32.mrf.mxu0
      %v1738 = vadd.f32 0.0, %v1737
      %v1739 = vpop.f32.mrf.mxu0
      %v1740 = vadd.f32 0.0, %v1739
      %1741 = vmatmul.bf16.gmra.mxu0 %v1609
      %v1742 = vpop.f32.mrf.mxu0
      %v1743 = vadd.f32 0.0, %v1742
      %v1744 = vpop.f32.mrf.mxu0
      %v1745 = vadd.f32 0.0, %v1744
      %1746 = vmatmul.bf16.gmra.mxu0 %v1610
      %v1747 = vpop.f32.mrf.mxu0
      %v1748 = vadd.f32 0.0, %v1747
      %v1749 = vpop.f32.mrf.mxu0
      %v1750 = vadd.f32 0.0, %v1749
      %1751 = vmatmul.bf16.gmra.mxu0 %v1611
      %v1752 = vpop.f32.mrf.mxu0
      %v1753 = vadd.f32 0.0, %v1752
      %v1754 = vpop.f32.mrf.mxu0
      %v1755 = vadd.f32 0.0, %v1754
      %1756 = vmatmul.bf16.gmra.mxu0 %v1612
      %v1757 = vpop.f32.mrf.mxu0
      %v1758 = vadd.f32 0.0, %v1757
      %v1759 = vpop.f32.mrf.mxu0
      %v1760 = vadd.f32 0.0, %v1759
      %1761 = vmatmul.bf16.gmra.mxu0 %v1613
      %v1762 = vpop.f32.mrf.mxu0
      %v1763 = vadd.f32 0.0, %v1762
      %v1764 = vpop.f32.mrf.mxu0
      %v1765 = vadd.f32 0.0, %v1764
      %1766 = vdwg.mxu0
      %v1767 = vadd.f32 %v1452, %v1688
      %v1768 = vadd.f32 %v1453, %v1690
      %v1769 = vadd.f32 %v1454, %v1693
      %v1770 = vadd.f32 %v1455, %v1695
      %v1771 = vadd.f32 %v1456, %v1698
      %v1772 = vadd.f32 %v1457, %v1700
      %v1773 = vadd.f32 %v1458, %v1703
      %v1774 = vadd.f32 %v1459, %v1705
      %v1775 = vadd.f32 %v1460, %v1708
      %v1776 = vadd.f32 %v1461, %v1710
      %v1777 = vadd.f32 %v1462, %v1713
      %v1778 = vadd.f32 %v1463, %v1715
      %v1779 = vadd.f32 %v1464, %v1718
      %v1780 = vadd.f32 %v1465, %v1720
      %v1781 = vadd.f32 %v1466, %v1723
      %v1782 = vadd.f32 %v1467, %v1725
      %v1783 = vadd.f32 %v1468, %v1728
      %v1784 = vadd.f32 %v1469, %v1730
      %v1785 = vadd.f32 %v1470, %v1733
      %v1786 = vadd.f32 %v1471, %v1735
      %v1787 = vadd.f32 %v1472, %v1738
      %v1788 = vadd.f32 %v1473, %v1740
      %v1789 = vadd.f32 %v1474, %v1743
      %v1790 = vadd.f32 %v1475, %v1745
      %v1791 = vadd.f32 %v1476, %v1748
      %v1792 = vadd.f32 %v1477, %v1750
      %v1793 = vadd.f32 %v1478, %v1753
      %v1794 = vadd.f32 %v1479, %v1755
      %v1795 = vadd.f32 %v1480, %v1758
      %v1796 = vadd.f32 %v1481, %v1760
      %v1797 = vadd.f32 %v1482, %v1763
      %v1798 = vadd.f32 %v1483, %v1765
      %v1799 = vld [vmem:[%s1484] sm:$0xf]
      %v1800 = vld [vmem:[%s1484 + $0x4] sm:$0xf]
      %v1801 = vld [vmem:[%s1484 + $0x8] sm:$0x1]
      %v1802 = vld [vmem:[%s1484 + $0xc] sm:$0xf]
      %v1803 = vld [vmem:[%s1484 + $0x10] sm:$0xf]
      %v1804 = vld [vmem:[%s1484 + $0x14] sm:$0x1]
      %v1805 = vld [vmem:[%s1484 + $0x18] sm:$0xf]
      %v1806 = vld [vmem:[%s1484 + $0x1c] sm:$0xf]
      %v1807 = vld [vmem:[%s1484 + $0x20] sm:$0x1]
      %v1808 = vld [vmem:[%s1484 + $0x24] sm:$0xf]
      %v1809 = vld [vmem:[%s1484 + $0x28] sm:$0xf]
      %v1810 = vld [vmem:[%s1484 + $0x2c] sm:$0x1]
      %v1811 = vld [vmem:[%s1484 + $0x30] sm:$0xf]
      %v1812 = vld [vmem:[%s1484 + $0x34] sm:$0xf]
      %v1813 = vld [vmem:[%s1484 + $0x38] sm:$0x1]
      %v1814 = vld [vmem:[%s1484 + $0x3c] sm:$0xf]
      %v1815 = vld [vmem:[%s1484 + $0x40] sm:$0xf]
      %v1816 = vld [vmem:[%s1484 + $0x44] sm:$0x1]
      %v1817 = vld [vmem:[%s1484 + $0x48] sm:$0xf]
      %v1818 = vld [vmem:[%s1484 + $0x4c] sm:$0xf]
      %v1819 = vld [vmem:[%s1484 + $0x50] sm:$0x1]
      %v1820 = vld [vmem:[%s1484 + $0x54] sm:$0xf]
      %v1821 = vld [vmem:[%s1484 + $0x58] sm:$0xf]
      %v1822 = vld [vmem:[%s1484 + $0x5c] sm:$0x1]
      %v1823 = vld [vmem:[%s1484 + $0x60] sm:$0xf]
      %v1824 = vld [vmem:[%s1484 + $0x64] sm:$0xf]
      %v1825 = vld [vmem:[%s1484 + $0x68] sm:$0x1]
      %v1826 = vld [vmem:[%s1484 + $0x6c] sm:$0xf]
      %v1827 = vld [vmem:[%s1484 + $0x70] sm:$0xf]
      %v1828 = vld [vmem:[%s1484 + $0x74] sm:$0x1]
      %v1829 = vld [vmem:[%s1484 + $0x78] sm:$0xf]
      %v1830 = vld [vmem:[%s1484 + $0x7c] sm:$0xf]
      %v1831 = vld [vmem:[%s1484 + $0x80] sm:$0x1]
      %v1832 = vld [vmem:[%s1484 + $0x84] sm:$0xf]
      %v1833 = vld [vmem:[%s1484 + $0x88] sm:$0xf]
      %v1834 = vld [vmem:[%s1484 + $0x8c] sm:$0x1]
      %v1835 = vld [vmem:[%s1484 + $0x90] sm:$0xf]
      %v1836 = vld [vmem:[%s1484 + $0x94] sm:$0xf]
      %v1837 = vld [vmem:[%s1484 + $0x98] sm:$0x1]
      %v1838 = vld [vmem:[%s1484 + $0x9c] sm:$0xf]
      %v1839 = vld [vmem:[%s1484 + $0xa0] sm:$0xf]
      %v1840 = vld [vmem:[%s1484 + $0xa4] sm:$0x1]
      %v1841 = vld [vmem:[%s1484 + $0xa8] sm:$0xf]
      %v1842 = vld [vmem:[%s1484 + $0xac] sm:$0xf]
      %v1843 = vld [vmem:[%s1484 + $0xb0] sm:$0x1]
      %v1844 = vld [vmem:[%s1484 + $0xb4] sm:$0xf]
      %v1845 = vld [vmem:[%s1484 + $0xb8] sm:$0xf]
      %v1846 = vld [vmem:[%s1484 + $0xbc] sm:$0x1]
      %v1848 = vshrl.u32 %v1799, 16
      %v1850 = vrot.slane %v1848, 4
      %v1851 = vshll.u32 %v1799, 16
      %v1853 = vrot.slane %v1851, 5
      %v1854 = vor.u32 %v1850, %v1853
      %v1855 = vrot.slane %v1854, 4
      %v1857 = vshll.u32 %v1800, 16
      %v1859 = vrot.slane %v1857, 5
      %v1860 = vsel %vm235, %v1855, %v1859
      %v1861 = vshrl.u32 %v1800, 16
      %v1863 = vrot.slane %v1861, 4
      %v1864 = vor.u32 %v1863, %v1859
      %v1865 = vrot.slane %v1864, 4
      %v1867 = vshll.u32 %v1801, 16
      %v1869 = vrot.slane %v1867, 5
      %v1870 = vsel %vm235, %v1865, %v1869
      %v1872 = vshrl.u32 %v1802, 16
      %v1874 = vrot.slane %v1872, 4
      %v1875 = vshll.u32 %v1802, 16
      %v1877 = vrot.slane %v1875, 5
      %v1878 = vor.u32 %v1874, %v1877
      %v1879 = vrot.slane %v1878, 4
      %v1881 = vshll.u32 %v1803, 16
      %v1883 = vrot.slane %v1881, 5
      %v1884 = vsel %vm235, %v1879, %v1883
      %v1885 = vshrl.u32 %v1803, 16
      %v1887 = vrot.slane %v1885, 4
      %v1888 = vor.u32 %v1887, %v1883
      %v1889 = vrot.slane %v1888, 4
      %v1891 = vshll.u32 %v1804, 16
      %v1893 = vrot.slane %v1891, 5
      %v1894 = vsel %vm235, %v1889, %v1893
      %v1896 = vshrl.u32 %v1805, 16
      %v1898 = vrot.slane %v1896, 4
      %v1899 = vshll.u32 %v1805, 16
      %v1901 = vrot.slane %v1899, 5
      %v1902 = vor.u32 %v1898, %v1901
      %v1903 = vrot.slane %v1902, 4
      %v1905 = vshll.u32 %v1806, 16
      %v1907 = vrot.slane %v1905, 5
      %v1908 = vsel %vm235, %v1903, %v1907
      %v1909 = vshrl.u32 %v1806, 16
      %v1911 = vrot.slane %v1909, 4
      %v1912 = vor.u32 %v1911, %v1907
      %v1913 = vrot.slane %v1912, 4
      %v1915 = vshll.u32 %v1807, 16
      %v1917 = vrot.slane %v1915, 5
      %v1918 = vsel %vm235, %v1913, %v1917
      %v1920 = vshrl.u32 %v1808, 16
      %v1922 = vrot.slane %v1920, 4
      %v1923 = vshll.u32 %v1808, 16
      %v1925 = vrot.slane %v1923, 5
      %v1926 = vor.u32 %v1922, %v1925
      %v1927 = vrot.slane %v1926, 4
      %v1929 = vshll.u32 %v1809, 16
      %v1931 = vrot.slane %v1929, 5
      %v1932 = vsel %vm235, %v1927, %v1931
      %v1933 = vshrl.u32 %v1809, 16
      %v1935 = vrot.slane %v1933, 4
      %v1936 = vor.u32 %v1935, %v1931
      %v1937 = vrot.slane %v1936, 4
      %v1939 = vshll.u32 %v1810, 16
      %v1941 = vrot.slane %v1939, 5
      %v1942 = vsel %vm235, %v1937, %v1941
      %v1944 = vshrl.u32 %v1811, 16
      %v1946 = vrot.slane %v1944, 4
      %v1947 = vshll.u32 %v1811, 16
      %v1949 = vrot.slane %v1947, 5
      %v1950 = vor.u32 %v1946, %v1949
      %v1951 = vrot.slane %v1950, 4
      %v1953 = vshll.u32 %v1812, 16
      %v1955 = vrot.slane %v1953, 5
      %v1956 = vsel %vm235, %v1951, %v1955
      %v1957 = vshrl.u32 %v1812, 16
      %v1959 = vrot.slane %v1957, 4
      %v1960 = vor.u32 %v1959, %v1955
      %v1961 = vrot.slane %v1960, 4
      %v1963 = vshll.u32 %v1813, 16
      %v1965 = vrot.slane %v1963, 5
      %v1966 = vsel %vm235, %v1961, %v1965
      %v1968 = vshrl.u32 %v1814, 16
      %v1970 = vrot.slane %v1968, 4
      %v1971 = vshll.u32 %v1814, 16
      %v1973 = vrot.slane %v1971, 5
      %v1974 = vor.u32 %v1970, %v1973
      %v1975 = vrot.slane %v1974, 4
      %v1977 = vshll.u32 %v1815, 16
      %v1979 = vrot.slane %v1977, 5
      %v1980 = vsel %vm235, %v1975, %v1979
      %v1981 = vshrl.u32 %v1815, 16
      %v1983 = vrot.slane %v1981, 4
      %v1984 = vor.u32 %v1983, %v1979
      %v1985 = vrot.slane %v1984, 4
      %v1987 = vshll.u32 %v1816, 16
      %v1989 = vrot.slane %v1987, 5
      %v1990 = vsel %vm235, %v1985, %v1989
      %v1992 = vshrl.u32 %v1817, 16
      %v1994 = vrot.slane %v1992, 4
      %v1995 = vshll.u32 %v1817, 16
      %v1997 = vrot.slane %v1995, 5
      %v1998 = vor.u32 %v1994, %v1997
      %v1999 = vrot.slane %v1998, 4
      %v2001 = vshll.u32 %v1818, 16
      %v2003 = vrot.slane %v2001, 5
      %v2004 = vsel %vm235, %v1999, %v2003
      %v2005 = vshrl.u32 %v1818, 16
      %v2007 = vrot.slane %v2005, 4
      %v2008 = vor.u32 %v2007, %v2003
      %v2009 = vrot.slane %v2008, 4
      %v2011 = vshll.u32 %v1819, 16
      %v2013 = vrot.slane %v2011, 5
      %v2014 = vsel %vm235, %v2009, %v2013
      %v2016 = vshrl.u32 %v1820, 16
      %v2018 = vrot.slane %v2016, 4
      %v2019 = vshll.u32 %v1820, 16
      %v2021 = vrot.slane %v2019, 5
      %v2022 = vor.u32 %v2018, %v2021
      %v2023 = vrot.slane %v2022, 4
      %v2025 = vshll.u32 %v1821, 16
      %v2027 = vrot.slane %v2025, 5
      %v2028 = vsel %vm235, %v2023, %v2027
      %v2029 = vshrl.u32 %v1821, 16
      %v2031 = vrot.slane %v2029, 4
      %v2032 = vor.u32 %v2031, %v2027
      %v2033 = vrot.slane %v2032, 4
      %v2035 = vshll.u32 %v1822, 16
      %v2037 = vrot.slane %v2035, 5
      %v2038 = vsel %vm235, %v2033, %v2037
      %v2040 = vshrl.u32 %v1823, 16
      %v2042 = vrot.slane %v2040, 4
      %v2043 = vshll.u32 %v1823, 16
      %v2045 = vrot.slane %v2043, 5
      %v2046 = vor.u32 %v2042, %v2045
      %v2047 = vrot.slane %v2046, 4
      %v2049 = vshll.u32 %v1824, 16
      %v2051 = vrot.slane %v2049, 5
      %v2052 = vsel %vm235, %v2047, %v2051
      %v2053 = vshrl.u32 %v1824, 16
      %v2055 = vrot.slane %v2053, 4
      %v2056 = vor.u32 %v2055, %v2051
      %v2057 = vrot.slane %v2056, 4
      %v2059 = vshll.u32 %v1825, 16
      %v2061 = vrot.slane %v2059, 5
      %v2062 = vsel %vm235, %v2057, %v2061
      %v2064 = vshrl.u32 %v1826, 16
      %v2066 = vrot.slane %v2064, 4
      %v2067 = vshll.u32 %v1826, 16
      %v2069 = vrot.slane %v2067, 5
      %v2070 = vor.u32 %v2066, %v2069
      %v2071 = vrot.slane %v2070, 4
      %v2073 = vshll.u32 %v1827, 16
      %v2075 = vrot.slane %v2073, 5
      %v2076 = vsel %vm235, %v2071, %v2075
      %v2077 = vshrl.u32 %v1827, 16
      %v2079 = vrot.slane %v2077, 4
      %v2080 = vor.u32 %v2079, %v2075
      %v2081 = vrot.slane %v2080, 4
      %v2083 = vshll.u32 %v1828, 16
      %v2085 = vrot.slane %v2083, 5
      %v2086 = vsel %vm235, %v2081, %v2085
      %v2088 = vshrl.u32 %v1829, 16
      %v2090 = vrot.slane %v2088, 4
      %v2091 = vshll.u32 %v1829, 16
      %v2093 = vrot.slane %v2091, 5
      %v2094 = vor.u32 %v2090, %v2093
      %v2095 = vrot.slane %v2094, 4
      %v2097 = vshll.u32 %v1830, 16
      %v2099 = vrot.slane %v2097, 5
      %v2100 = vsel %vm235, %v2095, %v2099
      %v2101 = vshrl.u32 %v1830, 16
      %v2103 = vrot.slane %v2101, 4
      %v2104 = vor.u32 %v2103, %v2099
      %v2105 = vrot.slane %v2104, 4
      %v2107 = vshll.u32 %v1831, 16
      %v2109 = vrot.slane %v2107, 5
      %v2110 = vsel %vm235, %v2105, %v2109
      %v2112 = vshrl.u32 %v1832, 16
      %v2114 = vrot.slane %v2112, 4
      %v2115 = vshll.u32 %v1832, 16
      %v2117 = vrot.slane %v2115, 5
      %v2118 = vor.u32 %v2114, %v2117
      %v2119 = vrot.slane %v2118, 4
      %v2121 = vshll.u32 %v1833, 16
      %v2123 = vrot.slane %v2121, 5
      %v2124 = vsel %vm235, %v2119, %v2123
      %v2125 = vshrl.u32 %v1833, 16
      %v2127 = vrot.slane %v2125, 4
      %v2128 = vor.u32 %v2127, %v2123
      %v2129 = vrot.slane %v2128, 4
      %v2131 = vshll.u32 %v1834, 16
      %v2133 = vrot.slane %v2131, 5
      %v2134 = vsel %vm235, %v2129, %v2133
      %v2136 = vshrl.u32 %v1835, 16
      %v2138 = vrot.slane %v2136, 4
      %v2139 = vshll.u32 %v1835, 16
      %v2141 = vrot.slane %v2139, 5
      %v2142 = vor.u32 %v2138, %v2141
      %v2143 = vrot.slane %v2142, 4
      %v2145 = vshll.u32 %v1836, 16
      %v2147 = vrot.slane %v2145, 5
      %v2148 = vsel %vm235, %v2143, %v2147
      %v2149 = vshrl.u32 %v1836, 16
      %v2151 = vrot.slane %v2149, 4
      %v2152 = vor.u32 %v2151, %v2147
      %v2153 = vrot.slane %v2152, 4
      %v2155 = vshll.u32 %v1837, 16
      %v2157 = vrot.slane %v2155, 5
      %v2158 = vsel %vm235, %v2153, %v2157
      %v2160 = vshrl.u32 %v1838, 16
      %v2162 = vrot.slane %v2160, 4
      %v2163 = vshll.u32 %v1838, 16
      %v2165 = vrot.slane %v2163, 5
      %v2166 = vor.u32 %v2162, %v2165
      %v2167 = vrot.slane %v2166, 4
      %v2169 = vshll.u32 %v1839, 16
      %v2171 = vrot.slane %v2169, 5
      %v2172 = vsel %vm235, %v2167, %v2171
      %v2173 = vshrl.u32 %v1839, 16
      %v2175 = vrot.slane %v2173, 4
      %v2176 = vor.u32 %v2175, %v2171
      %v2177 = vrot.slane %v2176, 4
      %v2179 = vshll.u32 %v1840, 16
      %v2181 = vrot.slane %v2179, 5
      %v2182 = vsel %vm235, %v2177, %v2181
      %v2184 = vshrl.u32 %v1841, 16
      %v2186 = vrot.slane %v2184, 4
      %v2187 = vshll.u32 %v1841, 16
      %v2189 = vrot.slane %v2187, 5
      %v2190 = vor.u32 %v2186, %v2189
      %v2191 = vrot.slane %v2190, 4
      %v2193 = vshll.u32 %v1842, 16
      %v2195 = vrot.slane %v2193, 5
      %v2196 = vsel %vm235, %v2191, %v2195
      %v2197 = vshrl.u32 %v1842, 16
      %v2199 = vrot.slane %v2197, 4
      %v2200 = vor.u32 %v2199, %v2195
      %v2201 = vrot.slane %v2200, 4
      %v2203 = vshll.u32 %v1843, 16
      %v2205 = vrot.slane %v2203, 5
      %v2206 = vsel %vm235, %v2201, %v2205
      %v2208 = vshrl.u32 %v1844, 16
      %v2210 = vrot.slane %v2208, 4
      %v2211 = vshll.u32 %v1844, 16
      %v2213 = vrot.slane %v2211, 5
      %v2214 = vor.u32 %v2210, %v2213
      %v2215 = vrot.slane %v2214, 4
      %v2217 = vshll.u32 %v1845, 16
      %v2219 = vrot.slane %v2217, 5
      %v2220 = vsel %vm235, %v2215, %v2219
      %v2221 = vshrl.u32 %v1845, 16
      %v2223 = vrot.slane %v2221, 4
      %v2224 = vor.u32 %v2223, %v2219
      %v2225 = vrot.slane %v2224, 4
      %v2227 = vshll.u32 %v1846, 16
      %v2229 = vrot.slane %v2227, 5
      %v2230 = vsel %vm235, %v2225, %v2229
      %s2231 = scalar_lea.vmem %s1, 256
      %v2232 = vld [vmem:[%s2231] sm:$0xf]
      %v2233 = vld [vmem:[%s2231 + $0x4] sm:$0xf]
      %v2234 = vld [vmem:[%s2231 + $0x8] sm:$0xf]
      %v2235 = vld [vmem:[%s2231 + $0xc] sm:$0xf]
      %v2236 = vld [vmem:[%s2231 + $0x10] sm:$0xf]
      %v2237 = vld [vmem:[%s2231 + $0x14] sm:$0xf]
      %v2238 = vld [vmem:[%s2231 + $0x18] sm:$0xf]
      %v2239 = vld [vmem:[%s2231 + $0x1c] sm:$0xf]
      %v2240 = vld [vmem:[%s2231 + $0x20] sm:$0xf]
      %v2241 = vld [vmem:[%s2231 + $0x24] sm:$0xf]
      %v2242 = vld [vmem:[%s2231 + $0x28] sm:$0xf]
      %v2243 = vld [vmem:[%s2231 + $0x2c] sm:$0xf]
      %v2244 = vld [vmem:[%s2231 + $0x30] sm:$0xf]
      %v2245 = vld [vmem:[%s2231 + $0x34] sm:$0xf]
      %v2246 = vld [vmem:[%s2231 + $0x38] sm:$0xf]
      %v2247 = vld [vmem:[%s2231 + $0x3c] sm:$0xf]
      %v2248 = vunpack.c.l.b16 %v1860
      %v2249 = vunpack.c.l.b16 %v1870
      %v2250 = vunpack.c.l.b16 %v1884
      %v2251 = vunpack.c.l.b16 %v1894
      %v2252 = vunpack.c.l.b16 %v1908
      %v2253 = vunpack.c.l.b16 %v1918
      %v2254 = vunpack.c.l.b16 %v1932
      %v2255 = vunpack.c.l.b16 %v1942
      %v2256 = vunpack.c.l.b16 %v1956
      %v2257 = vunpack.c.l.b16 %v1966
      %v2258 = vunpack.c.l.b16 %v1980
      %v2259 = vunpack.c.l.b16 %v1990
      %v2260 = vunpack.c.l.b16 %v2004
      %v2261 = vunpack.c.l.b16 %v2014
      %v2262 = vunpack.c.l.b16 %v2028
      %v2263 = vunpack.c.l.b16 %v2038
      %v2264 = vunpack.c.l.b16 %v2052
      %v2265 = vunpack.c.l.b16 %v2062
      %v2266 = vunpack.c.l.b16 %v2076
      %v2267 = vunpack.c.l.b16 %v2086
      %v2268 = vunpack.c.l.b16 %v2100
      %v2269 = vunpack.c.l.b16 %v2110
      %v2270 = vunpack.c.l.b16 %v2124
      %v2271 = vunpack.c.l.b16 %v2134
      %v2272 = vunpack.c.l.b16 %v2148
      %v2273 = vunpack.c.l.b16 %v2158
      %v2274 = vunpack.c.l.b16 %v2172
      %v2275 = vunpack.c.l.b16 %v2182
      %v2276 = vunpack.c.l.b16 %v2196
      %v2277 = vunpack.c.l.b16 %v2206
      %v2278 = vunpack.c.l.b16 %v2220
      %v2279 = vunpack.c.l.b16 %v2230
      %v2280 = vpack.c.b16 %v2249, %v2248
      %v2281 = vpack.c.b16 %v2251, %v2250
      %v2282 = vpack.c.b16 %v2253, %v2252
      %v2283 = vpack.c.b16 %v2255, %v2254
      %v2284 = vpack.c.b16 %v2257, %v2256
      %v2285 = vpack.c.b16 %v2259, %v2258
      %v2286 = vpack.c.b16 %v2261, %v2260
      %v2287 = vpack.c.b16 %v2263, %v2262
      %v2288 = vpack.c.b16 %v2265, %v2264
      %v2289 = vpack.c.b16 %v2267, %v2266
      %v2290 = vpack.c.b16 %v2269, %v2268
      %v2291 = vpack.c.b16 %v2271, %v2270
      %v2292 = vpack.c.b16 %v2273, %v2272
      %v2293 = vpack.c.b16 %v2275, %v2274
      %v2294 = vpack.c.b16 %v2277, %v2276
      %v2295 = vpack.c.b16 %v2279, %v2278
      %v2328 = vunpack.c.l.b16 %v2232
      %v2329 = vunpack.c.l.b16 %v2233
      %v2330 = vunpack.c.l.b16 %v2234
      %v2331 = vunpack.c.l.b16 %v2235
      %v2332 = vunpack.c.l.b16 %v2236
      %v2333 = vunpack.c.l.b16 %v2237
      %v2334 = vunpack.c.l.b16 %v2238
      %v2335 = vunpack.c.l.b16 %v2239
      %v2336 = vunpack.c.l.b16 %v2240
      %v2337 = vunpack.c.l.b16 %v2241
      %v2338 = vunpack.c.l.b16 %v2242
      %v2339 = vunpack.c.l.b16 %v2243
      %v2340 = vunpack.c.l.b16 %v2244
      %v2341 = vunpack.c.l.b16 %v2245
      %v2342 = vunpack.c.l.b16 %v2246
      %v2343 = vunpack.c.l.b16 %v2247
      %v2344 = vpack.c.b16 %v2329, %v2328
      %v2345 = vpack.c.b16 %v2331, %v2330
      %v2346 = vpack.c.b16 %v2333, %v2332
      %v2347 = vpack.c.b16 %v2335, %v2334
      %v2348 = vpack.c.b16 %v2337, %v2336
      %v2349 = vpack.c.b16 %v2339, %v2338
      %v2350 = vpack.c.b16 %v2341, %v2340
      %v2351 = vpack.c.b16 %v2343, %v2342
      %2360 = vmatpush.bf16.msra.mxu0 %v2351
      %2361 = vmatpush.bf16.msra.mxu0 %v2350
      %2362 = vmatpush.bf16.msra.mxu0 %v2349
      %2363 = vmatpush.bf16.msra.mxu0 %v2348
      %2364 = vmatpush.bf16.msra.mxu0 %v2347
      %2365 = vmatpush.bf16.msra.mxu0 %v2346
      %2366 = vmatpush.bf16.msra.mxu0 %v2345
      %2367 = vmatpush.bf16.msra.mxu0 %v2344
      %2368 = vmatmul.bf16.gmra.mxu0 %v2280
      %v2369 = vpop.f32.mrf.mxu0
      %v2370 = vadd.f32 0.0, %v2369
      %v2371 = vpop.f32.mrf.mxu0
      %v2372 = vadd.f32 0.0, %v2371
      %2373 = vmatmul.bf16.gmra.mxu0 %v2281
      %v2374 = vpop.f32.mrf.mxu0
      %v2375 = vadd.f32 0.0, %v2374
      %v2376 = vpop.f32.mrf.mxu0
      %v2377 = vadd.f32 0.0, %v2376
      %2378 = vmatmul.bf16.gmra.mxu0 %v2282
      %v2379 = vpop.f32.mrf.mxu0
      %v2380 = vadd.f32 0.0, %v2379
      %v2381 = vpop.f32.mrf.mxu0
      %v2382 = vadd.f32 0.0, %v2381
      %2383 = vmatmul.bf16.gmra.mxu0 %v2283
      %v2384 = vpop.f32.mrf.mxu0
      %v2385 = vadd.f32 0.0, %v2384
      %v2386 = vpop.f32.mrf.mxu0
      %v2387 = vadd.f32 0.0, %v2386
      %2388 = vmatmul.bf16.gmra.mxu0 %v2284
      %v2389 = vpop.f32.mrf.mxu0
      %v2390 = vadd.f32 0.0, %v2389
      %v2391 = vpop.f32.mrf.mxu0
      %v2392 = vadd.f32 0.0, %v2391
      %2393 = vmatmul.bf16.gmra.mxu0 %v2285
      %v2394 = vpop.f32.mrf.mxu0
      %v2395 = vadd.f32 0.0, %v2394
      %v2396 = vpop.f32.mrf.mxu0
      %v2397 = vadd.f32 0.0, %v2396
      %2398 = vmatmul.bf16.gmra.mxu0 %v2286
      %v2399 = vpop.f32.mrf.mxu0
      %v2400 = vadd.f32 0.0, %v2399
      %v2401 = vpop.f32.mrf.mxu0
      %v2402 = vadd.f32 0.0, %v2401
      %2403 = vmatmul.bf16.gmra.mxu0 %v2287
      %v2404 = vpop.f32.mrf.mxu0
      %v2405 = vadd.f32 0.0, %v2404
      %v2406 = vpop.f32.mrf.mxu0
      %v2407 = vadd.f32 0.0, %v2406
      %2408 = vmatmul.bf16.gmra.mxu0 %v2288
      %v2409 = vpop.f32.mrf.mxu0
      %v2410 = vadd.f32 0.0, %v2409
      %v2411 = vpop.f32.mrf.mxu0
      %v2412 = vadd.f32 0.0, %v2411
      %2413 = vmatmul.bf16.gmra.mxu0 %v2289
      %v2414 = vpop.f32.mrf.mxu0
      %v2415 = vadd.f32 0.0, %v2414
      %v2416 = vpop.f32.mrf.mxu0
      %v2417 = vadd.f32 0.0, %v2416
      %2418 = vmatmul.bf16.gmra.mxu0 %v2290
      %v2419 = vpop.f32.mrf.mxu0
      %v2420 = vadd.f32 0.0, %v2419
      %v2421 = vpop.f32.mrf.mxu0
      %v2422 = vadd.f32 0.0, %v2421
      %2423 = vmatmul.bf16.gmra.mxu0 %v2291
      %v2424 = vpop.f32.mrf.mxu0
      %v2425 = vadd.f32 0.0, %v2424
      %v2426 = vpop.f32.mrf.mxu0
      %v2427 = vadd.f32 0.0, %v2426
      %2428 = vmatmul.bf16.gmra.mxu0 %v2292
      %v2429 = vpop.f32.mrf.mxu0
      %v2430 = vadd.f32 0.0, %v2429
      %v2431 = vpop.f32.mrf.mxu0
      %v2432 = vadd.f32 0.0, %v2431
      %2433 = vmatmul.bf16.gmra.mxu0 %v2293
      %v2434 = vpop.f32.mrf.mxu0
      %v2435 = vadd.f32 0.0, %v2434
      %v2436 = vpop.f32.mrf.mxu0
      %v2437 = vadd.f32 0.0, %v2436
      %2438 = vmatmul.bf16.gmra.mxu0 %v2294
      %v2439 = vpop.f32.mrf.mxu0
      %v2440 = vadd.f32 0.0, %v2439
      %v2441 = vpop.f32.mrf.mxu0
      %v2442 = vadd.f32 0.0, %v2441
      %2443 = vmatmul.bf16.gmra.mxu0 %v2295
      %v2444 = vpop.f32.mrf.mxu0
      %v2445 = vadd.f32 0.0, %v2444
      %v2446 = vpop.f32.mrf.mxu0
      %v2447 = vadd.f32 0.0, %v2446
      %2448 = vdwg.mxu0
      %v2449 = vadd.f32 %v1767, %v2370
      %v2450 = vadd.f32 %v1768, %v2372
      %v2451 = vadd.f32 %v1769, %v2375
      %v2452 = vadd.f32 %v1770, %v2377
      %v2453 = vadd.f32 %v1771, %v2380
      %v2454 = vadd.f32 %v1772, %v2382
      %v2455 = vadd.f32 %v1773, %v2385
      %v2456 = vadd.f32 %v1774, %v2387
      %v2457 = vadd.f32 %v1775, %v2390
      %v2458 = vadd.f32 %v1776, %v2392
      %v2459 = vadd.f32 %v1777, %v2395
      %v2460 = vadd.f32 %v1778, %v2397
      %v2461 = vadd.f32 %v1779, %v2400
      %v2462 = vadd.f32 %v1780, %v2402
      %v2463 = vadd.f32 %v1781, %v2405
      %v2464 = vadd.f32 %v1782, %v2407
      %v2465 = vadd.f32 %v1783, %v2410
      %v2466 = vadd.f32 %v1784, %v2412
      %v2467 = vadd.f32 %v1785, %v2415
      %v2468 = vadd.f32 %v1786, %v2417
      %v2469 = vadd.f32 %v1787, %v2420
      %v2470 = vadd.f32 %v1788, %v2422
      %v2471 = vadd.f32 %v1789, %v2425
      %v2472 = vadd.f32 %v1790, %v2427
      %v2473 = vadd.f32 %v1791, %v2430
      %v2474 = vadd.f32 %v1792, %v2432
      %v2475 = vadd.f32 %v1793, %v2435
      %v2476 = vadd.f32 %v1794, %v2437
      %v2477 = vadd.f32 %v1795, %v2440
      %v2478 = vadd.f32 %v1796, %v2442
      %v2479 = vadd.f32 %v1797, %v2445
      %v2480 = vadd.f32 %v1798, %v2447
      %v2481 = vld [vmem:[%s1484] sm:$0xe]
      %v2482 = vld [vmem:[%s1484 + $0xc] sm:$0xe]
      %v2483 = vld [vmem:[%s1484 + $0x18] sm:$0xe]
      %v2484 = vld [vmem:[%s1484 + $0x24] sm:$0xe]
      %v2485 = vld [vmem:[%s1484 + $0x30] sm:$0xe]
      %v2486 = vld [vmem:[%s1484 + $0x3c] sm:$0xe]
      %v2487 = vld [vmem:[%s1484 + $0x48] sm:$0xe]
      %v2488 = vld [vmem:[%s1484 + $0x54] sm:$0xe]
      %v2489 = vld [vmem:[%s1484 + $0x60] sm:$0xe]
      %v2490 = vld [vmem:[%s1484 + $0x6c] sm:$0xe]
      %v2491 = vld [vmem:[%s1484 + $0x78] sm:$0xe]
      %v2492 = vld [vmem:[%s1484 + $0x84] sm:$0xe]
      %v2493 = vld [vmem:[%s1484 + $0x90] sm:$0xe]
      %v2494 = vld [vmem:[%s1484 + $0x9c] sm:$0xe]
      %v2495 = vld [vmem:[%s1484 + $0xa8] sm:$0xe]
      %v2496 = vld [vmem:[%s1484 + $0xb4] sm:$0xe]
      %v2545 = vrot.slane %v2481, 5
      %v2546 = vrot.slane %v2545, 4
      %v2547 = vrot.slane %v1800, 5
      %v2548 = vsel %vm1121, %v2546, %v2547
      %v2549 = vrot.slane %v2547, 4
      %v2550 = vrot.slane %v1801, 5
      %v2551 = vsel %vm1121, %v2549, %v2550
      %v2552 = vrot.slane %v2482, 5
      %v2553 = vrot.slane %v2552, 4
      %v2554 = vrot.slane %v1803, 5
      %v2555 = vsel %vm1121, %v2553, %v2554
      %v2556 = vrot.slane %v2554, 4
      %v2557 = vrot.slane %v1804, 5
      %v2558 = vsel %vm1121, %v2556, %v2557
      %v2559 = vrot.slane %v2483, 5
      %v2560 = vrot.slane %v2559, 4
      %v2561 = vrot.slane %v1806, 5
      %v2562 = vsel %vm1121, %v2560, %v2561
      %v2563 = vrot.slane %v2561, 4
      %v2564 = vrot.slane %v1807, 5
      %v2565 = vsel %vm1121, %v2563, %v2564
      %v2566 = vrot.slane %v2484, 5
      %v2567 = vrot.slane %v2566, 4
      %v2568 = vrot.slane %v1809, 5
      %v2569 = vsel %vm1121, %v2567, %v2568
      %v2570 = vrot.slane %v2568, 4
      %v2571 = vrot.slane %v1810, 5
      %v2572 = vsel %vm1121, %v2570, %v2571
      %v2573 = vrot.slane %v2485, 5
      %v2574 = vrot.slane %v2573, 4
      %v2575 = vrot.slane %v1812, 5
      %v2576 = vsel %vm1121, %v2574, %v2575
      %v2577 = vrot.slane %v2575, 4
      %v2578 = vrot.slane %v1813, 5
      %v2579 = vsel %vm1121, %v2577, %v2578
      %v2580 = vrot.slane %v2486, 5
      %v2581 = vrot.slane %v2580, 4
      %v2582 = vrot.slane %v1815, 5
      %v2583 = vsel %vm1121, %v2581, %v2582
      %v2584 = vrot.slane %v2582, 4
      %v2585 = vrot.slane %v1816, 5
      %v2586 = vsel %vm1121, %v2584, %v2585
      %v2587 = vrot.slane %v2487, 5
      %v2588 = vrot.slane %v2587, 4
      %v2589 = vrot.slane %v1818, 5
      %v2590 = vsel %vm1121, %v2588, %v2589
      %v2591 = vrot.slane %v2589, 4
      %v2592 = vrot.slane %v1819, 5
      %v2593 = vsel %vm1121, %v2591, %v2592
      %v2594 = vrot.slane %v2488, 5
      %v2595 = vrot.slane %v2594, 4
      %v2596 = vrot.slane %v1821, 5
      %v2597 = vsel %vm1121, %v2595, %v2596
      %v2598 = vrot.slane %v2596, 4
      %v2599 = vrot.slane %v1822, 5
      %v2600 = vsel %vm1121, %v2598, %v2599
      %v2601 = vrot.slane %v2489, 5
      %v2602 = vrot.slane %v2601, 4
      %v2603 = vrot.slane %v1824, 5
      %v2604 = vsel %vm1121, %v2602, %v2603
      %v2605 = vrot.slane %v2603, 4
      %v2606 = vrot.slane %v1825, 5
      %v2607 = vsel %vm1121, %v2605, %v2606
      %v2608 = vrot.slane %v2490, 5
      %v2609 = vrot.slane %v2608, 4
      %v2610 = vrot.slane %v1827, 5
      %v2611 = vsel %vm1121, %v2609, %v2610
      %v2612 = vrot.slane %v2610, 4
      %v2613 = vrot.slane %v1828, 5
      %v2614 = vsel %vm1121, %v2612, %v2613
      %v2615 = vrot.slane %v2491, 5
      %v2616 = vrot.slane %v2615, 4
      %v2617 = vrot.slane %v1830, 5
      %v2618 = vsel %vm1121, %v2616, %v2617
      %v2619 = vrot.slane %v2617, 4
      %v2620 = vrot.slane %v1831, 5
      %v2621 = vsel %vm1121, %v2619, %v2620
      %v2622 = vrot.slane %v2492, 5
      %v2623 = vrot.slane %v2622, 4
      %v2624 = vrot.slane %v1833, 5
      %v2625 = vsel %vm1121, %v2623, %v2624
      %v2626 = vrot.slane %v2624, 4
      %v2627 = vrot.slane %v1834, 5
      %v2628 = vsel %vm1121, %v2626, %v2627
      %v2629 = vrot.slane %v2493, 5
      %v2630 = vrot.slane %v2629, 4
      %v2631 = vrot.slane %v1836, 5
      %v2632 = vsel %vm1121, %v2630, %v2631
      %v2633 = vrot.slane %v2631, 4
      %v2634 = vrot.slane %v1837, 5
      %v2635 = vsel %vm1121, %v2633, %v2634
      %v2636 = vrot.slane %v2494, 5
      %v2637 = vrot.slane %v2636, 4
      %v2638 = vrot.slane %v1839, 5
      %v2639 = vsel %vm1121, %v2637, %v2638
      %v2640 = vrot.slane %v2638, 4
      %v2641 = vrot.slane %v1840, 5
      %v2642 = vsel %vm1121, %v2640, %v2641
      %v2643 = vrot.slane %v2495, 5
      %v2644 = vrot.slane %v2643, 4
      %v2645 = vrot.slane %v1842, 5
      %v2646 = vsel %vm1121, %v2644, %v2645
      %v2647 = vrot.slane %v2645, 4
      %v2648 = vrot.slane %v1843, 5
      %v2649 = vsel %vm1121, %v2647, %v2648
      %v2650 = vrot.slane %v2496, 5
      %v2651 = vrot.slane %v2650, 4
      %v2652 = vrot.slane %v1845, 5
      %v2653 = vsel %vm1121, %v2651, %v2652
      %v2654 = vrot.slane %v2652, 4
      %v2655 = vrot.slane %v1846, 5
      %v2656 = vsel %vm1121, %v2654, %v2655
      %s2657 = scalar_lea.vmem %s1, 320
      %v2658 = vld [vmem:[%s2657] sm:$0xf]
      %v2659 = vld [vmem:[%s2657 + $0x4] sm:$0xf]
      %v2660 = vld [vmem:[%s2657 + $0x8] sm:$0xf]
      %v2661 = vld [vmem:[%s2657 + $0xc] sm:$0xf]
      %v2662 = vld [vmem:[%s2657 + $0x10] sm:$0xf]
      %v2663 = vld [vmem:[%s2657 + $0x14] sm:$0xf]
      %v2664 = vld [vmem:[%s2657 + $0x18] sm:$0xf]
      %v2665 = vld [vmem:[%s2657 + $0x1c] sm:$0xf]
      %v2666 = vld [vmem:[%s2657 + $0x20] sm:$0xf]
      %v2667 = vld [vmem:[%s2657 + $0x24] sm:$0xf]
      %v2668 = vld [vmem:[%s2657 + $0x28] sm:$0xf]
      %v2669 = vld [vmem:[%s2657 + $0x2c] sm:$0xf]
      %v2670 = vld [vmem:[%s2657 + $0x30] sm:$0xf]
      %v2671 = vld [vmem:[%s2657 + $0x34] sm:$0xf]
      %v2672 = vld [vmem:[%s2657 + $0x38] sm:$0xf]
      %v2673 = vld [vmem:[%s2657 + $0x3c] sm:$0xf]
      %v2674 = vunpack.c.l.b16 %v2548
      %v2675 = vunpack.c.l.b16 %v2551
      %v2676 = vunpack.c.l.b16 %v2555
      %v2677 = vunpack.c.l.b16 %v2558
      %v2678 = vunpack.c.l.b16 %v2562
      %v2679 = vunpack.c.l.b16 %v2565
      %v2680 = vunpack.c.l.b16 %v2569
      %v2681 = vunpack.c.l.b16 %v2572
      %v2682 = vunpack.c.l.b16 %v2576
      %v2683 = vunpack.c.l.b16 %v2579
      %v2684 = vunpack.c.l.b16 %v2583
      %v2685 = vunpack.c.l.b16 %v2586
      %v2686 = vunpack.c.l.b16 %v2590
      %v2687 = vunpack.c.l.b16 %v2593
      %v2688 = vunpack.c.l.b16 %v2597
      %v2689 = vunpack.c.l.b16 %v2600
      %v2690 = vunpack.c.l.b16 %v2604
      %v2691 = vunpack.c.l.b16 %v2607
      %v2692 = vunpack.c.l.b16 %v2611
      %v2693 = vunpack.c.l.b16 %v2614
      %v2694 = vunpack.c.l.b16 %v2618
      %v2695 = vunpack.c.l.b16 %v2621
      %v2696 = vunpack.c.l.b16 %v2625
      %v2697 = vunpack.c.l.b16 %v2628
      %v2698 = vunpack.c.l.b16 %v2632
      %v2699 = vunpack.c.l.b16 %v2635
      %v2700 = vunpack.c.l.b16 %v2639
      %v2701 = vunpack.c.l.b16 %v2642
      %v2702 = vunpack.c.l.b16 %v2646
      %v2703 = vunpack.c.l.b16 %v2649
      %v2704 = vunpack.c.l.b16 %v2653
      %v2705 = vunpack.c.l.b16 %v2656
      %v2706 = vpack.c.b16 %v2675, %v2674
      %v2707 = vpack.c.b16 %v2677, %v2676
      %v2708 = vpack.c.b16 %v2679, %v2678
      %v2709 = vpack.c.b16 %v2681, %v2680
      %v2710 = vpack.c.b16 %v2683, %v2682
      %v2711 = vpack.c.b16 %v2685, %v2684
      %v2712 = vpack.c.b16 %v2687, %v2686
      %v2713 = vpack.c.b16 %v2689, %v2688
      %v2714 = vpack.c.b16 %v2691, %v2690
      %v2715 = vpack.c.b16 %v2693, %v2692
      %v2716 = vpack.c.b16 %v2695, %v2694
      %v2717 = vpack.c.b16 %v2697, %v2696
      %v2718 = vpack.c.b16 %v2699, %v2698
      %v2719 = vpack.c.b16 %v2701, %v2700
      %v2720 = vpack.c.b16 %v2703, %v2702
      %v2721 = vpack.c.b16 %v2705, %v2704
      %v2754 = vunpack.c.l.b16 %v2658
      %v2755 = vunpack.c.l.b16 %v2659
      %v2756 = vunpack.c.l.b16 %v2660
      %v2757 = vunpack.c.l.b16 %v2661
      %v2758 = vunpack.c.l.b16 %v2662
      %v2759 = vunpack.c.l.b16 %v2663
      %v2760 = vunpack.c.l.b16 %v2664
      %v2761 = vunpack.c.l.b16 %v2665
      %v2762 = vunpack.c.l.b16 %v2666
      %v2763 = vunpack.c.l.b16 %v2667
      %v2764 = vunpack.c.l.b16 %v2668
      %v2765 = vunpack.c.l.b16 %v2669
      %v2766 = vunpack.c.l.b16 %v2670
      %v2767 = vunpack.c.l.b16 %v2671
      %v2768 = vunpack.c.l.b16 %v2672
      %v2769 = vunpack.c.l.b16 %v2673
      %v2770 = vpack.c.b16 %v2755, %v2754
      %v2771 = vpack.c.b16 %v2757, %v2756
      %v2772 = vpack.c.b16 %v2759, %v2758
      %v2773 = vpack.c.b16 %v2761, %v2760
      %v2774 = vpack.c.b16 %v2763, %v2762
      %v2775 = vpack.c.b16 %v2765, %v2764
      %v2776 = vpack.c.b16 %v2767, %v2766
      %v2777 = vpack.c.b16 %v2769, %v2768
      %2786 = vmatpush.bf16.msra.mxu0 %v2777
      %2787 = vmatpush.bf16.msra.mxu0 %v2776
      %2788 = vmatpush.bf16.msra.mxu0 %v2775
      %2789 = vmatpush.bf16.msra.mxu0 %v2774
      %2790 = vmatpush.bf16.msra.mxu0 %v2773
      %2791 = vmatpush.bf16.msra.mxu0 %v2772
      %2792 = vmatpush.bf16.msra.mxu0 %v2771
      %2793 = vmatpush.bf16.msra.mxu0 %v2770
      %2794 = vmatmul.bf16.gmra.mxu0 %v2706
      %v2795 = vpop.f32.mrf.mxu0
      %v2796 = vadd.f32 0.0, %v2795
      %v2797 = vpop.f32.mrf.mxu0
      %v2798 = vadd.f32 0.0, %v2797
      %2799 = vmatmul.bf16.gmra.mxu0 %v2707
      %v2800 = vpop.f32.mrf.mxu0
      %v2801 = vadd.f32 0.0, %v2800
      %v2802 = vpop.f32.mrf.mxu0
      %v2803 = vadd.f32 0.0, %v2802
      %2804 = vmatmul.bf16.gmra.mxu0 %v2708
      %v2805 = vpop.f32.mrf.mxu0
      %v2806 = vadd.f32 0.0, %v2805
      %v2807 = vpop.f32.mrf.mxu0
      %v2808 = vadd.f32 0.0, %v2807
      %2809 = vmatmul.bf16.gmra.mxu0 %v2709
      %v2810 = vpop.f32.mrf.mxu0
      %v2811 = vadd.f32 0.0, %v2810
      %v2812 = vpop.f32.mrf.mxu0
      %v2813 = vadd.f32 0.0, %v2812
      %2814 = vmatmul.bf16.gmra.mxu0 %v2710
      %v2815 = vpop.f32.mrf.mxu0
      %v2816 = vadd.f32 0.0, %v2815
      %v2817 = vpop.f32.mrf.mxu0
      %v2818 = vadd.f32 0.0, %v2817
      %2819 = vmatmul.bf16.gmra.mxu0 %v2711
      %v2820 = vpop.f32.mrf.mxu0
      %v2821 = vadd.f32 0.0, %v2820
      %v2822 = vpop.f32.mrf.mxu0
      %v2823 = vadd.f32 0.0, %v2822
      %2824 = vmatmul.bf16.gmra.mxu0 %v2712
      %v2825 = vpop.f32.mrf.mxu0
      %v2826 = vadd.f32 0.0, %v2825
      %v2827 = vpop.f32.mrf.mxu0
      %v2828 = vadd.f32 0.0, %v2827
      %2829 = vmatmul.bf16.gmra.mxu0 %v2713
      %v2830 = vpop.f32.mrf.mxu0
      %v2831 = vadd.f32 0.0, %v2830
      %v2832 = vpop.f32.mrf.mxu0
      %v2833 = vadd.f32 0.0, %v2832
      %2834 = vmatmul.bf16.gmra.mxu0 %v2714
      %v2835 = vpop.f32.mrf.mxu0
      %v2836 = vadd.f32 0.0, %v2835
      %v2837 = vpop.f32.mrf.mxu0
      %v2838 = vadd.f32 0.0, %v2837
      %2839 = vmatmul.bf16.gmra.mxu0 %v2715
      %v2840 = vpop.f32.mrf.mxu0
      %v2841 = vadd.f32 0.0, %v2840
      %v2842 = vpop.f32.mrf.mxu0
      %v2843 = vadd.f32 0.0, %v2842
      %2844 = vmatmul.bf16.gmra.mxu0 %v2716
      %v2845 = vpop.f32.mrf.mxu0
      %v2846 = vadd.f32 0.0, %v2845
      %v2847 = vpop.f32.mrf.mxu0
      %v2848 = vadd.f32 0.0, %v2847
      %2849 = vmatmul.bf16.gmra.mxu0 %v2717
      %v2850 = vpop.f32.mrf.mxu0
      %v2851 = vadd.f32 0.0, %v2850
      %v2852 = vpop.f32.mrf.mxu0
      %v2853 = vadd.f32 0.0, %v2852
      %2854 = vmatmul.bf16.gmra.mxu0 %v2718
      %v2855 = vpop.f32.mrf.mxu0
      %v2856 = vadd.f32 0.0, %v2855
      %v2857 = vpop.f32.mrf.mxu0
      %v2858 = vadd.f32 0.0, %v2857
      %2859 = vmatmul.bf16.gmra.mxu0 %v2719
      %v2860 = vpop.f32.mrf.mxu0
      %v2861 = vadd.f32 0.0, %v2860
      %v2862 = vpop.f32.mrf.mxu0
      %v2863 = vadd.f32 0.0, %v2862
      %2864 = vmatmul.bf16.gmra.mxu0 %v2720
      %v2865 = vpop.f32.mrf.mxu0
      %v2866 = vadd.f32 0.0, %v2865
      %v2867 = vpop.f32.mrf.mxu0
      %v2868 = vadd.f32 0.0, %v2867
      %2869 = vmatmul.bf16.gmra.mxu0 %v2721
      %v2870 = vpop.f32.mrf.mxu0
      %v2871 = vadd.f32 0.0, %v2870
      %v2872 = vpop.f32.mrf.mxu0
      %v2873 = vadd.f32 0.0, %v2872
      %2874 = vdwg.mxu0
      %v2875 = vadd.f32 %v2449, %v2796
      %v2876 = vadd.f32 %v2450, %v2798
      %v2877 = vadd.f32 %v2451, %v2801
      %v2878 = vadd.f32 %v2452, %v2803
      %v2879 = vadd.f32 %v2453, %v2806
      %v2880 = vadd.f32 %v2454, %v2808
      %v2881 = vadd.f32 %v2455, %v2811
      %v2882 = vadd.f32 %v2456, %v2813
      %v2883 = vadd.f32 %v2457, %v2816
      %v2884 = vadd.f32 %v2458, %v2818
      %v2885 = vadd.f32 %v2459, %v2821
      %v2886 = vadd.f32 %v2460, %v2823
      %v2887 = vadd.f32 %v2461, %v2826
      %v2888 = vadd.f32 %v2462, %v2828
      %v2889 = vadd.f32 %v2463, %v2831
      %v2890 = vadd.f32 %v2464, %v2833
      %v2891 = vadd.f32 %v2465, %v2836
      %v2892 = vadd.f32 %v2466, %v2838
      %v2893 = vadd.f32 %v2467, %v2841
      %v2894 = vadd.f32 %v2468, %v2843
      %v2895 = vadd.f32 %v2469, %v2846
      %v2896 = vadd.f32 %v2470, %v2848
      %v2897 = vadd.f32 %v2471, %v2851
      %v2898 = vadd.f32 %v2472, %v2853
      %v2899 = vadd.f32 %v2473, %v2856
      %v2900 = vadd.f32 %v2474, %v2858
      %v2901 = vadd.f32 %v2475, %v2861
      %v2902 = vadd.f32 %v2476, %v2863
      %v2903 = vadd.f32 %v2477, %v2866
      %v2904 = vadd.f32 %v2478, %v2868
      %v2905 = vadd.f32 %v2479, %v2871
      %v2906 = vadd.f32 %v2480, %v2873
      %s2907 = scalar_lea.vmem %s163, 24
      %v2908 = vld [vmem:[%s2907] sm:$0xf]
      %v2909 = vld [vmem:[%s2907 + $0x4] sm:$0xf]
      %v2910 = vld [vmem:[%s2907 + $0xc] sm:$0xf]
      %v2911 = vld [vmem:[%s2907 + $0x10] sm:$0xf]
      %v2912 = vld [vmem:[%s2907 + $0x18] sm:$0xf]
      %v2913 = vld [vmem:[%s2907 + $0x1c] sm:$0xf]
      %v2914 = vld [vmem:[%s2907 + $0x24] sm:$0xf]
      %v2915 = vld [vmem:[%s2907 + $0x28] sm:$0xf]
      %v2916 = vld [vmem:[%s2907 + $0x30] sm:$0xf]
      %v2917 = vld [vmem:[%s2907 + $0x34] sm:$0xf]
      %v2918 = vld [vmem:[%s2907 + $0x3c] sm:$0xf]
      %v2919 = vld [vmem:[%s2907 + $0x40] sm:$0xf]
      %v2920 = vld [vmem:[%s2907 + $0x48] sm:$0xf]
      %v2921 = vld [vmem:[%s2907 + $0x4c] sm:$0xf]
      %v2922 = vld [vmem:[%s2907 + $0x54] sm:$0xf]
      %v2923 = vld [vmem:[%s2907 + $0x58] sm:$0xf]
      %v2924 = vld [vmem:[%s2907 + $0x60] sm:$0xf]
      %v2925 = vld [vmem:[%s2907 + $0x64] sm:$0xf]
      %v2926 = vld [vmem:[%s2907 + $0x6c] sm:$0xf]
      %v2927 = vld [vmem:[%s2907 + $0x70] sm:$0xf]
      %v2928 = vld [vmem:[%s2907 + $0x78] sm:$0xf]
      %v2929 = vld [vmem:[%s2907 + $0x7c] sm:$0xf]
      %v2930 = vld [vmem:[%s2907 + $0x84] sm:$0xf]
      %v2931 = vld [vmem:[%s2907 + $0x88] sm:$0xf]
      %v2932 = vld [vmem:[%s2907 + $0x90] sm:$0xf]
      %v2933 = vld [vmem:[%s2907 + $0x94] sm:$0xf]
      %v2934 = vld [vmem:[%s2907 + $0x9c] sm:$0xf]
      %v2935 = vld [vmem:[%s2907 + $0xa0] sm:$0xf]
      %v2936 = vld [vmem:[%s2907 + $0xa8] sm:$0xf]
      %v2937 = vld [vmem:[%s2907 + $0xac] sm:$0xf]
      %v2938 = vld [vmem:[%s2907 + $0xb4] sm:$0xf]
      %v2939 = vld [vmem:[%s2907 + $0xb8] sm:$0xf]
      %s2940 = scalar_lea.vmem %s1, 384
      %v2941 = vld [vmem:[%s2940] sm:$0xf]
      %v2942 = vld [vmem:[%s2940 + $0x4] sm:$0xf]
      %v2943 = vld [vmem:[%s2940 + $0x8] sm:$0xf]
      %v2944 = vld [vmem:[%s2940 + $0xc] sm:$0xf]
      %v2945 = vld [vmem:[%s2940 + $0x10] sm:$0xf]
      %v2946 = vld [vmem:[%s2940 + $0x14] sm:$0xf]
      %v2947 = vld [vmem:[%s2940 + $0x18] sm:$0xf]
      %v2948 = vld [vmem:[%s2940 + $0x1c] sm:$0xf]
      %v2949 = vld [vmem:[%s2940 + $0x20] sm:$0xf]
      %v2950 = vld [vmem:[%s2940 + $0x24] sm:$0xf]
      %v2951 = vld [vmem:[%s2940 + $0x28] sm:$0xf]
      %v2952 = vld [vmem:[%s2940 + $0x2c] sm:$0xf]
      %v2953 = vld [vmem:[%s2940 + $0x30] sm:$0xf]
      %v2954 = vld [vmem:[%s2940 + $0x34] sm:$0xf]
      %v2955 = vld [vmem:[%s2940 + $0x38] sm:$0xf]
      %v2956 = vld [vmem:[%s2940 + $0x3c] sm:$0xf]
      %v2989 = vunpack.c.l.b16 %v2908
      %v2990 = vunpack.c.l.b16 %v2909
      %v2991 = vunpack.c.l.b16 %v2910
      %v2992 = vunpack.c.l.b16 %v2911
      %v2993 = vunpack.c.l.b16 %v2912
      %v2994 = vunpack.c.l.b16 %v2913
      %v2995 = vunpack.c.l.b16 %v2914
      %v2996 = vunpack.c.l.b16 %v2915
      %v2997 = vunpack.c.l.b16 %v2916
      %v2998 = vunpack.c.l.b16 %v2917
      %v2999 = vunpack.c.l.b16 %v2918
      %v3000 = vunpack.c.l.b16 %v2919
      %v3001 = vunpack.c.l.b16 %v2920
      %v3002 = vunpack.c.l.b16 %v2921
      %v3003 = vunpack.c.l.b16 %v2922
      %v3004 = vunpack.c.l.b16 %v2923
      %v3005 = vunpack.c.l.b16 %v2924
      %v3006 = vunpack.c.l.b16 %v2925
      %v3007 = vunpack.c.l.b16 %v2926
      %v3008 = vunpack.c.l.b16 %v2927
      %v3009 = vunpack.c.l.b16 %v2928
      %v3010 = vunpack.c.l.b16 %v2929
      %v3011 = vunpack.c.l.b16 %v2930
      %v3012 = vunpack.c.l.b16 %v2931
      %v3013 = vunpack.c.l.b16 %v2932
      %v3014 = vunpack.c.l.b16 %v2933
      %v3015 = vunpack.c.l.b16 %v2934
      %v3016 = vunpack.c.l.b16 %v2935
      %v3017 = vunpack.c.l.b16 %v2936
      %v3018 = vunpack.c.l.b16 %v2937
      %v3019 = vunpack.c.l.b16 %v2938
      %v3020 = vunpack.c.l.b16 %v2939
      %v3021 = vpack.c.b16 %v2990, %v2989
      %v3022 = vpack.c.b16 %v2992, %v2991
      %v3023 = vpack.c.b16 %v2994, %v2993
      %v3024 = vpack.c.b16 %v2996, %v2995
      %v3025 = vpack.c.b16 %v2998, %v2997
      %v3026 = vpack.c.b16 %v3000, %v2999
      %v3027 = vpack.c.b16 %v3002, %v3001
      %v3028 = vpack.c.b16 %v3004, %v3003
      %v3029 = vpack.c.b16 %v3006, %v3005
      %v3030 = vpack.c.b16 %v3008, %v3007
      %v3031 = vpack.c.b16 %v3010, %v3009
      %v3032 = vpack.c.b16 %v3012, %v3011
      %v3033 = vpack.c.b16 %v3014, %v3013
      %v3034 = vpack.c.b16 %v3016, %v3015
      %v3035 = vpack.c.b16 %v3018, %v3017
      %v3036 = vpack.c.b16 %v3020, %v3019
      %v3069 = vunpack.c.l.b16 %v2941
      %v3070 = vunpack.c.l.b16 %v2942
      %v3071 = vunpack.c.l.b16 %v2943
      %v3072 = vunpack.c.l.b16 %v2944
      %v3073 = vunpack.c.l.b16 %v2945
      %v3074 = vunpack.c.l.b16 %v2946
      %v3075 = vunpack.c.l.b16 %v2947
      %v3076 = vunpack.c.l.b16 %v2948
      %v3077 = vunpack.c.l.b16 %v2949
      %v3078 = vunpack.c.l.b16 %v2950
      %v3079 = vunpack.c.l.b16 %v2951
      %v3080 = vunpack.c.l.b16 %v2952
      %v3081 = vunpack.c.l.b16 %v2953
      %v3082 = vunpack.c.l.b16 %v2954
      %v3083 = vunpack.c.l.b16 %v2955
      %v3084 = vunpack.c.l.b16 %v2956
      %v3085 = vpack.c.b16 %v3070, %v3069
      %v3086 = vpack.c.b16 %v3072, %v3071
      %v3087 = vpack.c.b16 %v3074, %v3073
      %v3088 = vpack.c.b16 %v3076, %v3075
      %v3089 = vpack.c.b16 %v3078, %v3077
      %v3090 = vpack.c.b16 %v3080, %v3079
      %v3091 = vpack.c.b16 %v3082, %v3081
      %v3092 = vpack.c.b16 %v3084, %v3083
      %3101 = vmatpush.bf16.msra.mxu0 %v3092
      %3102 = vmatpush.bf16.msra.mxu0 %v3091
      %3103 = vmatpush.bf16.msra.mxu0 %v3090
      %3104 = vmatpush.bf16.msra.mxu0 %v3089
      %3105 = vmatpush.bf16.msra.mxu0 %v3088
      %3106 = vmatpush.bf16.msra.mxu0 %v3087
      %3107 = vmatpush.bf16.msra.mxu0 %v3086
      %3108 = vmatpush.bf16.msra.mxu0 %v3085
      %3109 = vmatmul.bf16.gmra.mxu0 %v3021
      %v3110 = vpop.f32.mrf.mxu0
      %v3111 = vadd.f32 0.0, %v3110
      %v3112 = vpop.f32.mrf.mxu0
      %v3113 = vadd.f32 0.0, %v3112
      %3114 = vmatmul.bf16.gmra.mxu0 %v3022
      %v3115 = vpop.f32.mrf.mxu0
      %v3116 = vadd.f32 0.0, %v3115
      %v3117 = vpop.f32.mrf.mxu0
      %v3118 = vadd.f32 0.0, %v3117
      %3119 = vmatmul.bf16.gmra.mxu0 %v3023
      %v3120 = vpop.f32.mrf.mxu0
      %v3121 = vadd.f32 0.0, %v3120
      %v3122 = vpop.f32.mrf.mxu0
      %v3123 = vadd.f32 0.0, %v3122
      %3124 = vmatmul.bf16.gmra.mxu0 %v3024
      %v3125 = vpop.f32.mrf.mxu0
      %v3126 = vadd.f32 0.0, %v3125
      %v3127 = vpop.f32.mrf.mxu0
      %v3128 = vadd.f32 0.0, %v3127
      %3129 = vmatmul.bf16.gmra.mxu0 %v3025
      %v3130 = vpop.f32.mrf.mxu0
      %v3131 = vadd.f32 0.0, %v3130
      %v3132 = vpop.f32.mrf.mxu0
      %v3133 = vadd.f32 0.0, %v3132
      %3134 = vmatmul.bf16.gmra.mxu0 %v3026
      %v3135 = vpop.f32.mrf.mxu0
      %v3136 = vadd.f32 0.0, %v3135
      %v3137 = vpop.f32.mrf.mxu0
      %v3138 = vadd.f32 0.0, %v3137
      %3139 = vmatmul.bf16.gmra.mxu0 %v3027
      %v3140 = vpop.f32.mrf.mxu0
      %v3141 = vadd.f32 0.0, %v3140
      %v3142 = vpop.f32.mrf.mxu0
      %v3143 = vadd.f32 0.0, %v3142
      %3144 = vmatmul.bf16.gmra.mxu0 %v3028
      %v3145 = vpop.f32.mrf.mxu0
      %v3146 = vadd.f32 0.0, %v3145
      %v3147 = vpop.f32.mrf.mxu0
      %v3148 = vadd.f32 0.0, %v3147
      %3149 = vmatmul.bf16.gmra.mxu0 %v3029
      %v3150 = vpop.f32.mrf.mxu0
      %v3151 = vadd.f32 0.0, %v3150
      %v3152 = vpop.f32.mrf.mxu0
      %v3153 = vadd.f32 0.0, %v3152
      %3154 = vmatmul.bf16.gmra.mxu0 %v3030
      %v3155 = vpop.f32.mrf.mxu0
      %v3156 = vadd.f32 0.0, %v3155
      %v3157 = vpop.f32.mrf.mxu0
      %v3158 = vadd.f32 0.0, %v3157
      %3159 = vmatmul.bf16.gmra.mxu0 %v3031
      %v3160 = vpop.f32.mrf.mxu0
      %v3161 = vadd.f32 0.0, %v3160
      %v3162 = vpop.f32.mrf.mxu0
      %v3163 = vadd.f32 0.0, %v3162
      %3164 = vmatmul.bf16.gmra.mxu0 %v3032
      %v3165 = vpop.f32.mrf.mxu0
      %v3166 = vadd.f32 0.0, %v3165
      %v3167 = vpop.f32.mrf.mxu0
      %v3168 = vadd.f32 0.0, %v3167
      %3169 = vmatmul.bf16.gmra.mxu0 %v3033
      %v3170 = vpop.f32.mrf.mxu0
      %v3171 = vadd.f32 0.0, %v3170
      %v3172 = vpop.f32.mrf.mxu0
      %v3173 = vadd.f32 0.0, %v3172
      %3174 = vmatmul.bf16.gmra.mxu0 %v3034
      %v3175 = vpop.f32.mrf.mxu0
      %v3176 = vadd.f32 0.0, %v3175
      %v3177 = vpop.f32.mrf.mxu0
      %v3178 = vadd.f32 0.0, %v3177
      %3179 = vmatmul.bf16.gmra.mxu0 %v3035
      %v3180 = vpop.f32.mrf.mxu0
      %v3181 = vadd.f32 0.0, %v3180
      %v3182 = vpop.f32.mrf.mxu0
      %v3183 = vadd.f32 0.0, %v3182
      %3184 = vmatmul.bf16.gmra.mxu0 %v3036
      %v3185 = vpop.f32.mrf.mxu0
      %v3186 = vadd.f32 0.0, %v3185
      %v3187 = vpop.f32.mrf.mxu0
      %v3188 = vadd.f32 0.0, %v3187
      %3189 = vdwg.mxu0
      %v3190 = vadd.f32 %v2875, %v3111
      %v3191 = vadd.f32 %v2876, %v3113
      %v3192 = vadd.f32 %v2877, %v3116
      %v3193 = vadd.f32 %v2878, %v3118
      %v3194 = vadd.f32 %v2879, %v3121
      %v3195 = vadd.f32 %v2880, %v3123
      %v3196 = vadd.f32 %v2881, %v3126
      %v3197 = vadd.f32 %v2882, %v3128
      %v3198 = vadd.f32 %v2883, %v3131
      %v3199 = vadd.f32 %v2884, %v3133
      %v3200 = vadd.f32 %v2885, %v3136
      %v3201 = vadd.f32 %v2886, %v3138
      %v3202 = vadd.f32 %v2887, %v3141
      %v3203 = vadd.f32 %v2888, %v3143
      %v3204 = vadd.f32 %v2889, %v3146
      %v3205 = vadd.f32 %v2890, %v3148
      %v3206 = vadd.f32 %v2891, %v3151
      %v3207 = vadd.f32 %v2892, %v3153
      %v3208 = vadd.f32 %v2893, %v3156
      %v3209 = vadd.f32 %v2894, %v3158
      %v3210 = vadd.f32 %v2895, %v3161
      %v3211 = vadd.f32 %v2896, %v3163
      %v3212 = vadd.f32 %v2897, %v3166
      %v3213 = vadd.f32 %v2898, %v3168
      %v3214 = vadd.f32 %v2899, %v3171
      %v3215 = vadd.f32 %v2900, %v3173
      %v3216 = vadd.f32 %v2901, %v3176
      %v3217 = vadd.f32 %v2902, %v3178
      %v3218 = vadd.f32 %v2903, %v3181
      %v3219 = vadd.f32 %v2904, %v3183
      %v3220 = vadd.f32 %v2905, %v3186
      %v3221 = vadd.f32 %v2906, %v3188
      %v3222 = vld [vmem:[%s2907] sm:$0xf]
      %v3223 = vld [vmem:[%s2907 + $0x4] sm:$0xf]
      %v3224 = vld [vmem:[%s2907 + $0x8] sm:$0x1]
      %v3225 = vld [vmem:[%s2907 + $0xc] sm:$0xf]
      %v3226 = vld [vmem:[%s2907 + $0x10] sm:$0xf]
      %v3227 = vld [vmem:[%s2907 + $0x14] sm:$0x1]
      %v3228 = vld [vmem:[%s2907 + $0x18] sm:$0xf]
      %v3229 = vld [vmem:[%s2907 + $0x1c] sm:$0xf]
      %v3230 = vld [vmem:[%s2907 + $0x20] sm:$0x1]
      %v3231 = vld [vmem:[%s2907 + $0x24] sm:$0xf]
      %v3232 = vld [vmem:[%s2907 + $0x28] sm:$0xf]
      %v3233 = vld [vmem:[%s2907 + $0x2c] sm:$0x1]
      %v3234 = vld [vmem:[%s2907 + $0x30] sm:$0xf]
      %v3235 = vld [vmem:[%s2907 + $0x34] sm:$0xf]
      %v3236 = vld [vmem:[%s2907 + $0x38] sm:$0x1]
      %v3237 = vld [vmem:[%s2907 + $0x3c] sm:$0xf]
      %v3238 = vld [vmem:[%s2907 + $0x40] sm:$0xf]
      %v3239 = vld [vmem:[%s2907 + $0x44] sm:$0x1]
      %v3240 = vld [vmem:[%s2907 + $0x48] sm:$0xf]
      %v3241 = vld [vmem:[%s2907 + $0x4c] sm:$0xf]
      %v3242 = vld [vmem:[%s2907 + $0x50] sm:$0x1]
      %v3243 = vld [vmem:[%s2907 + $0x54] sm:$0xf]
      %v3244 = vld [vmem:[%s2907 + $0x58] sm:$0xf]
      %v3245 = vld [vmem:[%s2907 + $0x5c] sm:$0x1]
      %v3246 = vld [vmem:[%s2907 + $0x60] sm:$0xf]
      %v3247 = vld [vmem:[%s2907 + $0x64] sm:$0xf]
      %v3248 = vld [vmem:[%s2907 + $0x68] sm:$0x1]
      %v3249 = vld [vmem:[%s2907 + $0x6c] sm:$0xf]
      %v3250 = vld [vmem:[%s2907 + $0x70] sm:$0xf]
      %v3251 = vld [vmem:[%s2907 + $0x74] sm:$0x1]
      %v3252 = vld [vmem:[%s2907 + $0x78] sm:$0xf]
      %v3253 = vld [vmem:[%s2907 + $0x7c] sm:$0xf]
      %v3254 = vld [vmem:[%s2907 + $0x80] sm:$0x1]
      %v3255 = vld [vmem:[%s2907 + $0x84] sm:$0xf]
      %v3256 = vld [vmem:[%s2907 + $0x88] sm:$0xf]
      %v3257 = vld [vmem:[%s2907 + $0x8c] sm:$0x1]
      %v3258 = vld [vmem:[%s2907 + $0x90] sm:$0xf]
      %v3259 = vld [vmem:[%s2907 + $0x94] sm:$0xf]
      %v3260 = vld [vmem:[%s2907 + $0x98] sm:$0x1]
      %v3261 = vld [vmem:[%s2907 + $0x9c] sm:$0xf]
      %v3262 = vld [vmem:[%s2907 + $0xa0] sm:$0xf]
      %v3263 = vld [vmem:[%s2907 + $0xa4] sm:$0x1]
      %v3264 = vld [vmem:[%s2907 + $0xa8] sm:$0xf]
      %v3265 = vld [vmem:[%s2907 + $0xac] sm:$0xf]
      %v3266 = vld [vmem:[%s2907 + $0xb0] sm:$0x1]
      %v3267 = vld [vmem:[%s2907 + $0xb4] sm:$0xf]
      %v3268 = vld [vmem:[%s2907 + $0xb8] sm:$0xf]
      %v3269 = vld [vmem:[%s2907 + $0xbc] sm:$0x1]
      %v3271 = vshrl.u32 %v3222, 16
      %v3273 = vrot.slane %v3271, 4
      %v3274 = vshll.u32 %v3222, 16
      %v3276 = vrot.slane %v3274, 5
      %v3277 = vor.u32 %v3273, %v3276
      %v3278 = vrot.slane %v3277, 4
      %v3280 = vshll.u32 %v3223, 16
      %v3282 = vrot.slane %v3280, 5
      %v3283 = vsel %vm235, %v3278, %v3282
      %v3284 = vshrl.u32 %v3223, 16
      %v3286 = vrot.slane %v3284, 4
      %v3287 = vor.u32 %v3286, %v3282
      %v3288 = vrot.slane %v3287, 4
      %v3290 = vshll.u32 %v3224, 16
      %v3292 = vrot.slane %v3290, 5
      %v3293 = vsel %vm235, %v3288, %v3292
      %v3295 = vshrl.u32 %v3225, 16
      %v3297 = vrot.slane %v3295, 4
      %v3298 = vshll.u32 %v3225, 16
      %v3300 = vrot.slane %v3298, 5
      %v3301 = vor.u32 %v3297, %v3300
      %v3302 = vrot.slane %v3301, 4
      %v3304 = vshll.u32 %v3226, 16
      %v3306 = vrot.slane %v3304, 5
      %v3307 = vsel %vm235, %v3302, %v3306
      %v3308 = vshrl.u32 %v3226, 16
      %v3310 = vrot.slane %v3308, 4
      %v3311 = vor.u32 %v3310, %v3306
      %v3312 = vrot.slane %v3311, 4
      %v3314 = vshll.u32 %v3227, 16
      %v3316 = vrot.slane %v3314, 5
      %v3317 = vsel %vm235, %v3312, %v3316
      %v3319 = vshrl.u32 %v3228, 16
      %v3321 = vrot.slane %v3319, 4
      %v3322 = vshll.u32 %v3228, 16
      %v3324 = vrot.slane %v3322, 5
      %v3325 = vor.u32 %v3321, %v3324
      %v3326 = vrot.slane %v3325, 4
      %v3328 = vshll.u32 %v3229, 16
      %v3330 = vrot.slane %v3328, 5
      %v3331 = vsel %vm235, %v3326, %v3330
      %v3332 = vshrl.u32 %v3229, 16
      %v3334 = vrot.slane %v3332, 4
      %v3335 = vor.u32 %v3334, %v3330
      %v3336 = vrot.slane %v3335, 4
      %v3338 = vshll.u32 %v3230, 16
      %v3340 = vrot.slane %v3338, 5
      %v3341 = vsel %vm235, %v3336, %v3340
      %v3343 = vshrl.u32 %v3231, 16
      %v3345 = vrot.slane %v3343, 4
      %v3346 = vshll.u32 %v3231, 16
      %v3348 = vrot.slane %v3346, 5
      %v3349 = vor.u32 %v3345, %v3348
      %v3350 = vrot.slane %v3349, 4
      %v3352 = vshll.u32 %v3232, 16
      %v3354 = vrot.slane %v3352, 5
      %v3355 = vsel %vm235, %v3350, %v3354
      %v3356 = vshrl.u32 %v3232, 16
      %v3358 = vrot.slane %v3356, 4
      %v3359 = vor.u32 %v3358, %v3354
      %v3360 = vrot.slane %v3359, 4
      %v3362 = vshll.u32 %v3233, 16
      %v3364 = vrot.slane %v3362, 5
      %v3365 = vsel %vm235, %v3360, %v3364
      %v3367 = vshrl.u32 %v3234, 16
      %v3369 = vrot.slane %v3367, 4
      %v3370 = vshll.u32 %v3234, 16
      %v3372 = vrot.slane %v3370, 5
      %v3373 = vor.u32 %v3369, %v3372
      %v3374 = vrot.slane %v3373, 4
      %v3376 = vshll.u32 %v3235, 16
      %v3378 = vrot.slane %v3376, 5
      %v3379 = vsel %vm235, %v3374, %v3378
      %v3380 = vshrl.u32 %v3235, 16
      %v3382 = vrot.slane %v3380, 4
      %v3383 = vor.u32 %v3382, %v3378
      %v3384 = vrot.slane %v3383, 4
      %v3386 = vshll.u32 %v3236, 16
      %v3388 = vrot.slane %v3386, 5
      %v3389 = vsel %vm235, %v3384, %v3388
      %v3391 = vshrl.u32 %v3237, 16
      %v3393 = vrot.slane %v3391, 4
      %v3394 = vshll.u32 %v3237, 16
      %v3396 = vrot.slane %v3394, 5
      %v3397 = vor.u32 %v3393, %v3396
      %v3398 = vrot.slane %v3397, 4
      %v3400 = vshll.u32 %v3238, 16
      %v3402 = vrot.slane %v3400, 5
      %v3403 = vsel %vm235, %v3398, %v3402
      %v3404 = vshrl.u32 %v3238, 16
      %v3406 = vrot.slane %v3404, 4
      %v3407 = vor.u32 %v3406, %v3402
      %v3408 = vrot.slane %v3407, 4
      %v3410 = vshll.u32 %v3239, 16
      %v3412 = vrot.slane %v3410, 5
      %v3413 = vsel %vm235, %v3408, %v3412
      %v3415 = vshrl.u32 %v3240, 16
      %v3417 = vrot.slane %v3415, 4
      %v3418 = vshll.u32 %v3240, 16
      %v3420 = vrot.slane %v3418, 5
      %v3421 = vor.u32 %v3417, %v3420
      %v3422 = vrot.slane %v3421, 4
      %v3424 = vshll.u32 %v3241, 16
      %v3426 = vrot.slane %v3424, 5
      %v3427 = vsel %vm235, %v3422, %v3426
      %v3428 = vshrl.u32 %v3241, 16
      %v3430 = vrot.slane %v3428, 4
      %v3431 = vor.u32 %v3430, %v3426
      %v3432 = vrot.slane %v3431, 4
      %v3434 = vshll.u32 %v3242, 16
      %v3436 = vrot.slane %v3434, 5
      %v3437 = vsel %vm235, %v3432, %v3436
      %v3439 = vshrl.u32 %v3243, 16
      %v3441 = vrot.slane %v3439, 4
      %v3442 = vshll.u32 %v3243, 16
      %v3444 = vrot.slane %v3442, 5
      %v3445 = vor.u32 %v3441, %v3444
      %v3446 = vrot.slane %v3445, 4
      %v3448 = vshll.u32 %v3244, 16
      %v3450 = vrot.slane %v3448, 5
      %v3451 = vsel %vm235, %v3446, %v3450
      %v3452 = vshrl.u32 %v3244, 16
      %v3454 = vrot.slane %v3452, 4
      %v3455 = vor.u32 %v3454, %v3450
      %v3456 = vrot.slane %v3455, 4
      %v3458 = vshll.u32 %v3245, 16
      %v3460 = vrot.slane %v3458, 5
      %v3461 = vsel %vm235, %v3456, %v3460
      %v3463 = vshrl.u32 %v3246, 16
      %v3465 = vrot.slane %v3463, 4
      %v3466 = vshll.u32 %v3246, 16
      %v3468 = vrot.slane %v3466, 5
      %v3469 = vor.u32 %v3465, %v3468
      %v3470 = vrot.slane %v3469, 4
      %v3472 = vshll.u32 %v3247, 16
      %v3474 = vrot.slane %v3472, 5
      %v3475 = vsel %vm235, %v3470, %v3474
      %v3476 = vshrl.u32 %v3247, 16
      %v3478 = vrot.slane %v3476, 4
      %v3479 = vor.u32 %v3478, %v3474
      %v3480 = vrot.slane %v3479, 4
      %v3482 = vshll.u32 %v3248, 16
      %v3484 = vrot.slane %v3482, 5
      %v3485 = vsel %vm235, %v3480, %v3484
      %v3487 = vshrl.u32 %v3249, 16
      %v3489 = vrot.slane %v3487, 4
      %v3490 = vshll.u32 %v3249, 16
      %v3492 = vrot.slane %v3490, 5
      %v3493 = vor.u32 %v3489, %v3492
      %v3494 = vrot.slane %v3493, 4
      %v3496 = vshll.u32 %v3250, 16
      %v3498 = vrot.slane %v3496, 5
      %v3499 = vsel %vm235, %v3494, %v3498
      %v3500 = vshrl.u32 %v3250, 16
      %v3502 = vrot.slane %v3500, 4
      %v3503 = vor.u32 %v3502, %v3498
      %v3504 = vrot.slane %v3503, 4
      %v3506 = vshll.u32 %v3251, 16
      %v3508 = vrot.slane %v3506, 5
      %v3509 = vsel %vm235, %v3504, %v3508
      %v3511 = vshrl.u32 %v3252, 16
      %v3513 = vrot.slane %v3511, 4
      %v3514 = vshll.u32 %v3252, 16
      %v3516 = vrot.slane %v3514, 5
      %v3517 = vor.u32 %v3513, %v3516
      %v3518 = vrot.slane %v3517, 4
      %v3520 = vshll.u32 %v3253, 16
      %v3522 = vrot.slane %v3520, 5
      %v3523 = vsel %vm235, %v3518, %v3522
      %v3524 = vshrl.u32 %v3253, 16
      %v3526 = vrot.slane %v3524, 4
      %v3527 = vor.u32 %v3526, %v3522
      %v3528 = vrot.slane %v3527, 4
      %v3530 = vshll.u32 %v3254, 16
      %v3532 = vrot.slane %v3530, 5
      %v3533 = vsel %vm235, %v3528, %v3532
      %v3535 = vshrl.u32 %v3255, 16
      %v3537 = vrot.slane %v3535, 4
      %v3538 = vshll.u32 %v3255, 16
      %v3540 = vrot.slane %v3538, 5
      %v3541 = vor.u32 %v3537, %v3540
      %v3542 = vrot.slane %v3541, 4
      %v3544 = vshll.u32 %v3256, 16
      %v3546 = vrot.slane %v3544, 5
      %v3547 = vsel %vm235, %v3542, %v3546
      %v3548 = vshrl.u32 %v3256, 16
      %v3550 = vrot.slane %v3548, 4
      %v3551 = vor.u32 %v3550, %v3546
      %v3552 = vrot.slane %v3551, 4
      %v3554 = vshll.u32 %v3257, 16
      %v3556 = vrot.slane %v3554, 5
      %v3557 = vsel %vm235, %v3552, %v3556
      %v3559 = vshrl.u32 %v3258, 16
      %v3561 = vrot.slane %v3559, 4
      %v3562 = vshll.u32 %v3258, 16
      %v3564 = vrot.slane %v3562, 5
      %v3565 = vor.u32 %v3561, %v3564
      %v3566 = vrot.slane %v3565, 4
      %v3568 = vshll.u32 %v3259, 16
      %v3570 = vrot.slane %v3568, 5
      %v3571 = vsel %vm235, %v3566, %v3570
      %v3572 = vshrl.u32 %v3259, 16
      %v3574 = vrot.slane %v3572, 4
      %v3575 = vor.u32 %v3574, %v3570
      %v3576 = vrot.slane %v3575, 4
      %v3578 = vshll.u32 %v3260, 16
      %v3580 = vrot.slane %v3578, 5
      %v3581 = vsel %vm235, %v3576, %v3580
      %v3583 = vshrl.u32 %v3261, 16
      %v3585 = vrot.slane %v3583, 4
      %v3586 = vshll.u32 %v3261, 16
      %v3588 = vrot.slane %v3586, 5
      %v3589 = vor.u32 %v3585, %v3588
      %v3590 = vrot.slane %v3589, 4
      %v3592 = vshll.u32 %v3262, 16
      %v3594 = vrot.slane %v3592, 5
      %v3595 = vsel %vm235, %v3590, %v3594
      %v3596 = vshrl.u32 %v3262, 16
      %v3598 = vrot.slane %v3596, 4
      %v3599 = vor.u32 %v3598, %v3594
      %v3600 = vrot.slane %v3599, 4
      %v3602 = vshll.u32 %v3263, 16
      %v3604 = vrot.slane %v3602, 5
      %v3605 = vsel %vm235, %v3600, %v3604
      %v3607 = vshrl.u32 %v3264, 16
      %v3609 = vrot.slane %v3607, 4
      %v3610 = vshll.u32 %v3264, 16
      %v3612 = vrot.slane %v3610, 5
      %v3613 = vor.u32 %v3609, %v3612
      %v3614 = vrot.slane %v3613, 4
      %v3616 = vshll.u32 %v3265, 16
      %v3618 = vrot.slane %v3616, 5
      %v3619 = vsel %vm235, %v3614, %v3618
      %v3620 = vshrl.u32 %v3265, 16
      %v3622 = vrot.slane %v3620, 4
      %v3623 = vor.u32 %v3622, %v3618
      %v3624 = vrot.slane %v3623, 4
      %v3626 = vshll.u32 %v3266, 16
      %v3628 = vrot.slane %v3626, 5
      %v3629 = vsel %vm235, %v3624, %v3628
      %v3631 = vshrl.u32 %v3267, 16
      %v3633 = vrot.slane %v3631, 4
      %v3634 = vshll.u32 %v3267, 16
      %v3636 = vrot.slane %v3634, 5
      %v3637 = vor.u32 %v3633, %v3636
      %v3638 = vrot.slane %v3637, 4
      %v3640 = vshll.u32 %v3268, 16
      %v3642 = vrot.slane %v3640, 5
      %v3643 = vsel %vm235, %v3638, %v3642
      %v3644 = vshrl.u32 %v3268, 16
      %v3646 = vrot.slane %v3644, 4
      %v3647 = vor.u32 %v3646, %v3642
      %v3648 = vrot.slane %v3647, 4
      %v3650 = vshll.u32 %v3269, 16
      %v3652 = vrot.slane %v3650, 5
      %v3653 = vsel %vm235, %v3648, %v3652
      %s3654 = scalar_lea.vmem %s1, 448
      %v3655 = vld [vmem:[%s3654] sm:$0xf]
      %v3656 = vld [vmem:[%s3654 + $0x4] sm:$0xf]
      %v3657 = vld [vmem:[%s3654 + $0x8] sm:$0xf]
      %v3658 = vld [vmem:[%s3654 + $0xc] sm:$0xf]
      %v3659 = vld [vmem:[%s3654 + $0x10] sm:$0xf]
      %v3660 = vld [vmem:[%s3654 + $0x14] sm:$0xf]
      %v3661 = vld [vmem:[%s3654 + $0x18] sm:$0xf]
      %v3662 = vld [vmem:[%s3654 + $0x1c] sm:$0xf]
      %v3663 = vld [vmem:[%s3654 + $0x20] sm:$0xf]
      %v3664 = vld [vmem:[%s3654 + $0x24] sm:$0xf]
      %v3665 = vld [vmem:[%s3654 + $0x28] sm:$0xf]
      %v3666 = vld [vmem:[%s3654 + $0x2c] sm:$0xf]
      %v3667 = vld [vmem:[%s3654 + $0x30] sm:$0xf]
      %v3668 = vld [vmem:[%s3654 + $0x34] sm:$0xf]
      %v3669 = vld [vmem:[%s3654 + $0x38] sm:$0xf]
      %v3670 = vld [vmem:[%s3654 + $0x3c] sm:$0xf]
      %v3671 = vunpack.c.l.b16 %v3283
      %v3672 = vunpack.c.l.b16 %v3293
      %v3673 = vunpack.c.l.b16 %v3307
      %v3674 = vunpack.c.l.b16 %v3317
      %v3675 = vunpack.c.l.b16 %v3331
      %v3676 = vunpack.c.l.b16 %v3341
      %v3677 = vunpack.c.l.b16 %v3355
      %v3678 = vunpack.c.l.b16 %v3365
      %v3679 = vunpack.c.l.b16 %v3379
      %v3680 = vunpack.c.l.b16 %v3389
      %v3681 = vunpack.c.l.b16 %v3403
      %v3682 = vunpack.c.l.b16 %v3413
      %v3683 = vunpack.c.l.b16 %v3427
      %v3684 = vunpack.c.l.b16 %v3437
      %v3685 = vunpack.c.l.b16 %v3451
      %v3686 = vunpack.c.l.b16 %v3461
      %v3687 = vunpack.c.l.b16 %v3475
      %v3688 = vunpack.c.l.b16 %v3485
      %v3689 = vunpack.c.l.b16 %v3499
      %v3690 = vunpack.c.l.b16 %v3509
      %v3691 = vunpack.c.l.b16 %v3523
      %v3692 = vunpack.c.l.b16 %v3533
      %v3693 = vunpack.c.l.b16 %v3547
      %v3694 = vunpack.c.l.b16 %v3557
      %v3695 = vunpack.c.l.b16 %v3571
      %v3696 = vunpack.c.l.b16 %v3581
      %v3697 = vunpack.c.l.b16 %v3595
      %v3698 = vunpack.c.l.b16 %v3605
      %v3699 = vunpack.c.l.b16 %v3619
      %v3700 = vunpack.c.l.b16 %v3629
      %v3701 = vunpack.c.l.b16 %v3643
      %v3702 = vunpack.c.l.b16 %v3653
      %v3703 = vpack.c.b16 %v3672, %v3671
      %v3704 = vpack.c.b16 %v3674, %v3673
      %v3705 = vpack.c.b16 %v3676, %v3675
      %v3706 = vpack.c.b16 %v3678, %v3677
      %v3707 = vpack.c.b16 %v3680, %v3679
      %v3708 = vpack.c.b16 %v3682, %v3681
      %v3709 = vpack.c.b16 %v3684, %v3683
      %v3710 = vpack.c.b16 %v3686, %v3685
      %v3711 = vpack.c.b16 %v3688, %v3687
      %v3712 = vpack.c.b16 %v3690, %v3689
      %v3713 = vpack.c.b16 %v3692, %v3691
      %v3714 = vpack.c.b16 %v3694, %v3693
      %v3715 = vpack.c.b16 %v3696, %v3695
      %v3716 = vpack.c.b16 %v3698, %v3697
      %v3717 = vpack.c.b16 %v3700, %v3699
      %v3718 = vpack.c.b16 %v3702, %v3701
      %v3751 = vunpack.c.l.b16 %v3655
      %v3752 = vunpack.c.l.b16 %v3656
      %v3753 = vunpack.c.l.b16 %v3657
      %v3754 = vunpack.c.l.b16 %v3658
      %v3755 = vunpack.c.l.b16 %v3659
      %v3756 = vunpack.c.l.b16 %v3660
      %v3757 = vunpack.c.l.b16 %v3661
      %v3758 = vunpack.c.l.b16 %v3662
      %v3759 = vunpack.c.l.b16 %v3663
      %v3760 = vunpack.c.l.b16 %v3664
      %v3761 = vunpack.c.l.b16 %v3665
      %v3762 = vunpack.c.l.b16 %v3666
      %v3763 = vunpack.c.l.b16 %v3667
      %v3764 = vunpack.c.l.b16 %v3668
      %v3765 = vunpack.c.l.b16 %v3669
      %v3766 = vunpack.c.l.b16 %v3670
      %v3767 = vpack.c.b16 %v3752, %v3751
      %v3768 = vpack.c.b16 %v3754, %v3753
      %v3769 = vpack.c.b16 %v3756, %v3755
      %v3770 = vpack.c.b16 %v3758, %v3757
      %v3771 = vpack.c.b16 %v3760, %v3759
      %v3772 = vpack.c.b16 %v3762, %v3761
      %v3773 = vpack.c.b16 %v3764, %v3763
      %v3774 = vpack.c.b16 %v3766, %v3765
      %3783 = vmatpush.bf16.msra.mxu0 %v3774
      %3784 = vmatpush.bf16.msra.mxu0 %v3773
      %3785 = vmatpush.bf16.msra.mxu0 %v3772
      %3786 = vmatpush.bf16.msra.mxu0 %v3771
      %3787 = vmatpush.bf16.msra.mxu0 %v3770
      %3788 = vmatpush.bf16.msra.mxu0 %v3769
      %3789 = vmatpush.bf16.msra.mxu0 %v3768
      %3790 = vmatpush.bf16.msra.mxu0 %v3767
      %3791 = vmatmul.bf16.gmra.mxu0 %v3703
      %v3792 = vpop.f32.mrf.mxu0
      %v3793 = vadd.f32 0.0, %v3792
      %v3794 = vpop.f32.mrf.mxu0
      %v3795 = vadd.f32 0.0, %v3794
      %3796 = vmatmul.bf16.gmra.mxu0 %v3704
      %v3797 = vpop.f32.mrf.mxu0
      %v3798 = vadd.f32 0.0, %v3797
      %v3799 = vpop.f32.mrf.mxu0
      %v3800 = vadd.f32 0.0, %v3799
      %3801 = vmatmul.bf16.gmra.mxu0 %v3705
      %v3802 = vpop.f32.mrf.mxu0
      %v3803 = vadd.f32 0.0, %v3802
      %v3804 = vpop.f32.mrf.mxu0
      %v3805 = vadd.f32 0.0, %v3804
      %3806 = vmatmul.bf16.gmra.mxu0 %v3706
      %v3807 = vpop.f32.mrf.mxu0
      %v3808 = vadd.f32 0.0, %v3807
      %v3809 = vpop.f32.mrf.mxu0
      %v3810 = vadd.f32 0.0, %v3809
      %3811 = vmatmul.bf16.gmra.mxu0 %v3707
      %v3812 = vpop.f32.mrf.mxu0
      %v3813 = vadd.f32 0.0, %v3812
      %v3814 = vpop.f32.mrf.mxu0
      %v3815 = vadd.f32 0.0, %v3814
      %3816 = vmatmul.bf16.gmra.mxu0 %v3708
      %v3817 = vpop.f32.mrf.mxu0
      %v3818 = vadd.f32 0.0, %v3817
      %v3819 = vpop.f32.mrf.mxu0
      %v3820 = vadd.f32 0.0, %v3819
      %3821 = vmatmul.bf16.gmra.mxu0 %v3709
      %v3822 = vpop.f32.mrf.mxu0
      %v3823 = vadd.f32 0.0, %v3822
      %v3824 = vpop.f32.mrf.mxu0
      %v3825 = vadd.f32 0.0, %v3824
      %3826 = vmatmul.bf16.gmra.mxu0 %v3710
      %v3827 = vpop.f32.mrf.mxu0
      %v3828 = vadd.f32 0.0, %v3827
      %v3829 = vpop.f32.mrf.mxu0
      %v3830 = vadd.f32 0.0, %v3829
      %3831 = vmatmul.bf16.gmra.mxu0 %v3711
      %v3832 = vpop.f32.mrf.mxu0
      %v3833 = vadd.f32 0.0, %v3832
      %v3834 = vpop.f32.mrf.mxu0
      %v3835 = vadd.f32 0.0, %v3834
      %3836 = vmatmul.bf16.gmra.mxu0 %v3712
      %v3837 = vpop.f32.mrf.mxu0
      %v3838 = vadd.f32 0.0, %v3837
      %v3839 = vpop.f32.mrf.mxu0
      %v3840 = vadd.f32 0.0, %v3839
      %3841 = vmatmul.bf16.gmra.mxu0 %v3713
      %v3842 = vpop.f32.mrf.mxu0
      %v3843 = vadd.f32 0.0, %v3842
      %v3844 = vpop.f32.mrf.mxu0
      %v3845 = vadd.f32 0.0, %v3844
      %3846 = vmatmul.bf16.gmra.mxu0 %v3714
      %v3847 = vpop.f32.mrf.mxu0
      %v3848 = vadd.f32 0.0, %v3847
      %v3849 = vpop.f32.mrf.mxu0
      %v3850 = vadd.f32 0.0, %v3849
      %3851 = vmatmul.bf16.gmra.mxu0 %v3715
      %v3852 = vpop.f32.mrf.mxu0
      %v3853 = vadd.f32 0.0, %v3852
      %v3854 = vpop.f32.mrf.mxu0
      %v3855 = vadd.f32 0.0, %v3854
      %3856 = vmatmul.bf16.gmra.mxu0 %v3716
      %v3857 = vpop.f32.mrf.mxu0
      %v3858 = vadd.f32 0.0, %v3857
      %v3859 = vpop.f32.mrf.mxu0
      %v3860 = vadd.f32 0.0, %v3859
      %3861 = vmatmul.bf16.gmra.mxu0 %v3717
      %v3862 = vpop.f32.mrf.mxu0
      %v3863 = vadd.f32 0.0, %v3862
      %v3864 = vpop.f32.mrf.mxu0
      %v3865 = vadd.f32 0.0, %v3864
      %3866 = vmatmul.bf16.gmra.mxu0 %v3718
      %v3867 = vpop.f32.mrf.mxu0
      %v3868 = vadd.f32 0.0, %v3867
      %v3869 = vpop.f32.mrf.mxu0
      %v3870 = vadd.f32 0.0, %v3869
      %3871 = vdwg.mxu0
      %v3872 = vadd.f32 %v3190, %v3793
      %v3873 = vadd.f32 %v3191, %v3795
      %v3874 = vadd.f32 %v3192, %v3798
      %v3875 = vadd.f32 %v3193, %v3800
      %v3876 = vadd.f32 %v3194, %v3803
      %v3877 = vadd.f32 %v3195, %v3805
      %v3878 = vadd.f32 %v3196, %v3808
      %v3879 = vadd.f32 %v3197, %v3810
      %v3880 = vadd.f32 %v3198, %v3813
      %v3881 = vadd.f32 %v3199, %v3815
      %v3882 = vadd.f32 %v3200, %v3818
      %v3883 = vadd.f32 %v3201, %v3820
      %v3884 = vadd.f32 %v3202, %v3823
      %v3885 = vadd.f32 %v3203, %v3825
      %v3886 = vadd.f32 %v3204, %v3828
      %v3887 = vadd.f32 %v3205, %v3830
      %v3888 = vadd.f32 %v3206, %v3833
      %v3889 = vadd.f32 %v3207, %v3835
      %v3890 = vadd.f32 %v3208, %v3838
      %v3891 = vadd.f32 %v3209, %v3840
      %v3892 = vadd.f32 %v3210, %v3843
      %v3893 = vadd.f32 %v3211, %v3845
      %v3894 = vadd.f32 %v3212, %v3848
      %v3895 = vadd.f32 %v3213, %v3850
      %v3896 = vadd.f32 %v3214, %v3853
      %v3897 = vadd.f32 %v3215, %v3855
      %v3898 = vadd.f32 %v3216, %v3858
      %v3899 = vadd.f32 %v3217, %v3860
      %v3900 = vadd.f32 %v3218, %v3863
      %v3901 = vadd.f32 %v3219, %v3865
      %v3902 = vadd.f32 %v3220, %v3868
      %v3903 = vadd.f32 %v3221, %v3870
      %v3904 = vld [vmem:[%s2907] sm:$0xe]
      %v3905 = vld [vmem:[%s2907 + $0xc] sm:$0xe]
      %v3906 = vld [vmem:[%s2907 + $0x18] sm:$0xe]
      %v3907 = vld [vmem:[%s2907 + $0x24] sm:$0xe]
      %v3908 = vld [vmem:[%s2907 + $0x30] sm:$0xe]
      %v3909 = vld [vmem:[%s2907 + $0x3c] sm:$0xe]
      %v3910 = vld [vmem:[%s2907 + $0x48] sm:$0xe]
      %v3911 = vld [vmem:[%s2907 + $0x54] sm:$0xe]
      %v3912 = vld [vmem:[%s2907 + $0x60] sm:$0xe]
      %v3913 = vld [vmem:[%s2907 + $0x6c] sm:$0xe]
      %v3914 = vld [vmem:[%s2907 + $0x78] sm:$0xe]
      %v3915 = vld [vmem:[%s2907 + $0x84] sm:$0xe]
      %v3916 = vld [vmem:[%s2907 + $0x90] sm:$0xe]
      %v3917 = vld [vmem:[%s2907 + $0x9c] sm:$0xe]
      %v3918 = vld [vmem:[%s2907 + $0xa8] sm:$0xe]
      %v3919 = vld [vmem:[%s2907 + $0xb4] sm:$0xe]
      %v3968 = vrot.slane %v3904, 5
      %v3969 = vrot.slane %v3968, 4
      %v3970 = vrot.slane %v3223, 5
      %v3971 = vsel %vm1121, %v3969, %v3970
      %v3972 = vrot.slane %v3970, 4
      %v3973 = vrot.slane %v3224, 5
      %v3974 = vsel %vm1121, %v3972, %v3973
      %v3975 = vrot.slane %v3905, 5
      %v3976 = vrot.slane %v3975, 4
      %v3977 = vrot.slane %v3226, 5
      %v3978 = vsel %vm1121, %v3976, %v3977
      %v3979 = vrot.slane %v3977, 4
      %v3980 = vrot.slane %v3227, 5
      %v3981 = vsel %vm1121, %v3979, %v3980
      %v3982 = vrot.slane %v3906, 5
      %v3983 = vrot.slane %v3982, 4
      %v3984 = vrot.slane %v3229, 5
      %v3985 = vsel %vm1121, %v3983, %v3984
      %v3986 = vrot.slane %v3984, 4
      %v3987 = vrot.slane %v3230, 5
      %v3988 = vsel %vm1121, %v3986, %v3987
      %v3989 = vrot.slane %v3907, 5
      %v3990 = vrot.slane %v3989, 4
      %v3991 = vrot.slane %v3232, 5
      %v3992 = vsel %vm1121, %v3990, %v3991
      %v3993 = vrot.slane %v3991, 4
      %v3994 = vrot.slane %v3233, 5
      %v3995 = vsel %vm1121, %v3993, %v3994
      %v3996 = vrot.slane %v3908, 5
      %v3997 = vrot.slane %v3996, 4
      %v3998 = vrot.slane %v3235, 5
      %v3999 = vsel %vm1121, %v3997, %v3998
      %v4000 = vrot.slane %v3998, 4
      %v4001 = vrot.slane %v3236, 5
      %v4002 = vsel %vm1121, %v4000, %v4001
      %v4003 = vrot.slane %v3909, 5
      %v4004 = vrot.slane %v4003, 4
      %v4005 = vrot.slane %v3238, 5
      %v4006 = vsel %vm1121, %v4004, %v4005
      %v4007 = vrot.slane %v4005, 4
      %v4008 = vrot.slane %v3239, 5
      %v4009 = vsel %vm1121, %v4007, %v4008
      %v4010 = vrot.slane %v3910, 5
      %v4011 = vrot.slane %v4010, 4
      %v4012 = vrot.slane %v3241, 5
      %v4013 = vsel %vm1121, %v4011, %v4012
      %v4014 = vrot.slane %v4012, 4
      %v4015 = vrot.slane %v3242, 5
      %v4016 = vsel %vm1121, %v4014, %v4015
      %v4017 = vrot.slane %v3911, 5
      %v4018 = vrot.slane %v4017, 4
      %v4019 = vrot.slane %v3244, 5
      %v4020 = vsel %vm1121, %v4018, %v4019
      %v4021 = vrot.slane %v4019, 4
      %v4022 = vrot.slane %v3245, 5
      %v4023 = vsel %vm1121, %v4021, %v4022
      %v4024 = vrot.slane %v3912, 5
      %v4025 = vrot.slane %v4024, 4
      %v4026 = vrot.slane %v3247, 5
      %v4027 = vsel %vm1121, %v4025, %v4026
      %v4028 = vrot.slane %v4026, 4
      %v4029 = vrot.slane %v3248, 5
      %v4030 = vsel %vm1121, %v4028, %v4029
      %v4031 = vrot.slane %v3913, 5
      %v4032 = vrot.slane %v4031, 4
      %v4033 = vrot.slane %v3250, 5
      %v4034 = vsel %vm1121, %v4032, %v4033
      %v4035 = vrot.slane %v4033, 4
      %v4036 = vrot.slane %v3251, 5
      %v4037 = vsel %vm1121, %v4035, %v4036
      %v4038 = vrot.slane %v3914, 5
      %v4039 = vrot.slane %v4038, 4
      %v4040 = vrot.slane %v3253, 5
      %v4041 = vsel %vm1121, %v4039, %v4040
      %v4042 = vrot.slane %v4040, 4
      %v4043 = vrot.slane %v3254, 5
      %v4044 = vsel %vm1121, %v4042, %v4043
      %v4045 = vrot.slane %v3915, 5
      %v4046 = vrot.slane %v4045, 4
      %v4047 = vrot.slane %v3256, 5
      %v4048 = vsel %vm1121, %v4046, %v4047
      %v4049 = vrot.slane %v4047, 4
      %v4050 = vrot.slane %v3257, 5
      %v4051 = vsel %vm1121, %v4049, %v4050
      %v4052 = vrot.slane %v3916, 5
      %v4053 = vrot.slane %v4052, 4
      %v4054 = vrot.slane %v3259, 5
      %v4055 = vsel %vm1121, %v4053, %v4054
      %v4056 = vrot.slane %v4054, 4
      %v4057 = vrot.slane %v3260, 5
      %v4058 = vsel %vm1121, %v4056, %v4057
      %v4059 = vrot.slane %v3917, 5
      %v4060 = vrot.slane %v4059, 4
      %v4061 = vrot.slane %v3262, 5
      %v4062 = vsel %vm1121, %v4060, %v4061
      %v4063 = vrot.slane %v4061, 4
      %v4064 = vrot.slane %v3263, 5
      %v4065 = vsel %vm1121, %v4063, %v4064
      %v4066 = vrot.slane %v3918, 5
      %v4067 = vrot.slane %v4066, 4
      %v4068 = vrot.slane %v3265, 5
      %v4069 = vsel %vm1121, %v4067, %v4068
      %v4070 = vrot.slane %v4068, 4
      %v4071 = vrot.slane %v3266, 5
      %v4072 = vsel %vm1121, %v4070, %v4071
      %v4073 = vrot.slane %v3919, 5
      %v4074 = vrot.slane %v4073, 4
      %v4075 = vrot.slane %v3268, 5
      %v4076 = vsel %vm1121, %v4074, %v4075
      %v4077 = vrot.slane %v4075, 4
      %v4078 = vrot.slane %v3269, 5
      %v4079 = vsel %vm1121, %v4077, %v4078
      %s4080 = scalar_lea.vmem %s1, 512
      %v4081 = vld [vmem:[%s4080] sm:$0xf]
      %v4082 = vld [vmem:[%s4080 + $0x4] sm:$0xf]
      %v4083 = vld [vmem:[%s4080 + $0x8] sm:$0xf]
      %v4084 = vld [vmem:[%s4080 + $0xc] sm:$0xf]
      %v4085 = vld [vmem:[%s4080 + $0x10] sm:$0xf]
      %v4086 = vld [vmem:[%s4080 + $0x14] sm:$0xf]
      %v4087 = vld [vmem:[%s4080 + $0x18] sm:$0xf]
      %v4088 = vld [vmem:[%s4080 + $0x1c] sm:$0xf]
      %v4089 = vld [vmem:[%s4080 + $0x20] sm:$0xf]
      %v4090 = vld [vmem:[%s4080 + $0x24] sm:$0xf]
      %v4091 = vld [vmem:[%s4080 + $0x28] sm:$0xf]
      %v4092 = vld [vmem:[%s4080 + $0x2c] sm:$0xf]
      %v4093 = vld [vmem:[%s4080 + $0x30] sm:$0xf]
      %v4094 = vld [vmem:[%s4080 + $0x34] sm:$0xf]
      %v4095 = vld [vmem:[%s4080 + $0x38] sm:$0xf]
      %v4096 = vld [vmem:[%s4080 + $0x3c] sm:$0xf]
      %v4097 = vunpack.c.l.b16 %v3971
      %v4098 = vunpack.c.l.b16 %v3974
      %v4099 = vunpack.c.l.b16 %v3978
      %v4100 = vunpack.c.l.b16 %v3981
      %v4101 = vunpack.c.l.b16 %v3985
      %v4102 = vunpack.c.l.b16 %v3988
      %v4103 = vunpack.c.l.b16 %v3992
      %v4104 = vunpack.c.l.b16 %v3995
      %v4105 = vunpack.c.l.b16 %v3999
      %v4106 = vunpack.c.l.b16 %v4002
      %v4107 = vunpack.c.l.b16 %v4006
      %v4108 = vunpack.c.l.b16 %v4009
      %v4109 = vunpack.c.l.b16 %v4013
      %v4110 = vunpack.c.l.b16 %v4016
      %v4111 = vunpack.c.l.b16 %v4020
      %v4112 = vunpack.c.l.b16 %v4023
      %v4113 = vunpack.c.l.b16 %v4027
      %v4114 = vunpack.c.l.b16 %v4030
      %v4115 = vunpack.c.l.b16 %v4034
      %v4116 = vunpack.c.l.b16 %v4037
      %v4117 = vunpack.c.l.b16 %v4041
      %v4118 = vunpack.c.l.b16 %v4044
      %v4119 = vunpack.c.l.b16 %v4048
      %v4120 = vunpack.c.l.b16 %v4051
      %v4121 = vunpack.c.l.b16 %v4055
      %v4122 = vunpack.c.l.b16 %v4058
      %v4123 = vunpack.c.l.b16 %v4062
      %v4124 = vunpack.c.l.b16 %v4065
      %v4125 = vunpack.c.l.b16 %v4069
      %v4126 = vunpack.c.l.b16 %v4072
      %v4127 = vunpack.c.l.b16 %v4076
      %v4128 = vunpack.c.l.b16 %v4079
      %v4129 = vpack.c.b16 %v4098, %v4097
      %v4130 = vpack.c.b16 %v4100, %v4099
      %v4131 = vpack.c.b16 %v4102, %v4101
      %v4132 = vpack.c.b16 %v4104, %v4103
      %v4133 = vpack.c.b16 %v4106, %v4105
      %v4134 = vpack.c.b16 %v4108, %v4107
      %v4135 = vpack.c.b16 %v4110, %v4109
      %v4136 = vpack.c.b16 %v4112, %v4111
      %v4137 = vpack.c.b16 %v4114, %v4113
      %v4138 = vpack.c.b16 %v4116, %v4115
      %v4139 = vpack.c.b16 %v4118, %v4117
      %v4140 = vpack.c.b16 %v4120, %v4119
      %v4141 = vpack.c.b16 %v4122, %v4121
      %v4142 = vpack.c.b16 %v4124, %v4123
      %v4143 = vpack.c.b16 %v4126, %v4125
      %v4144 = vpack.c.b16 %v4128, %v4127
      %v4177 = vunpack.c.l.b16 %v4081
      %v4178 = vunpack.c.l.b16 %v4082
      %v4179 = vunpack.c.l.b16 %v4083
      %v4180 = vunpack.c.l.b16 %v4084
      %v4181 = vunpack.c.l.b16 %v4085
      %v4182 = vunpack.c.l.b16 %v4086
      %v4183 = vunpack.c.l.b16 %v4087
      %v4184 = vunpack.c.l.b16 %v4088
      %v4185 = vunpack.c.l.b16 %v4089
      %v4186 = vunpack.c.l.b16 %v4090
      %v4187 = vunpack.c.l.b16 %v4091
      %v4188 = vunpack.c.l.b16 %v4092
      %v4189 = vunpack.c.l.b16 %v4093
      %v4190 = vunpack.c.l.b16 %v4094
      %v4191 = vunpack.c.l.b16 %v4095
      %v4192 = vunpack.c.l.b16 %v4096
      %v4193 = vpack.c.b16 %v4178, %v4177
      %v4194 = vpack.c.b16 %v4180, %v4179
      %v4195 = vpack.c.b16 %v4182, %v4181
      %v4196 = vpack.c.b16 %v4184, %v4183
      %v4197 = vpack.c.b16 %v4186, %v4185
      %v4198 = vpack.c.b16 %v4188, %v4187
      %v4199 = vpack.c.b16 %v4190, %v4189
      %v4200 = vpack.c.b16 %v4192, %v4191
      %4209 = vmatpush.bf16.msra.mxu0 %v4200
      %4210 = vmatpush.bf16.msra.mxu0 %v4199
      %4211 = vmatpush.bf16.msra.mxu0 %v4198
      %4212 = vmatpush.bf16.msra.mxu0 %v4197
      %4213 = vmatpush.bf16.msra.mxu0 %v4196
      %4214 = vmatpush.bf16.msra.mxu0 %v4195
      %4215 = vmatpush.bf16.msra.mxu0 %v4194
      %4216 = vmatpush.bf16.msra.mxu0 %v4193
      %4217 = vmatmul.bf16.gmra.mxu0 %v4129
      %v4218 = vpop.f32.mrf.mxu0
      %v4219 = vadd.f32 0.0, %v4218
      %v4220 = vpop.f32.mrf.mxu0
      %v4221 = vadd.f32 0.0, %v4220
      %4222 = vmatmul.bf16.gmra.mxu0 %v4130
      %v4223 = vpop.f32.mrf.mxu0
      %v4224 = vadd.f32 0.0, %v4223
      %v4225 = vpop.f32.mrf.mxu0
      %v4226 = vadd.f32 0.0, %v4225
      %4227 = vmatmul.bf16.gmra.mxu0 %v4131
      %v4228 = vpop.f32.mrf.mxu0
      %v4229 = vadd.f32 0.0, %v4228
      %v4230 = vpop.f32.mrf.mxu0
      %v4231 = vadd.f32 0.0, %v4230
      %4232 = vmatmul.bf16.gmra.mxu0 %v4132
      %v4233 = vpop.f32.mrf.mxu0
      %v4234 = vadd.f32 0.0, %v4233
      %v4235 = vpop.f32.mrf.mxu0
      %v4236 = vadd.f32 0.0, %v4235
      %4237 = vmatmul.bf16.gmra.mxu0 %v4133
      %v4238 = vpop.f32.mrf.mxu0
      %v4239 = vadd.f32 0.0, %v4238
      %v4240 = vpop.f32.mrf.mxu0
      %v4241 = vadd.f32 0.0, %v4240
      %4242 = vmatmul.bf16.gmra.mxu0 %v4134
      %v4243 = vpop.f32.mrf.mxu0
      %v4244 = vadd.f32 0.0, %v4243
      %v4245 = vpop.f32.mrf.mxu0
      %v4246 = vadd.f32 0.0, %v4245
      %4247 = vmatmul.bf16.gmra.mxu0 %v4135
      %v4248 = vpop.f32.mrf.mxu0
      %v4249 = vadd.f32 0.0, %v4248
      %v4250 = vpop.f32.mrf.mxu0
      %v4251 = vadd.f32 0.0, %v4250
      %4252 = vmatmul.bf16.gmra.mxu0 %v4136
      %v4253 = vpop.f32.mrf.mxu0
      %v4254 = vadd.f32 0.0, %v4253
      %v4255 = vpop.f32.mrf.mxu0
      %v4256 = vadd.f32 0.0, %v4255
      %4257 = vmatmul.bf16.gmra.mxu0 %v4137
      %v4258 = vpop.f32.mrf.mxu0
      %v4259 = vadd.f32 0.0, %v4258
      %v4260 = vpop.f32.mrf.mxu0
      %v4261 = vadd.f32 0.0, %v4260
      %4262 = vmatmul.bf16.gmra.mxu0 %v4138
      %v4263 = vpop.f32.mrf.mxu0
      %v4264 = vadd.f32 0.0, %v4263
      %v4265 = vpop.f32.mrf.mxu0
      %v4266 = vadd.f32 0.0, %v4265
      %4267 = vmatmul.bf16.gmra.mxu0 %v4139
      %v4268 = vpop.f32.mrf.mxu0
      %v4269 = vadd.f32 0.0, %v4268
      %v4270 = vpop.f32.mrf.mxu0
      %v4271 = vadd.f32 0.0, %v4270
      %4272 = vmatmul.bf16.gmra.mxu0 %v4140
      %v4273 = vpop.f32.mrf.mxu0
      %v4274 = vadd.f32 0.0, %v4273
      %v4275 = vpop.f32.mrf.mxu0
      %v4276 = vadd.f32 0.0, %v4275
      %4277 = vmatmul.bf16.gmra.mxu0 %v4141
      %v4278 = vpop.f32.mrf.mxu0
      %v4279 = vadd.f32 0.0, %v4278
      %v4280 = vpop.f32.mrf.mxu0
      %v4281 = vadd.f32 0.0, %v4280
      %4282 = vmatmul.bf16.gmra.mxu0 %v4142
      %v4283 = vpop.f32.mrf.mxu0
      %v4284 = vadd.f32 0.0, %v4283
      %v4285 = vpop.f32.mrf.mxu0
      %v4286 = vadd.f32 0.0, %v4285
      %4287 = vmatmul.bf16.gmra.mxu0 %v4143
      %v4288 = vpop.f32.mrf.mxu0
      %v4289 = vadd.f32 0.0, %v4288
      %v4290 = vpop.f32.mrf.mxu0
      %v4291 = vadd.f32 0.0, %v4290
      %4292 = vmatmul.bf16.gmra.mxu0 %v4144
      %v4293 = vpop.f32.mrf.mxu0
      %v4294 = vadd.f32 0.0, %v4293
      %v4295 = vpop.f32.mrf.mxu0
      %v4296 = vadd.f32 0.0, %v4295
      %4297 = vdwg.mxu0
      %v4298 = vadd.f32 %v3872, %v4219
      %v4299 = vadd.f32 %v3873, %v4221
      %v4300 = vadd.f32 %v3874, %v4224
      %v4301 = vadd.f32 %v3875, %v4226
      %v4302 = vadd.f32 %v3876, %v4229
      %v4303 = vadd.f32 %v3877, %v4231
      %v4304 = vadd.f32 %v3878, %v4234
      %v4305 = vadd.f32 %v3879, %v4236
      %v4306 = vadd.f32 %v3880, %v4239
      %v4307 = vadd.f32 %v3881, %v4241
      %v4308 = vadd.f32 %v3882, %v4244
      %v4309 = vadd.f32 %v3883, %v4246
      %v4310 = vadd.f32 %v3884, %v4249
      %v4311 = vadd.f32 %v3885, %v4251
      %v4312 = vadd.f32 %v3886, %v4254
      %v4313 = vadd.f32 %v3887, %v4256
      %v4314 = vadd.f32 %v3888, %v4259
      %v4315 = vadd.f32 %v3889, %v4261
      %v4316 = vadd.f32 %v3890, %v4264
      %v4317 = vadd.f32 %v3891, %v4266
      %v4318 = vadd.f32 %v3892, %v4269
      %v4319 = vadd.f32 %v3893, %v4271
      %v4320 = vadd.f32 %v3894, %v4274
      %v4321 = vadd.f32 %v3895, %v4276
      %v4322 = vadd.f32 %v3896, %v4279
      %v4323 = vadd.f32 %v3897, %v4281
      %v4324 = vadd.f32 %v3898, %v4284
      %v4325 = vadd.f32 %v3899, %v4286
      %v4326 = vadd.f32 %v3900, %v4289
      %v4327 = vadd.f32 %v3901, %v4291
      %v4328 = vadd.f32 %v3902, %v4294
      %v4329 = vadd.f32 %v3903, %v4296
      %4330 = vst [vmem:[%s168] sm:$0xff] %v4298
      %4331 = vst [vmem:[%s168 + $0x8] sm:$0xff] %v4299
      %4332 = vst [vmem:[%s168 + $0x10] sm:$0xff] %v4300
      %4333 = vst [vmem:[%s168 + $0x18] sm:$0xff] %v4301
      %4334 = vst [vmem:[%s168 + $0x20] sm:$0xff] %v4302
      %4335 = vst [vmem:[%s168 + $0x28] sm:$0xff] %v4303
      %4336 = vst [vmem:[%s168 + $0x30] sm:$0xff] %v4304
      %4337 = vst [vmem:[%s168 + $0x38] sm:$0xff] %v4305
      %4338 = vst [vmem:[%s168 + $0x40] sm:$0xff] %v4306
      %4339 = vst [vmem:[%s168 + $0x48] sm:$0xff] %v4307
      %4340 = vst [vmem:[%s168 + $0x50] sm:$0xff] %v4308
      %4341 = vst [vmem:[%s168 + $0x58] sm:$0xff] %v4309
      %4342 = vst [vmem:[%s168 + $0x60] sm:$0xff] %v4310
      %4343 = vst [vmem:[%s168 + $0x68] sm:$0xff] %v4311
      %4344 = vst [vmem:[%s168 + $0x70] sm:$0xff] %v4312
      %4345 = vst [vmem:[%s168 + $0x78] sm:$0xff] %v4313
      %4346 = vst [vmem:[%s168 + $0x80] sm:$0xff] %v4314
      %4347 = vst [vmem:[%s168 + $0x88] sm:$0xff] %v4315
      %4348 = vst [vmem:[%s168 + $0x90] sm:$0xff] %v4316
      %4349 = vst [vmem:[%s168 + $0x98] sm:$0xff] %v4317
      %4350 = vst [vmem:[%s168 + $0xa0] sm:$0xff] %v4318
      %4351 = vst [vmem:[%s168 + $0xa8] sm:$0xff] %v4319
      %4352 = vst [vmem:[%s168 + $0xb0] sm:$0xff] %v4320
      %4353 = vst [vmem:[%s168 + $0xb8] sm:$0xff] %v4321
      %4354 = vst [vmem:[%s168 + $0xc0] sm:$0xff] %v4322
      %4355 = vst [vmem:[%s168 + $0xc8] sm:$0xff] %v4323
      %4356 = vst [vmem:[%s168 + $0xd0] sm:$0xff] %v4324
      %4357 = vst [vmem:[%s168 + $0xd8] sm:$0xff] %v4325
      %4358 = vst [vmem:[%s168 + $0xe0] sm:$0xff] %v4326
      %4359 = vst [vmem:[%s168 + $0xe8] sm:$0xff] %v4327
      %4360 = vst [vmem:[%s168 + $0xf0] sm:$0xff] %v4328
      %4361 = vst [vmem:[%s168 + $0xf8] sm:$0xff] %v4329
      %p4362 = scmp.eq.s32.totalorder %s15, 0
      // Predicated region
      $region29: #{_forward.3} parent=27 // pred_check
        %p4363 = pneg %p4362
      $region30: #{_forward.3} parent=27 // pred_check_branch
        %4365 = sbr.rel (%p4363) target = $region32
      $region31: #{_forward.3} parent=27 // pred_region
        %4366 = vst [vmem:[%s3] sm:$0x3] 0.0
      $region32: #{_forward.3} parent=27 // pred_fallthru
        _
      %v4367 = vld [vmem:[%s3] sm:$0x3]
      %v4368 = vadd.f32 %v4298, %v4299
      %v4369 = vadd.f32 %v4368, %v4300
      %v4370 = vadd.f32 %v4369, %v4301
      %v4371 = vadd.f32 %v4370, %v4302
      %v4372 = vadd.f32 %v4371, %v4303
      %v4373 = vadd.f32 %v4372, %v4304
      %v4374 = vadd.f32 %v4373, %v4305
      %v4375 = vadd.f32 %v4374, %v4306
      %v4376 = vadd.f32 %v4375, %v4307
      %v4377 = vadd.f32 %v4376, %v4308
      %v4378 = vadd.f32 %v4377, %v4309
      %v4379 = vadd.f32 %v4378, %v4310
      %v4380 = vadd.f32 %v4379, %v4311
      %v4381 = vadd.f32 %v4380, %v4312
      %v4382 = vadd.f32 %v4381, %v4313
      %v4383 = vadd.f32 %v4382, %v4314
      %v4384 = vadd.f32 %v4383, %v4315
      %v4385 = vadd.f32 %v4384, %v4316
      %v4386 = vadd.f32 %v4385, %v4317
      %v4387 = vadd.f32 %v4386, %v4318
      %v4388 = vadd.f32 %v4387, %v4319
      %v4389 = vadd.f32 %v4388, %v4320
      %v4390 = vadd.f32 %v4389, %v4321
      %v4391 = vadd.f32 %v4390, %v4322
      %v4392 = vadd.f32 %v4391, %v4323
      %v4393 = vadd.f32 %v4392, %v4324
      %v4394 = vadd.f32 %v4393, %v4325
      %v4395 = vadd.f32 %v4394, %v4326
      %v4396 = vadd.f32 %v4395, %v4327
      %v4397 = vadd.f32 %v4396, %v4328
      %v4398 = vadd.f32 %v4397, %v4329
      %v4399 = vrot.slane %v4398, 4
      %v4400 = vadd.f32 %v4398, %v4399
      %v4401 = vrot.slane %v4400, 2
      %v4402 = vadd.f32 %v4400, %v4401
      %v4403 = vrot.slane %v4402, 1
      %v4404 = vadd.f32 %v4402, %v4403
      %v4405 = vmul.f32 %v4298, %v4298
      %v4406 = vmul.f32 %v4299, %v4299
      %v4407 = vmul.f32 %v4300, %v4300
      %v4408 = vmul.f32 %v4301, %v4301
      %v4409 = vmul.f32 %v4302, %v4302
      %v4410 = vmul.f32 %v4303, %v4303
      %v4411 = vmul.f32 %v4304, %v4304
      %v4412 = vmul.f32 %v4305, %v4305
      %v4413 = vmul.f32 %v4306, %v4306
      %v4414 = vmul.f32 %v4307, %v4307
      %v4415 = vmul.f32 %v4308, %v4308
      %v4416 = vmul.f32 %v4309, %v4309
      %v4417 = vmul.f32 %v4310, %v4310
      %v4418 = vmul.f32 %v4311, %v4311
      %v4419 = vmul.f32 %v4312, %v4312
      %v4420 = vmul.f32 %v4313, %v4313
      %v4421 = vmul.f32 %v4314, %v4314
      %v4422 = vmul.f32 %v4315, %v4315
      %v4423 = vmul.f32 %v4316, %v4316
      %v4424 = vmul.f32 %v4317, %v4317
      %v4425 = vmul.f32 %v4318, %v4318
      %v4426 = vmul.f32 %v4319, %v4319
      %v4427 = vmul.f32 %v4320, %v4320
      %v4428 = vmul.f32 %v4321, %v4321
      %v4429 = vmul.f32 %v4322, %v4322
      %v4430 = vmul.f32 %v4323, %v4323
      %v4431 = vmul.f32 %v4324, %v4324
      %v4432 = vmul.f32 %v4325, %v4325
      %v4433 = vmul.f32 %v4326, %v4326
      %v4434 = vmul.f32 %v4327, %v4327
      %v4435 = vmul.f32 %v4328, %v4328
      %v4436 = vmul.f32 %v4329, %v4329
      %v4437 = vadd.f32 %v4405, %v4406
      %v4438 = vadd.f32 %v4437, %v4407
      %v4439 = vadd.f32 %v4438, %v4408
      %v4440 = vadd.f32 %v4439, %v4409
      %v4441 = vadd.f32 %v4440, %v4410
      %v4442 = vadd.f32 %v4441, %v4411
      %v4443 = vadd.f32 %v4442, %v4412
      %v4444 = vadd.f32 %v4443, %v4413
      %v4445 = vadd.f32 %v4444, %v4414
      %v4446 = vadd.f32 %v4445, %v4415
      %v4447 = vadd.f32 %v4446, %v4416
      %v4448 = vadd.f32 %v4447, %v4417
      %v4449 = vadd.f32 %v4448, %v4418
      %v4450 = vadd.f32 %v4449, %v4419
      %v4451 = vadd.f32 %v4450, %v4420
      %v4452 = vadd.f32 %v4451, %v4421
      %v4453 = vadd.f32 %v4452, %v4422
      %v4454 = vadd.f32 %v4453, %v4423
      %v4455 = vadd.f32 %v4454, %v4424
      %v4456 = vadd.f32 %v4455, %v4425
      %v4457 = vadd.f32 %v4456, %v4426
      %v4458 = vadd.f32 %v4457, %v4427
      %v4459 = vadd.f32 %v4458, %v4428
      %v4460 = vadd.f32 %v4459, %v4429
      %v4461 = vadd.f32 %v4460, %v4430
      %v4462 = vadd.f32 %v4461, %v4431
      %v4463 = vadd.f32 %v4462, %v4432
      %v4464 = vadd.f32 %v4463, %v4433
      %v4465 = vadd.f32 %v4464, %v4434
      %v4466 = vadd.f32 %v4465, %v4435
      %v4467 = vadd.f32 %v4466, %v4436
      %v4468 = vrot.slane %v4467, 4
      %v4469 = vadd.f32 %v4467, %v4468
      %v4470 = vrot.slane %v4469, 2
      %v4471 = vadd.f32 %v4469, %v4470
      %v4472 = vrot.slane %v4471, 1
      %v4473 = vadd.f32 %v4471, %v4472
      %vm4474 = vcmask 1040384
      %v4475 = vsel %vm4474, %v4404, %v4473
      %v4476 = vadd.f32 %v4367, %v4475
      %4477 = vst [vmem:[%s3] sm:$0x3] %v4476
      %p4478 = scmp.lt.s32.totalorder %s15, 1
      %s4479 = scalar_select %p4478, %s15, 1
      %s4480 = smul.addr %s4479, 32
      %s4481 = smul.addr %s4480, 8
      %s4482 = scalar_lea.vmem %s2, %s4481
      // Predicated region
      $region33: #{_forward.3} parent=27 // pred_check
        %p4483 = pneg %p80
      $region34: #{_forward.3} parent=27 // pred_check_branch
        %4485 = sbr.rel (%p4483) target = $region36
      $region35: #{_forward.3} parent=27 // pred_region
        _
      $region36: #{_forward.3} parent=27 // pred_fallthru
        _
      // Predicated region
      $region37: #{_forward.3} parent=27 // pred_check
        %p4486 = pneg %p101
      $region38: #{_forward.3} parent=27 // pred_check_branch
        %4488 = sbr.rel (%p4486) target = $region40
      $region39: #{_forward.3} parent=27 // pred_region
        _
      $region40: #{_forward.3} parent=27 // pred_fallthru
        _
      // Predicated region
      $region41: #{_forward.3} parent=27 // pred_check
        %p4489 = pneg %p101
      $region42: #{_forward.3} parent=27 // pred_check_branch
        %4491 = sbr.rel (%p4489) target = $region44
      $region43: #{_forward.3} parent=27 // pred_region
        _
      $region44: #{_forward.3} parent=27 // pred_fallthru
        _
    $region28: #{_forward.3} parent=5 // pred_fallthru
      _
    %p4492 = scmp.le.s32.totalorder 2, %s10
    // Predicated region
    $region45: #{_forward.3} parent=5 // pred_check
      %p4493 = pneg %p4492
    $region46: #{_forward.3} parent=5 // pred_check_branch
      %4495 = sbr.rel (%p4493) target = $region48
    $region47: #{_forward.3} parent=5 // pred_region
      %s4496 = ssub.s32 %s10, 2
      // Predicated region
      $region49: #{_forward.3} parent=47 // pred_check
        %p4497 = pneg %p86
      $region50: #{_forward.3} parent=47 // pred_check_branch
        %4499 = sbr.rel (%p4497) target = $region52
      $region51: #{_forward.3} parent=47 // pred_region
        %p4500 = scmp.lt.s32.totalorder %s16, 1
        %s4501 = scalar_select %p4500, %s16, 1
        %s4502 = smul.addr %s4501, 32
        %s4503 = smul.addr %s4502, 8
        %s4504 = scalar_lea.vmem %s2, %s4503
      $region52: #{_forward.3} parent=47 // pred_fallthru
        _
    $region48: #{_forward.3} parent=5 // pred_fallthru
      _
  $region6: #{_forward.3} parent=0 // loop_footer
    %s14 = sadd.s32 1, %s10
  $region7: #{_forward.3} parent=0 // loop_footer_branch
    %9 = sbr.rel target = $region3
  $region8: #{_forward.3} parent=0 // loop_exit
    _

</llo_original>
